<compile_context>
chip_gen: v7x
topology: tpu7x:2x2x1
jax: 0.10.0
libtpu: 0.0.40
codegen_flags: <defaults>
</compile_context>

<pallas_src>
import math

import numpy as np
import jax
import jax.numpy as jnp
from jax import lax
from jax.experimental import pallas as pl
from jax.experimental.pallas import tpu as pltpu


# ----------------------------------------------------------------------------- helpers
def _gelu(x):
    # exact (erf-based) GELU, matching torch.nn.functional.gelu default
    return 0.5 * x * (1.0 + lax.erf(x * 0.7071067811865476))


def _dft_bases(S, M):
    """Truncated real-DFT analysis/synthesis bases, built in float64 numpy (angle reduced mod S).

    Returns:
      cc   [2M, S]  analysis rows interleaved (re0, im0, re1, im1, ...):  F = cc @ h
      isyn [S, 2M]  synthesis columns blocked [re | im]:  y = isyn @ concat([OR, OI], axis=0)
    """
    s = np.arange(S)
    k = np.arange(M)
    ang_ks = 2.0 * np.pi * ((k[:, None] * s[None, :]) % S).astype(np.float64) / S   # [M, S]
    cr = np.cos(ang_ks)                       # XR = cr @ h
    ci = -np.sin(ang_ks)                      # XI = ci @ h
    cc = np.stack([cr, ci], axis=1).reshape(2 * M, S)      # rows interleaved: r0,i0,r1,i1,...
    coef = np.where((k == 0) | (k == S // 2), 1.0, 2.0)
    ang_sk = ang_ks.T                                       # [S, M]
    irs = coef[None, :] * np.cos(ang_sk) / S                # y = irs @ OR + iis @ OI
    iis = -coef[None, :] * np.sin(ang_sk) / S
    isyn = np.concatenate([irs, iis], axis=1)               # [S, 2M]
    return cc, isyn


def _vmem_limit_bytes():
    cap = 128 * 1024 * 1024
    try:
        cap = int(pltpu.get_tpu_info().vmem_capacity_bytes)
    except Exception:
        pass
    # leave headroom for the rest of the program; never ask for more than 64 MiB scoped
    return int(min(64 * 1024 * 1024, max(32 * 1024 * 1024, cap - 16 * 1024 * 1024)))


# ----------------------------------------------------------------------------- fused Pallas kernel
def _fno1d_kernel(x_ref, bias0_ref, cc_ref, isyn_ref,
                  wr_ref, wi_ref, wlin_ref, blin_ref,
                  fc0_ref, fc1w_ref, fc1b_ref, fc2wt_ref, fc2b_ref, o_ref):
    f32 = jnp.float32
    cdt = cc_ref.dtype                     # compute dtype for MXU operands (f32 or bf16)
    n_layers = wr_ref.shape[0]
    M = wr_ref.shape[1]

    x_cs = x_ref[0]                        # [C, S]

    # lift: fc0 with the grid coordinate folded into a precomputed per-position bias
    h = lax.dot_general(x_cs, fc0_ref[...], (((0,), (0,)), ((), ())),
                        preferred_element_type=f32) + bias0_ref[...]            # [S, W]

    for l in range(n_layers):
        hc = h.astype(cdt)

        # truncated rfft as ONE MXU matmul; rows of F2 are interleaved (re, im) per mode
        F2 = lax.dot_general(cc_ref[...], hc, (((1,), (0,)), ((), ())),
                             preferred_element_type=f32)                        # [2M, Win]
        Fs = F2.reshape(M, 2, F2.shape[1]).astype(cdt)                          # [M, 2, Win]

        # per-mode complex channel mixing as mode-batched MXU contractions
        dnb = (((2,), (2,)), ((0,), (0,)))                                      # contract Win, batch M
        A = lax.dot_general(Fs, wr_ref[l], dnb, preferred_element_type=f32)     # [M, 2, Wout]
        Bm = lax.dot_general(Fs, wi_ref[l], dnb, preferred_element_type=f32)    # [M, 2, Wout]

        # stack (re, im) output spectra along the sublane axis -> ONE synthesis matmul
        o_cat = jnp.concatenate([A[:, 0, :] - Bm[:, 1, :],                      # OR  [M, Wout]
                                 Bm[:, 0, :] + A[:, 1, :]], axis=0)             # OI  [M, Wout]
        o_cat = o_cat.astype(cdt)                                               # [2M, Wout]

        # truncated irfft: single MXU matmul [S, 2M] @ [2M, Wout]
        y = lax.dot_general(isyn_ref[...], o_cat, (((1,), (0,)), ((), ())),
                            preferred_element_type=f32)                         # [S, Wout]

        # 1x1 conv (Conv1d weight layout [out, in]): h @ W^T + b
        y = y + lax.dot_general(hc, wlin_ref[l], (((1,), (1,)), ((), ())),
                                preferred_element_type=f32) + blin_ref[l]       # [S, Wout]

        h = _gelu(y) if l < n_layers - 1 else y

    # projection head: fc1 -> gelu -> fc2 ; result written channels-major [out, S] (lane-dense S)
    hh = lax.dot_general(h.astype(cdt), fc1w_ref[...], (((1,), (0,)), ((), ())),
                         preferred_element_type=f32) + fc1b_ref[...]            # [S, 128]
    hh = _gelu(hh)
    out = lax.dot_general(fc2wt_ref[...], hh.astype(cdt), (((1,), (1,)), ((), ())),
                          preferred_element_type=f32) + fc2b_ref[...]           # [out, S]
    o_ref[0] = out.astype(o_ref.dtype)


# ----------------------------------------------------------------------------- wrappers
def prepare_params(params, modes, S, compute_dtype=jnp.bfloat16):
    """One-time parameter / DFT-basis preparation (hoisted out of the forward pass)."""
    assert modes <= S // 2 + 1
    cdt = compute_dtype
    fc0_w = params["fc0_w"]                                  # [C+1, W]
    C = fc0_w.shape[0] - 1

    cc, isyn = _dft_bases(S, modes)
    grid = np.linspace(0.0, 1.0, S).astype(np.float64)       # same grid as the torch module

    prep = {
        "fc0_wc": fc0_w[:C].astype(jnp.float32),                                        # [C, W]
        "bias0": (jnp.asarray(grid[:, None], jnp.float32) * fc0_w[C][None, :]
                  + params["fc0_b"]).astype(jnp.float32),                               # [S, W]
        "cc": jnp.asarray(cc, cdt),                                                     # [2M, S]
        "isyn": jnp.asarray(isyn, cdt),                                                 # [S, 2M]
        "wr": jnp.stack([jnp.transpose(params[f"spec{l}_wr"], (2, 1, 0))
                         for l in range(4)]).astype(cdt),                               # [4,M,Wo,Wi]
        "wi": jnp.stack([jnp.transpose(params[f"spec{l}_wi"], (2, 1, 0))
                         for l in range(4)]).astype(cdt),                               # [4,M,Wo,Wi]
        "wlin": jnp.stack([params[f"w{l}_w"] for l in range(4)]).astype(cdt),           # [4,Wo,Wi]
        "blin": jnp.stack([params[f"w{l}_b"].T for l in range(4)]).astype(jnp.float32), # [4,1,W]
        "fc1_w": params["fc1_w"].astype(cdt),                                           # [W, 128]
        "fc1_b": params["fc1_b"].astype(jnp.float32),                                   # [1, 128]
        "fc2_wt": params["fc2_w"].T.astype(cdt),                                        # [out, 128]
        "fc2_b": params["fc2_b"].T.astype(jnp.float32),                                 # [out, 1]
    }
    return prep


def _const_spec(arr):
    n = arr.ndim
    return pl.BlockSpec(tuple(arr.shape), lambda b, _n=n: (0,) * _n)


def fno1d_forward(x, prep):
    """x: [B, input_size, S] float32  ->  [B, output_size, S] float32."""
    B, C, S = x.shape
    out_size = prep["fc2_wt"].shape[0]

    in_specs = [
        pl.BlockSpec((1, C, S), lambda b: (b, 0, 0)),
        _const_spec(prep["bias0"]), _const_spec(prep["cc"]), _const_spec(prep["isyn"]),
        _const_spec(prep["wr"]), _const_spec(prep["wi"]),
        _const_spec(prep["wlin"]), _const_spec(prep["blin"]),
        _const_spec(prep["fc0_wc"]), _const_spec(prep["fc1_w"]), _const_spec(prep["fc1_b"]),
        _const_spec(prep["fc2_wt"]), _const_spec(prep["fc2_b"]),
    ]
    return pl.pallas_call(
        _fno1d_kernel,
        out_shape=jax.ShapeDtypeStruct((B, out_size, S), jnp.float32),
        grid=(B,),
        in_specs=in_specs,
        out_specs=pl.BlockSpec((1, out_size, S), lambda b: (b, 0, 0)),
        compiler_params=pltpu.CompilerParams(
            dimension_semantics=("parallel",),
            vmem_limit_bytes=_vmem_limit_bytes()),
    )(x, prep["bias0"], prep["cc"], prep["isyn"],
      prep["wr"], prep["wi"], prep["wlin"], prep["blin"],
      prep["fc0_wc"], prep["fc1_w"], prep["fc1_b"], prep["fc2_wt"], prep["fc2_b"])


# ----------------------------------------------------------------------------- pure-JAX reference
def fno1d_reference(x, params, modes):
    B, C, S = x.shape
    xt = jnp.transpose(x, (0, 2, 1))
    grid = jnp.broadcast_to(
        jnp.linspace(0.0, 1.0, S, dtype=jnp.float32).reshape(1, S, 1), (B, S, 1))
    xt = jnp.concatenate([xt, grid], axis=-1)
    h = xt @ params["fc0_w"] + params["fc0_b"]
    h = jnp.transpose(h, (0, 2, 1))                                        # [B, W, S]
    for l in range(4):
        w_c = params[f"spec{l}_wr"] + 1j * params[f"spec{l}_wi"]           # [Win, Wout, M]
        x_ft = jnp.fft.rfft(h, axis=-1)
        out_ft = jnp.zeros((B, h.shape[1], S // 2 + 1), dtype=jnp.complex64)
        out_ft = out_ft.at[:, :, :modes].set(
            jnp.einsum("bix,iox->box", x_ft[:, :, :modes], w_c))
        y1 = jnp.fft.irfft(out_ft, n=S, axis=-1)
        y2 = jnp.einsum("oi,bis->bos", params[f"w{l}_w"], h) + params[f"w{l}_b"][None]
        h = y1 + y2
        if l < 3:
            h = _gelu(h)
    h = jnp.transpose(h, (0, 2, 1))
    h = _gelu(h @ params["fc1_w"] + params["fc1_b"])
    h = h @ params["fc2_w"] + params["fc2_b"]
    return jnp.transpose(h, (0, 2, 1))


# ----------------------------------------------------------------------------- params
def init_params(key, input_size, width, modes, output_size):
    ks = iter(jax.random.split(key, 40))
    u = lambda k, shp, a: jax.random.uniform(k, shp, jnp.float32, -a, a)
    p = {}
    a0 = 1.0 / math.sqrt(input_size + 1)
    p["fc0_w"] = u(next(ks), (input_size + 1, width), a0)
    p["fc0_b"] = u(next(ks), (1, width), a0)
    spec_scale = 1.0 / (width * width)
    aw = 1.0 / math.sqrt(width)
    for l in range(4):
        p[f"spec{l}_wr"] = jax.random.uniform(next(ks), (width, width, modes),
                                              jnp.float32, 0.0, spec_scale)
        p[f"spec{l}_wi"] = jax.random.uniform(next(ks), (width, width, modes),
                                              jnp.float32, 0.0, spec_scale)
        p[f"w{l}_w"] = u(next(ks), (width, width), aw)       # Conv1d(k=1) weight [out, in]
        p[f"w{l}_b"] = u(next(ks), (width, 1), aw)
    a1 = 1.0 / math.sqrt(width)
    p["fc1_w"] = u(next(ks), (width, 128), a1)
    p["fc1_b"] = u(next(ks), (1, 128), a1)
    a2 = 1.0 / math.sqrt(128)
    p["fc2_w"] = u(next(ks), (128, output_size), a2)
    p["fc2_b"] = u(next(ks), (1, output_size), a2)
    return p


# ----------------------------------------------------------------------------- main
if __name__ == "__main__":
    B, input_size, S = 2, 4, 16
    modes, width, output_size = 8, 32, 1

    key = jax.random.PRNGKey(0)
    k_params, k_x = jax.random.split(key)
    params = init_params(k_params, input_size, width, modes, output_size)
    x = jax.random.normal(k_x, (B, input_size, S), dtype=jnp.float32)

    ref = jax.block_until_ready(fno1d_reference(x, params, modes))
    scale = float(jnp.max(jnp.abs(ref))) + 1e-6

    # f32 path (tight correctness check)
    prep_f32 = prepare_params(params, modes, S, compute_dtype=jnp.float32)
    out_f32 = jax.block_until_ready(fno1d_forward(x, prep_f32))
    assert out_f32.shape == (B, output_size, S)
    err32 = float(jnp.max(jnp.abs(out_f32 - ref)))
    assert err32 <= 1e-3 * scale, f"f32 mismatch: max abs err {err32} vs scale {scale}"

    # bf16-MXU-operand path (performance configuration; f32 accumulation + f32 element-wise math)
    prep_bf16 = prepare_params(params, modes, S, compute_dtype=jnp.bfloat16)
    out_bf16 = jax.block_until_ready(fno1d_forward(x, prep_bf16))
    err16 = float(jnp.max(jnp.abs(out_bf16 - ref)))
    assert err16 <= 3e-2 * scale, f"bf16 mismatch: max abs err {err16} vs scale {scale}"

    print("KERNEL_OK")
</pallas_src>

<mosaic_0001>
module attributes {stable_mosaic.version = 11 : i64} {
  func.func @_fno1d_kernel(%arg0: i32, %arg1: memref<1x4x16xf32, #tpu.memory_space<vmem>>, %arg2: memref<16x32xf32, #tpu.memory_space<vmem>>, %arg3: memref<16x16xf32, #tpu.memory_space<vmem>>, %arg4: memref<16x16xf32, #tpu.memory_space<vmem>>, %arg5: memref<4x8x32x32xf32, #tpu.memory_space<vmem>>, %arg6: memref<4x8x32x32xf32, #tpu.memory_space<vmem>>, %arg7: memref<4x32x32xf32, #tpu.memory_space<vmem>>, %arg8: memref<4x1x32xf32, #tpu.memory_space<vmem>>, %arg9: memref<4x32xf32, #tpu.memory_space<vmem>>, %arg10: memref<32x128xf32, #tpu.memory_space<vmem>>, %arg11: memref<1x128xf32, #tpu.memory_space<vmem>>, %arg12: memref<1x128xf32, #tpu.memory_space<vmem>>, %arg13: memref<1x1xf32, #tpu.memory_space<vmem>>, %arg14: memref<1x1x16xf32, #tpu.memory_space<vmem>>) attributes {dimension_semantics = [#tpu.dimension_semantics<parallel>], iteration_bounds = array<i64: 2>, scalar_prefetch = 0 : i64, scratch_operands = 0 : i64, tpu.core_type = #tpu.core_type<tc>, window_params = [{transform_indices = @transform_0, window_bounds = array<i64: 1, 4, 16>}, {pipeline_mode = #tpu.pipeline_mode<synchronous>, transform_indices = @transform_1, window_bounds = array<i64: 16, 32>}, {pipeline_mode = #tpu.pipeline_mode<synchronous>, transform_indices = @transform_2, window_bounds = array<i64: 16, 16>}, {pipeline_mode = #tpu.pipeline_mode<synchronous>, transform_indices = @transform_3, window_bounds = array<i64: 16, 16>}, {pipeline_mode = #tpu.pipeline_mode<synchronous>, transform_indices = @transform_4, window_bounds = array<i64: 4, 8, 32, 32>}, {pipeline_mode = #tpu.pipeline_mode<synchronous>, transform_indices = @transform_5, window_bounds = array<i64: 4, 8, 32, 32>}, {pipeline_mode = #tpu.pipeline_mode<synchronous>, transform_indices = @transform_6, window_bounds = array<i64: 4, 32, 32>}, {pipeline_mode = #tpu.pipeline_mode<synchronous>, transform_indices = @transform_7, window_bounds = array<i64: 4, 1, 32>}, {pipeline_mode = #tpu.pipeline_mode<synchronous>, transform_indices = @transform_8, window_bounds = array<i64: 4, 32>}, {pipeline_mode = #tpu.pipeline_mode<synchronous>, transform_indices = @transform_9, window_bounds = array<i64: 32, 128>}, {pipeline_mode = #tpu.pipeline_mode<synchronous>, transform_indices = @transform_10, window_bounds = array<i64: 1, 128>}, {pipeline_mode = #tpu.pipeline_mode<synchronous>, transform_indices = @transform_11, window_bounds = array<i64: 1, 128>}, {pipeline_mode = #tpu.pipeline_mode<synchronous>, transform_indices = @transform_12, window_bounds = array<i64: 1, 1>}, {transform_indices = @transform_13, window_bounds = array<i64: 1, 1, 16>}]} {
    %c0 = arith.constant 0 : index
    %c0_0 = arith.constant 0 : index
    %c0_1 = arith.constant 0 : index
    %0 = vector.load %arg1[%c0, %c0_0, %c0_1] : memref<1x4x16xf32, #tpu.memory_space<vmem>>, vector<1x4x16xf32>
    %1 = vector.shape_cast %0 : vector<1x4x16xf32> to vector<4x16xf32>
    %c0_2 = arith.constant 0 : index
    %c0_3 = arith.constant 0 : index
    %2 = vector.load %arg9[%c0_2, %c0_3] : memref<4x32xf32, #tpu.memory_space<vmem>>, vector<4x32xf32>
    %cst = arith.constant dense<0.000000e+00> : vector<16x32xf32>
    %3 = tpu.matmul %1, %2, %cst {dimension_numbers = #tpu.dot_dimension_numbers<[0], [0], [1], [1], [0, 1, 1, 1], [], []>} : vector<4x16xf32>, vector<4x32xf32>, vector<16x32xf32> -> vector<16x32xf32>
    %c0_4 = arith.constant 0 : index
    %c0_5 = arith.constant 0 : index
    %4 = vector.load %arg2[%c0_4, %c0_5] : memref<16x32xf32, #tpu.memory_space<vmem>>, vector<16x32xf32>
    %5 = arith.addf %3, %4 : vector<16x32xf32>
    %c0_6 = arith.constant 0 : index
    %c0_7 = arith.constant 0 : index
    %6 = vector.load %arg3[%c0_6, %c0_7] : memref<16x16xf32, #tpu.memory_space<vmem>>, vector<16x16xf32>
    %cst_8 = arith.constant dense<0.000000e+00> : vector<16x32xf32>
    %7 = tpu.matmul %6, %5, %cst_8 {dimension_numbers = #tpu.dot_dimension_numbers<[1], [0], [0], [1], [0, 0, 1, 1], [], []>} : vector<16x16xf32>, vector<16x32xf32>, vector<16x32xf32> -> vector<16x32xf32>
    %8 = vector.shape_cast %7 : vector<16x32xf32> to vector<8x2x32xf32>
    %c0_9 = arith.constant 0 : index
    %c0_10 = arith.constant 0 : index
    %c0_11 = arith.constant 0 : index
    %c0_12 = arith.constant 0 : index
    %9 = vector.load %arg5[%c0_9, %c0_10, %c0_11, %c0_12] : memref<4x8x32x32xf32, #tpu.memory_space<vmem>>, vector<1x8x32x32xf32>
    %10 = vector.shape_cast %9 : vector<1x8x32x32xf32> to vector<8x32x32xf32>
    %cst_13 = arith.constant dense<0.000000e+00> : vector<8x2x32xf32>
    %11 = tpu.matmul %8, %10, %cst_13 {dimension_numbers = #tpu.dot_dimension_numbers<[2], [2], [1], [1], [0, 0, 0, 1, 1, 1], [0], [0]>} : vector<8x2x32xf32>, vector<8x32x32xf32>, vector<8x2x32xf32> -> vector<8x2x32xf32>
    %c0_14 = arith.constant 0 : index
    %c0_15 = arith.constant 0 : index
    %c0_16 = arith.constant 0 : index
    %c0_17 = arith.constant 0 : index
    %12 = vector.load %arg6[%c0_14, %c0_15, %c0_16, %c0_17] : memref<4x8x32x32xf32, #tpu.memory_space<vmem>>, vector<1x8x32x32xf32>
    %13 = vector.shape_cast %12 : vector<1x8x32x32xf32> to vector<8x32x32xf32>
    %cst_18 = arith.constant dense<0.000000e+00> : vector<8x2x32xf32>
    %14 = tpu.matmul %8, %13, %cst_18 {dimension_numbers = #tpu.dot_dimension_numbers<[2], [2], [1], [1], [0, 0, 0, 1, 1, 1], [0], [0]>} : vector<8x2x32xf32>, vector<8x32x32xf32>, vector<8x2x32xf32> -> vector<8x2x32xf32>
    %15 = vector.extract_strided_slice %11 {offsets = [0, 0, 0], sizes = [8, 1, 32], strides = [1, 1, 1]} : vector<8x2x32xf32> to vector<8x1x32xf32>
    %16 = vector.shape_cast %15 : vector<8x1x32xf32> to vector<8x32xf32>
    %17 = vector.extract_strided_slice %14 {offsets = [0, 1, 0], sizes = [8, 1, 32], strides = [1, 1, 1]} : vector<8x2x32xf32> to vector<8x1x32xf32>
    %18 = vector.shape_cast %17 : vector<8x1x32xf32> to vector<8x32xf32>
    %19 = arith.subf %16, %18 : vector<8x32xf32>
    %20 = vector.extract_strided_slice %14 {offsets = [0, 0, 0], sizes = [8, 1, 32], strides = [1, 1, 1]} : vector<8x2x32xf32> to vector<8x1x32xf32>
    %21 = vector.shape_cast %20 : vector<8x1x32xf32> to vector<8x32xf32>
    %22 = vector.extract_strided_slice %11 {offsets = [0, 1, 0], sizes = [8, 1, 32], strides = [1, 1, 1]} : vector<8x2x32xf32> to vector<8x1x32xf32>
    %23 = vector.shape_cast %22 : vector<8x1x32xf32> to vector<8x32xf32>
    %24 = arith.addf %21, %23 : vector<8x32xf32>
    %25 = tpu.concatenate %19, %24 in 0 : vector<8x32xf32>, vector<8x32xf32> -> vector<16x32xf32>
    %c0_19 = arith.constant 0 : index
    %c0_20 = arith.constant 0 : index
    %26 = vector.load %arg4[%c0_19, %c0_20] : memref<16x16xf32, #tpu.memory_space<vmem>>, vector<16x16xf32>
    %cst_21 = arith.constant dense<0.000000e+00> : vector<16x32xf32>
    %27 = tpu.matmul %26, %25, %cst_21 {dimension_numbers = #tpu.dot_dimension_numbers<[1], [0], [0], [1], [0, 0, 1, 1], [], []>} : vector<16x16xf32>, vector<16x32xf32>, vector<16x32xf32> -> vector<16x32xf32>
    %c0_22 = arith.constant 0 : index
    %c0_23 = arith.constant 0 : index
    %c0_24 = arith.constant 0 : index
    %28 = vector.load %arg7[%c0_22, %c0_23, %c0_24] : memref<4x32x32xf32, #tpu.memory_space<vmem>>, vector<1x32x32xf32>
    %29 = vector.shape_cast %28 : vector<1x32x32xf32> to vector<32x32xf32>
    %cst_25 = arith.constant dense<0.000000e+00> : vector<16x32xf32>
    %30 = tpu.matmul %5, %29, %cst_25 {dimension_numbers = #tpu.dot_dimension_numbers<[1], [1], [0], [0], [0, 0, 1, 0], [], []>} : vector<16x32xf32>, vector<32x32xf32>, vector<16x32xf32> -> vector<16x32xf32>
    %31 = arith.addf %27, %30 : vector<16x32xf32>
    %c0_26 = arith.constant 0 : index
    %c0_27 = arith.constant 0 : index
    %c0_28 = arith.constant 0 : index
    %32 = vector.load %arg8[%c0_26, %c0_27, %c0_28] : memref<4x1x32xf32, #tpu.memory_space<vmem>>, vector<1x1x32xf32>
    %33 = vector.shape_cast %32 : vector<1x1x32xf32> to vector<1x32xf32>
    %34 = vector.broadcast %33 : vector<1x32xf32> to vector<16x32xf32>
    %35 = arith.addf %31, %34 : vector<16x32xf32>
    %cst_29 = arith.constant 5.000000e-01 : f32
    %36 = vector.broadcast %cst_29 : f32 to vector<16x32xf32>
    %37 = arith.mulf %36, %35 : vector<16x32xf32>
    %cst_30 = arith.constant 0.707106769 : f32
    %38 = vector.broadcast %cst_30 : f32 to vector<16x32xf32>
    %39 = arith.mulf %35, %38 : vector<16x32xf32>
    %40 = math.erf %39 : vector<16x32xf32>
    %cst_31 = arith.constant 1.000000e+00 : f32
    %41 = vector.broadcast %cst_31 : f32 to vector<16x32xf32>
    %42 = arith.addf %41, %40 : vector<16x32xf32>
    %43 = arith.mulf %37, %42 : vector<16x32xf32>
    %c0_32 = arith.constant 0 : index
    %c0_33 = arith.constant 0 : index
    %44 = vector.load %arg3[%c0_32, %c0_33] : memref<16x16xf32, #tpu.memory_space<vmem>>, vector<16x16xf32>
    %cst_34 = arith.constant dense<0.000000e+00> : vector<16x32xf32>
    %45 = tpu.matmul %44, %43, %cst_34 {dimension_numbers = #tpu.dot_dimension_numbers<[1], [0], [0], [1], [0, 0, 1, 1], [], []>} : vector<16x16xf32>, vector<16x32xf32>, vector<16x32xf32> -> vector<16x32xf32>
    %46 = vector.shape_cast %45 : vector<16x32xf32> to vector<8x2x32xf32>
    %c1 = arith.constant 1 : index
    %c0_35 = arith.constant 0 : index
    %c0_36 = arith.constant 0 : index
    %c0_37 = arith.constant 0 : index
    %47 = vector.load %arg5[%c1, %c0_35, %c0_36, %c0_37] : memref<4x8x32x32xf32, #tpu.memory_space<vmem>>, vector<1x8x32x32xf32>
    %48 = vector.shape_cast %47 : vector<1x8x32x32xf32> to vector<8x32x32xf32>
    %cst_38 = arith.constant dense<0.000000e+00> : vector<8x2x32xf32>
    %49 = tpu.matmul %46, %48, %cst_38 {dimension_numbers = #tpu.dot_dimension_numbers<[2], [2], [1], [1], [0, 0, 0, 1, 1, 1], [0], [0]>} : vector<8x2x32xf32>, vector<8x32x32xf32>, vector<8x2x32xf32> -> vector<8x2x32xf32>
    %c1_39 = arith.constant 1 : index
    %c0_40 = arith.constant 0 : index
    %c0_41 = arith.constant 0 : index
    %c0_42 = arith.constant 0 : index
    %50 = vector.load %arg6[%c1_39, %c0_40, %c0_41, %c0_42] : memref<4x8x32x32xf32, #tpu.memory_space<vmem>>, vector<1x8x32x32xf32>
    %51 = vector.shape_cast %50 : vector<1x8x32x32xf32> to vector<8x32x32xf32>
    %cst_43 = arith.constant dense<0.000000e+00> : vector<8x2x32xf32>
    %52 = tpu.matmul %46, %51, %cst_43 {dimension_numbers = #tpu.dot_dimension_numbers<[2], [2], [1], [1], [0, 0, 0, 1, 1, 1], [0], [0]>} : vector<8x2x32xf32>, vector<8x32x32xf32>, vector<8x2x32xf32> -> vector<8x2x32xf32>
    %53 = vector.extract_strided_slice %49 {offsets = [0, 0, 0], sizes = [8, 1, 32], strides = [1, 1, 1]} : vector<8x2x32xf32> to vector<8x1x32xf32>
    %54 = vector.shape_cast %53 : vector<8x1x32xf32> to vector<8x32xf32>
    %55 = vector.extract_strided_slice %52 {offsets = [0, 1, 0], sizes = [8, 1, 32], strides = [1, 1, 1]} : vector<8x2x32xf32> to vector<8x1x32xf32>
    %56 = vector.shape_cast %55 : vector<8x1x32xf32> to vector<8x32xf32>
    %57 = arith.subf %54, %56 : vector<8x32xf32>
    %58 = vector.extract_strided_slice %52 {offsets = [0, 0, 0], sizes = [8, 1, 32], strides = [1, 1, 1]} : vector<8x2x32xf32> to vector<8x1x32xf32>
    %59 = vector.shape_cast %58 : vector<8x1x32xf32> to vector<8x32xf32>
    %60 = vector.extract_strided_slice %49 {offsets = [0, 1, 0], sizes = [8, 1, 32], strides = [1, 1, 1]} : vector<8x2x32xf32> to vector<8x1x32xf32>
    %61 = vector.shape_cast %60 : vector<8x1x32xf32> to vector<8x32xf32>
    %62 = arith.addf %59, %61 : vector<8x32xf32>
    %63 = tpu.concatenate %57, %62 in 0 : vector<8x32xf32>, vector<8x32xf32> -> vector<16x32xf32>
    %c0_44 = arith.constant 0 : index
    %c0_45 = arith.constant 0 : index
    %64 = vector.load %arg4[%c0_44, %c0_45] : memref<16x16xf32, #tpu.memory_space<vmem>>, vector<16x16xf32>
    %cst_46 = arith.constant dense<0.000000e+00> : vector<16x32xf32>
    %65 = tpu.matmul %64, %63, %cst_46 {dimension_numbers = #tpu.dot_dimension_numbers<[1], [0], [0], [1], [0, 0, 1, 1], [], []>} : vector<16x16xf32>, vector<16x32xf32>, vector<16x32xf32> -> vector<16x32xf32>
    %c1_47 = arith.constant 1 : index
    %c0_48 = arith.constant 0 : index
    %c0_49 = arith.constant 0 : index
    %66 = vector.load %arg7[%c1_47, %c0_48, %c0_49] : memref<4x32x32xf32, #tpu.memory_space<vmem>>, vector<1x32x32xf32>
    %67 = vector.shape_cast %66 : vector<1x32x32xf32> to vector<32x32xf32>
    %cst_50 = arith.constant dense<0.000000e+00> : vector<16x32xf32>
    %68 = tpu.matmul %43, %67, %cst_50 {dimension_numbers = #tpu.dot_dimension_numbers<[1], [1], [0], [0], [0, 0, 1, 0], [], []>} : vector<16x32xf32>, vector<32x32xf32>, vector<16x32xf32> -> vector<16x32xf32>
    %69 = arith.addf %65, %68 : vector<16x32xf32>
    %c1_51 = arith.constant 1 : index
    %c0_52 = arith.constant 0 : index
    %c0_53 = arith.constant 0 : index
    %70 = vector.load %arg8[%c1_51, %c0_52, %c0_53] : memref<4x1x32xf32, #tpu.memory_space<vmem>>, vector<1x1x32xf32>
    %71 = vector.shape_cast %70 : vector<1x1x32xf32> to vector<1x32xf32>
    %72 = vector.broadcast %71 : vector<1x32xf32> to vector<16x32xf32>
    %73 = arith.addf %69, %72 : vector<16x32xf32>
    %cst_54 = arith.constant 5.000000e-01 : f32
    %74 = vector.broadcast %cst_54 : f32 to vector<16x32xf32>
    %75 = arith.mulf %74, %73 : vector<16x32xf32>
    %cst_55 = arith.constant 0.707106769 : f32
    %76 = vector.broadcast %cst_55 : f32 to vector<16x32xf32>
    %77 = arith.mulf %73, %76 : vector<16x32xf32>
    %78 = math.erf %77 : vector<16x32xf32>
    %cst_56 = arith.constant 1.000000e+00 : f32
    %79 = vector.broadcast %cst_56 : f32 to vector<16x32xf32>
    %80 = arith.addf %79, %78 : vector<16x32xf32>
    %81 = arith.mulf %75, %80 : vector<16x32xf32>
    %c0_57 = arith.constant 0 : index
    %c0_58 = arith.constant 0 : index
    %82 = vector.load %arg3[%c0_57, %c0_58] : memref<16x16xf32, #tpu.memory_space<vmem>>, vector<16x16xf32>
    %cst_59 = arith.constant dense<0.000000e+00> : vector<16x32xf32>
    %83 = tpu.matmul %82, %81, %cst_59 {dimension_numbers = #tpu.dot_dimension_numbers<[1], [0], [0], [1], [0, 0, 1, 1], [], []>} : vector<16x16xf32>, vector<16x32xf32>, vector<16x32xf32> -> vector<16x32xf32>
    %84 = vector.shape_cast %83 : vector<16x32xf32> to vector<8x2x32xf32>
    %c2 = arith.constant 2 : index
    %c0_60 = arith.constant 0 : index
    %c0_61 = arith.constant 0 : index
    %c0_62 = arith.constant 0 : index
    %85 = vector.load %arg5[%c2, %c0_60, %c0_61, %c0_62] : memref<4x8x32x32xf32, #tpu.memory_space<vmem>>, vector<1x8x32x32xf32>
    %86 = vector.shape_cast %85 : vector<1x8x32x32xf32> to vector<8x32x32xf32>
    %cst_63 = arith.constant dense<0.000000e+00> : vector<8x2x32xf32>
    %87 = tpu.matmul %84, %86, %cst_63 {dimension_numbers = #tpu.dot_dimension_numbers<[2], [2], [1], [1], [0, 0, 0, 1, 1, 1], [0], [0]>} : vector<8x2x32xf32>, vector<8x32x32xf32>, vector<8x2x32xf32> -> vector<8x2x32xf32>
    %c2_64 = arith.constant 2 : index
    %c0_65 = arith.constant 0 : index
    %c0_66 = arith.constant 0 : index
    %c0_67 = arith.constant 0 : index
    %88 = vector.load %arg6[%c2_64, %c0_65, %c0_66, %c0_67] : memref<4x8x32x32xf32, #tpu.memory_space<vmem>>, vector<1x8x32x32xf32>
    %89 = vector.shape_cast %88 : vector<1x8x32x32xf32> to vector<8x32x32xf32>
    %cst_68 = arith.constant dense<0.000000e+00> : vector<8x2x32xf32>
    %90 = tpu.matmul %84, %89, %cst_68 {dimension_numbers = #tpu.dot_dimension_numbers<[2], [2], [1], [1], [0, 0, 0, 1, 1, 1], [0], [0]>} : vector<8x2x32xf32>, vector<8x32x32xf32>, vector<8x2x32xf32> -> vector<8x2x32xf32>
    %91 = vector.extract_strided_slice %87 {offsets = [0, 0, 0], sizes = [8, 1, 32], strides = [1, 1, 1]} : vector<8x2x32xf32> to vector<8x1x32xf32>
    %92 = vector.shape_cast %91 : vector<8x1x32xf32> to vector<8x32xf32>
    %93 = vector.extract_strided_slice %90 {offsets = [0, 1, 0], sizes = [8, 1, 32], strides = [1, 1, 1]} : vector<8x2x32xf32> to vector<8x1x32xf32>
    %94 = vector.shape_cast %93 : vector<8x1x32xf32> to vector<8x32xf32>
    %95 = arith.subf %92, %94 : vector<8x32xf32>
    %96 = vector.extract_strided_slice %90 {offsets = [0, 0, 0], sizes = [8, 1, 32], strides = [1, 1, 1]} : vector<8x2x32xf32> to vector<8x1x32xf32>
    %97 = vector.shape_cast %96 : vector<8x1x32xf32> to vector<8x32xf32>
    %98 = vector.extract_strided_slice %87 {offsets = [0, 1, 0], sizes = [8, 1, 32], strides = [1, 1, 1]} : vector<8x2x32xf32> to vector<8x1x32xf32>
    %99 = vector.shape_cast %98 : vector<8x1x32xf32> to vector<8x32xf32>
    %100 = arith.addf %97, %99 : vector<8x32xf32>
    %101 = tpu.concatenate %95, %100 in 0 : vector<8x32xf32>, vector<8x32xf32> -> vector<16x32xf32>
    %c0_69 = arith.constant 0 : index
    %c0_70 = arith.constant 0 : index
    %102 = vector.load %arg4[%c0_69, %c0_70] : memref<16x16xf32, #tpu.memory_space<vmem>>, vector<16x16xf32>
    %cst_71 = arith.constant dense<0.000000e+00> : vector<16x32xf32>
    %103 = tpu.matmul %102, %101, %cst_71 {dimension_numbers = #tpu.dot_dimension_numbers<[1], [0], [0], [1], [0, 0, 1, 1], [], []>} : vector<16x16xf32>, vector<16x32xf32>, vector<16x32xf32> -> vector<16x32xf32>
    %c2_72 = arith.constant 2 : index
    %c0_73 = arith.constant 0 : index
    %c0_74 = arith.constant 0 : index
    %104 = vector.load %arg7[%c2_72, %c0_73, %c0_74] : memref<4x32x32xf32, #tpu.memory_space<vmem>>, vector<1x32x32xf32>
    %105 = vector.shape_cast %104 : vector<1x32x32xf32> to vector<32x32xf32>
    %cst_75 = arith.constant dense<0.000000e+00> : vector<16x32xf32>
    %106 = tpu.matmul %81, %105, %cst_75 {dimension_numbers = #tpu.dot_dimension_numbers<[1], [1], [0], [0], [0, 0, 1, 0], [], []>} : vector<16x32xf32>, vector<32x32xf32>, vector<16x32xf32> -> vector<16x32xf32>
    %107 = arith.addf %103, %106 : vector<16x32xf32>
    %c2_76 = arith.constant 2 : index
    %c0_77 = arith.constant 0 : index
    %c0_78 = arith.constant 0 : index
    %108 = vector.load %arg8[%c2_76, %c0_77, %c0_78] : memref<4x1x32xf32, #tpu.memory_space<vmem>>, vector<1x1x32xf32>
    %109 = vector.shape_cast %108 : vector<1x1x32xf32> to vector<1x32xf32>
    %110 = vector.broadcast %109 : vector<1x32xf32> to vector<16x32xf32>
    %111 = arith.addf %107, %110 : vector<16x32xf32>
    %cst_79 = arith.constant 5.000000e-01 : f32
    %112 = vector.broadcast %cst_79 : f32 to vector<16x32xf32>
    %113 = arith.mulf %112, %111 : vector<16x32xf32>
    %cst_80 = arith.constant 0.707106769 : f32
    %114 = vector.broadcast %cst_80 : f32 to vector<16x32xf32>
    %115 = arith.mulf %111, %114 : vector<16x32xf32>
    %116 = math.erf %115 : vector<16x32xf32>
    %cst_81 = arith.constant 1.000000e+00 : f32
    %117 = vector.broadcast %cst_81 : f32 to vector<16x32xf32>
    %118 = arith.addf %117, %116 : vector<16x32xf32>
    %119 = arith.mulf %113, %118 : vector<16x32xf32>
    %c0_82 = arith.constant 0 : index
    %c0_83 = arith.constant 0 : index
    %120 = vector.load %arg3[%c0_82, %c0_83] : memref<16x16xf32, #tpu.memory_space<vmem>>, vector<16x16xf32>
    %cst_84 = arith.constant dense<0.000000e+00> : vector<16x32xf32>
    %121 = tpu.matmul %120, %119, %cst_84 {dimension_numbers = #tpu.dot_dimension_numbers<[1], [0], [0], [1], [0, 0, 1, 1], [], []>} : vector<16x16xf32>, vector<16x32xf32>, vector<16x32xf32> -> vector<16x32xf32>
    %122 = vector.shape_cast %121 : vector<16x32xf32> to vector<8x2x32xf32>
    %c3 = arith.constant 3 : index
    %c0_85 = arith.constant 0 : index
    %c0_86 = arith.constant 0 : index
    %c0_87 = arith.constant 0 : index
    %123 = vector.load %arg5[%c3, %c0_85, %c0_86, %c0_87] : memref<4x8x32x32xf32, #tpu.memory_space<vmem>>, vector<1x8x32x32xf32>
    %124 = vector.shape_cast %123 : vector<1x8x32x32xf32> to vector<8x32x32xf32>
    %cst_88 = arith.constant dense<0.000000e+00> : vector<8x2x32xf32>
    %125 = tpu.matmul %122, %124, %cst_88 {dimension_numbers = #tpu.dot_dimension_numbers<[2], [2], [1], [1], [0, 0, 0, 1, 1, 1], [0], [0]>} : vector<8x2x32xf32>, vector<8x32x32xf32>, vector<8x2x32xf32> -> vector<8x2x32xf32>
    %c3_89 = arith.constant 3 : index
    %c0_90 = arith.constant 0 : index
    %c0_91 = arith.constant 0 : index
    %c0_92 = arith.constant 0 : index
    %126 = vector.load %arg6[%c3_89, %c0_90, %c0_91, %c0_92] : memref<4x8x32x32xf32, #tpu.memory_space<vmem>>, vector<1x8x32x32xf32>
    %127 = vector.shape_cast %126 : vector<1x8x32x32xf32> to vector<8x32x32xf32>
    %cst_93 = arith.constant dense<0.000000e+00> : vector<8x2x32xf32>
    %128 = tpu.matmul %122, %127, %cst_93 {dimension_numbers = #tpu.dot_dimension_numbers<[2], [2], [1], [1], [0, 0, 0, 1, 1, 1], [0], [0]>} : vector<8x2x32xf32>, vector<8x32x32xf32>, vector<8x2x32xf32> -> vector<8x2x32xf32>
    %129 = vector.extract_strided_slice %125 {offsets = [0, 0, 0], sizes = [8, 1, 32], strides = [1, 1, 1]} : vector<8x2x32xf32> to vector<8x1x32xf32>
    %130 = vector.shape_cast %129 : vector<8x1x32xf32> to vector<8x32xf32>
    %131 = vector.extract_strided_slice %128 {offsets = [0, 1, 0], sizes = [8, 1, 32], strides = [1, 1, 1]} : vector<8x2x32xf32> to vector<8x1x32xf32>
    %132 = vector.shape_cast %131 : vector<8x1x32xf32> to vector<8x32xf32>
    %133 = arith.subf %130, %132 : vector<8x32xf32>
    %134 = vector.extract_strided_slice %128 {offsets = [0, 0, 0], sizes = [8, 1, 32], strides = [1, 1, 1]} : vector<8x2x32xf32> to vector<8x1x32xf32>
    %135 = vector.shape_cast %134 : vector<8x1x32xf32> to vector<8x32xf32>
    %136 = vector.extract_strided_slice %125 {offsets = [0, 1, 0], sizes = [8, 1, 32], strides = [1, 1, 1]} : vector<8x2x32xf32> to vector<8x1x32xf32>
    %137 = vector.shape_cast %136 : vector<8x1x32xf32> to vector<8x32xf32>
    %138 = arith.addf %135, %137 : vector<8x32xf32>
    %139 = tpu.concatenate %133, %138 in 0 : vector<8x32xf32>, vector<8x32xf32> -> vector<16x32xf32>
    %c0_94 = arith.constant 0 : index
    %c0_95 = arith.constant 0 : index
    %140 = vector.load %arg4[%c0_94, %c0_95] : memref<16x16xf32, #tpu.memory_space<vmem>>, vector<16x16xf32>
    %cst_96 = arith.constant dense<0.000000e+00> : vector<16x32xf32>
    %141 = tpu.matmul %140, %139, %cst_96 {dimension_numbers = #tpu.dot_dimension_numbers<[1], [0], [0], [1], [0, 0, 1, 1], [], []>} : vector<16x16xf32>, vector<16x32xf32>, vector<16x32xf32> -> vector<16x32xf32>
    %c3_97 = arith.constant 3 : index
    %c0_98 = arith.constant 0 : index
    %c0_99 = arith.constant 0 : index
    %142 = vector.load %arg7[%c3_97, %c0_98, %c0_99] : memref<4x32x32xf32, #tpu.memory_space<vmem>>, vector<1x32x32xf32>
    %143 = vector.shape_cast %142 : vector<1x32x32xf32> to vector<32x32xf32>
    %cst_100 = arith.constant dense<0.000000e+00> : vector<16x32xf32>
    %144 = tpu.matmul %119, %143, %cst_100 {dimension_numbers = #tpu.dot_dimension_numbers<[1], [1], [0], [0], [0, 0, 1, 0], [], []>} : vector<16x32xf32>, vector<32x32xf32>, vector<16x32xf32> -> vector<16x32xf32>
    %145 = arith.addf %141, %144 : vector<16x32xf32>
    %c3_101 = arith.constant 3 : index
    %c0_102 = arith.constant 0 : index
    %c0_103 = arith.constant 0 : index
    %146 = vector.load %arg8[%c3_101, %c0_102, %c0_103] : memref<4x1x32xf32, #tpu.memory_space<vmem>>, vector<1x1x32xf32>
    %147 = vector.shape_cast %146 : vector<1x1x32xf32> to vector<1x32xf32>
    %148 = vector.broadcast %147 : vector<1x32xf32> to vector<16x32xf32>
    %149 = arith.addf %145, %148 : vector<16x32xf32>
    %c0_104 = arith.constant 0 : index
    %c0_105 = arith.constant 0 : index
    %150 = vector.load %arg10[%c0_104, %c0_105] : memref<32x128xf32, #tpu.memory_space<vmem>>, vector<32x128xf32>
    %cst_106 = arith.constant dense<0.000000e+00> : vector<16x128xf32>
    %151 = tpu.matmul %149, %150, %cst_106 {dimension_numbers = #tpu.dot_dimension_numbers<[1], [0], [0], [1], [0, 0, 1, 1], [], []>} : vector<16x32xf32>, vector<32x128xf32>, vector<16x128xf32> -> vector<16x128xf32>
    %c0_107 = arith.constant 0 : index
    %c0_108 = arith.constant 0 : index
    %152 = vector.load %arg11[%c0_107, %c0_108] : memref<1x128xf32, #tpu.memory_space<vmem>>, vector<1x128xf32>
    %153 = vector.broadcast %152 : vector<1x128xf32> to vector<16x128xf32>
    %154 = arith.addf %151, %153 : vector<16x128xf32>
    %cst_109 = arith.constant 5.000000e-01 : f32
    %155 = vector.broadcast %cst_109 : f32 to vector<16x128xf32>
    %156 = arith.mulf %155, %154 : vector<16x128xf32>
    %cst_110 = arith.constant 0.707106769 : f32
    %157 = vector.broadcast %cst_110 : f32 to vector<16x128xf32>
    %158 = arith.mulf %154, %157 : vector<16x128xf32>
    %159 = math.erf %158 : vector<16x128xf32>
    %cst_111 = arith.constant 1.000000e+00 : f32
    %160 = vector.broadcast %cst_111 : f32 to vector<16x128xf32>
    %161 = arith.addf %160, %159 : vector<16x128xf32>
    %162 = arith.mulf %156, %161 : vector<16x128xf32>
    %c0_112 = arith.constant 0 : index
    %c0_113 = arith.constant 0 : index
    %163 = vector.load %arg12[%c0_112, %c0_113] : memref<1x128xf32, #tpu.memory_space<vmem>>, vector<1x128xf32>
    %cst_114 = arith.constant dense<0.000000e+00> : vector<1x16xf32>
    %164 = tpu.matmul %163, %162, %cst_114 {dimension_numbers = #tpu.dot_dimension_numbers<[1], [1], [0], [0], [0, 0, 1, 0], [], []>} : vector<1x128xf32>, vector<16x128xf32>, vector<1x16xf32> -> vector<1x16xf32>
    %c0_115 = arith.constant 0 : index
    %c0_116 = arith.constant 0 : index
    %165 = vector.load %arg13[%c0_115, %c0_116] : memref<1x1xf32, #tpu.memory_space<vmem>>, vector<1x1xf32>
    %166 = vector.broadcast %165 : vector<1x1xf32> to vector<1x16xf32>
    %167 = arith.addf %164, %166 : vector<1x16xf32>
    %c0_117 = arith.constant 0 : index
    %c0_118 = arith.constant 0 : index
    %c0_119 = arith.constant 0 : index
    %168 = vector.load %arg14[%c0_117, %c0_118, %c0_119] : memref<1x1x16xf32, #tpu.memory_space<vmem>>, vector<1x1x16xf32>
    %169 = vector.shape_cast %168 : vector<1x1x16xf32> to vector<1x16xf32>
    %170 = vector.shape_cast %167 : vector<1x16xf32> to vector<1x1x16xf32>
    tpu.vector_store %arg14[%c0_117, %c0_118, %c0_119], %170 {strides = array<i32>} : memref<1x1x16xf32, #tpu.memory_space<vmem>>, vector<1x1x16xf32>,
    return
  }
  func.func @transform_0(%arg0: i32) -> (i32, i32, i32) {
    %c0_i32 = arith.constant 0 : i32
    %c0_i32_0 = arith.constant 0 : i32
    %c0_i32_1 = arith.constant 0 : i32
    return %arg0, %c0_i32, %c0_i32_0 : i32, i32, i32
  }
  func.func @transform_1(%arg0: i32) -> (i32, i32) {
    %c0_i32 = arith.constant 0 : i32
    %c0_i32_0 = arith.constant 0 : i32
    %c0_i32_1 = arith.constant 0 : i32
    return %c0_i32, %c0_i32_0 : i32, i32
  }
  func.func @transform_2(%arg0: i32) -> (i32, i32) {
    %c0_i32 = arith.constant 0 : i32
    %c0_i32_0 = arith.constant 0 : i32
    %c0_i32_1 = arith.constant 0 : i32
    return %c0_i32, %c0_i32_0 : i32, i32
  }
  func.func @transform_3(%arg0: i32) -> (i32, i32) {
    %c0_i32 = arith.constant 0 : i32
    %c0_i32_0 = arith.constant 0 : i32
    %c0_i32_1 = arith.constant 0 : i32
    return %c0_i32, %c0_i32_0 : i32, i32
  }
  func.func @transform_4(%arg0: i32) -> (i32, i32, i32, i32) {
    %c0_i32 = arith.constant 0 : i32
    %c0_i32_0 = arith.constant 0 : i32
    %c0_i32_1 = arith.constant 0 : i32
    %c0_i32_2 = arith.constant 0 : i32
    %c0_i32_3 = arith.constant 0 : i32
    return %c0_i32, %c0_i32_0, %c0_i32_1, %c0_i32_2 : i32, i32, i32, i32
  }
  func.func @transform_5(%arg0: i32) -> (i32, i32, i32, i32) {
    %c0_i32 = arith.constant 0 : i32
    %c0_i32_0 = arith.constant 0 : i32
    %c0_i32_1 = arith.constant 0 : i32
    %c0_i32_2 = arith.constant 0 : i32
    %c0_i32_3 = arith.constant 0 : i32
    return %c0_i32, %c0_i32_0, %c0_i32_1, %c0_i32_2 : i32, i32, i32, i32
  }
  func.func @transform_6(%arg0: i32) -> (i32, i32, i32) {
    %c0_i32 = arith.constant 0 : i32
    %c0_i32_0 = arith.constant 0 : i32
    %c0_i32_1 = arith.constant 0 : i32
    %c0_i32_2 = arith.constant 0 : i32
    return %c0_i32, %c0_i32_0, %c0_i32_1 : i32, i32, i32
  }
  func.func @transform_7(%arg0: i32) -> (i32, i32, i32) {
    %c0_i32 = arith.constant 0 : i32
    %c0_i32_0 = arith.constant 0 : i32
    %c0_i32_1 = arith.constant 0 : i32
    %c0_i32_2 = arith.constant 0 : i32
    return %c0_i32, %c0_i32_0, %c0_i32_1 : i32, i32, i32
  }
  func.func @transform_8(%arg0: i32) -> (i32, i32) {
    %c0_i32 = arith.constant 0 : i32
    %c0_i32_0 = arith.constant 0 : i32
    %c0_i32_1 = arith.constant 0 : i32
    return %c0_i32, %c0_i32_0 : i32, i32
  }
  func.func @transform_9(%arg0: i32) -> (i32, i32) {
    %c0_i32 = arith.constant 0 : i32
    %c0_i32_0 = arith.constant 0 : i32
    %c0_i32_1 = arith.constant 0 : i32
    return %c0_i32, %c0_i32_0 : i32, i32
  }
  func.func @transform_10(%arg0: i32) -> (i32, i32) {
    %c0_i32 = arith.constant 0 : i32
    %c0_i32_0 = arith.constant 0 : i32
    %c0_i32_1 = arith.constant 0 : i32
    return %c0_i32, %c0_i32_0 : i32, i32
  }
  func.func @transform_11(%arg0: i32) -> (i32, i32) {
    %c0_i32 = arith.constant 0 : i32
    %c0_i32_0 = arith.constant 0 : i32
    %c0_i32_1 = arith.constant 0 : i32
    return %c0_i32, %c0_i32_0 : i32, i32
  }
  func.func @transform_12(%arg0: i32) -> (i32, i32) {
    %c0_i32 = arith.constant 0 : i32
    %c0_i32_0 = arith.constant 0 : i32
    %c0_i32_1 = arith.constant 0 : i32
    return %c0_i32, %c0_i32_0 : i32, i32
  }
  func.func @transform_13(%arg0: i32) -> (i32, i32, i32) {
    %c0_i32 = arith.constant 0 : i32
    %c0_i32_0 = arith.constant 0 : i32
    %c0_i32_1 = arith.constant 0 : i32
    return %arg0, %c0_i32, %c0_i32_0 : i32, i32, i32
  }
}

</mosaic_0001>

<llo_original>
// kernel: tpu_custom_call.1
$region0: #{tpu_custom_call.1}
  #allocation0 [shape = 'u32[]', space=smem, size = 0x4, offset = 0x4, fixed_abs, tag = 'smem constant byte address 0x4 - core index']
  #allocation1 [shape = 'u32[144,128]{1,0:T(1,128)}', space=vmem, size = 0x12000, scoped, tag = 'internal scratch']
  #allocation2 [shape = 'f32[1,1]{1,0:T(1,128)S(1)}', space=vmem, size = 0x200, scoped, tag = 'scoped memory for tpu_custom_call.1']
  %s0 = inlined_call_operand.hbm [shape: f32[2,4,16], index: 0, kind: input, shape index: {}]
  %s1 = inlined_call_operand.hbm [shape: f32[16,32], index: 1, kind: input, shape index: {}]
  %s2 = inlined_call_operand.hbm [shape: f32[16,16], index: 2, kind: input, shape index: {}]
  %s3 = inlined_call_operand.hbm [shape: f32[16,16], index: 3, kind: input, shape index: {}]
  %s4 = inlined_call_operand.hbm [shape: f32[4,8,32,32], index: 4, kind: input, shape index: {}]
  %s5 = inlined_call_operand.hbm [shape: f32[4,8,32,32], index: 5, kind: input, shape index: {}]
  %s6 = inlined_call_operand.hbm [shape: f32[4,32,32], index: 6, kind: input, shape index: {}]
  %s7 = inlined_call_operand.hbm [shape: f32[4,1,32], index: 7, kind: input, shape index: {}]
  %s8 = inlined_call_operand.hbm [shape: f32[4,32], index: 8, kind: input, shape index: {}]
  %s9 = inlined_call_operand.hbm [shape: f32[32,128], index: 9, kind: input, shape index: {}]
  %s10 = inlined_call_operand.hbm [shape: f32[1,128], index: 10, kind: input, shape index: {}]
  %s11 = inlined_call_operand.hbm [shape: f32[1,128], index: 11, kind: input, shape index: {}]
  %s12 = inlined_call_operand.<no memory space> [shape: f32[1,1], index: 12, kind: input, shape index: {}]
  %s13 = inlined_call_operand.hbm [shape: f32[2,1,16], index: 13, kind: output, shape index: {}]
  %s14 = sld [smem:[#allocation0]]
  $region133: #{tpu_custom_call.1} parent=0
    _
  %s16 = ssub.s32 1, %s14
  %s17 = scalar_select 0, %s16, %s14
  %v18 = vstv %s12
  %19 = vst [vmem:[#allocation2] sm:$0x1] %v18
  $region1: #{tpu_custom_call.1} parent=0
    #allocation3 [shape = 'u8[4096]{0}', space=vmem, size = 0x1000, scoped, tag = 'input window, operand 0']
    #allocation4 [shape = 's32[2]{0}', space=sflag, size = 0x8, scoped, tag = 'scoped memory for tpu_custom_call.1']
    #allocation5 [shape = 's32[2]{0}', space=sflag, size = 0x8, scoped, tag = 'scoped memory for tpu_custom_call.1']
    #allocation6 [shape = 'u8[8192]{0}', space=vmem, size = 0x2000, scoped, tag = 'input window, operand 1, single buffered']
    #allocation7 [shape = 's32[1]{0}', space=sflag, size = 0x4, scoped, tag = 'scoped memory for tpu_custom_call.1']
    #allocation8 [shape = 'u8[8192]{0}', space=vmem, size = 0x2000, scoped, tag = 'input window, operand 2, single buffered']
    #allocation9 [shape = 'u8[8192]{0}', space=vmem, size = 0x2000, scoped, tag = 'input window, operand 3, single buffered']
    #allocation10 [shape = 's32[1]{0}', space=sflag, size = 0x4, scoped, tag = 'scoped memory for tpu_custom_call.1']
    #allocation11 [shape = 'u8[524288]{0}', space=vmem, size = 0x80000, scoped, tag = 'input window, operand 4, single buffered']
    #allocation12 [shape = 'u8[524288]{0}', space=vmem, size = 0x80000, scoped, tag = 'input window, operand 5, single buffered']
    #allocation13 [shape = 's32[1]{0}', space=sflag, size = 0x4, scoped, tag = 'scoped memory for tpu_custom_call.1']
    #allocation14 [shape = 'u8[65536]{0}', space=vmem, size = 0x10000, scoped, tag = 'input window, operand 6, single buffered']
    #allocation15 [shape = 'u8[2048]{0}', space=vmem, size = 0x800, scoped, tag = 'input window, operand 7, single buffered']
    #allocation16 [shape = 's32[1]{0}', space=sflag, size = 0x4, scoped, tag = 'scoped memory for tpu_custom_call.1']
    #allocation17 [shape = 'u8[2048]{0}', space=vmem, size = 0x800, scoped, tag = 'input window, operand 8, single buffered']
    #allocation18 [shape = 'u8[16384]{0}', space=vmem, size = 0x4000, scoped, tag = 'input window, operand 9, single buffered']
    #allocation19 [shape = 's32[1]{0}', space=sflag, size = 0x4, scoped, tag = 'scoped memory for tpu_custom_call.1']
    #allocation20 [shape = 'u8[512]{0}', space=vmem, size = 0x400, scoped, tag = 'input window, operand 10, single buffered']
    #allocation21 [shape = 'u8[512]{0}', space=vmem, size = 0x400, scoped, tag = 'input window, operand 11, single buffered']
    #allocation22 [shape = 's32[1]{0}', space=sflag, size = 0x4, scoped, tag = 'scoped memory for tpu_custom_call.1']
    #allocation23 [shape = 'u8[1024]{0}', space=vmem, size = 0x400, scoped, tag = 'output window, operand 0']
    %20 = vsyncpa [#allocation4], 0
    %s21 = scalar_lea.sflag [#allocation4], 1
    %22 = vsyncpa %s21, 0
    %23 = vsyncpa [#allocation7], 0
    %24 = vsyncpa [#allocation10], 0
    %25 = vsyncpa [#allocation13], 0
    %26 = vsyncpa [#allocation16], 0
    %27 = vsyncpa [#allocation19], 0
    %28 = vsyncpa [#allocation22], 0
    %29 = vsyncpa [#allocation5], 0
    %s30 = scalar_lea.sflag [#allocation5], 1
    %31 = vsyncpa %s30, 0
    loop: start=0, step=1, limit=4
    $region2: #{tpu_custom_call.1} parent=1 // loop_pre_header
      _
    $region3: #{tpu_custom_call.1} parent=1 // loop_header
      %s33 = sphi 0, %s37
      %p34 = scmp.ge.s32.totalorder %s33, 4
      %s43 = sphi 0, %s45
      %s46 = sphi 0, %s43
      %s47 = sphi 0, %s46
      %s63 = sphi 0, %s47
      %s67 = sphi 0, %s67
      %s69 = sphi 0, %s67
      %s70 = sphi 0, %s69
      %s84 = sphi 0, %s70
      %s88 = sphi 0, %s88
      %s90 = sphi 0, %s88
      %s91 = sphi 0, %s90
      %s105 = sphi 0, %s91
      %s109 = sphi 0, %s109
      %s111 = sphi 0, %s109
      %s112 = sphi 0, %s111
      %s126 = sphi 0, %s112
      %s130 = sphi 0, %s130
      %s132 = sphi 0, %s130
      %s133 = sphi 0, %s132
      %s147 = sphi 0, %s133
      %s151 = sphi 0, %s151
      %s153 = sphi 0, %s151
      %s154 = sphi 0, %s153
      %s168 = sphi 0, %s154
      %s172 = sphi 0, %s172
      %s174 = sphi 0, %s172
      %s175 = sphi 0, %s174
      %s189 = sphi 0, %s175
      %s193 = sphi 0, %s193
      %s195 = sphi 0, %s193
      %s196 = sphi 0, %s195
      %s210 = sphi 0, %s196
      %s214 = sphi 0, %s214
      %s216 = sphi 0, %s214
      %s217 = sphi 0, %s216
      %s231 = sphi 0, %s217
      %s235 = sphi 0, %s235
      %s237 = sphi 0, %s235
      %s238 = sphi 0, %s237
      %s252 = sphi 0, %s238
      %s256 = sphi 0, %s256
      %s258 = sphi 0, %s256
      %s259 = sphi 0, %s258
      %s273 = sphi 0, %s259
      %s277 = sphi 0, %s277
      %s279 = sphi 0, %s277
      %s280 = sphi 0, %s279
      %s294 = sphi 0, %s280
      %s298 = sphi 0, %s298
      %s300 = sphi 0, %s298
      %s301 = sphi 0, %s300
      %s315 = sphi 0, %s301
      %s321 = sphi 0, %s323
      %s324 = sphi 0, %s321
      %s325 = sphi 0, %s324
      %s341 = sphi 0, %s325
    $region4: #{tpu_custom_call.1} parent=1 // loop_header_branch
      %36 = sbr.rel (%p34) target = $region8
    $region5: #{tpu_custom_call.1} parent=1 // loop_body
      %s38 = ssub.s32 %s33, 1
      %s39 = ssub.s32 %s33, 2
      %s40 = sadd.s32 %s33, 1
      %s41 = ssub.s32 %s33, %s40
      %p42 = scmp.eq.s32.totalorder %s41, 0
      %s44 = sadd.s32 %s43, 1
      %s45 = scalar_select %p42, %s43, %s44
      %p48 = pneg %p42
      %p49 = scmp.eq.s32.totalorder %s33, 1
      %p50 = por %p48, %p49
      %p51 = scmp.ne.s32.totalorder %s43, %s46
      %p52 = scmp.eq.s32.totalorder %s33, 0
      %p53 = por %p51, %p52
      %p54 = scmp.ne.s32.totalorder %s43, %s46
      %p55 = scmp.eq.s32.totalorder %s38, 1
      %p56 = por %p54, %p55
      %p57 = scmp.ne.s32.totalorder %s46, %s47
      %p58 = scmp.eq.s32.totalorder %s38, 0
      %p59 = por %p57, %p58
      %p60 = scmp.ne.s32.totalorder %s46, %s47
      %p61 = scmp.eq.s32.totalorder %s39, 1
      %p62 = por %p60, %p61
      %p64 = scmp.ne.s32.totalorder %s47, %s63
      %p65 = scmp.eq.s32.totalorder %s39, 0
      %p66 = por %p64, %p65
      %s68 = sadd.s32 %s67, 1
      %p71 = scmp.eq.s32.totalorder %s33, 1
      %p72 = scmp.ne.s32.totalorder %s67, %s69
      %p73 = scmp.eq.s32.totalorder %s33, 0
      %p74 = por %p72, %p73
      %p75 = scmp.ne.s32.totalorder %s67, %s69
      %p76 = scmp.eq.s32.totalorder %s38, 1
      %p77 = por %p75, %p76
      %p78 = scmp.ne.s32.totalorder %s69, %s70
      %p79 = scmp.eq.s32.totalorder %s38, 0
      %p80 = por %p78, %p79
      %p81 = scmp.ne.s32.totalorder %s69, %s70
      %p82 = scmp.eq.s32.totalorder %s39, 1
      %p83 = por %p81, %p82
      %p85 = scmp.ne.s32.totalorder %s70, %s84
      %p86 = scmp.eq.s32.totalorder %s39, 0
      %p87 = por %p85, %p86
      %s89 = sadd.s32 %s88, 1
      %p92 = scmp.eq.s32.totalorder %s33, 1
      %p93 = scmp.ne.s32.totalorder %s88, %s90
      %p94 = scmp.eq.s32.totalorder %s33, 0
      %p95 = por %p93, %p94
      %p96 = scmp.ne.s32.totalorder %s88, %s90
      %p97 = scmp.eq.s32.totalorder %s38, 1
      %p98 = por %p96, %p97
      %p99 = scmp.ne.s32.totalorder %s90, %s91
      %p100 = scmp.eq.s32.totalorder %s38, 0
      %p101 = por %p99, %p100
      %p102 = scmp.ne.s32.totalorder %s90, %s91
      %p103 = scmp.eq.s32.totalorder %s39, 1
      %p104 = por %p102, %p103
      %p106 = scmp.ne.s32.totalorder %s91, %s105
      %p107 = scmp.eq.s32.totalorder %s39, 0
      %p108 = por %p106, %p107
      %s110 = sadd.s32 %s109, 1
      %p113 = scmp.eq.s32.totalorder %s33, 1
      %p114 = scmp.ne.s32.totalorder %s109, %s111
      %p115 = scmp.eq.s32.totalorder %s33, 0
      %p116 = por %p114, %p115
      %p117 = scmp.ne.s32.totalorder %s109, %s111
      %p118 = scmp.eq.s32.totalorder %s38, 1
      %p119 = por %p117, %p118
      %p120 = scmp.ne.s32.totalorder %s111, %s112
      %p121 = scmp.eq.s32.totalorder %s38, 0
      %p122 = por %p120, %p121
      %p123 = scmp.ne.s32.totalorder %s111, %s112
      %p124 = scmp.eq.s32.totalorder %s39, 1
      %p125 = por %p123, %p124
      %p127 = scmp.ne.s32.totalorder %s112, %s126
      %p128 = scmp.eq.s32.totalorder %s39, 0
      %p129 = por %p127, %p128
      %s131 = sadd.s32 %s130, 1
      %p134 = scmp.eq.s32.totalorder %s33, 1
      %p135 = scmp.ne.s32.totalorder %s130, %s132
      %p136 = scmp.eq.s32.totalorder %s33, 0
      %p137 = por %p135, %p136
      %p138 = scmp.ne.s32.totalorder %s130, %s132
      %p139 = scmp.eq.s32.totalorder %s38, 1
      %p140 = por %p138, %p139
      %p141 = scmp.ne.s32.totalorder %s132, %s133
      %p142 = scmp.eq.s32.totalorder %s38, 0
      %p143 = por %p141, %p142
      %p144 = scmp.ne.s32.totalorder %s132, %s133
      %p145 = scmp.eq.s32.totalorder %s39, 1
      %p146 = por %p144, %p145
      %p148 = scmp.ne.s32.totalorder %s133, %s147
      %p149 = scmp.eq.s32.totalorder %s39, 0
      %p150 = por %p148, %p149
      %s152 = sadd.s32 %s151, 1
      %p155 = scmp.eq.s32.totalorder %s33, 1
      %p156 = scmp.ne.s32.totalorder %s151, %s153
      %p157 = scmp.eq.s32.totalorder %s33, 0
      %p158 = por %p156, %p157
      %p159 = scmp.ne.s32.totalorder %s151, %s153
      %p160 = scmp.eq.s32.totalorder %s38, 1
      %p161 = por %p159, %p160
      %p162 = scmp.ne.s32.totalorder %s153, %s154
      %p163 = scmp.eq.s32.totalorder %s38, 0
      %p164 = por %p162, %p163
      %p165 = scmp.ne.s32.totalorder %s153, %s154
      %p166 = scmp.eq.s32.totalorder %s39, 1
      %p167 = por %p165, %p166
      %p169 = scmp.ne.s32.totalorder %s154, %s168
      %p170 = scmp.eq.s32.totalorder %s39, 0
      %p171 = por %p169, %p170
      %s173 = sadd.s32 %s172, 1
      %p176 = scmp.eq.s32.totalorder %s33, 1
      %p177 = scmp.ne.s32.totalorder %s172, %s174
      %p178 = scmp.eq.s32.totalorder %s33, 0
      %p179 = por %p177, %p178
      %p180 = scmp.ne.s32.totalorder %s172, %s174
      %p181 = scmp.eq.s32.totalorder %s38, 1
      %p182 = por %p180, %p181
      %p183 = scmp.ne.s32.totalorder %s174, %s175
      %p184 = scmp.eq.s32.totalorder %s38, 0
      %p185 = por %p183, %p184
      %p186 = scmp.ne.s32.totalorder %s174, %s175
      %p187 = scmp.eq.s32.totalorder %s39, 1
      %p188 = por %p186, %p187
      %p190 = scmp.ne.s32.totalorder %s175, %s189
      %p191 = scmp.eq.s32.totalorder %s39, 0
      %p192 = por %p190, %p191
      %s194 = sadd.s32 %s193, 1
      %p197 = scmp.eq.s32.totalorder %s33, 1
      %p198 = scmp.ne.s32.totalorder %s193, %s195
      %p199 = scmp.eq.s32.totalorder %s33, 0
      %p200 = por %p198, %p199
      %p201 = scmp.ne.s32.totalorder %s193, %s195
      %p202 = scmp.eq.s32.totalorder %s38, 1
      %p203 = por %p201, %p202
      %p204 = scmp.ne.s32.totalorder %s195, %s196
      %p205 = scmp.eq.s32.totalorder %s38, 0
      %p206 = por %p204, %p205
      %p207 = scmp.ne.s32.totalorder %s195, %s196
      %p208 = scmp.eq.s32.totalorder %s39, 1
      %p209 = por %p207, %p208
      %p211 = scmp.ne.s32.totalorder %s196, %s210
      %p212 = scmp.eq.s32.totalorder %s39, 0
      %p213 = por %p211, %p212
      %s215 = sadd.s32 %s214, 1
      %p218 = scmp.eq.s32.totalorder %s33, 1
      %p219 = scmp.ne.s32.totalorder %s214, %s216
      %p220 = scmp.eq.s32.totalorder %s33, 0
      %p221 = por %p219, %p220
      %p222 = scmp.ne.s32.totalorder %s214, %s216
      %p223 = scmp.eq.s32.totalorder %s38, 1
      %p224 = por %p222, %p223
      %p225 = scmp.ne.s32.totalorder %s216, %s217
      %p226 = scmp.eq.s32.totalorder %s38, 0
      %p227 = por %p225, %p226
      %p228 = scmp.ne.s32.totalorder %s216, %s217
      %p229 = scmp.eq.s32.totalorder %s39, 1
      %p230 = por %p228, %p229
      %p232 = scmp.ne.s32.totalorder %s217, %s231
      %p233 = scmp.eq.s32.totalorder %s39, 0
      %p234 = por %p232, %p233
      %s236 = sadd.s32 %s235, 1
      %p239 = scmp.eq.s32.totalorder %s33, 1
      %p240 = scmp.ne.s32.totalorder %s235, %s237
      %p241 = scmp.eq.s32.totalorder %s33, 0
      %p242 = por %p240, %p241
      %p243 = scmp.ne.s32.totalorder %s235, %s237
      %p244 = scmp.eq.s32.totalorder %s38, 1
      %p245 = por %p243, %p244
      %p246 = scmp.ne.s32.totalorder %s237, %s238
      %p247 = scmp.eq.s32.totalorder %s38, 0
      %p248 = por %p246, %p247
      %p249 = scmp.ne.s32.totalorder %s237, %s238
      %p250 = scmp.eq.s32.totalorder %s39, 1
      %p251 = por %p249, %p250
      %p253 = scmp.ne.s32.totalorder %s238, %s252
      %p254 = scmp.eq.s32.totalorder %s39, 0
      %p255 = por %p253, %p254
      %s257 = sadd.s32 %s256, 1
      %p260 = scmp.eq.s32.totalorder %s33, 1
      %p261 = scmp.ne.s32.totalorder %s256, %s258
      %p262 = scmp.eq.s32.totalorder %s33, 0
      %p263 = por %p261, %p262
      %p264 = scmp.ne.s32.totalorder %s256, %s258
      %p265 = scmp.eq.s32.totalorder %s38, 1
      %p266 = por %p264, %p265
      %p267 = scmp.ne.s32.totalorder %s258, %s259
      %p268 = scmp.eq.s32.totalorder %s38, 0
      %p269 = por %p267, %p268
      %p270 = scmp.ne.s32.totalorder %s258, %s259
      %p271 = scmp.eq.s32.totalorder %s39, 1
      %p272 = por %p270, %p271
      %p274 = scmp.ne.s32.totalorder %s259, %s273
      %p275 = scmp.eq.s32.totalorder %s39, 0
      %p276 = por %p274, %p275
      %s278 = sadd.s32 %s277, 1
      %p281 = scmp.eq.s32.totalorder %s33, 1
      %p282 = scmp.ne.s32.totalorder %s277, %s279
      %p283 = scmp.eq.s32.totalorder %s33, 0
      %p284 = por %p282, %p283
      %p285 = scmp.ne.s32.totalorder %s277, %s279
      %p286 = scmp.eq.s32.totalorder %s38, 1
      %p287 = por %p285, %p286
      %p288 = scmp.ne.s32.totalorder %s279, %s280
      %p289 = scmp.eq.s32.totalorder %s38, 0
      %p290 = por %p288, %p289
      %p291 = scmp.ne.s32.totalorder %s279, %s280
      %p292 = scmp.eq.s32.totalorder %s39, 1
      %p293 = por %p291, %p292
      %p295 = scmp.ne.s32.totalorder %s280, %s294
      %p296 = scmp.eq.s32.totalorder %s39, 0
      %p297 = por %p295, %p296
      %s299 = sadd.s32 %s298, 1
      %p302 = scmp.eq.s32.totalorder %s33, 1
      %p303 = scmp.ne.s32.totalorder %s298, %s300
      %p304 = scmp.eq.s32.totalorder %s33, 0
      %p305 = por %p303, %p304
      %p306 = scmp.ne.s32.totalorder %s298, %s300
      %p307 = scmp.eq.s32.totalorder %s38, 1
      %p308 = por %p306, %p307
      %p309 = scmp.ne.s32.totalorder %s300, %s301
      %p310 = scmp.eq.s32.totalorder %s38, 0
      %p311 = por %p309, %p310
      %p312 = scmp.ne.s32.totalorder %s300, %s301
      %p313 = scmp.eq.s32.totalorder %s39, 1
      %p314 = por %p312, %p313
      %p316 = scmp.ne.s32.totalorder %s301, %s315
      %p317 = scmp.eq.s32.totalorder %s39, 0
      %p318 = por %p316, %p317
      %s319 = ssub.s32 %s33, %s40
      %p320 = scmp.eq.s32.totalorder %s319, 0
      %s322 = sadd.s32 %s321, 1
      %s323 = scalar_select %p320, %s321, %s322
      %p326 = pneg %p320
      %p327 = scmp.eq.s32.totalorder %s33, 1
      %p328 = por %p326, %p327
      %p329 = scmp.ne.s32.totalorder %s321, %s324
      %p330 = scmp.eq.s32.totalorder %s33, 0
      %p331 = por %p329, %p330
      %p332 = scmp.ne.s32.totalorder %s321, %s324
      %p333 = scmp.eq.s32.totalorder %s38, 1
      %p334 = por %p332, %p333
      %p335 = scmp.ne.s32.totalorder %s324, %s325
      %p336 = scmp.eq.s32.totalorder %s38, 0
      %p337 = por %p335, %p336
      %p338 = scmp.ne.s32.totalorder %s324, %s325
      %p339 = scmp.eq.s32.totalorder %s39, 1
      %p340 = por %p338, %p339
      %p342 = scmp.ne.s32.totalorder %s325, %s341
      %p343 = scmp.eq.s32.totalorder %s39, 0
      %p344 = por %p342, %p343
      %p345 = scmp.le.s32.totalorder 1, %s33
      %p346 = scmp.lt.s32.totalorder %s33, 3
      %p347 = pnand %p345, %p346
      %p348 = pneg %p347
      // Predicated region
      $region9: #{tpu_custom_call.1} parent=5 // pred_check
        _
      $region10: #{tpu_custom_call.1} parent=5 // pred_check_branch
        %350 = sbr.rel (%p347) target = $region12
      $region11: #{tpu_custom_call.1} parent=5 // pred_region
        %s351 = ssub.s32 %s33, 1
        // Predicated region
        $region13: #{tpu_custom_call.1} parent=11 // pred_check
          %p352 = pneg %p80
        $region14: #{tpu_custom_call.1} parent=11 // pred_check_branch
          %354 = sbr.rel (%p352) target = $region16
        $region15: #{tpu_custom_call.1} parent=11 // pred_region
          %s356 = ssub.s32 256, 256
          %357 = vsyncadd [#allocation7], %s356
          %s358 = sshll.u32 [#allocation6], 4
          %s359 = int_to_ptr.vmem [resolvable:$true] %s358
          %364 = dma.hbm_to_vmem [thread:$0]  %s1, 256, %s359, [#allocation7], 128, 128, 8
        $region16: #{tpu_custom_call.1} parent=11 // pred_fallthru
          _
        // Predicated region
        $region17: #{tpu_custom_call.1} parent=11 // pred_check
          %p365 = pneg %p101
        $region18: #{tpu_custom_call.1} parent=11 // pred_check_branch
          %367 = sbr.rel (%p365) target = $region20
        $region19: #{tpu_custom_call.1} parent=11 // pred_region
          %s369 = ssub.s32 256, 256
          %370 = vsyncadd [#allocation7], %s369
          %s371 = sshll.u32 [#allocation8], 4
          %s372 = int_to_ptr.vmem [resolvable:$true] %s371
          %377 = dma.hbm_to_vmem [thread:$0]  %s2, 256, %s372, [#allocation7], 128, 128, 8
        $region20: #{tpu_custom_call.1} parent=11 // pred_fallthru
          _
        // Predicated region
        $region21: #{tpu_custom_call.1} parent=11 // pred_check
          %p378 = pneg %p122
        $region22: #{tpu_custom_call.1} parent=11 // pred_check_branch
          %380 = sbr.rel (%p378) target = $region24
        $region23: #{tpu_custom_call.1} parent=11 // pred_region
          %s382 = ssub.s32 256, 256
          %383 = vsyncadd [#allocation10], %s382
          %s384 = sshll.u32 [#allocation9], 4
          %s385 = int_to_ptr.vmem [resolvable:$true] %s384
          %390 = dma.hbm_to_vmem [thread:$0]  %s3, 256, %s385, [#allocation10], 128, 128, 8
        $region24: #{tpu_custom_call.1} parent=11 // pred_fallthru
          _
        // Predicated region
        $region25: #{tpu_custom_call.1} parent=11 // pred_check
          %p391 = pneg %p143
        $region26: #{tpu_custom_call.1} parent=11 // pred_check_branch
          %393 = sbr.rel (%p391) target = $region28
        $region27: #{tpu_custom_call.1} parent=11 // pred_region
          %s395 = ssub.s32 16384, 16384
          %396 = vsyncadd [#allocation10], %s395
          %s397 = sshll.u32 [#allocation11], 4
          %s398 = int_to_ptr.vmem [resolvable:$true] %s397
          %403 = dma.hbm_to_vmem [thread:$0]  %s4, 16384, %s398, [#allocation10], 128, 128, 8
        $region28: #{tpu_custom_call.1} parent=11 // pred_fallthru
          _
        // Predicated region
        $region29: #{tpu_custom_call.1} parent=11 // pred_check
          %p404 = pneg %p164
        $region30: #{tpu_custom_call.1} parent=11 // pred_check_branch
          %406 = sbr.rel (%p404) target = $region32
        $region31: #{tpu_custom_call.1} parent=11 // pred_region
          %s408 = ssub.s32 16384, 16384
          %409 = vsyncadd [#allocation13], %s408
          %s410 = sshll.u32 [#allocation12], 4
          %s411 = int_to_ptr.vmem [resolvable:$true] %s410
          %416 = dma.hbm_to_vmem [thread:$0]  %s5, 16384, %s411, [#allocation13], 128, 128, 8
        $region32: #{tpu_custom_call.1} parent=11 // pred_fallthru
          _
        // Predicated region
        $region33: #{tpu_custom_call.1} parent=11 // pred_check
          %p417 = pneg %p185
        $region34: #{tpu_custom_call.1} parent=11 // pred_check_branch
          %419 = sbr.rel (%p417) target = $region36
        $region35: #{tpu_custom_call.1} parent=11 // pred_region
          %s421 = ssub.s32 2048, 2048
          %422 = vsyncadd [#allocation13], %s421
          %s423 = sshll.u32 [#allocation14], 4
          %s424 = int_to_ptr.vmem [resolvable:$true] %s423
          %429 = dma.hbm_to_vmem [thread:$0]  %s6, 2048, %s424, [#allocation13], 128, 128, 8
        $region36: #{tpu_custom_call.1} parent=11 // pred_fallthru
          _
        // Predicated region
        $region37: #{tpu_custom_call.1} parent=11 // pred_check
          %p430 = pneg %p206
        $region38: #{tpu_custom_call.1} parent=11 // pred_check_branch
          %432 = sbr.rel (%p430) target = $region40
        $region39: #{tpu_custom_call.1} parent=11 // pred_region
          %s434 = ssub.s32 64, 64
          %435 = vsyncadd [#allocation16], %s434
          %s436 = sshll.u32 [#allocation15], 4
          %s437 = int_to_ptr.vmem [resolvable:$true] %s436
          %442 = dma.hbm_to_vmem [thread:$0]  %s7, 64, %s437, [#allocation16], 16, 16, 1
        $region40: #{tpu_custom_call.1} parent=11 // pred_fallthru
          _
        // Predicated region
        $region41: #{tpu_custom_call.1} parent=11 // pred_check
          %p443 = pneg %p227
        $region42: #{tpu_custom_call.1} parent=11 // pred_check_branch
          %445 = sbr.rel (%p443) target = $region44
        $region43: #{tpu_custom_call.1} parent=11 // pred_region
          %s447 = ssub.s32 64, 64
          %448 = vsyncadd [#allocation16], %s447
          %s450 = sshll.u32 [#allocation17], 4
          %s451 = int_to_ptr.vmem [resolvable:$true] %s450
          %453 = dma.hbm_to_vmem [thread:$0]  %s8, 64, %s451, [#allocation16]
        $region44: #{tpu_custom_call.1} parent=11 // pred_fallthru
          _
        // Predicated region
        $region45: #{tpu_custom_call.1} parent=11 // pred_check
          %p454 = pneg %p248
        $region46: #{tpu_custom_call.1} parent=11 // pred_check_branch
          %456 = sbr.rel (%p454) target = $region48
        $region47: #{tpu_custom_call.1} parent=11 // pred_region
          %s458 = ssub.s32 512, 512
          %459 = vsyncadd [#allocation19], %s458
          %s460 = sshll.u32 [#allocation18], 4
          %s461 = int_to_ptr.vmem [resolvable:$true] %s460
          %466 = dma.hbm_to_vmem [thread:$0]  %s9, 512, %s461, [#allocation19], 128, 128, 8
        $region48: #{tpu_custom_call.1} parent=11 // pred_fallthru
          _
        // Predicated region
        $region49: #{tpu_custom_call.1} parent=11 // pred_check
          %p467 = pneg %p269
        $region50: #{tpu_custom_call.1} parent=11 // pred_check_branch
          %469 = sbr.rel (%p467) target = $region52
        $region51: #{tpu_custom_call.1} parent=11 // pred_region
          %s471 = ssub.s32 16, 16
          %472 = vsyncadd [#allocation19], %s471
          %s474 = sshll.u32 [#allocation20], 4
          %s475 = int_to_ptr.vmem [resolvable:$true] %s474
          %477 = dma.hbm_to_vmem [thread:$0]  %s10, 16, %s475, [#allocation19]
        $region52: #{tpu_custom_call.1} parent=11 // pred_fallthru
          _
        // Predicated region
        $region53: #{tpu_custom_call.1} parent=11 // pred_check
          %p478 = pneg %p290
        $region54: #{tpu_custom_call.1} parent=11 // pred_check_branch
          %480 = sbr.rel (%p478) target = $region56
        $region55: #{tpu_custom_call.1} parent=11 // pred_region
          %s482 = ssub.s32 16, 16
          %483 = vsyncadd [#allocation22], %s482
          %s485 = sshll.u32 [#allocation21], 4
          %s486 = int_to_ptr.vmem [resolvable:$true] %s485
          %488 = dma.hbm_to_vmem [thread:$0]  %s11, 16, %s486, [#allocation22]
        $region56: #{tpu_custom_call.1} parent=11 // pred_fallthru
          _
        // Predicated region
        $region57: #{tpu_custom_call.1} parent=11 // pred_check
          %p489 = pneg %p311
        $region58: #{tpu_custom_call.1} parent=11 // pred_check_branch
          %491 = sbr.rel (%p489) target = $region60
        $region59: #{tpu_custom_call.1} parent=11 // pred_region
          _
        $region60: #{tpu_custom_call.1} parent=11 // pred_fallthru
          _
      $region12: #{tpu_custom_call.1} parent=5 // pred_fallthru
        _
      %p492 = scmp.lt.s32.totalorder %s33, 2
      // Predicated region
      $region61: #{tpu_custom_call.1} parent=5 // pred_check
        %p493 = pneg %p492
      $region62: #{tpu_custom_call.1} parent=5 // pred_check_branch
        %495 = sbr.rel (%p493) target = $region64
      $region63: #{tpu_custom_call.1} parent=5 // pred_region
        // Predicated region
        $region65: #{tpu_custom_call.1} parent=63 // pred_check
          %p496 = pneg %p53
        $region66: #{tpu_custom_call.1} parent=63 // pred_check_branch
          %498 = sbr.rel (%p496) target = $region68
        $region67: #{tpu_custom_call.1} parent=63 // pred_region
          %s499 = sand.u32 %s43, 1
          %s500 = scalar_lea.sflag [#allocation4], %s499
          %s501 = sand.u32 %s43, 1
          %s502 = smul.addr %s501, 4
          %s503 = scalar_lea.vmem [#allocation3], %s502
          %s505 = ssub.s32 64, 64
          %506 = vsyncadd %s500, %s505
          %s507 = smul.addr %s33, 64
          %s508 = scalar_lea.hbm %s0, %s507
          %s510 = sshll.u32 %s503, 4
          %s511 = int_to_ptr.vmem [resolvable:$true] %s510
          %513 = dma.hbm_to_vmem [thread:$0]  %s508, 64, %s511, %s500
        $region68: #{tpu_custom_call.1} parent=63 // pred_fallthru
          _
      $region64: #{tpu_custom_call.1} parent=5 // pred_fallthru
        _
      %p514 = scmp.le.s32.totalorder 1, %s33
      %p515 = scmp.lt.s32.totalorder %s33, 3
      %p516 = pnand %p514, %p515
      %p517 = pneg %p516
      // Predicated region
      $region69: #{tpu_custom_call.1} parent=5 // pred_check
        _
      $region70: #{tpu_custom_call.1} parent=5 // pred_check_branch
        %519 = sbr.rel (%p516) target = $region72
      $region71: #{tpu_custom_call.1} parent=5 // pred_region
        %s520 = ssub.s32 %s33, 1
        %s521 = sand.u32 %s46, 1
        %s522 = scalar_lea.sflag [#allocation4], %s521
        %s523 = sand.u32 %s46, 1
        %s524 = smul.addr %s523, 4
        %s525 = scalar_lea.vmem [#allocation3], %s524
        // Predicated region
        $region73: #{tpu_custom_call.1} parent=71 // pred_check
          %p526 = pneg %p59
        $region74: #{tpu_custom_call.1} parent=71 // pred_check_branch
          %528 = sbr.rel (%p526) target = $region76
        $region75: #{tpu_custom_call.1} parent=71 // pred_region
          %529 = dma.done %s522, 64
        $region76: #{tpu_custom_call.1} parent=71 // pred_fallthru
          _
        // Predicated region
        $region77: #{tpu_custom_call.1} parent=71 // pred_check
          %p530 = pneg %p80
        $region78: #{tpu_custom_call.1} parent=71 // pred_check_branch
          %532 = sbr.rel (%p530) target = $region80
        $region79: #{tpu_custom_call.1} parent=71 // pred_region
          %533 = dma.done [#allocation7], 256
        $region80: #{tpu_custom_call.1} parent=71 // pred_fallthru
          _
        // Predicated region
        $region81: #{tpu_custom_call.1} parent=71 // pred_check
          %p534 = pneg %p101
        $region82: #{tpu_custom_call.1} parent=71 // pred_check_branch
          %536 = sbr.rel (%p534) target = $region84
        $region83: #{tpu_custom_call.1} parent=71 // pred_region
          %537 = dma.done [#allocation7], 256
        $region84: #{tpu_custom_call.1} parent=71 // pred_fallthru
          _
        // Predicated region
        $region85: #{tpu_custom_call.1} parent=71 // pred_check
          %p538 = pneg %p122
        $region86: #{tpu_custom_call.1} parent=71 // pred_check_branch
          %540 = sbr.rel (%p538) target = $region88
        $region87: #{tpu_custom_call.1} parent=71 // pred_region
          %541 = dma.done [#allocation10], 256
        $region88: #{tpu_custom_call.1} parent=71 // pred_fallthru
          _
        // Predicated region
        $region89: #{tpu_custom_call.1} parent=71 // pred_check
          %p542 = pneg %p143
        $region90: #{tpu_custom_call.1} parent=71 // pred_check_branch
          %544 = sbr.rel (%p542) target = $region92
        $region91: #{tpu_custom_call.1} parent=71 // pred_region
          %545 = dma.done [#allocation10], 16384
        $region92: #{tpu_custom_call.1} parent=71 // pred_fallthru
          _
        // Predicated region
        $region93: #{tpu_custom_call.1} parent=71 // pred_check
          %p546 = pneg %p164
        $region94: #{tpu_custom_call.1} parent=71 // pred_check_branch
          %548 = sbr.rel (%p546) target = $region96
        $region95: #{tpu_custom_call.1} parent=71 // pred_region
          %549 = dma.done [#allocation13], 16384
        $region96: #{tpu_custom_call.1} parent=71 // pred_fallthru
          _
        // Predicated region
        $region97: #{tpu_custom_call.1} parent=71 // pred_check
          %p550 = pneg %p185
        $region98: #{tpu_custom_call.1} parent=71 // pred_check_branch
          %552 = sbr.rel (%p550) target = $region100
        $region99: #{tpu_custom_call.1} parent=71 // pred_region
          %553 = dma.done [#allocation13], 2048
        $region100: #{tpu_custom_call.1} parent=71 // pred_fallthru
          _
        // Predicated region
        $region101: #{tpu_custom_call.1} parent=71 // pred_check
          %p554 = pneg %p206
        $region102: #{tpu_custom_call.1} parent=71 // pred_check_branch
          %556 = sbr.rel (%p554) target = $region104
        $region103: #{tpu_custom_call.1} parent=71 // pred_region
          %557 = dma.done [#allocation16], 64
        $region104: #{tpu_custom_call.1} parent=71 // pred_fallthru
          _
        // Predicated region
        $region105: #{tpu_custom_call.1} parent=71 // pred_check
          %p558 = pneg %p227
        $region106: #{tpu_custom_call.1} parent=71 // pred_check_branch
          %560 = sbr.rel (%p558) target = $region108
        $region107: #{tpu_custom_call.1} parent=71 // pred_region
          %561 = dma.done [#allocation16], 64
        $region108: #{tpu_custom_call.1} parent=71 // pred_fallthru
          _
        // Predicated region
        $region109: #{tpu_custom_call.1} parent=71 // pred_check
          %p562 = pneg %p248
        $region110: #{tpu_custom_call.1} parent=71 // pred_check_branch
          %564 = sbr.rel (%p562) target = $region112
        $region111: #{tpu_custom_call.1} parent=71 // pred_region
          %565 = dma.done [#allocation19], 512
        $region112: #{tpu_custom_call.1} parent=71 // pred_fallthru
          _
        // Predicated region
        $region113: #{tpu_custom_call.1} parent=71 // pred_check
          %p566 = pneg %p269
        $region114: #{tpu_custom_call.1} parent=71 // pred_check_branch
          %568 = sbr.rel (%p566) target = $region116
        $region115: #{tpu_custom_call.1} parent=71 // pred_region
          %569 = dma.done [#allocation19], 16
        $region116: #{tpu_custom_call.1} parent=71 // pred_fallthru
          _
        // Predicated region
        $region117: #{tpu_custom_call.1} parent=71 // pred_check
          %p570 = pneg %p290
        $region118: #{tpu_custom_call.1} parent=71 // pred_check_branch
          %572 = sbr.rel (%p570) target = $region120
        $region119: #{tpu_custom_call.1} parent=71 // pred_region
          %573 = dma.done [#allocation22], 16
        $region120: #{tpu_custom_call.1} parent=71 // pred_fallthru
          _
        %s574 = sand.u32 %s46, 1
        %s575 = scalar_lea.sflag [#allocation4], %s574
        %s576 = sand.u32 %s46, 1
        %s577 = smul.addr %s576, 4
        %s578 = scalar_lea.vmem [#allocation3], %s577
        %p579 = pneg %p59
        %p580 = pneg %p56
        %p581 = pneg %p80
        %p582 = pneg %p77
        %p583 = pneg %p101
        %p584 = pneg %p98
        %p585 = pneg %p122
        %p586 = pneg %p119
        %p587 = pneg %p143
        %p588 = pneg %p140
        %p589 = pneg %p164
        %p590 = pneg %p161
        %p591 = pneg %p185
        %p592 = pneg %p182
        %p593 = pneg %p206
        %p594 = pneg %p203
        %p595 = pneg %p227
        %p596 = pneg %p224
        %p597 = pneg %p248
        %p598 = pneg %p245
        %p599 = pneg %p269
        %p600 = pneg %p266
        %p601 = pneg %p290
        %p602 = pneg %p287
        %p603 = pneg %p311
        %p604 = pneg %p308
        %p605 = pneg %p337
        %p606 = pneg %p334
        %s607 = sand.u32 %s324, 1
        %s608 = scalar_lea.sflag [#allocation5], %s607
        %s609 = sand.u32 %s324, 1
        %s610 = scalar_lea.vmem [#allocation23], %s609
        %v611 = vld [vmem:[%s525] sm:$0xf]
        %v612 = vld [vmem:[#allocation17] sm:$0xf]
        %v613 = vld [vmem:[#allocation6] sm:$0xff]
        %v614 = vld [vmem:[#allocation6 + $0x8] sm:$0xff]
        %615 = vxpose.xlu0.b32.start [1/16] %v611, 128
        %616 = vxpose.xlu0.b32.cont [2/16] 0.0, 128
        %617 = vxpose.xlu0.b32.cont [3/16] 0.0, 128
        %618 = vxpose.xlu0.b32.cont [4/16] 0.0, 128
        %619 = vxpose.xlu0.b32.cont [5/16] 0.0, 128
        %620 = vxpose.xlu0.b32.cont [6/16] 0.0, 128
        %621 = vxpose.xlu0.b32.cont [7/16] 0.0, 128
        %622 = vxpose.xlu0.b32.cont [8/16] 0.0, 128
        %623 = vxpose.xlu0.b32.cont [9/16] 0.0, 128
        %624 = vxpose.xlu0.b32.cont [10/16] 0.0, 128
        %625 = vxpose.xlu0.b32.cont [11/16] 0.0, 128
        %626 = vxpose.xlu0.b32.cont [12/16] 0.0, 128
        %627 = vxpose.xlu0.b32.cont [13/16] 0.0, 128
        %628 = vxpose.xlu0.b32.cont [14/16] 0.0, 128
        %629 = vxpose.xlu0.b32.cont [15/16] 0.0, 128
        %630 = vxpose.xlu0.b32.end [16/16] 0.0, 128
        %v631 = vpop.trf.xlu0
        %v632 = vpop.trf.xlu0
        %v633 = vpop.trf.xlu0
        %v634 = vpop.trf.xlu0
        %v635 = vpop.trf.xlu0
        %v636 = vpop.trf.xlu0
        %v637 = vpop.trf.xlu0
        %v638 = vpop.trf.xlu0
        %v639 = vpop.trf.xlu0
        %v640 = vpop.trf.xlu0
        %v641 = vpop.trf.xlu0
        %v642 = vpop.trf.xlu0
        %v643 = vpop.trf.xlu0
        %v644 = vpop.trf.xlu0
        %v645 = vpop.trf.xlu0
        %v646 = vpop.trf.xlu0
        %vm647 = vcmask 31744
        %v649 = vsel %vm647, %v631, 0
        %v652 = vsel %vm647, %v632, 0
        %vm654 = vcmask 1043456
        %v656 = vsel %vm654, %v612, 0
        %658 = vmatprep.subr.mxu0 0.0
        %659 = vmatpush1.msra.mxu0 %v656
        %660 = vmatprep.subr.mxu0 0.0
        %661 = vmatpush1.msra.mxu0 0.0
        %662 = vmatprep.subr.mxu0 0.0
        %663 = vmatpush1.msra.mxu0 0.0
        %664 = vmatprep.subr.mxu0 0.0
        %665 = vmatpush1.msra.mxu0 0.0
        %666 = vmatprep.subr.mxu0 0.0
        %667 = vmatpush1.msra.mxu0 0.0
        %668 = vmatprep.subr.mxu0 0.0
        %669 = vmatpush1.msra.mxu0 0.0
        %670 = vmatprep.subr.mxu0 0.0
        %671 = vmatpush1.msra.mxu0 0.0
        %672 = vmatprep.subr.mxu0 0.0
        %673 = vmatpush1.msra.mxu0 0.0
        %674 = vmatprep.subr.mxu0 0.0
        %675 = vmatpush1.msra.mxu0 0.0
        %676 = vmatprep.subr.mxu0 0.0
        %677 = vmatpush1.msra.mxu0 0.0
        %678 = vmatprep.subr.mxu0 0.0
        %679 = vmatpush1.msra.mxu0 0.0
        %680 = vmatprep.subr.mxu0 0.0
        %681 = vmatpush1.msra.mxu0 0.0
        %682 = vmatprep.subr.mxu0 0.0
        %683 = vmatpush1.msra.mxu0 0.0
        %684 = vmatprep.subr.mxu0 0.0
        %685 = vmatpush1.msra.mxu0 0.0
        %686 = vmatprep.subr.mxu0 0.0
        %687 = vmatpush1.msra.mxu0 0.0
        %688 = vmatprep.subr.mxu0 0.0
        %689 = vmatpush1.msra.mxu0 0.0
        %690 = vmatprep.subr.mxu0 0.0
        %691 = vmatpush1.msra.mxu0 0.0
        %692 = vmatprep.subr.mxu0 0.0
        %693 = vmatpush1.msra.mxu0 0.0
        %694 = vmatprep.subr.mxu0 0.0
        %695 = vmatpush1.msra.mxu0 0.0
        %696 = vmatprep.subr.mxu0 0.0
        %697 = vmatpush1.msra.mxu0 0.0
        %698 = vmatprep.subr.mxu0 0.0
        %699 = vmatpush1.msra.mxu0 0.0
        %700 = vmatprep.subr.mxu0 0.0
        %701 = vmatpush1.msra.mxu0 0.0
        %702 = vmatprep.subr.mxu0 0.0
        %703 = vmatpush1.msra.mxu0 0.0
        %704 = vmatprep.subr.mxu0 0.0
        %705 = vmatpush1.msra.mxu0 0.0
        %706 = vmatprep.subr.mxu0 0.0
        %707 = vmatpush1.msra.mxu0 0.0
        %708 = vmatprep.subr.mxu0 0.0
        %709 = vmatpush1.msra.mxu0 0.0
        %710 = vmatprep.subr.mxu0 0.0
        %711 = vmatpush1.msra.mxu0 0.0
        %712 = vmatprep.subr.mxu0 0.0
        %713 = vmatpush1.msra.mxu0 0.0
        %714 = vmatprep.subr.mxu0 0.0
        %715 = vmatpush1.msra.mxu0 0.0
        %716 = vmatprep.subr.mxu0 0.0
        %717 = vmatpush1.msra.mxu0 0.0
        %718 = vmatprep.subr.mxu0 0.0
        %719 = vmatpush1.msra.mxu0 0.0
        %720 = vmatprep.subr.mxu0 0.0
        %721 = vmatpush1.msra.mxu0 0.0
        %722 = vmatprep.mubr.f32.mxu0 0.0
        %723 = vmatmul.mubr.f32.gmra.mrb[0].mxu0 %v649
        %v724 = vpop.f32.mrb[0].mxu0
        %v725 = vadd.f32 %v613, %v724
        %v726 = vpop.f32.mrb[0].mxu0
        %727 = vmatprep.mubr.f32.mxu0 0.0
        %728 = vmatmul.mubr.f32.gmra.mrb[0].mxu0 %v652
        %v729 = vpop.f32.mrb[0].mxu0
        %v730 = vadd.f32 %v614, %v729
        %v731 = vpop.f32.mrb[0].mxu0
        %732 = vdwg.mxu0
        %v733 = vld [vmem:[#allocation8] sm:$0xff]
        %v734 = vld [vmem:[#allocation8 + $0x8] sm:$0xff]
        %vm735 = vcmask 130048
        %v737 = vsel %vm735, %v733, 0
        %v740 = vsel %vm735, %v734, 0
        %742 = vmatprep.subr.mxu0 0.0
        %743 = vmatpush1.msra.mxu0 %v725
        %744 = vmatprep.subr.mxu0 0.0
        %745 = vmatpush1.msra.mxu0 %v730
        %746 = vmatprep.subr.mxu0 0.0
        %747 = vmatpush1.msra.mxu0 0.0
        %748 = vmatprep.subr.mxu0 0.0
        %749 = vmatpush1.msra.mxu0 0.0
        %750 = vmatprep.subr.mxu0 0.0
        %751 = vmatpush1.msra.mxu0 0.0
        %752 = vmatprep.subr.mxu0 0.0
        %753 = vmatpush1.msra.mxu0 0.0
        %754 = vmatprep.subr.mxu0 0.0
        %755 = vmatpush1.msra.mxu0 0.0
        %756 = vmatprep.subr.mxu0 0.0
        %757 = vmatpush1.msra.mxu0 0.0
        %758 = vmatprep.subr.mxu0 0.0
        %759 = vmatpush1.msra.mxu0 0.0
        %760 = vmatprep.subr.mxu0 0.0
        %761 = vmatpush1.msra.mxu0 0.0
        %762 = vmatprep.subr.mxu0 0.0
        %763 = vmatpush1.msra.mxu0 0.0
        %764 = vmatprep.subr.mxu0 0.0
        %765 = vmatpush1.msra.mxu0 0.0
        %766 = vmatprep.subr.mxu0 0.0
        %767 = vmatpush1.msra.mxu0 0.0
        %768 = vmatprep.subr.mxu0 0.0
        %769 = vmatpush1.msra.mxu0 0.0
        %770 = vmatprep.subr.mxu0 0.0
        %771 = vmatpush1.msra.mxu0 0.0
        %772 = vmatprep.subr.mxu0 0.0
        %773 = vmatpush1.msra.mxu0 0.0
        %774 = vmatprep.subr.mxu0 0.0
        %775 = vmatpush1.msra.mxu0 0.0
        %776 = vmatprep.subr.mxu0 0.0
        %777 = vmatpush1.msra.mxu0 0.0
        %778 = vmatprep.subr.mxu0 0.0
        %779 = vmatpush1.msra.mxu0 0.0
        %780 = vmatprep.subr.mxu0 0.0
        %781 = vmatpush1.msra.mxu0 0.0
        %782 = vmatprep.subr.mxu0 0.0
        %783 = vmatpush1.msra.mxu0 0.0
        %784 = vmatprep.subr.mxu0 0.0
        %785 = vmatpush1.msra.mxu0 0.0
        %786 = vmatprep.subr.mxu0 0.0
        %787 = vmatpush1.msra.mxu0 0.0
        %788 = vmatprep.subr.mxu0 0.0
        %789 = vmatpush1.msra.mxu0 0.0
        %790 = vmatprep.subr.mxu0 0.0
        %791 = vmatpush1.msra.mxu0 0.0
        %792 = vmatprep.subr.mxu0 0.0
        %793 = vmatpush1.msra.mxu0 0.0
        %794 = vmatprep.subr.mxu0 0.0
        %795 = vmatpush1.msra.mxu0 0.0
        %796 = vmatprep.subr.mxu0 0.0
        %797 = vmatpush1.msra.mxu0 0.0
        %798 = vmatprep.subr.mxu0 0.0
        %799 = vmatpush1.msra.mxu0 0.0
        %800 = vmatprep.subr.mxu0 0.0
        %801 = vmatpush1.msra.mxu0 0.0
        %802 = vmatprep.subr.mxu0 0.0
        %803 = vmatpush1.msra.mxu0 0.0
        %804 = vmatprep.subr.mxu0 0.0
        %805 = vmatpush1.msra.mxu0 0.0
        %806 = vmatprep.mubr.f32.mxu0 0.0
        %807 = vmatmul.mubr.f32.gmra.mrb[0].mxu0 %v737
        %v808 = vpop.f32.mrb[0].mxu0
        %v809 = vadd.f32 0.0, %v808
        %v810 = vpop.f32.mrb[0].mxu0
        %811 = vmatprep.mubr.f32.mxu0 0.0
        %812 = vmatmul.mubr.f32.gmra.mrb[0].mxu0 %v740
        %v813 = vpop.f32.mrb[0].mxu0
        %v814 = vadd.f32 0.0, %v813
        %v815 = vpop.f32.mrb[0].mxu0
        %816 = vdwg.mxu0
        %v819 = vcombine.high %v809, %v809
        %v821 = vunpack.c.l.s4 1983009808
        %v822 = vunpack.c.0.s8 %v821
        %v823 = vlaneseq
        %v824 = vshrl.u32 %v823, 7
        %v825 = vsub.s32 %v822, %v824
        %v826 = vrot.slane %v809, %v825
        %v828 = vunpack.c.l.s4 1983009808
        %v829 = vunpack.c.0.s8 %v828
        %v830 = vlaneseq
        %v831 = vshrl.u32 %v830, 7
        %v832 = vsub.s32 %v829, %v831
        %v833 = vrot.slane %v819, %v832
        %v834 = vcombine.high %v826, %v826
        %v835 = vcombine.high %v833, %v833
        %v836 = vcombine.high %v814, %v814
        %v838 = vunpack.c.l.s4 1983009808
        %v839 = vunpack.c.0.s8 %v838
        %v840 = vlaneseq
        %v841 = vshrl.u32 %v840, 7
        %v842 = vsub.s32 %v839, %v841
        %v843 = vrot.slane %v814, %v842
        %v845 = vunpack.c.l.s4 1983009808
        %v846 = vunpack.c.0.s8 %v845
        %v847 = vlaneseq
        %v848 = vshrl.u32 %v847, 7
        %v849 = vsub.s32 %v846, %v848
        %v850 = vrot.slane %v836, %v849
        %v851 = vcombine.high %v843, %v843
        %v852 = vcombine.high %v850, %v850
        %v853 = vld [vmem:[#allocation11] sm:$0xff]
        %v854 = vld [vmem:[#allocation11 + $0x8] sm:$0xff]
        %v855 = vld [vmem:[#allocation11 + $0x10] sm:$0xff]
        %v856 = vld [vmem:[#allocation11 + $0x18] sm:$0xff]
        %v857 = vld [vmem:[#allocation11 + $0x20] sm:$0xff]
        %v858 = vld [vmem:[#allocation11 + $0x28] sm:$0xff]
        %v859 = vld [vmem:[#allocation11 + $0x30] sm:$0xff]
        %v860 = vld [vmem:[#allocation11 + $0x38] sm:$0xff]
        %v861 = vld [vmem:[#allocation11 + $0x40] sm:$0xff]
        %v862 = vld [vmem:[#allocation11 + $0x48] sm:$0xff]
        %v863 = vld [vmem:[#allocation11 + $0x50] sm:$0xff]
        %v864 = vld [vmem:[#allocation11 + $0x58] sm:$0xff]
        %v865 = vld [vmem:[#allocation11 + $0x60] sm:$0xff]
        %v866 = vld [vmem:[#allocation11 + $0x68] sm:$0xff]
        %v867 = vld [vmem:[#allocation11 + $0x70] sm:$0xff]
        %v868 = vld [vmem:[#allocation11 + $0x78] sm:$0xff]
        %v869 = vld [vmem:[#allocation11 + $0x80] sm:$0xff]
        %v870 = vld [vmem:[#allocation11 + $0x88] sm:$0xff]
        %v871 = vld [vmem:[#allocation11 + $0x90] sm:$0xff]
        %v872 = vld [vmem:[#allocation11 + $0x98] sm:$0xff]
        %v873 = vld [vmem:[#allocation11 + $0xa0] sm:$0xff]
        %v874 = vld [vmem:[#allocation11 + $0xa8] sm:$0xff]
        %v875 = vld [vmem:[#allocation11 + $0xb0] sm:$0xff]
        %v876 = vld [vmem:[#allocation11 + $0xb8] sm:$0xff]
        %v877 = vld [vmem:[#allocation11 + $0xc0] sm:$0xff]
        %v878 = vld [vmem:[#allocation11 + $0xc8] sm:$0xff]
        %v879 = vld [vmem:[#allocation11 + $0xd0] sm:$0xff]
        %v880 = vld [vmem:[#allocation11 + $0xd8] sm:$0xff]
        %v881 = vld [vmem:[#allocation11 + $0xe0] sm:$0xff]
        %v882 = vld [vmem:[#allocation11 + $0xe8] sm:$0xff]
        %v883 = vld [vmem:[#allocation11 + $0xf0] sm:$0xff]
        %v884 = vld [vmem:[#allocation11 + $0xf8] sm:$0xff]
        %vm885 = vcmask 261120
        %v886 = vsel %vm885, %v826, 0
        %v889 = vsel %vm885, %v853, 0
        %v892 = vsel %vm885, %v854, 0
        %v895 = vsel %vm885, %v855, 0
        %v898 = vsel %vm885, %v856, 0
        %900 = vmatprep.subr.mxu0 0.0
        %901 = vmatpush1.xpose.msra.mxu0 %v889
        %902 = vmatprep.subr.mxu0 0.0
        %903 = vmatpush1.xpose.msra.mxu0 %v892
        %904 = vmatprep.subr.mxu0 0.0
        %905 = vmatpush1.xpose.msra.mxu0 %v895
        %906 = vmatprep.subr.mxu0 0.0
        %907 = vmatpush1.xpose.msra.mxu0 %v898
        %908 = vmatprep.subr.mxu0 0.0
        %909 = vmatpush1.xpose.msra.mxu0 0.0
        %910 = vmatprep.subr.mxu0 0.0
        %911 = vmatpush1.xpose.msra.mxu0 0.0
        %912 = vmatprep.subr.mxu0 0.0
        %913 = vmatpush1.xpose.msra.mxu0 0.0
        %914 = vmatprep.subr.mxu0 0.0
        %915 = vmatpush1.xpose.msra.mxu0 0.0
        %916 = vmatprep.subr.mxu0 0.0
        %917 = vmatpush1.xpose.msra.mxu0 0.0
        %918 = vmatprep.subr.mxu0 0.0
        %919 = vmatpush1.xpose.msra.mxu0 0.0
        %920 = vmatprep.subr.mxu0 0.0
        %921 = vmatpush1.xpose.msra.mxu0 0.0
        %922 = vmatprep.subr.mxu0 0.0
        %923 = vmatpush1.xpose.msra.mxu0 0.0
        %924 = vmatprep.subr.mxu0 0.0
        %925 = vmatpush1.xpose.msra.mxu0 0.0
        %926 = vmatprep.subr.mxu0 0.0
        %927 = vmatpush1.xpose.msra.mxu0 0.0
        %928 = vmatprep.subr.mxu0 0.0
        %929 = vmatpush1.xpose.msra.mxu0 0.0
        %930 = vmatprep.subr.mxu0 0.0
        %931 = vmatpush1.xpose.msra.mxu0 0.0
        %932 = vmatprep.subr.mxu0 0.0
        %933 = vmatpush1.xpose.msra.mxu0 0.0
        %934 = vmatprep.subr.mxu0 0.0
        %935 = vmatpush1.xpose.msra.mxu0 0.0
        %936 = vmatprep.subr.mxu0 0.0
        %937 = vmatpush1.xpose.msra.mxu0 0.0
        %938 = vmatprep.subr.mxu0 0.0
        %939 = vmatpush1.xpose.msra.mxu0 0.0
        %940 = vmatprep.subr.mxu0 0.0
        %941 = vmatpush1.xpose.msra.mxu0 0.0
        %942 = vmatprep.subr.mxu0 0.0
        %943 = vmatpush1.xpose.msra.mxu0 0.0
        %944 = vmatprep.subr.mxu0 0.0
        %945 = vmatpush1.xpose.msra.mxu0 0.0
        %946 = vmatprep.subr.mxu0 0.0
        %947 = vmatpush1.xpose.msra.mxu0 0.0
        %948 = vmatprep.subr.mxu0 0.0
        %949 = vmatpush1.xpose.msra.mxu0 0.0
        %950 = vmatprep.subr.mxu0 0.0
        %951 = vmatpush1.xpose.msra.mxu0 0.0
        %952 = vmatprep.subr.mxu0 0.0
        %953 = vmatpush1.xpose.msra.mxu0 0.0
        %954 = vmatprep.subr.mxu0 0.0
        %955 = vmatpush1.xpose.msra.mxu0 0.0
        %956 = vmatprep.subr.mxu0 0.0
        %957 = vmatpush1.xpose.msra.mxu0 0.0
        %958 = vmatprep.subr.mxu0 0.0
        %959 = vmatpush1.xpose.msra.mxu0 0.0
        %960 = vmatprep.subr.mxu0 0.0
        %961 = vmatpush1.xpose.msra.mxu0 0.0
        %962 = vmatprep.subr.mxu0 0.0
        %963 = vmatpush1.xpose.msra.mxu0 0.0
        %964 = vmatprep.mubr.f32.mxu0 0.0
        %965 = vmatmul.mubr.f32.gmra.mrb[0].mxu0 %v886
        %v966 = vpop.f32.mrb[0].mxu0
        %v967 = vadd.f32 0.0, %v966
        %v968 = vpop.f32.mrb[0].mxu0
        %969 = vdwg.mxu0
        %v970 = vsel %vm885, %v834, 0
        %v973 = vsel %vm885, %v857, 0
        %v976 = vsel %vm885, %v858, 0
        %v979 = vsel %vm885, %v859, 0
        %v982 = vsel %vm885, %v860, 0
        %984 = vmatprep.subr.mxu0 0.0
        %985 = vmatpush1.xpose.msra.mxu0 %v973
        %986 = vmatprep.subr.mxu0 0.0
        %987 = vmatpush1.xpose.msra.mxu0 %v976
        %988 = vmatprep.subr.mxu0 0.0
        %989 = vmatpush1.xpose.msra.mxu0 %v979
        %990 = vmatprep.subr.mxu0 0.0
        %991 = vmatpush1.xpose.msra.mxu0 %v982
        %992 = vmatprep.subr.mxu0 0.0
        %993 = vmatpush1.xpose.msra.mxu0 0.0
        %994 = vmatprep.subr.mxu0 0.0
        %995 = vmatpush1.xpose.msra.mxu0 0.0
        %996 = vmatprep.subr.mxu0 0.0
        %997 = vmatpush1.xpose.msra.mxu0 0.0
        %998 = vmatprep.subr.mxu0 0.0
        %999 = vmatpush1.xpose.msra.mxu0 0.0
        %1000 = vmatprep.subr.mxu0 0.0
        %1001 = vmatpush1.xpose.msra.mxu0 0.0
        %1002 = vmatprep.subr.mxu0 0.0
        %1003 = vmatpush1.xpose.msra.mxu0 0.0
        %1004 = vmatprep.subr.mxu0 0.0
        %1005 = vmatpush1.xpose.msra.mxu0 0.0
        %1006 = vmatprep.subr.mxu0 0.0
        %1007 = vmatpush1.xpose.msra.mxu0 0.0
        %1008 = vmatprep.subr.mxu0 0.0
        %1009 = vmatpush1.xpose.msra.mxu0 0.0
        %1010 = vmatprep.subr.mxu0 0.0
        %1011 = vmatpush1.xpose.msra.mxu0 0.0
        %1012 = vmatprep.subr.mxu0 0.0
        %1013 = vmatpush1.xpose.msra.mxu0 0.0
        %1014 = vmatprep.subr.mxu0 0.0
        %1015 = vmatpush1.xpose.msra.mxu0 0.0
        %1016 = vmatprep.subr.mxu0 0.0
        %1017 = vmatpush1.xpose.msra.mxu0 0.0
        %1018 = vmatprep.subr.mxu0 0.0
        %1019 = vmatpush1.xpose.msra.mxu0 0.0
        %1020 = vmatprep.subr.mxu0 0.0
        %1021 = vmatpush1.xpose.msra.mxu0 0.0
        %1022 = vmatprep.subr.mxu0 0.0
        %1023 = vmatpush1.xpose.msra.mxu0 0.0
        %1024 = vmatprep.subr.mxu0 0.0
        %1025 = vmatpush1.xpose.msra.mxu0 0.0
        %1026 = vmatprep.subr.mxu0 0.0
        %1027 = vmatpush1.xpose.msra.mxu0 0.0
        %1028 = vmatprep.subr.mxu0 0.0
        %1029 = vmatpush1.xpose.msra.mxu0 0.0
        %1030 = vmatprep.subr.mxu0 0.0
        %1031 = vmatpush1.xpose.msra.mxu0 0.0
        %1032 = vmatprep.subr.mxu0 0.0
        %1033 = vmatpush1.xpose.msra.mxu0 0.0
        %1034 = vmatprep.subr.mxu0 0.0
        %1035 = vmatpush1.xpose.msra.mxu0 0.0
        %1036 = vmatprep.subr.mxu0 0.0
        %1037 = vmatpush1.xpose.msra.mxu0 0.0
        %1038 = vmatprep.subr.mxu0 0.0
        %1039 = vmatpush1.xpose.msra.mxu0 0.0
        %1040 = vmatprep.subr.mxu0 0.0
        %1041 = vmatpush1.xpose.msra.mxu0 0.0
        %1042 = vmatprep.subr.mxu0 0.0
        %1043 = vmatpush1.xpose.msra.mxu0 0.0
        %1044 = vmatprep.subr.mxu0 0.0
        %1045 = vmatpush1.xpose.msra.mxu0 0.0
        %1046 = vmatprep.subr.mxu0 0.0
        %1047 = vmatpush1.xpose.msra.mxu0 0.0
        %1048 = vmatprep.mubr.f32.mxu0 0.0
        %1049 = vmatmul.mubr.f32.gmra.mrb[0].mxu0 %v970
        %v1050 = vpop.f32.mrb[0].mxu0
        %v1051 = vadd.f32 0.0, %v1050
        %v1052 = vpop.f32.mrb[0].mxu0
        %1053 = vdwg.mxu0
        %v1054 = vsel %vm885, %v833, 0
        %v1057 = vsel %vm885, %v861, 0
        %v1060 = vsel %vm885, %v862, 0
        %v1063 = vsel %vm885, %v863, 0
        %v1066 = vsel %vm885, %v864, 0
        %1068 = vmatprep.subr.mxu0 0.0
        %1069 = vmatpush1.xpose.msra.mxu0 %v1057
        %1070 = vmatprep.subr.mxu0 0.0
        %1071 = vmatpush1.xpose.msra.mxu0 %v1060
        %1072 = vmatprep.subr.mxu0 0.0
        %1073 = vmatpush1.xpose.msra.mxu0 %v1063
        %1074 = vmatprep.subr.mxu0 0.0
        %1075 = vmatpush1.xpose.msra.mxu0 %v1066
        %1076 = vmatprep.subr.mxu0 0.0
        %1077 = vmatpush1.xpose.msra.mxu0 0.0
        %1078 = vmatprep.subr.mxu0 0.0
        %1079 = vmatpush1.xpose.msra.mxu0 0.0
        %1080 = vmatprep.subr.mxu0 0.0
        %1081 = vmatpush1.xpose.msra.mxu0 0.0
        %1082 = vmatprep.subr.mxu0 0.0
        %1083 = vmatpush1.xpose.msra.mxu0 0.0
        %1084 = vmatprep.subr.mxu0 0.0
        %1085 = vmatpush1.xpose.msra.mxu0 0.0
        %1086 = vmatprep.subr.mxu0 0.0
        %1087 = vmatpush1.xpose.msra.mxu0 0.0
        %1088 = vmatprep.subr.mxu0 0.0
        %1089 = vmatpush1.xpose.msra.mxu0 0.0
        %1090 = vmatprep.subr.mxu0 0.0
        %1091 = vmatpush1.xpose.msra.mxu0 0.0
        %1092 = vmatprep.subr.mxu0 0.0
        %1093 = vmatpush1.xpose.msra.mxu0 0.0
        %1094 = vmatprep.subr.mxu0 0.0
        %1095 = vmatpush1.xpose.msra.mxu0 0.0
        %1096 = vmatprep.subr.mxu0 0.0
        %1097 = vmatpush1.xpose.msra.mxu0 0.0
        %1098 = vmatprep.subr.mxu0 0.0
        %1099 = vmatpush1.xpose.msra.mxu0 0.0
        %1100 = vmatprep.subr.mxu0 0.0
        %1101 = vmatpush1.xpose.msra.mxu0 0.0
        %1102 = vmatprep.subr.mxu0 0.0
        %1103 = vmatpush1.xpose.msra.mxu0 0.0
        %1104 = vmatprep.subr.mxu0 0.0
        %1105 = vmatpush1.xpose.msra.mxu0 0.0
        %1106 = vmatprep.subr.mxu0 0.0
        %1107 = vmatpush1.xpose.msra.mxu0 0.0
        %1108 = vmatprep.subr.mxu0 0.0
        %1109 = vmatpush1.xpose.msra.mxu0 0.0
        %1110 = vmatprep.subr.mxu0 0.0
        %1111 = vmatpush1.xpose.msra.mxu0 0.0
        %1112 = vmatprep.subr.mxu0 0.0
        %1113 = vmatpush1.xpose.msra.mxu0 0.0
        %1114 = vmatprep.subr.mxu0 0.0
        %1115 = vmatpush1.xpose.msra.mxu0 0.0
        %1116 = vmatprep.subr.mxu0 0.0
        %1117 = vmatpush1.xpose.msra.mxu0 0.0
        %1118 = vmatprep.subr.mxu0 0.0
        %1119 = vmatpush1.xpose.msra.mxu0 0.0
        %1120 = vmatprep.subr.mxu0 0.0
        %1121 = vmatpush1.xpose.msra.mxu0 0.0
        %1122 = vmatprep.subr.mxu0 0.0
        %1123 = vmatpush1.xpose.msra.mxu0 0.0
        %1124 = vmatprep.subr.mxu0 0.0
        %1125 = vmatpush1.xpose.msra.mxu0 0.0
        %1126 = vmatprep.subr.mxu0 0.0
        %1127 = vmatpush1.xpose.msra.mxu0 0.0
        %1128 = vmatprep.subr.mxu0 0.0
        %1129 = vmatpush1.xpose.msra.mxu0 0.0
        %1130 = vmatprep.subr.mxu0 0.0
        %1131 = vmatpush1.xpose.msra.mxu0 0.0
        %1132 = vmatprep.mubr.f32.mxu0 0.0
        %1133 = vmatmul.mubr.f32.gmra.mrb[0].mxu0 %v1054
        %v1134 = vpop.f32.mrb[0].mxu0
        %v1135 = vadd.f32 0.0, %v1134
        %v1136 = vpop.f32.mrb[0].mxu0
        %1137 = vdwg.mxu0
        %v1138 = vsel %vm885, %v835, 0
        %v1141 = vsel %vm885, %v865, 0
        %v1144 = vsel %vm885, %v866, 0
        %v1147 = vsel %vm885, %v867, 0
        %v1150 = vsel %vm885, %v868, 0
        %1152 = vmatprep.subr.mxu0 0.0
        %1153 = vmatpush1.xpose.msra.mxu0 %v1141
        %1154 = vmatprep.subr.mxu0 0.0
        %1155 = vmatpush1.xpose.msra.mxu0 %v1144
        %1156 = vmatprep.subr.mxu0 0.0
        %1157 = vmatpush1.xpose.msra.mxu0 %v1147
        %1158 = vmatprep.subr.mxu0 0.0
        %1159 = vmatpush1.xpose.msra.mxu0 %v1150
        %1160 = vmatprep.subr.mxu0 0.0
        %1161 = vmatpush1.xpose.msra.mxu0 0.0
        %1162 = vmatprep.subr.mxu0 0.0
        %1163 = vmatpush1.xpose.msra.mxu0 0.0
        %1164 = vmatprep.subr.mxu0 0.0
        %1165 = vmatpush1.xpose.msra.mxu0 0.0
        %1166 = vmatprep.subr.mxu0 0.0
        %1167 = vmatpush1.xpose.msra.mxu0 0.0
        %1168 = vmatprep.subr.mxu0 0.0
        %1169 = vmatpush1.xpose.msra.mxu0 0.0
        %1170 = vmatprep.subr.mxu0 0.0
        %1171 = vmatpush1.xpose.msra.mxu0 0.0
        %1172 = vmatprep.subr.mxu0 0.0
        %1173 = vmatpush1.xpose.msra.mxu0 0.0
        %1174 = vmatprep.subr.mxu0 0.0
        %1175 = vmatpush1.xpose.msra.mxu0 0.0
        %1176 = vmatprep.subr.mxu0 0.0
        %1177 = vmatpush1.xpose.msra.mxu0 0.0
        %1178 = vmatprep.subr.mxu0 0.0
        %1179 = vmatpush1.xpose.msra.mxu0 0.0
        %1180 = vmatprep.subr.mxu0 0.0
        %1181 = vmatpush1.xpose.msra.mxu0 0.0
        %1182 = vmatprep.subr.mxu0 0.0
        %1183 = vmatpush1.xpose.msra.mxu0 0.0
        %1184 = vmatprep.subr.mxu0 0.0
        %1185 = vmatpush1.xpose.msra.mxu0 0.0
        %1186 = vmatprep.subr.mxu0 0.0
        %1187 = vmatpush1.xpose.msra.mxu0 0.0
        %1188 = vmatprep.subr.mxu0 0.0
        %1189 = vmatpush1.xpose.msra.mxu0 0.0
        %1190 = vmatprep.subr.mxu0 0.0
        %1191 = vmatpush1.xpose.msra.mxu0 0.0
        %1192 = vmatprep.subr.mxu0 0.0
        %1193 = vmatpush1.xpose.msra.mxu0 0.0
        %1194 = vmatprep.subr.mxu0 0.0
        %1195 = vmatpush1.xpose.msra.mxu0 0.0
        %1196 = vmatprep.subr.mxu0 0.0
        %1197 = vmatpush1.xpose.msra.mxu0 0.0
        %1198 = vmatprep.subr.mxu0 0.0
        %1199 = vmatpush1.xpose.msra.mxu0 0.0
        %1200 = vmatprep.subr.mxu0 0.0
        %1201 = vmatpush1.xpose.msra.mxu0 0.0
        %1202 = vmatprep.subr.mxu0 0.0
        %1203 = vmatpush1.xpose.msra.mxu0 0.0
        %1204 = vmatprep.subr.mxu0 0.0
        %1205 = vmatpush1.xpose.msra.mxu0 0.0
        %1206 = vmatprep.subr.mxu0 0.0
        %1207 = vmatpush1.xpose.msra.mxu0 0.0
        %1208 = vmatprep.subr.mxu0 0.0
        %1209 = vmatpush1.xpose.msra.mxu0 0.0
        %1210 = vmatprep.subr.mxu0 0.0
        %1211 = vmatpush1.xpose.msra.mxu0 0.0
        %1212 = vmatprep.subr.mxu0 0.0
        %1213 = vmatpush1.xpose.msra.mxu0 0.0
        %1214 = vmatprep.subr.mxu0 0.0
        %1215 = vmatpush1.xpose.msra.mxu0 0.0
        %1216 = vmatprep.mubr.f32.mxu0 0.0
        %1217 = vmatmul.mubr.f32.gmra.mrb[0].mxu0 %v1138
        %v1218 = vpop.f32.mrb[0].mxu0
        %v1219 = vadd.f32 0.0, %v1218
        %v1220 = vpop.f32.mrb[0].mxu0
        %1221 = vdwg.mxu0
        %v1222 = vsel %vm885, %v843, 0
        %v1225 = vsel %vm885, %v869, 0
        %v1228 = vsel %vm885, %v870, 0
        %v1231 = vsel %vm885, %v871, 0
        %v1234 = vsel %vm885, %v872, 0
        %1236 = vmatprep.subr.mxu0 0.0
        %1237 = vmatpush1.xpose.msra.mxu0 %v1225
        %1238 = vmatprep.subr.mxu0 0.0
        %1239 = vmatpush1.xpose.msra.mxu0 %v1228
        %1240 = vmatprep.subr.mxu0 0.0
        %1241 = vmatpush1.xpose.msra.mxu0 %v1231
        %1242 = vmatprep.subr.mxu0 0.0
        %1243 = vmatpush1.xpose.msra.mxu0 %v1234
        %1244 = vmatprep.subr.mxu0 0.0
        %1245 = vmatpush1.xpose.msra.mxu0 0.0
        %1246 = vmatprep.subr.mxu0 0.0
        %1247 = vmatpush1.xpose.msra.mxu0 0.0
        %1248 = vmatprep.subr.mxu0 0.0
        %1249 = vmatpush1.xpose.msra.mxu0 0.0
        %1250 = vmatprep.subr.mxu0 0.0
        %1251 = vmatpush1.xpose.msra.mxu0 0.0
        %1252 = vmatprep.subr.mxu0 0.0
        %1253 = vmatpush1.xpose.msra.mxu0 0.0
        %1254 = vmatprep.subr.mxu0 0.0
        %1255 = vmatpush1.xpose.msra.mxu0 0.0
        %1256 = vmatprep.subr.mxu0 0.0
        %1257 = vmatpush1.xpose.msra.mxu0 0.0
        %1258 = vmatprep.subr.mxu0 0.0
        %1259 = vmatpush1.xpose.msra.mxu0 0.0
        %1260 = vmatprep.subr.mxu0 0.0
        %1261 = vmatpush1.xpose.msra.mxu0 0.0
        %1262 = vmatprep.subr.mxu0 0.0
        %1263 = vmatpush1.xpose.msra.mxu0 0.0
        %1264 = vmatprep.subr.mxu0 0.0
        %1265 = vmatpush1.xpose.msra.mxu0 0.0
        %1266 = vmatprep.subr.mxu0 0.0
        %1267 = vmatpush1.xpose.msra.mxu0 0.0
        %1268 = vmatprep.subr.mxu0 0.0
        %1269 = vmatpush1.xpose.msra.mxu0 0.0
        %1270 = vmatprep.subr.mxu0 0.0
        %1271 = vmatpush1.xpose.msra.mxu0 0.0
        %1272 = vmatprep.subr.mxu0 0.0
        %1273 = vmatpush1.xpose.msra.mxu0 0.0
        %1274 = vmatprep.subr.mxu0 0.0
        %1275 = vmatpush1.xpose.msra.mxu0 0.0
        %1276 = vmatprep.subr.mxu0 0.0
        %1277 = vmatpush1.xpose.msra.mxu0 0.0
        %1278 = vmatprep.subr.mxu0 0.0
        %1279 = vmatpush1.xpose.msra.mxu0 0.0
        %1280 = vmatprep.subr.mxu0 0.0
        %1281 = vmatpush1.xpose.msra.mxu0 0.0
        %1282 = vmatprep.subr.mxu0 0.0
        %1283 = vmatpush1.xpose.msra.mxu0 0.0
        %1284 = vmatprep.subr.mxu0 0.0
        %1285 = vmatpush1.xpose.msra.mxu0 0.0
        %1286 = vmatprep.subr.mxu0 0.0
        %1287 = vmatpush1.xpose.msra.mxu0 0.0
        %1288 = vmatprep.subr.mxu0 0.0
        %1289 = vmatpush1.xpose.msra.mxu0 0.0
        %1290 = vmatprep.subr.mxu0 0.0
        %1291 = vmatpush1.xpose.msra.mxu0 0.0
        %1292 = vmatprep.subr.mxu0 0.0
        %1293 = vmatpush1.xpose.msra.mxu0 0.0
        %1294 = vmatprep.subr.mxu0 0.0
        %1295 = vmatpush1.xpose.msra.mxu0 0.0
        %1296 = vmatprep.subr.mxu0 0.0
        %1297 = vmatpush1.xpose.msra.mxu0 0.0
        %1298 = vmatprep.subr.mxu0 0.0
        %1299 = vmatpush1.xpose.msra.mxu0 0.0
        %1300 = vmatprep.mubr.f32.mxu0 0.0
        %1301 = vmatmul.mubr.f32.gmra.mrb[0].mxu0 %v1222
        %v1302 = vpop.f32.mrb[0].mxu0
        %v1303 = vadd.f32 0.0, %v1302
        %v1304 = vpop.f32.mrb[0].mxu0
        %1305 = vdwg.mxu0
        %v1306 = vsel %vm885, %v851, 0
        %v1309 = vsel %vm885, %v873, 0
        %v1312 = vsel %vm885, %v874, 0
        %v1315 = vsel %vm885, %v875, 0
        %v1318 = vsel %vm885, %v876, 0
        %1320 = vmatprep.subr.mxu0 0.0
        %1321 = vmatpush1.xpose.msra.mxu0 %v1309
        %1322 = vmatprep.subr.mxu0 0.0
        %1323 = vmatpush1.xpose.msra.mxu0 %v1312
        %1324 = vmatprep.subr.mxu0 0.0
        %1325 = vmatpush1.xpose.msra.mxu0 %v1315
        %1326 = vmatprep.subr.mxu0 0.0
        %1327 = vmatpush1.xpose.msra.mxu0 %v1318
        %1328 = vmatprep.subr.mxu0 0.0
        %1329 = vmatpush1.xpose.msra.mxu0 0.0
        %1330 = vmatprep.subr.mxu0 0.0
        %1331 = vmatpush1.xpose.msra.mxu0 0.0
        %1332 = vmatprep.subr.mxu0 0.0
        %1333 = vmatpush1.xpose.msra.mxu0 0.0
        %1334 = vmatprep.subr.mxu0 0.0
        %1335 = vmatpush1.xpose.msra.mxu0 0.0
        %1336 = vmatprep.subr.mxu0 0.0
        %1337 = vmatpush1.xpose.msra.mxu0 0.0
        %1338 = vmatprep.subr.mxu0 0.0
        %1339 = vmatpush1.xpose.msra.mxu0 0.0
        %1340 = vmatprep.subr.mxu0 0.0
        %1341 = vmatpush1.xpose.msra.mxu0 0.0
        %1342 = vmatprep.subr.mxu0 0.0
        %1343 = vmatpush1.xpose.msra.mxu0 0.0
        %1344 = vmatprep.subr.mxu0 0.0
        %1345 = vmatpush1.xpose.msra.mxu0 0.0
        %1346 = vmatprep.subr.mxu0 0.0
        %1347 = vmatpush1.xpose.msra.mxu0 0.0
        %1348 = vmatprep.subr.mxu0 0.0
        %1349 = vmatpush1.xpose.msra.mxu0 0.0
        %1350 = vmatprep.subr.mxu0 0.0
        %1351 = vmatpush1.xpose.msra.mxu0 0.0
        %1352 = vmatprep.subr.mxu0 0.0
        %1353 = vmatpush1.xpose.msra.mxu0 0.0
        %1354 = vmatprep.subr.mxu0 0.0
        %1355 = vmatpush1.xpose.msra.mxu0 0.0
        %1356 = vmatprep.subr.mxu0 0.0
        %1357 = vmatpush1.xpose.msra.mxu0 0.0
        %1358 = vmatprep.subr.mxu0 0.0
        %1359 = vmatpush1.xpose.msra.mxu0 0.0
        %1360 = vmatprep.subr.mxu0 0.0
        %1361 = vmatpush1.xpose.msra.mxu0 0.0
        %1362 = vmatprep.subr.mxu0 0.0
        %1363 = vmatpush1.xpose.msra.mxu0 0.0
        %1364 = vmatprep.subr.mxu0 0.0
        %1365 = vmatpush1.xpose.msra.mxu0 0.0
        %1366 = vmatprep.subr.mxu0 0.0
        %1367 = vmatpush1.xpose.msra.mxu0 0.0
        %1368 = vmatprep.subr.mxu0 0.0
        %1369 = vmatpush1.xpose.msra.mxu0 0.0
        %1370 = vmatprep.subr.mxu0 0.0
        %1371 = vmatpush1.xpose.msra.mxu0 0.0
        %1372 = vmatprep.subr.mxu0 0.0
        %1373 = vmatpush1.xpose.msra.mxu0 0.0
        %1374 = vmatprep.subr.mxu0 0.0
        %1375 = vmatpush1.xpose.msra.mxu0 0.0
        %1376 = vmatprep.subr.mxu0 0.0
        %1377 = vmatpush1.xpose.msra.mxu0 0.0
        %1378 = vmatprep.subr.mxu0 0.0
        %1379 = vmatpush1.xpose.msra.mxu0 0.0
        %1380 = vmatprep.subr.mxu0 0.0
        %1381 = vmatpush1.xpose.msra.mxu0 0.0
        %1382 = vmatprep.subr.mxu0 0.0
        %1383 = vmatpush1.xpose.msra.mxu0 0.0
        %1384 = vmatprep.mubr.f32.mxu0 0.0
        %1385 = vmatmul.mubr.f32.gmra.mrb[0].mxu0 %v1306
        %v1386 = vpop.f32.mrb[0].mxu0
        %v1387 = vadd.f32 0.0, %v1386
        %v1388 = vpop.f32.mrb[0].mxu0
        %1389 = vdwg.mxu0
        %v1390 = vsel %vm885, %v850, 0
        %v1393 = vsel %vm885, %v877, 0
        %v1396 = vsel %vm885, %v878, 0
        %v1399 = vsel %vm885, %v879, 0
        %v1402 = vsel %vm885, %v880, 0
        %1404 = vmatprep.subr.mxu0 0.0
        %1405 = vmatpush1.xpose.msra.mxu0 %v1393
        %1406 = vmatprep.subr.mxu0 0.0
        %1407 = vmatpush1.xpose.msra.mxu0 %v1396
        %1408 = vmatprep.subr.mxu0 0.0
        %1409 = vmatpush1.xpose.msra.mxu0 %v1399
        %1410 = vmatprep.subr.mxu0 0.0
        %1411 = vmatpush1.xpose.msra.mxu0 %v1402
        %1412 = vmatprep.subr.mxu0 0.0
        %1413 = vmatpush1.xpose.msra.mxu0 0.0
        %1414 = vmatprep.subr.mxu0 0.0
        %1415 = vmatpush1.xpose.msra.mxu0 0.0
        %1416 = vmatprep.subr.mxu0 0.0
        %1417 = vmatpush1.xpose.msra.mxu0 0.0
        %1418 = vmatprep.subr.mxu0 0.0
        %1419 = vmatpush1.xpose.msra.mxu0 0.0
        %1420 = vmatprep.subr.mxu0 0.0
        %1421 = vmatpush1.xpose.msra.mxu0 0.0
        %1422 = vmatprep.subr.mxu0 0.0
        %1423 = vmatpush1.xpose.msra.mxu0 0.0
        %1424 = vmatprep.subr.mxu0 0.0
        %1425 = vmatpush1.xpose.msra.mxu0 0.0
        %1426 = vmatprep.subr.mxu0 0.0
        %1427 = vmatpush1.xpose.msra.mxu0 0.0
        %1428 = vmatprep.subr.mxu0 0.0
        %1429 = vmatpush1.xpose.msra.mxu0 0.0
        %1430 = vmatprep.subr.mxu0 0.0
        %1431 = vmatpush1.xpose.msra.mxu0 0.0
        %1432 = vmatprep.subr.mxu0 0.0
        %1433 = vmatpush1.xpose.msra.mxu0 0.0
        %1434 = vmatprep.subr.mxu0 0.0
        %1435 = vmatpush1.xpose.msra.mxu0 0.0
        %1436 = vmatprep.subr.mxu0 0.0
        %1437 = vmatpush1.xpose.msra.mxu0 0.0
        %1438 = vmatprep.subr.mxu0 0.0
        %1439 = vmatpush1.xpose.msra.mxu0 0.0
        %1440 = vmatprep.subr.mxu0 0.0
        %1441 = vmatpush1.xpose.msra.mxu0 0.0
        %1442 = vmatprep.subr.mxu0 0.0
        %1443 = vmatpush1.xpose.msra.mxu0 0.0
        %1444 = vmatprep.subr.mxu0 0.0
        %1445 = vmatpush1.xpose.msra.mxu0 0.0
        %1446 = vmatprep.subr.mxu0 0.0
        %1447 = vmatpush1.xpose.msra.mxu0 0.0
        %1448 = vmatprep.subr.mxu0 0.0
        %1449 = vmatpush1.xpose.msra.mxu0 0.0
        %1450 = vmatprep.subr.mxu0 0.0
        %1451 = vmatpush1.xpose.msra.mxu0 0.0
        %1452 = vmatprep.subr.mxu0 0.0
        %1453 = vmatpush1.xpose.msra.mxu0 0.0
        %1454 = vmatprep.subr.mxu0 0.0
        %1455 = vmatpush1.xpose.msra.mxu0 0.0
        %1456 = vmatprep.subr.mxu0 0.0
        %1457 = vmatpush1.xpose.msra.mxu0 0.0
        %1458 = vmatprep.subr.mxu0 0.0
        %1459 = vmatpush1.xpose.msra.mxu0 0.0
        %1460 = vmatprep.subr.mxu0 0.0
        %1461 = vmatpush1.xpose.msra.mxu0 0.0
        %1462 = vmatprep.subr.mxu0 0.0
        %1463 = vmatpush1.xpose.msra.mxu0 0.0
        %1464 = vmatprep.subr.mxu0 0.0
        %1465 = vmatpush1.xpose.msra.mxu0 0.0
        %1466 = vmatprep.subr.mxu0 0.0
        %1467 = vmatpush1.xpose.msra.mxu0 0.0
        %1468 = vmatprep.mubr.f32.mxu0 0.0
        %1469 = vmatmul.mubr.f32.gmra.mrb[0].mxu0 %v1390
        %v1470 = vpop.f32.mrb[0].mxu0
        %v1471 = vadd.f32 0.0, %v1470
        %v1472 = vpop.f32.mrb[0].mxu0
        %1473 = vdwg.mxu0
        %v1474 = vsel %vm885, %v852, 0
        %v1477 = vsel %vm885, %v881, 0
        %v1480 = vsel %vm885, %v882, 0
        %v1483 = vsel %vm885, %v883, 0
        %v1486 = vsel %vm885, %v884, 0
        %1488 = vmatprep.subr.mxu0 0.0
        %1489 = vmatpush1.xpose.msra.mxu0 %v1477
        %1490 = vmatprep.subr.mxu0 0.0
        %1491 = vmatpush1.xpose.msra.mxu0 %v1480
        %1492 = vmatprep.subr.mxu0 0.0
        %1493 = vmatpush1.xpose.msra.mxu0 %v1483
        %1494 = vmatprep.subr.mxu0 0.0
        %1495 = vmatpush1.xpose.msra.mxu0 %v1486
        %1496 = vmatprep.subr.mxu0 0.0
        %1497 = vmatpush1.xpose.msra.mxu0 0.0
        %1498 = vmatprep.subr.mxu0 0.0
        %1499 = vmatpush1.xpose.msra.mxu0 0.0
        %1500 = vmatprep.subr.mxu0 0.0
        %1501 = vmatpush1.xpose.msra.mxu0 0.0
        %1502 = vmatprep.subr.mxu0 0.0
        %1503 = vmatpush1.xpose.msra.mxu0 0.0
        %1504 = vmatprep.subr.mxu0 0.0
        %1505 = vmatpush1.xpose.msra.mxu0 0.0
        %1506 = vmatprep.subr.mxu0 0.0
        %1507 = vmatpush1.xpose.msra.mxu0 0.0
        %1508 = vmatprep.subr.mxu0 0.0
        %1509 = vmatpush1.xpose.msra.mxu0 0.0
        %1510 = vmatprep.subr.mxu0 0.0
        %1511 = vmatpush1.xpose.msra.mxu0 0.0
        %1512 = vmatprep.subr.mxu0 0.0
        %1513 = vmatpush1.xpose.msra.mxu0 0.0
        %1514 = vmatprep.subr.mxu0 0.0
        %1515 = vmatpush1.xpose.msra.mxu0 0.0
        %1516 = vmatprep.subr.mxu0 0.0
        %1517 = vmatpush1.xpose.msra.mxu0 0.0
        %1518 = vmatprep.subr.mxu0 0.0
        %1519 = vmatpush1.xpose.msra.mxu0 0.0
        %1520 = vmatprep.subr.mxu0 0.0
        %1521 = vmatpush1.xpose.msra.mxu0 0.0
        %1522 = vmatprep.subr.mxu0 0.0
        %1523 = vmatpush1.xpose.msra.mxu0 0.0
        %1524 = vmatprep.subr.mxu0 0.0
        %1525 = vmatpush1.xpose.msra.mxu0 0.0
        %1526 = vmatprep.subr.mxu0 0.0
        %1527 = vmatpush1.xpose.msra.mxu0 0.0
        %1528 = vmatprep.subr.mxu0 0.0
        %1529 = vmatpush1.xpose.msra.mxu0 0.0
        %1530 = vmatprep.subr.mxu0 0.0
        %1531 = vmatpush1.xpose.msra.mxu0 0.0
        %1532 = vmatprep.subr.mxu0 0.0
        %1533 = vmatpush1.xpose.msra.mxu0 0.0
        %1534 = vmatprep.subr.mxu0 0.0
        %1535 = vmatpush1.xpose.msra.mxu0 0.0
        %1536 = vmatprep.subr.mxu0 0.0
        %1537 = vmatpush1.xpose.msra.mxu0 0.0
        %1538 = vmatprep.subr.mxu0 0.0
        %1539 = vmatpush1.xpose.msra.mxu0 0.0
        %1540 = vmatprep.subr.mxu0 0.0
        %1541 = vmatpush1.xpose.msra.mxu0 0.0
        %1542 = vmatprep.subr.mxu0 0.0
        %1543 = vmatpush1.xpose.msra.mxu0 0.0
        %1544 = vmatprep.subr.mxu0 0.0
        %1545 = vmatpush1.xpose.msra.mxu0 0.0
        %1546 = vmatprep.subr.mxu0 0.0
        %1547 = vmatpush1.xpose.msra.mxu0 0.0
        %1548 = vmatprep.subr.mxu0 0.0
        %1549 = vmatpush1.xpose.msra.mxu0 0.0
        %1550 = vmatprep.subr.mxu0 0.0
        %1551 = vmatpush1.xpose.msra.mxu0 0.0
        %1552 = vmatprep.mubr.f32.mxu0 0.0
        %1553 = vmatmul.mubr.f32.gmra.mrb[0].mxu0 %v1474
        %v1554 = vpop.f32.mrb[0].mxu0
        %v1555 = vadd.f32 0.0, %v1554
        %v1556 = vpop.f32.mrb[0].mxu0
        %1557 = vdwg.mxu0
        %v1558 = vld [vmem:[#allocation12] sm:$0xff]
        %v1559 = vld [vmem:[#allocation12 + $0x8] sm:$0xff]
        %v1560 = vld [vmem:[#allocation12 + $0x10] sm:$0xff]
        %v1561 = vld [vmem:[#allocation12 + $0x18] sm:$0xff]
        %v1562 = vld [vmem:[#allocation12 + $0x20] sm:$0xff]
        %v1563 = vld [vmem:[#allocation12 + $0x28] sm:$0xff]
        %v1564 = vld [vmem:[#allocation12 + $0x30] sm:$0xff]
        %v1565 = vld [vmem:[#allocation12 + $0x38] sm:$0xff]
        %v1566 = vld [vmem:[#allocation12 + $0x40] sm:$0xff]
        %v1567 = vld [vmem:[#allocation12 + $0x48] sm:$0xff]
        %v1568 = vld [vmem:[#allocation12 + $0x50] sm:$0xff]
        %v1569 = vld [vmem:[#allocation12 + $0x58] sm:$0xff]
        %v1570 = vld [vmem:[#allocation12 + $0x60] sm:$0xff]
        %v1571 = vld [vmem:[#allocation12 + $0x68] sm:$0xff]
        %v1572 = vld [vmem:[#allocation12 + $0x70] sm:$0xff]
        %v1573 = vld [vmem:[#allocation12 + $0x78] sm:$0xff]
        %v1574 = vld [vmem:[#allocation12 + $0x80] sm:$0xff]
        %v1575 = vld [vmem:[#allocation12 + $0x88] sm:$0xff]
        %v1576 = vld [vmem:[#allocation12 + $0x90] sm:$0xff]
        %v1577 = vld [vmem:[#allocation12 + $0x98] sm:$0xff]
        %v1578 = vld [vmem:[#allocation12 + $0xa0] sm:$0xff]
        %v1579 = vld [vmem:[#allocation12 + $0xa8] sm:$0xff]
        %v1580 = vld [vmem:[#allocation12 + $0xb0] sm:$0xff]
        %v1581 = vld [vmem:[#allocation12 + $0xb8] sm:$0xff]
        %v1582 = vld [vmem:[#allocation12 + $0xc0] sm:$0xff]
        %v1583 = vld [vmem:[#allocation12 + $0xc8] sm:$0xff]
        %v1584 = vld [vmem:[#allocation12 + $0xd0] sm:$0xff]
        %v1585 = vld [vmem:[#allocation12 + $0xd8] sm:$0xff]
        %v1586 = vld [vmem:[#allocation12 + $0xe0] sm:$0xff]
        %v1587 = vld [vmem:[#allocation12 + $0xe8] sm:$0xff]
        %v1588 = vld [vmem:[#allocation12 + $0xf0] sm:$0xff]
        %v1589 = vld [vmem:[#allocation12 + $0xf8] sm:$0xff]
        %v1591 = vsel %vm885, %v1558, 0
        %v1594 = vsel %vm885, %v1559, 0
        %v1597 = vsel %vm885, %v1560, 0
        %v1600 = vsel %vm885, %v1561, 0
        %1602 = vmatprep.subr.mxu0 0.0
        %1603 = vmatpush1.xpose.msra.mxu0 %v1591
        %1604 = vmatprep.subr.mxu0 0.0
        %1605 = vmatpush1.xpose.msra.mxu0 %v1594
        %1606 = vmatprep.subr.mxu0 0.0
        %1607 = vmatpush1.xpose.msra.mxu0 %v1597
        %1608 = vmatprep.subr.mxu0 0.0
        %1609 = vmatpush1.xpose.msra.mxu0 %v1600
        %1610 = vmatprep.subr.mxu0 0.0
        %1611 = vmatpush1.xpose.msra.mxu0 0.0
        %1612 = vmatprep.subr.mxu0 0.0
        %1613 = vmatpush1.xpose.msra.mxu0 0.0
        %1614 = vmatprep.subr.mxu0 0.0
        %1615 = vmatpush1.xpose.msra.mxu0 0.0
        %1616 = vmatprep.subr.mxu0 0.0
        %1617 = vmatpush1.xpose.msra.mxu0 0.0
        %1618 = vmatprep.subr.mxu0 0.0
        %1619 = vmatpush1.xpose.msra.mxu0 0.0
        %1620 = vmatprep.subr.mxu0 0.0
        %1621 = vmatpush1.xpose.msra.mxu0 0.0
        %1622 = vmatprep.subr.mxu0 0.0
        %1623 = vmatpush1.xpose.msra.mxu0 0.0
        %1624 = vmatprep.subr.mxu0 0.0
        %1625 = vmatpush1.xpose.msra.mxu0 0.0
        %1626 = vmatprep.subr.mxu0 0.0
        %1627 = vmatpush1.xpose.msra.mxu0 0.0
        %1628 = vmatprep.subr.mxu0 0.0
        %1629 = vmatpush1.xpose.msra.mxu0 0.0
        %1630 = vmatprep.subr.mxu0 0.0
        %1631 = vmatpush1.xpose.msra.mxu0 0.0
        %1632 = vmatprep.subr.mxu0 0.0
        %1633 = vmatpush1.xpose.msra.mxu0 0.0
        %1634 = vmatprep.subr.mxu0 0.0
        %1635 = vmatpush1.xpose.msra.mxu0 0.0
        %1636 = vmatprep.subr.mxu0 0.0
        %1637 = vmatpush1.xpose.msra.mxu0 0.0
        %1638 = vmatprep.subr.mxu0 0.0
        %1639 = vmatpush1.xpose.msra.mxu0 0.0
        %1640 = vmatprep.subr.mxu0 0.0
        %1641 = vmatpush1.xpose.msra.mxu0 0.0
        %1642 = vmatprep.subr.mxu0 0.0
        %1643 = vmatpush1.xpose.msra.mxu0 0.0
        %1644 = vmatprep.subr.mxu0 0.0
        %1645 = vmatpush1.xpose.msra.mxu0 0.0
        %1646 = vmatprep.subr.mxu0 0.0
        %1647 = vmatpush1.xpose.msra.mxu0 0.0
        %1648 = vmatprep.subr.mxu0 0.0
        %1649 = vmatpush1.xpose.msra.mxu0 0.0
        %1650 = vmatprep.subr.mxu0 0.0
        %1651 = vmatpush1.xpose.msra.mxu0 0.0
        %1652 = vmatprep.subr.mxu0 0.0
        %1653 = vmatpush1.xpose.msra.mxu0 0.0
        %1654 = vmatprep.subr.mxu0 0.0
        %1655 = vmatpush1.xpose.msra.mxu0 0.0
        %1656 = vmatprep.subr.mxu0 0.0
        %1657 = vmatpush1.xpose.msra.mxu0 0.0
        %1658 = vmatprep.subr.mxu0 0.0
        %1659 = vmatpush1.xpose.msra.mxu0 0.0
        %1660 = vmatprep.subr.mxu0 0.0
        %1661 = vmatpush1.xpose.msra.mxu0 0.0
        %1662 = vmatprep.subr.mxu0 0.0
        %1663 = vmatpush1.xpose.msra.mxu0 0.0
        %1664 = vmatprep.subr.mxu0 0.0
        %1665 = vmatpush1.xpose.msra.mxu0 0.0
        %1666 = vmatprep.mubr.f32.mxu0 0.0
        %1667 = vmatmul.mubr.f32.gmra.mrb[0].mxu0 %v886
        %v1668 = vpop.f32.mrb[0].mxu0
        %v1669 = vadd.f32 0.0, %v1668
        %v1670 = vpop.f32.mrb[0].mxu0
        %1671 = vdwg.mxu0
        %v1673 = vsel %vm885, %v1562, 0
        %v1676 = vsel %vm885, %v1563, 0
        %v1679 = vsel %vm885, %v1564, 0
        %v1682 = vsel %vm885, %v1565, 0
        %1684 = vmatprep.subr.mxu0 0.0
        %1685 = vmatpush1.xpose.msra.mxu0 %v1673
        %1686 = vmatprep.subr.mxu0 0.0
        %1687 = vmatpush1.xpose.msra.mxu0 %v1676
        %1688 = vmatprep.subr.mxu0 0.0
        %1689 = vmatpush1.xpose.msra.mxu0 %v1679
        %1690 = vmatprep.subr.mxu0 0.0
        %1691 = vmatpush1.xpose.msra.mxu0 %v1682
        %1692 = vmatprep.subr.mxu0 0.0
        %1693 = vmatpush1.xpose.msra.mxu0 0.0
        %1694 = vmatprep.subr.mxu0 0.0
        %1695 = vmatpush1.xpose.msra.mxu0 0.0
        %1696 = vmatprep.subr.mxu0 0.0
        %1697 = vmatpush1.xpose.msra.mxu0 0.0
        %1698 = vmatprep.subr.mxu0 0.0
        %1699 = vmatpush1.xpose.msra.mxu0 0.0
        %1700 = vmatprep.subr.mxu0 0.0
        %1701 = vmatpush1.xpose.msra.mxu0 0.0
        %1702 = vmatprep.subr.mxu0 0.0
        %1703 = vmatpush1.xpose.msra.mxu0 0.0
        %1704 = vmatprep.subr.mxu0 0.0
        %1705 = vmatpush1.xpose.msra.mxu0 0.0
        %1706 = vmatprep.subr.mxu0 0.0
        %1707 = vmatpush1.xpose.msra.mxu0 0.0
        %1708 = vmatprep.subr.mxu0 0.0
        %1709 = vmatpush1.xpose.msra.mxu0 0.0
        %1710 = vmatprep.subr.mxu0 0.0
        %1711 = vmatpush1.xpose.msra.mxu0 0.0
        %1712 = vmatprep.subr.mxu0 0.0
        %1713 = vmatpush1.xpose.msra.mxu0 0.0
        %1714 = vmatprep.subr.mxu0 0.0
        %1715 = vmatpush1.xpose.msra.mxu0 0.0
        %1716 = vmatprep.subr.mxu0 0.0
        %1717 = vmatpush1.xpose.msra.mxu0 0.0
        %1718 = vmatprep.subr.mxu0 0.0
        %1719 = vmatpush1.xpose.msra.mxu0 0.0
        %1720 = vmatprep.subr.mxu0 0.0
        %1721 = vmatpush1.xpose.msra.mxu0 0.0
        %1722 = vmatprep.subr.mxu0 0.0
        %1723 = vmatpush1.xpose.msra.mxu0 0.0
        %1724 = vmatprep.subr.mxu0 0.0
        %1725 = vmatpush1.xpose.msra.mxu0 0.0
        %1726 = vmatprep.subr.mxu0 0.0
        %1727 = vmatpush1.xpose.msra.mxu0 0.0
        %1728 = vmatprep.subr.mxu0 0.0
        %1729 = vmatpush1.xpose.msra.mxu0 0.0
        %1730 = vmatprep.subr.mxu0 0.0
        %1731 = vmatpush1.xpose.msra.mxu0 0.0
        %1732 = vmatprep.subr.mxu0 0.0
        %1733 = vmatpush1.xpose.msra.mxu0 0.0
        %1734 = vmatprep.subr.mxu0 0.0
        %1735 = vmatpush1.xpose.msra.mxu0 0.0
        %1736 = vmatprep.subr.mxu0 0.0
        %1737 = vmatpush1.xpose.msra.mxu0 0.0
        %1738 = vmatprep.subr.mxu0 0.0
        %1739 = vmatpush1.xpose.msra.mxu0 0.0
        %1740 = vmatprep.subr.mxu0 0.0
        %1741 = vmatpush1.xpose.msra.mxu0 0.0
        %1742 = vmatprep.subr.mxu0 0.0
        %1743 = vmatpush1.xpose.msra.mxu0 0.0
        %1744 = vmatprep.subr.mxu0 0.0
        %1745 = vmatpush1.xpose.msra.mxu0 0.0
        %1746 = vmatprep.subr.mxu0 0.0
        %1747 = vmatpush1.xpose.msra.mxu0 0.0
        %1748 = vmatprep.mubr.f32.mxu0 0.0
        %1749 = vmatmul.mubr.f32.gmra.mrb[0].mxu0 %v970
        %v1750 = vpop.f32.mrb[0].mxu0
        %v1751 = vadd.f32 0.0, %v1750
        %v1752 = vpop.f32.mrb[0].mxu0
        %1753 = vdwg.mxu0
        %v1755 = vsel %vm885, %v1566, 0
        %v1758 = vsel %vm885, %v1567, 0
        %v1761 = vsel %vm885, %v1568, 0
        %v1764 = vsel %vm885, %v1569, 0
        %1766 = vmatprep.subr.mxu0 0.0
        %1767 = vmatpush1.xpose.msra.mxu0 %v1755
        %1768 = vmatprep.subr.mxu0 0.0
        %1769 = vmatpush1.xpose.msra.mxu0 %v1758
        %1770 = vmatprep.subr.mxu0 0.0
        %1771 = vmatpush1.xpose.msra.mxu0 %v1761
        %1772 = vmatprep.subr.mxu0 0.0
        %1773 = vmatpush1.xpose.msra.mxu0 %v1764
        %1774 = vmatprep.subr.mxu0 0.0
        %1775 = vmatpush1.xpose.msra.mxu0 0.0
        %1776 = vmatprep.subr.mxu0 0.0
        %1777 = vmatpush1.xpose.msra.mxu0 0.0
        %1778 = vmatprep.subr.mxu0 0.0
        %1779 = vmatpush1.xpose.msra.mxu0 0.0
        %1780 = vmatprep.subr.mxu0 0.0
        %1781 = vmatpush1.xpose.msra.mxu0 0.0
        %1782 = vmatprep.subr.mxu0 0.0
        %1783 = vmatpush1.xpose.msra.mxu0 0.0
        %1784 = vmatprep.subr.mxu0 0.0
        %1785 = vmatpush1.xpose.msra.mxu0 0.0
        %1786 = vmatprep.subr.mxu0 0.0
        %1787 = vmatpush1.xpose.msra.mxu0 0.0
        %1788 = vmatprep.subr.mxu0 0.0
        %1789 = vmatpush1.xpose.msra.mxu0 0.0
        %1790 = vmatprep.subr.mxu0 0.0
        %1791 = vmatpush1.xpose.msra.mxu0 0.0
        %1792 = vmatprep.subr.mxu0 0.0
        %1793 = vmatpush1.xpose.msra.mxu0 0.0
        %1794 = vmatprep.subr.mxu0 0.0
        %1795 = vmatpush1.xpose.msra.mxu0 0.0
        %1796 = vmatprep.subr.mxu0 0.0
        %1797 = vmatpush1.xpose.msra.mxu0 0.0
        %1798 = vmatprep.subr.mxu0 0.0
        %1799 = vmatpush1.xpose.msra.mxu0 0.0
        %1800 = vmatprep.subr.mxu0 0.0
        %1801 = vmatpush1.xpose.msra.mxu0 0.0
        %1802 = vmatprep.subr.mxu0 0.0
        %1803 = vmatpush1.xpose.msra.mxu0 0.0
        %1804 = vmatprep.subr.mxu0 0.0
        %1805 = vmatpush1.xpose.msra.mxu0 0.0
        %1806 = vmatprep.subr.mxu0 0.0
        %1807 = vmatpush1.xpose.msra.mxu0 0.0
        %1808 = vmatprep.subr.mxu0 0.0
        %1809 = vmatpush1.xpose.msra.mxu0 0.0
        %1810 = vmatprep.subr.mxu0 0.0
        %1811 = vmatpush1.xpose.msra.mxu0 0.0
        %1812 = vmatprep.subr.mxu0 0.0
        %1813 = vmatpush1.xpose.msra.mxu0 0.0
        %1814 = vmatprep.subr.mxu0 0.0
        %1815 = vmatpush1.xpose.msra.mxu0 0.0
        %1816 = vmatprep.subr.mxu0 0.0
        %1817 = vmatpush1.xpose.msra.mxu0 0.0
        %1818 = vmatprep.subr.mxu0 0.0
        %1819 = vmatpush1.xpose.msra.mxu0 0.0
        %1820 = vmatprep.subr.mxu0 0.0
        %1821 = vmatpush1.xpose.msra.mxu0 0.0
        %1822 = vmatprep.subr.mxu0 0.0
        %1823 = vmatpush1.xpose.msra.mxu0 0.0
        %1824 = vmatprep.subr.mxu0 0.0
        %1825 = vmatpush1.xpose.msra.mxu0 0.0
        %1826 = vmatprep.subr.mxu0 0.0
        %1827 = vmatpush1.xpose.msra.mxu0 0.0
        %1828 = vmatprep.subr.mxu0 0.0
        %1829 = vmatpush1.xpose.msra.mxu0 0.0
        %1830 = vmatprep.mubr.f32.mxu0 0.0
        %1831 = vmatmul.mubr.f32.gmra.mrb[0].mxu0 %v1054
        %v1832 = vpop.f32.mrb[0].mxu0
        %v1833 = vadd.f32 0.0, %v1832
        %v1834 = vpop.f32.mrb[0].mxu0
        %1835 = vdwg.mxu0
        %v1837 = vsel %vm885, %v1570, 0
        %v1840 = vsel %vm885, %v1571, 0
        %v1843 = vsel %vm885, %v1572, 0
        %v1846 = vsel %vm885, %v1573, 0
        %1848 = vmatprep.subr.mxu0 0.0
        %1849 = vmatpush1.xpose.msra.mxu0 %v1837
        %1850 = vmatprep.subr.mxu0 0.0
        %1851 = vmatpush1.xpose.msra.mxu0 %v1840
        %1852 = vmatprep.subr.mxu0 0.0
        %1853 = vmatpush1.xpose.msra.mxu0 %v1843
        %1854 = vmatprep.subr.mxu0 0.0
        %1855 = vmatpush1.xpose.msra.mxu0 %v1846
        %1856 = vmatprep.subr.mxu0 0.0
        %1857 = vmatpush1.xpose.msra.mxu0 0.0
        %1858 = vmatprep.subr.mxu0 0.0
        %1859 = vmatpush1.xpose.msra.mxu0 0.0
        %1860 = vmatprep.subr.mxu0 0.0
        %1861 = vmatpush1.xpose.msra.mxu0 0.0
        %1862 = vmatprep.subr.mxu0 0.0
        %1863 = vmatpush1.xpose.msra.mxu0 0.0
        %1864 = vmatprep.subr.mxu0 0.0
        %1865 = vmatpush1.xpose.msra.mxu0 0.0
        %1866 = vmatprep.subr.mxu0 0.0
        %1867 = vmatpush1.xpose.msra.mxu0 0.0
        %1868 = vmatprep.subr.mxu0 0.0
        %1869 = vmatpush1.xpose.msra.mxu0 0.0
        %1870 = vmatprep.subr.mxu0 0.0
        %1871 = vmatpush1.xpose.msra.mxu0 0.0
        %1872 = vmatprep.subr.mxu0 0.0
        %1873 = vmatpush1.xpose.msra.mxu0 0.0
        %1874 = vmatprep.subr.mxu0 0.0
        %1875 = vmatpush1.xpose.msra.mxu0 0.0
        %1876 = vmatprep.subr.mxu0 0.0
        %1877 = vmatpush1.xpose.msra.mxu0 0.0
        %1878 = vmatprep.subr.mxu0 0.0
        %1879 = vmatpush1.xpose.msra.mxu0 0.0
        %1880 = vmatprep.subr.mxu0 0.0
        %1881 = vmatpush1.xpose.msra.mxu0 0.0
        %1882 = vmatprep.subr.mxu0 0.0
        %1883 = vmatpush1.xpose.msra.mxu0 0.0
        %1884 = vmatprep.subr.mxu0 0.0
        %1885 = vmatpush1.xpose.msra.mxu0 0.0
        %1886 = vmatprep.subr.mxu0 0.0
        %1887 = vmatpush1.xpose.msra.mxu0 0.0
        %1888 = vmatprep.subr.mxu0 0.0
        %1889 = vmatpush1.xpose.msra.mxu0 0.0
        %1890 = vmatprep.subr.mxu0 0.0
        %1891 = vmatpush1.xpose.msra.mxu0 0.0
        %1892 = vmatprep.subr.mxu0 0.0
        %1893 = vmatpush1.xpose.msra.mxu0 0.0
        %1894 = vmatprep.subr.mxu0 0.0
        %1895 = vmatpush1.xpose.msra.mxu0 0.0
        %1896 = vmatprep.subr.mxu0 0.0
        %1897 = vmatpush1.xpose.msra.mxu0 0.0
        %1898 = vmatprep.subr.mxu0 0.0
        %1899 = vmatpush1.xpose.msra.mxu0 0.0
        %1900 = vmatprep.subr.mxu0 0.0
        %1901 = vmatpush1.xpose.msra.mxu0 0.0
        %1902 = vmatprep.subr.mxu0 0.0
        %1903 = vmatpush1.xpose.msra.mxu0 0.0
        %1904 = vmatprep.subr.mxu0 0.0
        %1905 = vmatpush1.xpose.msra.mxu0 0.0
        %1906 = vmatprep.subr.mxu0 0.0
        %1907 = vmatpush1.xpose.msra.mxu0 0.0
        %1908 = vmatprep.subr.mxu0 0.0
        %1909 = vmatpush1.xpose.msra.mxu0 0.0
        %1910 = vmatprep.subr.mxu0 0.0
        %1911 = vmatpush1.xpose.msra.mxu0 0.0
        %1912 = vmatprep.mubr.f32.mxu0 0.0
        %1913 = vmatmul.mubr.f32.gmra.mrb[0].mxu0 %v1138
        %v1914 = vpop.f32.mrb[0].mxu0
        %v1915 = vadd.f32 0.0, %v1914
        %v1916 = vpop.f32.mrb[0].mxu0
        %1917 = vdwg.mxu0
        %v1919 = vsel %vm885, %v1574, 0
        %v1922 = vsel %vm885, %v1575, 0
        %v1925 = vsel %vm885, %v1576, 0
        %v1928 = vsel %vm885, %v1577, 0
        %1930 = vmatprep.subr.mxu0 0.0
        %1931 = vmatpush1.xpose.msra.mxu0 %v1919
        %1932 = vmatprep.subr.mxu0 0.0
        %1933 = vmatpush1.xpose.msra.mxu0 %v1922
        %1934 = vmatprep.subr.mxu0 0.0
        %1935 = vmatpush1.xpose.msra.mxu0 %v1925
        %1936 = vmatprep.subr.mxu0 0.0
        %1937 = vmatpush1.xpose.msra.mxu0 %v1928
        %1938 = vmatprep.subr.mxu0 0.0
        %1939 = vmatpush1.xpose.msra.mxu0 0.0
        %1940 = vmatprep.subr.mxu0 0.0
        %1941 = vmatpush1.xpose.msra.mxu0 0.0
        %1942 = vmatprep.subr.mxu0 0.0
        %1943 = vmatpush1.xpose.msra.mxu0 0.0
        %1944 = vmatprep.subr.mxu0 0.0
        %1945 = vmatpush1.xpose.msra.mxu0 0.0
        %1946 = vmatprep.subr.mxu0 0.0
        %1947 = vmatpush1.xpose.msra.mxu0 0.0
        %1948 = vmatprep.subr.mxu0 0.0
        %1949 = vmatpush1.xpose.msra.mxu0 0.0
        %1950 = vmatprep.subr.mxu0 0.0
        %1951 = vmatpush1.xpose.msra.mxu0 0.0
        %1952 = vmatprep.subr.mxu0 0.0
        %1953 = vmatpush1.xpose.msra.mxu0 0.0
        %1954 = vmatprep.subr.mxu0 0.0
        %1955 = vmatpush1.xpose.msra.mxu0 0.0
        %1956 = vmatprep.subr.mxu0 0.0
        %1957 = vmatpush1.xpose.msra.mxu0 0.0
        %1958 = vmatprep.subr.mxu0 0.0
        %1959 = vmatpush1.xpose.msra.mxu0 0.0
        %1960 = vmatprep.subr.mxu0 0.0
        %1961 = vmatpush1.xpose.msra.mxu0 0.0
        %1962 = vmatprep.subr.mxu0 0.0
        %1963 = vmatpush1.xpose.msra.mxu0 0.0
        %1964 = vmatprep.subr.mxu0 0.0
        %1965 = vmatpush1.xpose.msra.mxu0 0.0
        %1966 = vmatprep.subr.mxu0 0.0
        %1967 = vmatpush1.xpose.msra.mxu0 0.0
        %1968 = vmatprep.subr.mxu0 0.0
        %1969 = vmatpush1.xpose.msra.mxu0 0.0
        %1970 = vmatprep.subr.mxu0 0.0
        %1971 = vmatpush1.xpose.msra.mxu0 0.0
        %1972 = vmatprep.subr.mxu0 0.0
        %1973 = vmatpush1.xpose.msra.mxu0 0.0
        %1974 = vmatprep.subr.mxu0 0.0
        %1975 = vmatpush1.xpose.msra.mxu0 0.0
        %1976 = vmatprep.subr.mxu0 0.0
        %1977 = vmatpush1.xpose.msra.mxu0 0.0
        %1978 = vmatprep.subr.mxu0 0.0
        %1979 = vmatpush1.xpose.msra.mxu0 0.0
        %1980 = vmatprep.subr.mxu0 0.0
        %1981 = vmatpush1.xpose.msra.mxu0 0.0
        %1982 = vmatprep.subr.mxu0 0.0
        %1983 = vmatpush1.xpose.msra.mxu0 0.0
        %1984 = vmatprep.subr.mxu0 0.0
        %1985 = vmatpush1.xpose.msra.mxu0 0.0
        %1986 = vmatprep.subr.mxu0 0.0
        %1987 = vmatpush1.xpose.msra.mxu0 0.0
        %1988 = vmatprep.subr.mxu0 0.0
        %1989 = vmatpush1.xpose.msra.mxu0 0.0
        %1990 = vmatprep.subr.mxu0 0.0
        %1991 = vmatpush1.xpose.msra.mxu0 0.0
        %1992 = vmatprep.subr.mxu0 0.0
        %1993 = vmatpush1.xpose.msra.mxu0 0.0
        %1994 = vmatprep.mubr.f32.mxu0 0.0
        %1995 = vmatmul.mubr.f32.gmra.mrb[0].mxu0 %v1222
        %v1996 = vpop.f32.mrb[0].mxu0
        %v1997 = vadd.f32 0.0, %v1996
        %v1998 = vpop.f32.mrb[0].mxu0
        %1999 = vdwg.mxu0
        %v2001 = vsel %vm885, %v1578, 0
        %v2004 = vsel %vm885, %v1579, 0
        %v2007 = vsel %vm885, %v1580, 0
        %v2010 = vsel %vm885, %v1581, 0
        %2012 = vmatprep.subr.mxu0 0.0
        %2013 = vmatpush1.xpose.msra.mxu0 %v2001
        %2014 = vmatprep.subr.mxu0 0.0
        %2015 = vmatpush1.xpose.msra.mxu0 %v2004
        %2016 = vmatprep.subr.mxu0 0.0
        %2017 = vmatpush1.xpose.msra.mxu0 %v2007
        %2018 = vmatprep.subr.mxu0 0.0
        %2019 = vmatpush1.xpose.msra.mxu0 %v2010
        %2020 = vmatprep.subr.mxu0 0.0
        %2021 = vmatpush1.xpose.msra.mxu0 0.0
        %2022 = vmatprep.subr.mxu0 0.0
        %2023 = vmatpush1.xpose.msra.mxu0 0.0
        %2024 = vmatprep.subr.mxu0 0.0
        %2025 = vmatpush1.xpose.msra.mxu0 0.0
        %2026 = vmatprep.subr.mxu0 0.0
        %2027 = vmatpush1.xpose.msra.mxu0 0.0
        %2028 = vmatprep.subr.mxu0 0.0
        %2029 = vmatpush1.xpose.msra.mxu0 0.0
        %2030 = vmatprep.subr.mxu0 0.0
        %2031 = vmatpush1.xpose.msra.mxu0 0.0
        %2032 = vmatprep.subr.mxu0 0.0
        %2033 = vmatpush1.xpose.msra.mxu0 0.0
        %2034 = vmatprep.subr.mxu0 0.0
        %2035 = vmatpush1.xpose.msra.mxu0 0.0
        %2036 = vmatprep.subr.mxu0 0.0
        %2037 = vmatpush1.xpose.msra.mxu0 0.0
        %2038 = vmatprep.subr.mxu0 0.0
        %2039 = vmatpush1.xpose.msra.mxu0 0.0
        %2040 = vmatprep.subr.mxu0 0.0
        %2041 = vmatpush1.xpose.msra.mxu0 0.0
        %2042 = vmatprep.subr.mxu0 0.0
        %2043 = vmatpush1.xpose.msra.mxu0 0.0
        %2044 = vmatprep.subr.mxu0 0.0
        %2045 = vmatpush1.xpose.msra.mxu0 0.0
        %2046 = vmatprep.subr.mxu0 0.0
        %2047 = vmatpush1.xpose.msra.mxu0 0.0
        %2048 = vmatprep.subr.mxu0 0.0
        %2049 = vmatpush1.xpose.msra.mxu0 0.0
        %2050 = vmatprep.subr.mxu0 0.0
        %2051 = vmatpush1.xpose.msra.mxu0 0.0
        %2052 = vmatprep.subr.mxu0 0.0
        %2053 = vmatpush1.xpose.msra.mxu0 0.0
        %2054 = vmatprep.subr.mxu0 0.0
        %2055 = vmatpush1.xpose.msra.mxu0 0.0
        %2056 = vmatprep.subr.mxu0 0.0
        %2057 = vmatpush1.xpose.msra.mxu0 0.0
        %2058 = vmatprep.subr.mxu0 0.0
        %2059 = vmatpush1.xpose.msra.mxu0 0.0
        %2060 = vmatprep.subr.mxu0 0.0
        %2061 = vmatpush1.xpose.msra.mxu0 0.0
        %2062 = vmatprep.subr.mxu0 0.0
        %2063 = vmatpush1.xpose.msra.mxu0 0.0
        %2064 = vmatprep.subr.mxu0 0.0
        %2065 = vmatpush1.xpose.msra.mxu0 0.0
        %2066 = vmatprep.subr.mxu0 0.0
        %2067 = vmatpush1.xpose.msra.mxu0 0.0
        %2068 = vmatprep.subr.mxu0 0.0
        %2069 = vmatpush1.xpose.msra.mxu0 0.0
        %2070 = vmatprep.subr.mxu0 0.0
        %2071 = vmatpush1.xpose.msra.mxu0 0.0
        %2072 = vmatprep.subr.mxu0 0.0
        %2073 = vmatpush1.xpose.msra.mxu0 0.0
        %2074 = vmatprep.subr.mxu0 0.0
        %2075 = vmatpush1.xpose.msra.mxu0 0.0
        %2076 = vmatprep.mubr.f32.mxu0 0.0
        %2077 = vmatmul.mubr.f32.gmra.mrb[0].mxu0 %v1306
        %v2078 = vpop.f32.mrb[0].mxu0
        %v2079 = vadd.f32 0.0, %v2078
        %v2080 = vpop.f32.mrb[0].mxu0
        %2081 = vdwg.mxu0
        %v2083 = vsel %vm885, %v1582, 0
        %v2086 = vsel %vm885, %v1583, 0
        %v2089 = vsel %vm885, %v1584, 0
        %v2092 = vsel %vm885, %v1585, 0
        %2094 = vmatprep.subr.mxu0 0.0
        %2095 = vmatpush1.xpose.msra.mxu0 %v2083
        %2096 = vmatprep.subr.mxu0 0.0
        %2097 = vmatpush1.xpose.msra.mxu0 %v2086
        %2098 = vmatprep.subr.mxu0 0.0
        %2099 = vmatpush1.xpose.msra.mxu0 %v2089
        %2100 = vmatprep.subr.mxu0 0.0
        %2101 = vmatpush1.xpose.msra.mxu0 %v2092
        %2102 = vmatprep.subr.mxu0 0.0
        %2103 = vmatpush1.xpose.msra.mxu0 0.0
        %2104 = vmatprep.subr.mxu0 0.0
        %2105 = vmatpush1.xpose.msra.mxu0 0.0
        %2106 = vmatprep.subr.mxu0 0.0
        %2107 = vmatpush1.xpose.msra.mxu0 0.0
        %2108 = vmatprep.subr.mxu0 0.0
        %2109 = vmatpush1.xpose.msra.mxu0 0.0
        %2110 = vmatprep.subr.mxu0 0.0
        %2111 = vmatpush1.xpose.msra.mxu0 0.0
        %2112 = vmatprep.subr.mxu0 0.0
        %2113 = vmatpush1.xpose.msra.mxu0 0.0
        %2114 = vmatprep.subr.mxu0 0.0
        %2115 = vmatpush1.xpose.msra.mxu0 0.0
        %2116 = vmatprep.subr.mxu0 0.0
        %2117 = vmatpush1.xpose.msra.mxu0 0.0
        %2118 = vmatprep.subr.mxu0 0.0
        %2119 = vmatpush1.xpose.msra.mxu0 0.0
        %2120 = vmatprep.subr.mxu0 0.0
        %2121 = vmatpush1.xpose.msra.mxu0 0.0
        %2122 = vmatprep.subr.mxu0 0.0
        %2123 = vmatpush1.xpose.msra.mxu0 0.0
        %2124 = vmatprep.subr.mxu0 0.0
        %2125 = vmatpush1.xpose.msra.mxu0 0.0
        %2126 = vmatprep.subr.mxu0 0.0
        %2127 = vmatpush1.xpose.msra.mxu0 0.0
        %2128 = vmatprep.subr.mxu0 0.0
        %2129 = vmatpush1.xpose.msra.mxu0 0.0
        %2130 = vmatprep.subr.mxu0 0.0
        %2131 = vmatpush1.xpose.msra.mxu0 0.0
        %2132 = vmatprep.subr.mxu0 0.0
        %2133 = vmatpush1.xpose.msra.mxu0 0.0
        %2134 = vmatprep.subr.mxu0 0.0
        %2135 = vmatpush1.xpose.msra.mxu0 0.0
        %2136 = vmatprep.subr.mxu0 0.0
        %2137 = vmatpush1.xpose.msra.mxu0 0.0
        %2138 = vmatprep.subr.mxu0 0.0
        %2139 = vmatpush1.xpose.msra.mxu0 0.0
        %2140 = vmatprep.subr.mxu0 0.0
        %2141 = vmatpush1.xpose.msra.mxu0 0.0
        %2142 = vmatprep.subr.mxu0 0.0
        %2143 = vmatpush1.xpose.msra.mxu0 0.0
        %2144 = vmatprep.subr.mxu0 0.0
        %2145 = vmatpush1.xpose.msra.mxu0 0.0
        %2146 = vmatprep.subr.mxu0 0.0
        %2147 = vmatpush1.xpose.msra.mxu0 0.0
        %2148 = vmatprep.subr.mxu0 0.0
        %2149 = vmatpush1.xpose.msra.mxu0 0.0
        %2150 = vmatprep.subr.mxu0 0.0
        %2151 = vmatpush1.xpose.msra.mxu0 0.0
        %2152 = vmatprep.subr.mxu0 0.0
        %2153 = vmatpush1.xpose.msra.mxu0 0.0
        %2154 = vmatprep.subr.mxu0 0.0
        %2155 = vmatpush1.xpose.msra.mxu0 0.0
        %2156 = vmatprep.subr.mxu0 0.0
        %2157 = vmatpush1.xpose.msra.mxu0 0.0
        %2158 = vmatprep.mubr.f32.mxu0 0.0
        %2159 = vmatmul.mubr.f32.gmra.mrb[0].mxu0 %v1390
        %v2160 = vpop.f32.mrb[0].mxu0
        %v2161 = vadd.f32 0.0, %v2160
        %v2162 = vpop.f32.mrb[0].mxu0
        %2163 = vdwg.mxu0
        %v2165 = vsel %vm885, %v1586, 0
        %v2168 = vsel %vm885, %v1587, 0
        %v2171 = vsel %vm885, %v1588, 0
        %v2174 = vsel %vm885, %v1589, 0
        %2176 = vmatprep.subr.mxu0 0.0
        %2177 = vmatpush1.xpose.msra.mxu0 %v2165
        %2178 = vmatprep.subr.mxu0 0.0
        %2179 = vmatpush1.xpose.msra.mxu0 %v2168
        %2180 = vmatprep.subr.mxu0 0.0
        %2181 = vmatpush1.xpose.msra.mxu0 %v2171
        %2182 = vmatprep.subr.mxu0 0.0
        %2183 = vmatpush1.xpose.msra.mxu0 %v2174
        %2184 = vmatprep.subr.mxu0 0.0
        %2185 = vmatpush1.xpose.msra.mxu0 0.0
        %2186 = vmatprep.subr.mxu0 0.0
        %2187 = vmatpush1.xpose.msra.mxu0 0.0
        %2188 = vmatprep.subr.mxu0 0.0
        %2189 = vmatpush1.xpose.msra.mxu0 0.0
        %2190 = vmatprep.subr.mxu0 0.0
        %2191 = vmatpush1.xpose.msra.mxu0 0.0
        %2192 = vmatprep.subr.mxu0 0.0
        %2193 = vmatpush1.xpose.msra.mxu0 0.0
        %2194 = vmatprep.subr.mxu0 0.0
        %2195 = vmatpush1.xpose.msra.mxu0 0.0
        %2196 = vmatprep.subr.mxu0 0.0
        %2197 = vmatpush1.xpose.msra.mxu0 0.0
        %2198 = vmatprep.subr.mxu0 0.0
        %2199 = vmatpush1.xpose.msra.mxu0 0.0
        %2200 = vmatprep.subr.mxu0 0.0
        %2201 = vmatpush1.xpose.msra.mxu0 0.0
        %2202 = vmatprep.subr.mxu0 0.0
        %2203 = vmatpush1.xpose.msra.mxu0 0.0
        %2204 = vmatprep.subr.mxu0 0.0
        %2205 = vmatpush1.xpose.msra.mxu0 0.0
        %2206 = vmatprep.subr.mxu0 0.0
        %2207 = vmatpush1.xpose.msra.mxu0 0.0
        %2208 = vmatprep.subr.mxu0 0.0
        %2209 = vmatpush1.xpose.msra.mxu0 0.0
        %2210 = vmatprep.subr.mxu0 0.0
        %2211 = vmatpush1.xpose.msra.mxu0 0.0
        %2212 = vmatprep.subr.mxu0 0.0
        %2213 = vmatpush1.xpose.msra.mxu0 0.0
        %2214 = vmatprep.subr.mxu0 0.0
        %2215 = vmatpush1.xpose.msra.mxu0 0.0
        %2216 = vmatprep.subr.mxu0 0.0
        %2217 = vmatpush1.xpose.msra.mxu0 0.0
        %2218 = vmatprep.subr.mxu0 0.0
        %2219 = vmatpush1.xpose.msra.mxu0 0.0
        %2220 = vmatprep.subr.mxu0 0.0
        %2221 = vmatpush1.xpose.msra.mxu0 0.0
        %2222 = vmatprep.subr.mxu0 0.0
        %2223 = vmatpush1.xpose.msra.mxu0 0.0
        %2224 = vmatprep.subr.mxu0 0.0
        %2225 = vmatpush1.xpose.msra.mxu0 0.0
        %2226 = vmatprep.subr.mxu0 0.0
        %2227 = vmatpush1.xpose.msra.mxu0 0.0
        %2228 = vmatprep.subr.mxu0 0.0
        %2229 = vmatpush1.xpose.msra.mxu0 0.0
        %2230 = vmatprep.subr.mxu0 0.0
        %2231 = vmatpush1.xpose.msra.mxu0 0.0
        %2232 = vmatprep.subr.mxu0 0.0
        %2233 = vmatpush1.xpose.msra.mxu0 0.0
        %2234 = vmatprep.subr.mxu0 0.0
        %2235 = vmatpush1.xpose.msra.mxu0 0.0
        %2236 = vmatprep.subr.mxu0 0.0
        %2237 = vmatpush1.xpose.msra.mxu0 0.0
        %2238 = vmatprep.subr.mxu0 0.0
        %2239 = vmatpush1.xpose.msra.mxu0 0.0
        %2240 = vmatprep.mubr.f32.mxu0 0.0
        %2241 = vmatmul.mubr.f32.gmra.mrb[0].mxu0 %v1474
        %v2242 = vpop.f32.mrb[0].mxu0
        %v2243 = vadd.f32 0.0, %v2242
        %v2244 = vpop.f32.mrb[0].mxu0
        %2245 = vdwg.mxu0
        %v2254 = vrot.slane %v1669, 1
        %v2255 = vrot.slane %v1751, 1
        %v2256 = vrot.slane %v1833, 1
        %v2257 = vrot.slane %v1915, 1
        %v2258 = vrot.slane %v1997, 1
        %v2259 = vrot.slane %v2079, 1
        %v2260 = vrot.slane %v2161, 1
        %v2261 = vrot.slane %v2243, 1
        %v2270 = vsub.f32 %v967, %v2254
        %v2271 = vsub.f32 %v1051, %v2255
        %v2272 = vsub.f32 %v1135, %v2256
        %v2273 = vsub.f32 %v1219, %v2257
        %v2274 = vsub.f32 %v1303, %v2258
        %v2275 = vsub.f32 %v1387, %v2259
        %v2276 = vsub.f32 %v1471, %v2260
        %v2277 = vsub.f32 %v1555, %v2261
        %v2286 = vrot.slane %v967, 1
        %v2287 = vrot.slane %v1051, 1
        %v2288 = vrot.slane %v1135, 1
        %v2289 = vrot.slane %v1219, 1
        %v2290 = vrot.slane %v1303, 1
        %v2291 = vrot.slane %v1387, 1
        %v2292 = vrot.slane %v1471, 1
        %v2293 = vrot.slane %v1555, 1
        %v2302 = vadd.f32 %v1669, %v2286
        %v2303 = vadd.f32 %v1751, %v2287
        %v2304 = vadd.f32 %v1833, %v2288
        %v2305 = vadd.f32 %v1915, %v2289
        %v2306 = vadd.f32 %v1997, %v2290
        %v2307 = vadd.f32 %v2079, %v2291
        %v2308 = vadd.f32 %v2161, %v2292
        %v2309 = vadd.f32 %v2243, %v2293
        %v2318 = vrot.slane %v2271, 7
        %vm2319 = vcmask 1041409
        %v2320 = vsel %vm2319, %v2318, %v2270
        %v2321 = vrot.slane %v2272, 6
        %vm2322 = vcmask 1042434
        %v2323 = vsel %vm2322, %v2321, %v2320
        %v2324 = vrot.slane %v2273, 5
        %vm2325 = vcmask 1043459
        %v2326 = vsel %vm2325, %v2324, %v2323
        %v2327 = vrot.slane %v2274, 4
        %vm2328 = vcmask 1044484
        %v2329 = vsel %vm2328, %v2327, %v2326
        %v2330 = vrot.slane %v2275, 3
        %vm2331 = vcmask 1045509
        %v2332 = vsel %vm2331, %v2330, %v2329
        %v2333 = vrot.slane %v2276, 2
        %vm2334 = vcmask 1046534
        %v2335 = vsel %vm2334, %v2333, %v2332
        %v2336 = vrot.slane %v2277, 1
        %vm2337 = vcmask 1047559
        %v2338 = vsel %vm2337, %v2336, %v2335
        %v2348 = vrot.slane %v2303, 7
        %v2349 = vsel %vm2319, %v2348, %v2302
        %v2350 = vrot.slane %v2304, 6
        %v2351 = vsel %vm2322, %v2350, %v2349
        %v2352 = vrot.slane %v2305, 5
        %v2353 = vsel %vm2325, %v2352, %v2351
        %v2354 = vrot.slane %v2306, 4
        %v2355 = vsel %vm2328, %v2354, %v2353
        %v2356 = vrot.slane %v2307, 3
        %v2357 = vsel %vm2331, %v2356, %v2355
        %v2358 = vrot.slane %v2308, 2
        %v2359 = vsel %vm2334, %v2358, %v2357
        %v2360 = vrot.slane %v2309, 1
        %v2361 = vsel %vm2337, %v2360, %v2359
        %v2363 = vld [vmem:[#allocation9] sm:$0xff]
        %v2364 = vld [vmem:[#allocation9 + $0x8] sm:$0xff]
        %v2365 = vld [vmem:[#allocation14] sm:$0xff]
        %v2366 = vld [vmem:[#allocation14 + $0x8] sm:$0xff]
        %v2367 = vld [vmem:[#allocation14 + $0x10] sm:$0xff]
        %v2368 = vld [vmem:[#allocation14 + $0x18] sm:$0xff]
        %v2370 = vsel %vm885, %v725, 0
        %v2373 = vsel %vm885, %v730, 0
        %v2376 = vsel %vm885, %v2365, 0
        %v2379 = vsel %vm885, %v2366, 0
        %v2382 = vsel %vm885, %v2367, 0
        %v2385 = vsel %vm885, %v2368, 0
        %2387 = vmatprep.subr.mxu0 0.0
        %2388 = vmatpush1.xpose.msra.mxu0 %v2376
        %2389 = vmatprep.subr.mxu0 0.0
        %2390 = vmatpush1.xpose.msra.mxu0 %v2379
        %2391 = vmatprep.subr.mxu0 0.0
        %2392 = vmatpush1.xpose.msra.mxu0 %v2382
        %2393 = vmatprep.subr.mxu0 0.0
        %2394 = vmatpush1.xpose.msra.mxu0 %v2385
        %2395 = vmatprep.subr.mxu0 0.0
        %2396 = vmatpush1.xpose.msra.mxu0 0.0
        %2397 = vmatprep.subr.mxu0 0.0
        %2398 = vmatpush1.xpose.msra.mxu0 0.0
        %2399 = vmatprep.subr.mxu0 0.0
        %2400 = vmatpush1.xpose.msra.mxu0 0.0
        %2401 = vmatprep.subr.mxu0 0.0
        %2402 = vmatpush1.xpose.msra.mxu0 0.0
        %2403 = vmatprep.subr.mxu0 0.0
        %2404 = vmatpush1.xpose.msra.mxu0 0.0
        %2405 = vmatprep.subr.mxu0 0.0
        %2406 = vmatpush1.xpose.msra.mxu0 0.0
        %2407 = vmatprep.subr.mxu0 0.0
        %2408 = vmatpush1.xpose.msra.mxu0 0.0
        %2409 = vmatprep.subr.mxu0 0.0
        %2410 = vmatpush1.xpose.msra.mxu0 0.0
        %2411 = vmatprep.subr.mxu0 0.0
        %2412 = vmatpush1.xpose.msra.mxu0 0.0
        %2413 = vmatprep.subr.mxu0 0.0
        %2414 = vmatpush1.xpose.msra.mxu0 0.0
        %2415 = vmatprep.subr.mxu0 0.0
        %2416 = vmatpush1.xpose.msra.mxu0 0.0
        %2417 = vmatprep.subr.mxu0 0.0
        %2418 = vmatpush1.xpose.msra.mxu0 0.0
        %2419 = vmatprep.subr.mxu0 0.0
        %2420 = vmatpush1.xpose.msra.mxu0 0.0
        %2421 = vmatprep.subr.mxu0 0.0
        %2422 = vmatpush1.xpose.msra.mxu0 0.0
        %2423 = vmatprep.subr.mxu0 0.0
        %2424 = vmatpush1.xpose.msra.mxu0 0.0
        %2425 = vmatprep.subr.mxu0 0.0
        %2426 = vmatpush1.xpose.msra.mxu0 0.0
        %2427 = vmatprep.subr.mxu0 0.0
        %2428 = vmatpush1.xpose.msra.mxu0 0.0
        %2429 = vmatprep.subr.mxu0 0.0
        %2430 = vmatpush1.xpose.msra.mxu0 0.0
        %2431 = vmatprep.subr.mxu0 0.0
        %2432 = vmatpush1.xpose.msra.mxu0 0.0
        %2433 = vmatprep.subr.mxu0 0.0
        %2434 = vmatpush1.xpose.msra.mxu0 0.0
        %2435 = vmatprep.subr.mxu0 0.0
        %2436 = vmatpush1.xpose.msra.mxu0 0.0
        %2437 = vmatprep.subr.mxu0 0.0
        %2438 = vmatpush1.xpose.msra.mxu0 0.0
        %2439 = vmatprep.subr.mxu0 0.0
        %2440 = vmatpush1.xpose.msra.mxu0 0.0
        %2441 = vmatprep.subr.mxu0 0.0
        %2442 = vmatpush1.xpose.msra.mxu0 0.0
        %2443 = vmatprep.subr.mxu0 0.0
        %2444 = vmatpush1.xpose.msra.mxu0 0.0
        %2445 = vmatprep.subr.mxu0 0.0
        %2446 = vmatpush1.xpose.msra.mxu0 0.0
        %2447 = vmatprep.subr.mxu0 0.0
        %2448 = vmatpush1.xpose.msra.mxu0 0.0
        %2449 = vmatprep.subr.mxu0 0.0
        %2450 = vmatpush1.xpose.msra.mxu0 0.0
        %2451 = vmatprep.mubr.f32.mxu0 0.0
        %2452 = vmatmul.mubr.f32.gmra.mrb[0].mxu0 %v2370
        %v2453 = vpop.f32.mrb[0].mxu0
        %v2454 = vadd.f32 0.0, %v2453
        %v2455 = vpop.f32.mrb[0].mxu0
        %2456 = vmatprep.mubr.f32.mxu0 0.0
        %2457 = vmatmul.mubr.f32.gmra.mrb[0].mxu0 %v2373
        %v2458 = vpop.f32.mrb[0].mxu0
        %v2459 = vadd.f32 0.0, %v2458
        %v2460 = vpop.f32.mrb[0].mxu0
        %2461 = vdwg.mxu0
        %v2463 = vsel %vm735, %v2363, 0
        %v2466 = vsel %vm735, %v2364, 0
        %2468 = vmatprep.subr.mxu0 0.0
        %2469 = vmatpush1.msra.mxu0 %v2338
        %2470 = vmatprep.subr.mxu0 0.0
        %2471 = vmatpush1.msra.mxu0 %v2361
        %2472 = vmatprep.subr.mxu0 0.0
        %2473 = vmatpush1.msra.mxu0 0.0
        %2474 = vmatprep.subr.mxu0 0.0
        %2475 = vmatpush1.msra.mxu0 0.0
        %2476 = vmatprep.subr.mxu0 0.0
        %2477 = vmatpush1.msra.mxu0 0.0
        %2478 = vmatprep.subr.mxu0 0.0
        %2479 = vmatpush1.msra.mxu0 0.0
        %2480 = vmatprep.subr.mxu0 0.0
        %2481 = vmatpush1.msra.mxu0 0.0
        %2482 = vmatprep.subr.mxu0 0.0
        %2483 = vmatpush1.msra.mxu0 0.0
        %2484 = vmatprep.subr.mxu0 0.0
        %2485 = vmatpush1.msra.mxu0 0.0
        %2486 = vmatprep.subr.mxu0 0.0
        %2487 = vmatpush1.msra.mxu0 0.0
        %2488 = vmatprep.subr.mxu0 0.0
        %2489 = vmatpush1.msra.mxu0 0.0
        %2490 = vmatprep.subr.mxu0 0.0
        %2491 = vmatpush1.msra.mxu0 0.0
        %2492 = vmatprep.subr.mxu0 0.0
        %2493 = vmatpush1.msra.mxu0 0.0
        %2494 = vmatprep.subr.mxu0 0.0
        %2495 = vmatpush1.msra.mxu0 0.0
        %2496 = vmatprep.subr.mxu0 0.0
        %2497 = vmatpush1.msra.mxu0 0.0
        %2498 = vmatprep.subr.mxu0 0.0
        %2499 = vmatpush1.msra.mxu0 0.0
        %2500 = vmatprep.subr.mxu0 0.0
        %2501 = vmatpush1.msra.mxu0 0.0
        %2502 = vmatprep.subr.mxu0 0.0
        %2503 = vmatpush1.msra.mxu0 0.0
        %2504 = vmatprep.subr.mxu0 0.0
        %2505 = vmatpush1.msra.mxu0 0.0
        %2506 = vmatprep.subr.mxu0 0.0
        %2507 = vmatpush1.msra.mxu0 0.0
        %2508 = vmatprep.subr.mxu0 0.0
        %2509 = vmatpush1.msra.mxu0 0.0
        %2510 = vmatprep.subr.mxu0 0.0
        %2511 = vmatpush1.msra.mxu0 0.0
        %2512 = vmatprep.subr.mxu0 0.0
        %2513 = vmatpush1.msra.mxu0 0.0
        %2514 = vmatprep.subr.mxu0 0.0
        %2515 = vmatpush1.msra.mxu0 0.0
        %2516 = vmatprep.subr.mxu0 0.0
        %2517 = vmatpush1.msra.mxu0 0.0
        %2518 = vmatprep.subr.mxu0 0.0
        %2519 = vmatpush1.msra.mxu0 0.0
        %2520 = vmatprep.subr.mxu0 0.0
        %2521 = vmatpush1.msra.mxu0 0.0
        %2522 = vmatprep.subr.mxu0 0.0
        %2523 = vmatpush1.msra.mxu0 0.0
        %2524 = vmatprep.subr.mxu0 0.0
        %2525 = vmatpush1.msra.mxu0 0.0
        %2526 = vmatprep.subr.mxu0 0.0
        %2527 = vmatpush1.msra.mxu0 0.0
        %2528 = vmatprep.subr.mxu0 0.0
        %2529 = vmatpush1.msra.mxu0 0.0
        %2530 = vmatprep.subr.mxu0 0.0
        %2531 = vmatpush1.msra.mxu0 0.0
        %2532 = vmatprep.mubr.f32.mxu0 0.0
        %2533 = vmatmul.mubr.f32.gmra.mrb[0].mxu0 %v2463
        %v2534 = vpop.f32.mrb[0].mxu0
        %v2535 = vadd.f32 %v2454, %v2534
        %v2536 = vpop.f32.mrb[0].mxu0
        %2537 = vmatprep.mubr.f32.mxu0 0.0
        %2538 = vmatmul.mubr.f32.gmra.mrb[0].mxu0 %v2466
        %v2539 = vpop.f32.mrb[0].mxu0
        %v2540 = vadd.f32 %v2459, %v2539
        %v2541 = vpop.f32.mrb[0].mxu0
        %2542 = vdwg.mxu0
        %v2543 = vld [vmem:[#allocation15] sm:$0x1]
        %v2545 = vlaneseq
        %v2546 = vshrl.u32 %v2545, 7
        %v2547 = vsub.s32 0, %v2546
        %v2548 = vrot.slane %v2543, %v2547
        %v2550 = vadd.f32 %v2535, %v2548
        %v2551 = vadd.f32 %v2540, %v2548
        %v2552 = vmul.f32 %v2550, 0.5
        %v2553 = vmul.f32 %v2551, 0.5
        %v2554 = vmul.f32 %v2550, 0.70710677
        %v2555 = vmul.f32 %v2551, 0.70710677
        %v2556 = verf.f32.pop %v2554
        %v2557 = verf.f32.pop %v2555
        %v2558 = vadd.f32 %v2556, 1.0
        %v2559 = vadd.f32 %v2557, 1.0
        %v2560 = vmul.f32 %v2552, %v2558
        %v2561 = vmul.f32 %v2553, %v2559
        %2562 = vmatprep.subr.mxu0 0.0
        %2563 = vmatpush1.msra.mxu0 %v2560
        %2564 = vmatprep.subr.mxu0 0.0
        %2565 = vmatpush1.msra.mxu0 %v2561
        %2566 = vmatprep.subr.mxu0 0.0
        %2567 = vmatpush1.msra.mxu0 0.0
        %2568 = vmatprep.subr.mxu0 0.0
        %2569 = vmatpush1.msra.mxu0 0.0
        %2570 = vmatprep.subr.mxu0 0.0
        %2571 = vmatpush1.msra.mxu0 0.0
        %2572 = vmatprep.subr.mxu0 0.0
        %2573 = vmatpush1.msra.mxu0 0.0
        %2574 = vmatprep.subr.mxu0 0.0
        %2575 = vmatpush1.msra.mxu0 0.0
        %2576 = vmatprep.subr.mxu0 0.0
        %2577 = vmatpush1.msra.mxu0 0.0
        %2578 = vmatprep.subr.mxu0 0.0
        %2579 = vmatpush1.msra.mxu0 0.0
        %2580 = vmatprep.subr.mxu0 0.0
        %2581 = vmatpush1.msra.mxu0 0.0
        %2582 = vmatprep.subr.mxu0 0.0
        %2583 = vmatpush1.msra.mxu0 0.0
        %2584 = vmatprep.subr.mxu0 0.0
        %2585 = vmatpush1.msra.mxu0 0.0
        %2586 = vmatprep.subr.mxu0 0.0
        %2587 = vmatpush1.msra.mxu0 0.0
        %2588 = vmatprep.subr.mxu0 0.0
        %2589 = vmatpush1.msra.mxu0 0.0
        %2590 = vmatprep.subr.mxu0 0.0
        %2591 = vmatpush1.msra.mxu0 0.0
        %2592 = vmatprep.subr.mxu0 0.0
        %2593 = vmatpush1.msra.mxu0 0.0
        %2594 = vmatprep.subr.mxu0 0.0
        %2595 = vmatpush1.msra.mxu0 0.0
        %2596 = vmatprep.subr.mxu0 0.0
        %2597 = vmatpush1.msra.mxu0 0.0
        %2598 = vmatprep.subr.mxu0 0.0
        %2599 = vmatpush1.msra.mxu0 0.0
        %2600 = vmatprep.subr.mxu0 0.0
        %2601 = vmatpush1.msra.mxu0 0.0
        %2602 = vmatprep.subr.mxu0 0.0
        %2603 = vmatpush1.msra.mxu0 0.0
        %2604 = vmatprep.subr.mxu0 0.0
        %2605 = vmatpush1.msra.mxu0 0.0
        %2606 = vmatprep.subr.mxu0 0.0
        %2607 = vmatpush1.msra.mxu0 0.0
        %2608 = vmatprep.subr.mxu0 0.0
        %2609 = vmatpush1.msra.mxu0 0.0
        %2610 = vmatprep.subr.mxu0 0.0
        %2611 = vmatpush1.msra.mxu0 0.0
        %2612 = vmatprep.subr.mxu0 0.0
        %2613 = vmatpush1.msra.mxu0 0.0
        %2614 = vmatprep.subr.mxu0 0.0
        %2615 = vmatpush1.msra.mxu0 0.0
        %2616 = vmatprep.subr.mxu0 0.0
        %2617 = vmatpush1.msra.mxu0 0.0
        %2618 = vmatprep.subr.mxu0 0.0
        %2619 = vmatpush1.msra.mxu0 0.0
        %2620 = vmatprep.subr.mxu0 0.0
        %2621 = vmatpush1.msra.mxu0 0.0
        %2622 = vmatprep.subr.mxu0 0.0
        %2623 = vmatpush1.msra.mxu0 0.0
        %2624 = vmatprep.subr.mxu0 0.0
        %2625 = vmatpush1.msra.mxu0 0.0
        %2626 = vmatprep.mubr.f32.mxu0 0.0
        %2627 = vmatmul.mubr.f32.gmra.mrb[0].mxu0 %v737
        %v2628 = vpop.f32.mrb[0].mxu0
        %v2629 = vadd.f32 0.0, %v2628
        %v2630 = vpop.f32.mrb[0].mxu0
        %2631 = vmatprep.mubr.f32.mxu0 0.0
        %2632 = vmatmul.mubr.f32.gmra.mrb[0].mxu0 %v740
        %v2633 = vpop.f32.mrb[0].mxu0
        %v2634 = vadd.f32 0.0, %v2633
        %v2635 = vpop.f32.mrb[0].mxu0
        %2636 = vdwg.mxu0
        %v2639 = vcombine.high %v2629, %v2629
        %v2641 = vunpack.c.l.s4 1983009808
        %v2642 = vunpack.c.0.s8 %v2641
        %v2643 = vlaneseq
        %v2644 = vshrl.u32 %v2643, 7
        %v2645 = vsub.s32 %v2642, %v2644
        %v2646 = vrot.slane %v2629, %v2645
        %v2648 = vunpack.c.l.s4 1983009808
        %v2649 = vunpack.c.0.s8 %v2648
        %v2650 = vlaneseq
        %v2651 = vshrl.u32 %v2650, 7
        %v2652 = vsub.s32 %v2649, %v2651
        %v2653 = vrot.slane %v2639, %v2652
        %v2654 = vcombine.high %v2646, %v2646
        %v2655 = vcombine.high %v2653, %v2653
        %v2656 = vcombine.high %v2634, %v2634
        %v2658 = vunpack.c.l.s4 1983009808
        %v2659 = vunpack.c.0.s8 %v2658
        %v2660 = vlaneseq
        %v2661 = vshrl.u32 %v2660, 7
        %v2662 = vsub.s32 %v2659, %v2661
        %v2663 = vrot.slane %v2634, %v2662
        %v2665 = vunpack.c.l.s4 1983009808
        %v2666 = vunpack.c.0.s8 %v2665
        %v2667 = vlaneseq
        %v2668 = vshrl.u32 %v2667, 7
        %v2669 = vsub.s32 %v2666, %v2668
        %v2670 = vrot.slane %v2656, %v2669
        %v2671 = vcombine.high %v2663, %v2663
        %v2672 = vcombine.high %v2670, %v2670
        %s2673 = scalar_lea.vmem [#allocation11], 256
        %v2674 = vld [vmem:[%s2673] sm:$0xff]
        %v2675 = vld [vmem:[%s2673 + $0x8] sm:$0xff]
        %v2676 = vld [vmem:[%s2673 + $0x10] sm:$0xff]
        %v2677 = vld [vmem:[%s2673 + $0x18] sm:$0xff]
        %v2678 = vld [vmem:[%s2673 + $0x20] sm:$0xff]
        %v2679 = vld [vmem:[%s2673 + $0x28] sm:$0xff]
        %v2680 = vld [vmem:[%s2673 + $0x30] sm:$0xff]
        %v2681 = vld [vmem:[%s2673 + $0x38] sm:$0xff]
        %v2682 = vld [vmem:[%s2673 + $0x40] sm:$0xff]
        %v2683 = vld [vmem:[%s2673 + $0x48] sm:$0xff]
        %v2684 = vld [vmem:[%s2673 + $0x50] sm:$0xff]
        %v2685 = vld [vmem:[%s2673 + $0x58] sm:$0xff]
        %v2686 = vld [vmem:[%s2673 + $0x60] sm:$0xff]
        %v2687 = vld [vmem:[%s2673 + $0x68] sm:$0xff]
        %v2688 = vld [vmem:[%s2673 + $0x70] sm:$0xff]
        %v2689 = vld [vmem:[%s2673 + $0x78] sm:$0xff]
        %v2690 = vld [vmem:[%s2673 + $0x80] sm:$0xff]
        %v2691 = vld [vmem:[%s2673 + $0x88] sm:$0xff]
        %v2692 = vld [vmem:[%s2673 + $0x90] sm:$0xff]
        %v2693 = vld [vmem:[%s2673 + $0x98] sm:$0xff]
        %v2694 = vld [vmem:[%s2673 + $0xa0] sm:$0xff]
        %v2695 = vld [vmem:[%s2673 + $0xa8] sm:$0xff]
        %v2696 = vld [vmem:[%s2673 + $0xb0] sm:$0xff]
        %v2697 = vld [vmem:[%s2673 + $0xb8] sm:$0xff]
        %v2698 = vld [vmem:[%s2673 + $0xc0] sm:$0xff]
        %v2699 = vld [vmem:[%s2673 + $0xc8] sm:$0xff]
        %v2700 = vld [vmem:[%s2673 + $0xd0] sm:$0xff]
        %v2701 = vld [vmem:[%s2673 + $0xd8] sm:$0xff]
        %v2702 = vld [vmem:[%s2673 + $0xe0] sm:$0xff]
        %v2703 = vld [vmem:[%s2673 + $0xe8] sm:$0xff]
        %v2704 = vld [vmem:[%s2673 + $0xf0] sm:$0xff]
        %v2705 = vld [vmem:[%s2673 + $0xf8] sm:$0xff]
        %v2706 = vsel %vm885, %v2646, 0
        %v2709 = vsel %vm885, %v2674, 0
        %v2712 = vsel %vm885, %v2675, 0
        %v2715 = vsel %vm885, %v2676, 0
        %v2718 = vsel %vm885, %v2677, 0
        %2720 = vmatprep.subr.mxu0 0.0
        %2721 = vmatpush1.xpose.msra.mxu0 %v2709
        %2722 = vmatprep.subr.mxu0 0.0
        %2723 = vmatpush1.xpose.msra.mxu0 %v2712
        %2724 = vmatprep.subr.mxu0 0.0
        %2725 = vmatpush1.xpose.msra.mxu0 %v2715
        %2726 = vmatprep.subr.mxu0 0.0
        %2727 = vmatpush1.xpose.msra.mxu0 %v2718
        %2728 = vmatprep.subr.mxu0 0.0
        %2729 = vmatpush1.xpose.msra.mxu0 0.0
        %2730 = vmatprep.subr.mxu0 0.0
        %2731 = vmatpush1.xpose.msra.mxu0 0.0
        %2732 = vmatprep.subr.mxu0 0.0
        %2733 = vmatpush1.xpose.msra.mxu0 0.0
        %2734 = vmatprep.subr.mxu0 0.0
        %2735 = vmatpush1.xpose.msra.mxu0 0.0
        %2736 = vmatprep.subr.mxu0 0.0
        %2737 = vmatpush1.xpose.msra.mxu0 0.0
        %2738 = vmatprep.subr.mxu0 0.0
        %2739 = vmatpush1.xpose.msra.mxu0 0.0
        %2740 = vmatprep.subr.mxu0 0.0
        %2741 = vmatpush1.xpose.msra.mxu0 0.0
        %2742 = vmatprep.subr.mxu0 0.0
        %2743 = vmatpush1.xpose.msra.mxu0 0.0
        %2744 = vmatprep.subr.mxu0 0.0
        %2745 = vmatpush1.xpose.msra.mxu0 0.0
        %2746 = vmatprep.subr.mxu0 0.0
        %2747 = vmatpush1.xpose.msra.mxu0 0.0
        %2748 = vmatprep.subr.mxu0 0.0
        %2749 = vmatpush1.xpose.msra.mxu0 0.0
        %2750 = vmatprep.subr.mxu0 0.0
        %2751 = vmatpush1.xpose.msra.mxu0 0.0
        %2752 = vmatprep.subr.mxu0 0.0
        %2753 = vmatpush1.xpose.msra.mxu0 0.0
        %2754 = vmatprep.subr.mxu0 0.0
        %2755 = vmatpush1.xpose.msra.mxu0 0.0
        %2756 = vmatprep.subr.mxu0 0.0
        %2757 = vmatpush1.xpose.msra.mxu0 0.0
        %2758 = vmatprep.subr.mxu0 0.0
        %2759 = vmatpush1.xpose.msra.mxu0 0.0
        %2760 = vmatprep.subr.mxu0 0.0
        %2761 = vmatpush1.xpose.msra.mxu0 0.0
        %2762 = vmatprep.subr.mxu0 0.0
        %2763 = vmatpush1.xpose.msra.mxu0 0.0
        %2764 = vmatprep.subr.mxu0 0.0
        %2765 = vmatpush1.xpose.msra.mxu0 0.0
        %2766 = vmatprep.subr.mxu0 0.0
        %2767 = vmatpush1.xpose.msra.mxu0 0.0
        %2768 = vmatprep.subr.mxu0 0.0
        %2769 = vmatpush1.xpose.msra.mxu0 0.0
        %2770 = vmatprep.subr.mxu0 0.0
        %2771 = vmatpush1.xpose.msra.mxu0 0.0
        %2772 = vmatprep.subr.mxu0 0.0
        %2773 = vmatpush1.xpose.msra.mxu0 0.0
        %2774 = vmatprep.subr.mxu0 0.0
        %2775 = vmatpush1.xpose.msra.mxu0 0.0
        %2776 = vmatprep.subr.mxu0 0.0
        %2777 = vmatpush1.xpose.msra.mxu0 0.0
        %2778 = vmatprep.subr.mxu0 0.0
        %2779 = vmatpush1.xpose.msra.mxu0 0.0
        %2780 = vmatprep.subr.mxu0 0.0
        %2781 = vmatpush1.xpose.msra.mxu0 0.0
        %2782 = vmatprep.subr.mxu0 0.0
        %2783 = vmatpush1.xpose.msra.mxu0 0.0
        %2784 = vmatprep.mubr.f32.mxu0 0.0
        %2785 = vmatmul.mubr.f32.gmra.mrb[0].mxu0 %v2706
        %v2786 = vpop.f32.mrb[0].mxu0
        %v2787 = vadd.f32 0.0, %v2786
        %v2788 = vpop.f32.mrb[0].mxu0
        %2789 = vdwg.mxu0
        %v2790 = vsel %vm885, %v2654, 0
        %v2793 = vsel %vm885, %v2678, 0
        %v2796 = vsel %vm885, %v2679, 0
        %v2799 = vsel %vm885, %v2680, 0
        %v2802 = vsel %vm885, %v2681, 0
        %2804 = vmatprep.subr.mxu0 0.0
        %2805 = vmatpush1.xpose.msra.mxu0 %v2793
        %2806 = vmatprep.subr.mxu0 0.0
        %2807 = vmatpush1.xpose.msra.mxu0 %v2796
        %2808 = vmatprep.subr.mxu0 0.0
        %2809 = vmatpush1.xpose.msra.mxu0 %v2799
        %2810 = vmatprep.subr.mxu0 0.0
        %2811 = vmatpush1.xpose.msra.mxu0 %v2802
        %2812 = vmatprep.subr.mxu0 0.0
        %2813 = vmatpush1.xpose.msra.mxu0 0.0
        %2814 = vmatprep.subr.mxu0 0.0
        %2815 = vmatpush1.xpose.msra.mxu0 0.0
        %2816 = vmatprep.subr.mxu0 0.0
        %2817 = vmatpush1.xpose.msra.mxu0 0.0
        %2818 = vmatprep.subr.mxu0 0.0
        %2819 = vmatpush1.xpose.msra.mxu0 0.0
        %2820 = vmatprep.subr.mxu0 0.0
        %2821 = vmatpush1.xpose.msra.mxu0 0.0
        %2822 = vmatprep.subr.mxu0 0.0
        %2823 = vmatpush1.xpose.msra.mxu0 0.0
        %2824 = vmatprep.subr.mxu0 0.0
        %2825 = vmatpush1.xpose.msra.mxu0 0.0
        %2826 = vmatprep.subr.mxu0 0.0
        %2827 = vmatpush1.xpose.msra.mxu0 0.0
        %2828 = vmatprep.subr.mxu0 0.0
        %2829 = vmatpush1.xpose.msra.mxu0 0.0
        %2830 = vmatprep.subr.mxu0 0.0
        %2831 = vmatpush1.xpose.msra.mxu0 0.0
        %2832 = vmatprep.subr.mxu0 0.0
        %2833 = vmatpush1.xpose.msra.mxu0 0.0
        %2834 = vmatprep.subr.mxu0 0.0
        %2835 = vmatpush1.xpose.msra.mxu0 0.0
        %2836 = vmatprep.subr.mxu0 0.0
        %2837 = vmatpush1.xpose.msra.mxu0 0.0
        %2838 = vmatprep.subr.mxu0 0.0
        %2839 = vmatpush1.xpose.msra.mxu0 0.0
        %2840 = vmatprep.subr.mxu0 0.0
        %2841 = vmatpush1.xpose.msra.mxu0 0.0
        %2842 = vmatprep.subr.mxu0 0.0
        %2843 = vmatpush1.xpose.msra.mxu0 0.0
        %2844 = vmatprep.subr.mxu0 0.0
        %2845 = vmatpush1.xpose.msra.mxu0 0.0
        %2846 = vmatprep.subr.mxu0 0.0
        %2847 = vmatpush1.xpose.msra.mxu0 0.0
        %2848 = vmatprep.subr.mxu0 0.0
        %2849 = vmatpush1.xpose.msra.mxu0 0.0
        %2850 = vmatprep.subr.mxu0 0.0
        %2851 = vmatpush1.xpose.msra.mxu0 0.0
        %2852 = vmatprep.subr.mxu0 0.0
        %2853 = vmatpush1.xpose.msra.mxu0 0.0
        %2854 = vmatprep.subr.mxu0 0.0
        %2855 = vmatpush1.xpose.msra.mxu0 0.0
        %2856 = vmatprep.subr.mxu0 0.0
        %2857 = vmatpush1.xpose.msra.mxu0 0.0
        %2858 = vmatprep.subr.mxu0 0.0
        %2859 = vmatpush1.xpose.msra.mxu0 0.0
        %2860 = vmatprep.subr.mxu0 0.0
        %2861 = vmatpush1.xpose.msra.mxu0 0.0
        %2862 = vmatprep.subr.mxu0 0.0
        %2863 = vmatpush1.xpose.msra.mxu0 0.0
        %2864 = vmatprep.subr.mxu0 0.0
        %2865 = vmatpush1.xpose.msra.mxu0 0.0
        %2866 = vmatprep.subr.mxu0 0.0
        %2867 = vmatpush1.xpose.msra.mxu0 0.0
        %2868 = vmatprep.mubr.f32.mxu0 0.0
        %2869 = vmatmul.mubr.f32.gmra.mrb[0].mxu0 %v2790
        %v2870 = vpop.f32.mrb[0].mxu0
        %v2871 = vadd.f32 0.0, %v2870
        %v2872 = vpop.f32.mrb[0].mxu0
        %2873 = vdwg.mxu0
        %v2874 = vsel %vm885, %v2653, 0
        %v2877 = vsel %vm885, %v2682, 0
        %v2880 = vsel %vm885, %v2683, 0
        %v2883 = vsel %vm885, %v2684, 0
        %v2886 = vsel %vm885, %v2685, 0
        %2888 = vmatprep.subr.mxu0 0.0
        %2889 = vmatpush1.xpose.msra.mxu0 %v2877
        %2890 = vmatprep.subr.mxu0 0.0
        %2891 = vmatpush1.xpose.msra.mxu0 %v2880
        %2892 = vmatprep.subr.mxu0 0.0
        %2893 = vmatpush1.xpose.msra.mxu0 %v2883
        %2894 = vmatprep.subr.mxu0 0.0
        %2895 = vmatpush1.xpose.msra.mxu0 %v2886
        %2896 = vmatprep.subr.mxu0 0.0
        %2897 = vmatpush1.xpose.msra.mxu0 0.0
        %2898 = vmatprep.subr.mxu0 0.0
        %2899 = vmatpush1.xpose.msra.mxu0 0.0
        %2900 = vmatprep.subr.mxu0 0.0
        %2901 = vmatpush1.xpose.msra.mxu0 0.0
        %2902 = vmatprep.subr.mxu0 0.0
        %2903 = vmatpush1.xpose.msra.mxu0 0.0
        %2904 = vmatprep.subr.mxu0 0.0
        %2905 = vmatpush1.xpose.msra.mxu0 0.0
        %2906 = vmatprep.subr.mxu0 0.0
        %2907 = vmatpush1.xpose.msra.mxu0 0.0
        %2908 = vmatprep.subr.mxu0 0.0
        %2909 = vmatpush1.xpose.msra.mxu0 0.0
        %2910 = vmatprep.subr.mxu0 0.0
        %2911 = vmatpush1.xpose.msra.mxu0 0.0
        %2912 = vmatprep.subr.mxu0 0.0
        %2913 = vmatpush1.xpose.msra.mxu0 0.0
        %2914 = vmatprep.subr.mxu0 0.0
        %2915 = vmatpush1.xpose.msra.mxu0 0.0
        %2916 = vmatprep.subr.mxu0 0.0
        %2917 = vmatpush1.xpose.msra.mxu0 0.0
        %2918 = vmatprep.subr.mxu0 0.0
        %2919 = vmatpush1.xpose.msra.mxu0 0.0
        %2920 = vmatprep.subr.mxu0 0.0
        %2921 = vmatpush1.xpose.msra.mxu0 0.0
        %2922 = vmatprep.subr.mxu0 0.0
        %2923 = vmatpush1.xpose.msra.mxu0 0.0
        %2924 = vmatprep.subr.mxu0 0.0
        %2925 = vmatpush1.xpose.msra.mxu0 0.0
        %2926 = vmatprep.subr.mxu0 0.0
        %2927 = vmatpush1.xpose.msra.mxu0 0.0
        %2928 = vmatprep.subr.mxu0 0.0
        %2929 = vmatpush1.xpose.msra.mxu0 0.0
        %2930 = vmatprep.subr.mxu0 0.0
        %2931 = vmatpush1.xpose.msra.mxu0 0.0
        %2932 = vmatprep.subr.mxu0 0.0
        %2933 = vmatpush1.xpose.msra.mxu0 0.0
        %2934 = vmatprep.subr.mxu0 0.0
        %2935 = vmatpush1.xpose.msra.mxu0 0.0
        %2936 = vmatprep.subr.mxu0 0.0
        %2937 = vmatpush1.xpose.msra.mxu0 0.0
        %2938 = vmatprep.subr.mxu0 0.0
        %2939 = vmatpush1.xpose.msra.mxu0 0.0
        %2940 = vmatprep.subr.mxu0 0.0
        %2941 = vmatpush1.xpose.msra.mxu0 0.0
        %2942 = vmatprep.subr.mxu0 0.0
        %2943 = vmatpush1.xpose.msra.mxu0 0.0
        %2944 = vmatprep.subr.mxu0 0.0
        %2945 = vmatpush1.xpose.msra.mxu0 0.0
        %2946 = vmatprep.subr.mxu0 0.0
        %2947 = vmatpush1.xpose.msra.mxu0 0.0
        %2948 = vmatprep.subr.mxu0 0.0
        %2949 = vmatpush1.xpose.msra.mxu0 0.0
        %2950 = vmatprep.subr.mxu0 0.0
        %2951 = vmatpush1.xpose.msra.mxu0 0.0
        %2952 = vmatprep.mubr.f32.mxu0 0.0
        %2953 = vmatmul.mubr.f32.gmra.mrb[0].mxu0 %v2874
        %v2954 = vpop.f32.mrb[0].mxu0
        %v2955 = vadd.f32 0.0, %v2954
        %v2956 = vpop.f32.mrb[0].mxu0
        %2957 = vdwg.mxu0
        %v2958 = vsel %vm885, %v2655, 0
        %v2961 = vsel %vm885, %v2686, 0
        %v2964 = vsel %vm885, %v2687, 0
        %v2967 = vsel %vm885, %v2688, 0
        %v2970 = vsel %vm885, %v2689, 0
        %2972 = vmatprep.subr.mxu0 0.0
        %2973 = vmatpush1.xpose.msra.mxu0 %v2961
        %2974 = vmatprep.subr.mxu0 0.0
        %2975 = vmatpush1.xpose.msra.mxu0 %v2964
        %2976 = vmatprep.subr.mxu0 0.0
        %2977 = vmatpush1.xpose.msra.mxu0 %v2967
        %2978 = vmatprep.subr.mxu0 0.0
        %2979 = vmatpush1.xpose.msra.mxu0 %v2970
        %2980 = vmatprep.subr.mxu0 0.0
        %2981 = vmatpush1.xpose.msra.mxu0 0.0
        %2982 = vmatprep.subr.mxu0 0.0
        %2983 = vmatpush1.xpose.msra.mxu0 0.0
        %2984 = vmatprep.subr.mxu0 0.0
        %2985 = vmatpush1.xpose.msra.mxu0 0.0
        %2986 = vmatprep.subr.mxu0 0.0
        %2987 = vmatpush1.xpose.msra.mxu0 0.0
        %2988 = vmatprep.subr.mxu0 0.0
        %2989 = vmatpush1.xpose.msra.mxu0 0.0
        %2990 = vmatprep.subr.mxu0 0.0
        %2991 = vmatpush1.xpose.msra.mxu0 0.0
        %2992 = vmatprep.subr.mxu0 0.0
        %2993 = vmatpush1.xpose.msra.mxu0 0.0
        %2994 = vmatprep.subr.mxu0 0.0
        %2995 = vmatpush1.xpose.msra.mxu0 0.0
        %2996 = vmatprep.subr.mxu0 0.0
        %2997 = vmatpush1.xpose.msra.mxu0 0.0
        %2998 = vmatprep.subr.mxu0 0.0
        %2999 = vmatpush1.xpose.msra.mxu0 0.0
        %3000 = vmatprep.subr.mxu0 0.0
        %3001 = vmatpush1.xpose.msra.mxu0 0.0
        %3002 = vmatprep.subr.mxu0 0.0
        %3003 = vmatpush1.xpose.msra.mxu0 0.0
        %3004 = vmatprep.subr.mxu0 0.0
        %3005 = vmatpush1.xpose.msra.mxu0 0.0
        %3006 = vmatprep.subr.mxu0 0.0
        %3007 = vmatpush1.xpose.msra.mxu0 0.0
        %3008 = vmatprep.subr.mxu0 0.0
        %3009 = vmatpush1.xpose.msra.mxu0 0.0
        %3010 = vmatprep.subr.mxu0 0.0
        %3011 = vmatpush1.xpose.msra.mxu0 0.0
        %3012 = vmatprep.subr.mxu0 0.0
        %3013 = vmatpush1.xpose.msra.mxu0 0.0
        %3014 = vmatprep.subr.mxu0 0.0
        %3015 = vmatpush1.xpose.msra.mxu0 0.0
        %3016 = vmatprep.subr.mxu0 0.0
        %3017 = vmatpush1.xpose.msra.mxu0 0.0
        %3018 = vmatprep.subr.mxu0 0.0
        %3019 = vmatpush1.xpose.msra.mxu0 0.0
        %3020 = vmatprep.subr.mxu0 0.0
        %3021 = vmatpush1.xpose.msra.mxu0 0.0
        %3022 = vmatprep.subr.mxu0 0.0
        %3023 = vmatpush1.xpose.msra.mxu0 0.0
        %3024 = vmatprep.subr.mxu0 0.0
        %3025 = vmatpush1.xpose.msra.mxu0 0.0
        %3026 = vmatprep.subr.mxu0 0.0
        %3027 = vmatpush1.xpose.msra.mxu0 0.0
        %3028 = vmatprep.subr.mxu0 0.0
        %3029 = vmatpush1.xpose.msra.mxu0 0.0
        %3030 = vmatprep.subr.mxu0 0.0
        %3031 = vmatpush1.xpose.msra.mxu0 0.0
        %3032 = vmatprep.subr.mxu0 0.0
        %3033 = vmatpush1.xpose.msra.mxu0 0.0
        %3034 = vmatprep.subr.mxu0 0.0
        %3035 = vmatpush1.xpose.msra.mxu0 0.0
        %3036 = vmatprep.mubr.f32.mxu0 0.0
        %3037 = vmatmul.mubr.f32.gmra.mrb[0].mxu0 %v2958
        %v3038 = vpop.f32.mrb[0].mxu0
        %v3039 = vadd.f32 0.0, %v3038
        %v3040 = vpop.f32.mrb[0].mxu0
        %3041 = vdwg.mxu0
        %v3042 = vsel %vm885, %v2663, 0
        %v3045 = vsel %vm885, %v2690, 0
        %v3048 = vsel %vm885, %v2691, 0
        %v3051 = vsel %vm885, %v2692, 0
        %v3054 = vsel %vm885, %v2693, 0
        %3056 = vmatprep.subr.mxu0 0.0
        %3057 = vmatpush1.xpose.msra.mxu0 %v3045
        %3058 = vmatprep.subr.mxu0 0.0
        %3059 = vmatpush1.xpose.msra.mxu0 %v3048
        %3060 = vmatprep.subr.mxu0 0.0
        %3061 = vmatpush1.xpose.msra.mxu0 %v3051
        %3062 = vmatprep.subr.mxu0 0.0
        %3063 = vmatpush1.xpose.msra.mxu0 %v3054
        %3064 = vmatprep.subr.mxu0 0.0
        %3065 = vmatpush1.xpose.msra.mxu0 0.0
        %3066 = vmatprep.subr.mxu0 0.0
        %3067 = vmatpush1.xpose.msra.mxu0 0.0
        %3068 = vmatprep.subr.mxu0 0.0
        %3069 = vmatpush1.xpose.msra.mxu0 0.0
        %3070 = vmatprep.subr.mxu0 0.0
        %3071 = vmatpush1.xpose.msra.mxu0 0.0
        %3072 = vmatprep.subr.mxu0 0.0
        %3073 = vmatpush1.xpose.msra.mxu0 0.0
        %3074 = vmatprep.subr.mxu0 0.0
        %3075 = vmatpush1.xpose.msra.mxu0 0.0
        %3076 = vmatprep.subr.mxu0 0.0
        %3077 = vmatpush1.xpose.msra.mxu0 0.0
        %3078 = vmatprep.subr.mxu0 0.0
        %3079 = vmatpush1.xpose.msra.mxu0 0.0
        %3080 = vmatprep.subr.mxu0 0.0
        %3081 = vmatpush1.xpose.msra.mxu0 0.0
        %3082 = vmatprep.subr.mxu0 0.0
        %3083 = vmatpush1.xpose.msra.mxu0 0.0
        %3084 = vmatprep.subr.mxu0 0.0
        %3085 = vmatpush1.xpose.msra.mxu0 0.0
        %3086 = vmatprep.subr.mxu0 0.0
        %3087 = vmatpush1.xpose.msra.mxu0 0.0
        %3088 = vmatprep.subr.mxu0 0.0
        %3089 = vmatpush1.xpose.msra.mxu0 0.0
        %3090 = vmatprep.subr.mxu0 0.0
        %3091 = vmatpush1.xpose.msra.mxu0 0.0
        %3092 = vmatprep.subr.mxu0 0.0
        %3093 = vmatpush1.xpose.msra.mxu0 0.0
        %3094 = vmatprep.subr.mxu0 0.0
        %3095 = vmatpush1.xpose.msra.mxu0 0.0
        %3096 = vmatprep.subr.mxu0 0.0
        %3097 = vmatpush1.xpose.msra.mxu0 0.0
        %3098 = vmatprep.subr.mxu0 0.0
        %3099 = vmatpush1.xpose.msra.mxu0 0.0
        %3100 = vmatprep.subr.mxu0 0.0
        %3101 = vmatpush1.xpose.msra.mxu0 0.0
        %3102 = vmatprep.subr.mxu0 0.0
        %3103 = vmatpush1.xpose.msra.mxu0 0.0
        %3104 = vmatprep.subr.mxu0 0.0
        %3105 = vmatpush1.xpose.msra.mxu0 0.0
        %3106 = vmatprep.subr.mxu0 0.0
        %3107 = vmatpush1.xpose.msra.mxu0 0.0
        %3108 = vmatprep.subr.mxu0 0.0
        %3109 = vmatpush1.xpose.msra.mxu0 0.0
        %3110 = vmatprep.subr.mxu0 0.0
        %3111 = vmatpush1.xpose.msra.mxu0 0.0
        %3112 = vmatprep.subr.mxu0 0.0
        %3113 = vmatpush1.xpose.msra.mxu0 0.0
        %3114 = vmatprep.subr.mxu0 0.0
        %3115 = vmatpush1.xpose.msra.mxu0 0.0
        %3116 = vmatprep.subr.mxu0 0.0
        %3117 = vmatpush1.xpose.msra.mxu0 0.0
        %3118 = vmatprep.subr.mxu0 0.0
        %3119 = vmatpush1.xpose.msra.mxu0 0.0
        %3120 = vmatprep.mubr.f32.mxu0 0.0
        %3121 = vmatmul.mubr.f32.gmra.mrb[0].mxu0 %v3042
        %v3122 = vpop.f32.mrb[0].mxu0
        %v3123 = vadd.f32 0.0, %v3122
        %v3124 = vpop.f32.mrb[0].mxu0
        %3125 = vdwg.mxu0
        %v3126 = vsel %vm885, %v2671, 0
        %v3129 = vsel %vm885, %v2694, 0
        %v3132 = vsel %vm885, %v2695, 0
        %v3135 = vsel %vm885, %v2696, 0
        %v3138 = vsel %vm885, %v2697, 0
        %3140 = vmatprep.subr.mxu0 0.0
        %3141 = vmatpush1.xpose.msra.mxu0 %v3129
        %3142 = vmatprep.subr.mxu0 0.0
        %3143 = vmatpush1.xpose.msra.mxu0 %v3132
        %3144 = vmatprep.subr.mxu0 0.0
        %3145 = vmatpush1.xpose.msra.mxu0 %v3135
        %3146 = vmatprep.subr.mxu0 0.0
        %3147 = vmatpush1.xpose.msra.mxu0 %v3138
        %3148 = vmatprep.subr.mxu0 0.0
        %3149 = vmatpush1.xpose.msra.mxu0 0.0
        %3150 = vmatprep.subr.mxu0 0.0
        %3151 = vmatpush1.xpose.msra.mxu0 0.0
        %3152 = vmatprep.subr.mxu0 0.0
        %3153 = vmatpush1.xpose.msra.mxu0 0.0
        %3154 = vmatprep.subr.mxu0 0.0
        %3155 = vmatpush1.xpose.msra.mxu0 0.0
        %3156 = vmatprep.subr.mxu0 0.0
        %3157 = vmatpush1.xpose.msra.mxu0 0.0
        %3158 = vmatprep.subr.mxu0 0.0
        %3159 = vmatpush1.xpose.msra.mxu0 0.0
        %3160 = vmatprep.subr.mxu0 0.0
        %3161 = vmatpush1.xpose.msra.mxu0 0.0
        %3162 = vmatprep.subr.mxu0 0.0
        %3163 = vmatpush1.xpose.msra.mxu0 0.0
        %3164 = vmatprep.subr.mxu0 0.0
        %3165 = vmatpush1.xpose.msra.mxu0 0.0
        %3166 = vmatprep.subr.mxu0 0.0
        %3167 = vmatpush1.xpose.msra.mxu0 0.0
        %3168 = vmatprep.subr.mxu0 0.0
        %3169 = vmatpush1.xpose.msra.mxu0 0.0
        %3170 = vmatprep.subr.mxu0 0.0
        %3171 = vmatpush1.xpose.msra.mxu0 0.0
        %3172 = vmatprep.subr.mxu0 0.0
        %3173 = vmatpush1.xpose.msra.mxu0 0.0
        %3174 = vmatprep.subr.mxu0 0.0
        %3175 = vmatpush1.xpose.msra.mxu0 0.0
        %3176 = vmatprep.subr.mxu0 0.0
        %3177 = vmatpush1.xpose.msra.mxu0 0.0
        %3178 = vmatprep.subr.mxu0 0.0
        %3179 = vmatpush1.xpose.msra.mxu0 0.0
        %3180 = vmatprep.subr.mxu0 0.0
        %3181 = vmatpush1.xpose.msra.mxu0 0.0
        %3182 = vmatprep.subr.mxu0 0.0
        %3183 = vmatpush1.xpose.msra.mxu0 0.0
        %3184 = vmatprep.subr.mxu0 0.0
        %3185 = vmatpush1.xpose.msra.mxu0 0.0
        %3186 = vmatprep.subr.mxu0 0.0
        %3187 = vmatpush1.xpose.msra.mxu0 0.0
        %3188 = vmatprep.subr.mxu0 0.0
        %3189 = vmatpush1.xpose.msra.mxu0 0.0
        %3190 = vmatprep.subr.mxu0 0.0
        %3191 = vmatpush1.xpose.msra.mxu0 0.0
        %3192 = vmatprep.subr.mxu0 0.0
        %3193 = vmatpush1.xpose.msra.mxu0 0.0
        %3194 = vmatprep.subr.mxu0 0.0
        %3195 = vmatpush1.xpose.msra.mxu0 0.0
        %3196 = vmatprep.subr.mxu0 0.0
        %3197 = vmatpush1.xpose.msra.mxu0 0.0
        %3198 = vmatprep.subr.mxu0 0.0
        %3199 = vmatpush1.xpose.msra.mxu0 0.0
        %3200 = vmatprep.subr.mxu0 0.0
        %3201 = vmatpush1.xpose.msra.mxu0 0.0
        %3202 = vmatprep.subr.mxu0 0.0
        %3203 = vmatpush1.xpose.msra.mxu0 0.0
        %3204 = vmatprep.mubr.f32.mxu0 0.0
        %3205 = vmatmul.mubr.f32.gmra.mrb[0].mxu0 %v3126
        %v3206 = vpop.f32.mrb[0].mxu0
        %v3207 = vadd.f32 0.0, %v3206
        %v3208 = vpop.f32.mrb[0].mxu0
        %3209 = vdwg.mxu0
        %v3210 = vsel %vm885, %v2670, 0
        %v3213 = vsel %vm885, %v2698, 0
        %v3216 = vsel %vm885, %v2699, 0
        %v3219 = vsel %vm885, %v2700, 0
        %v3222 = vsel %vm885, %v2701, 0
        %3224 = vmatprep.subr.mxu0 0.0
        %3225 = vmatpush1.xpose.msra.mxu0 %v3213
        %3226 = vmatprep.subr.mxu0 0.0
        %3227 = vmatpush1.xpose.msra.mxu0 %v3216
        %3228 = vmatprep.subr.mxu0 0.0
        %3229 = vmatpush1.xpose.msra.mxu0 %v3219
        %3230 = vmatprep.subr.mxu0 0.0
        %3231 = vmatpush1.xpose.msra.mxu0 %v3222
        %3232 = vmatprep.subr.mxu0 0.0
        %3233 = vmatpush1.xpose.msra.mxu0 0.0
        %3234 = vmatprep.subr.mxu0 0.0
        %3235 = vmatpush1.xpose.msra.mxu0 0.0
        %3236 = vmatprep.subr.mxu0 0.0
        %3237 = vmatpush1.xpose.msra.mxu0 0.0
        %3238 = vmatprep.subr.mxu0 0.0
        %3239 = vmatpush1.xpose.msra.mxu0 0.0
        %3240 = vmatprep.subr.mxu0 0.0
        %3241 = vmatpush1.xpose.msra.mxu0 0.0
        %3242 = vmatprep.subr.mxu0 0.0
        %3243 = vmatpush1.xpose.msra.mxu0 0.0
        %3244 = vmatprep.subr.mxu0 0.0
        %3245 = vmatpush1.xpose.msra.mxu0 0.0
        %3246 = vmatprep.subr.mxu0 0.0
        %3247 = vmatpush1.xpose.msra.mxu0 0.0
        %3248 = vmatprep.subr.mxu0 0.0
        %3249 = vmatpush1.xpose.msra.mxu0 0.0
        %3250 = vmatprep.subr.mxu0 0.0
        %3251 = vmatpush1.xpose.msra.mxu0 0.0
        %3252 = vmatprep.subr.mxu0 0.0
        %3253 = vmatpush1.xpose.msra.mxu0 0.0
        %3254 = vmatprep.subr.mxu0 0.0
        %3255 = vmatpush1.xpose.msra.mxu0 0.0
        %3256 = vmatprep.subr.mxu0 0.0
        %3257 = vmatpush1.xpose.msra.mxu0 0.0
        %3258 = vmatprep.subr.mxu0 0.0
        %3259 = vmatpush1.xpose.msra.mxu0 0.0
        %3260 = vmatprep.subr.mxu0 0.0
        %3261 = vmatpush1.xpose.msra.mxu0 0.0
        %3262 = vmatprep.subr.mxu0 0.0
        %3263 = vmatpush1.xpose.msra.mxu0 0.0
        %3264 = vmatprep.subr.mxu0 0.0
        %3265 = vmatpush1.xpose.msra.mxu0 0.0
        %3266 = vmatprep.subr.mxu0 0.0
        %3267 = vmatpush1.xpose.msra.mxu0 0.0
        %3268 = vmatprep.subr.mxu0 0.0
        %3269 = vmatpush1.xpose.msra.mxu0 0.0
        %3270 = vmatprep.subr.mxu0 0.0
        %3271 = vmatpush1.xpose.msra.mxu0 0.0
        %3272 = vmatprep.subr.mxu0 0.0
        %3273 = vmatpush1.xpose.msra.mxu0 0.0
        %3274 = vmatprep.subr.mxu0 0.0
        %3275 = vmatpush1.xpose.msra.mxu0 0.0
        %3276 = vmatprep.subr.mxu0 0.0
        %3277 = vmatpush1.xpose.msra.mxu0 0.0
        %3278 = vmatprep.subr.mxu0 0.0
        %3279 = vmatpush1.xpose.msra.mxu0 0.0
        %3280 = vmatprep.subr.mxu0 0.0
        %3281 = vmatpush1.xpose.msra.mxu0 0.0
        %3282 = vmatprep.subr.mxu0 0.0
        %3283 = vmatpush1.xpose.msra.mxu0 0.0
        %3284 = vmatprep.subr.mxu0 0.0
        %3285 = vmatpush1.xpose.msra.mxu0 0.0
        %3286 = vmatprep.subr.mxu0 0.0
        %3287 = vmatpush1.xpose.msra.mxu0 0.0
        %3288 = vmatprep.mubr.f32.mxu0 0.0
        %3289 = vmatmul.mubr.f32.gmra.mrb[0].mxu0 %v3210
        %v3290 = vpop.f32.mrb[0].mxu0
        %v3291 = vadd.f32 0.0, %v3290
        %v3292 = vpop.f32.mrb[0].mxu0
        %3293 = vdwg.mxu0
        %v3294 = vsel %vm885, %v2672, 0
        %v3297 = vsel %vm885, %v2702, 0
        %v3300 = vsel %vm885, %v2703, 0
        %v3303 = vsel %vm885, %v2704, 0
        %v3306 = vsel %vm885, %v2705, 0
        %3308 = vmatprep.subr.mxu0 0.0
        %3309 = vmatpush1.xpose.msra.mxu0 %v3297
        %3310 = vmatprep.subr.mxu0 0.0
        %3311 = vmatpush1.xpose.msra.mxu0 %v3300
        %3312 = vmatprep.subr.mxu0 0.0
        %3313 = vmatpush1.xpose.msra.mxu0 %v3303
        %3314 = vmatprep.subr.mxu0 0.0
        %3315 = vmatpush1.xpose.msra.mxu0 %v3306
        %3316 = vmatprep.subr.mxu0 0.0
        %3317 = vmatpush1.xpose.msra.mxu0 0.0
        %3318 = vmatprep.subr.mxu0 0.0
        %3319 = vmatpush1.xpose.msra.mxu0 0.0
        %3320 = vmatprep.subr.mxu0 0.0
        %3321 = vmatpush1.xpose.msra.mxu0 0.0
        %3322 = vmatprep.subr.mxu0 0.0
        %3323 = vmatpush1.xpose.msra.mxu0 0.0
        %3324 = vmatprep.subr.mxu0 0.0
        %3325 = vmatpush1.xpose.msra.mxu0 0.0
        %3326 = vmatprep.subr.mxu0 0.0
        %3327 = vmatpush1.xpose.msra.mxu0 0.0
        %3328 = vmatprep.subr.mxu0 0.0
        %3329 = vmatpush1.xpose.msra.mxu0 0.0
        %3330 = vmatprep.subr.mxu0 0.0
        %3331 = vmatpush1.xpose.msra.mxu0 0.0
        %3332 = vmatprep.subr.mxu0 0.0
        %3333 = vmatpush1.xpose.msra.mxu0 0.0
        %3334 = vmatprep.subr.mxu0 0.0
        %3335 = vmatpush1.xpose.msra.mxu0 0.0
        %3336 = vmatprep.subr.mxu0 0.0
        %3337 = vmatpush1.xpose.msra.mxu0 0.0
        %3338 = vmatprep.subr.mxu0 0.0
        %3339 = vmatpush1.xpose.msra.mxu0 0.0
        %3340 = vmatprep.subr.mxu0 0.0
        %3341 = vmatpush1.xpose.msra.mxu0 0.0
        %3342 = vmatprep.subr.mxu0 0.0
        %3343 = vmatpush1.xpose.msra.mxu0 0.0
        %3344 = vmatprep.subr.mxu0 0.0
        %3345 = vmatpush1.xpose.msra.mxu0 0.0
        %3346 = vmatprep.subr.mxu0 0.0
        %3347 = vmatpush1.xpose.msra.mxu0 0.0
        %3348 = vmatprep.subr.mxu0 0.0
        %3349 = vmatpush1.xpose.msra.mxu0 0.0
        %3350 = vmatprep.subr.mxu0 0.0
        %3351 = vmatpush1.xpose.msra.mxu0 0.0
        %3352 = vmatprep.subr.mxu0 0.0
        %3353 = vmatpush1.xpose.msra.mxu0 0.0
        %3354 = vmatprep.subr.mxu0 0.0
        %3355 = vmatpush1.xpose.msra.mxu0 0.0
        %3356 = vmatprep.subr.mxu0 0.0
        %3357 = vmatpush1.xpose.msra.mxu0 0.0
        %3358 = vmatprep.subr.mxu0 0.0
        %3359 = vmatpush1.xpose.msra.mxu0 0.0
        %3360 = vmatprep.subr.mxu0 0.0
        %3361 = vmatpush1.xpose.msra.mxu0 0.0
        %3362 = vmatprep.subr.mxu0 0.0
        %3363 = vmatpush1.xpose.msra.mxu0 0.0
        %3364 = vmatprep.subr.mxu0 0.0
        %3365 = vmatpush1.xpose.msra.mxu0 0.0
        %3366 = vmatprep.subr.mxu0 0.0
        %3367 = vmatpush1.xpose.msra.mxu0 0.0
        %3368 = vmatprep.subr.mxu0 0.0
        %3369 = vmatpush1.xpose.msra.mxu0 0.0
        %3370 = vmatprep.subr.mxu0 0.0
        %3371 = vmatpush1.xpose.msra.mxu0 0.0
        %3372 = vmatprep.mubr.f32.mxu0 0.0
        %3373 = vmatmul.mubr.f32.gmra.mrb[0].mxu0 %v3294
        %v3374 = vpop.f32.mrb[0].mxu0
        %v3375 = vadd.f32 0.0, %v3374
        %v3376 = vpop.f32.mrb[0].mxu0
        %3377 = vdwg.mxu0
        %s3378 = scalar_lea.vmem [#allocation12], 256
        %v3379 = vld [vmem:[%s3378] sm:$0xff]
        %v3380 = vld [vmem:[%s3378 + $0x8] sm:$0xff]
        %v3381 = vld [vmem:[%s3378 + $0x10] sm:$0xff]
        %v3382 = vld [vmem:[%s3378 + $0x18] sm:$0xff]
        %v3383 = vld [vmem:[%s3378 + $0x20] sm:$0xff]
        %v3384 = vld [vmem:[%s3378 + $0x28] sm:$0xff]
        %v3385 = vld [vmem:[%s3378 + $0x30] sm:$0xff]
        %v3386 = vld [vmem:[%s3378 + $0x38] sm:$0xff]
        %v3387 = vld [vmem:[%s3378 + $0x40] sm:$0xff]
        %v3388 = vld [vmem:[%s3378 + $0x48] sm:$0xff]
        %v3389 = vld [vmem:[%s3378 + $0x50] sm:$0xff]
        %v3390 = vld [vmem:[%s3378 + $0x58] sm:$0xff]
        %v3391 = vld [vmem:[%s3378 + $0x60] sm:$0xff]
        %v3392 = vld [vmem:[%s3378 + $0x68] sm:$0xff]
        %v3393 = vld [vmem:[%s3378 + $0x70] sm:$0xff]
        %v3394 = vld [vmem:[%s3378 + $0x78] sm:$0xff]
        %v3395 = vld [vmem:[%s3378 + $0x80] sm:$0xff]
        %v3396 = vld [vmem:[%s3378 + $0x88] sm:$0xff]
        %v3397 = vld [vmem:[%s3378 + $0x90] sm:$0xff]
        %v3398 = vld [vmem:[%s3378 + $0x98] sm:$0xff]
        %v3399 = vld [vmem:[%s3378 + $0xa0] sm:$0xff]
        %v3400 = vld [vmem:[%s3378 + $0xa8] sm:$0xff]
        %v3401 = vld [vmem:[%s3378 + $0xb0] sm:$0xff]
        %v3402 = vld [vmem:[%s3378 + $0xb8] sm:$0xff]
        %v3403 = vld [vmem:[%s3378 + $0xc0] sm:$0xff]
        %v3404 = vld [vmem:[%s3378 + $0xc8] sm:$0xff]
        %v3405 = vld [vmem:[%s3378 + $0xd0] sm:$0xff]
        %v3406 = vld [vmem:[%s3378 + $0xd8] sm:$0xff]
        %v3407 = vld [vmem:[%s3378 + $0xe0] sm:$0xff]
        %v3408 = vld [vmem:[%s3378 + $0xe8] sm:$0xff]
        %v3409 = vld [vmem:[%s3378 + $0xf0] sm:$0xff]
        %v3410 = vld [vmem:[%s3378 + $0xf8] sm:$0xff]
        %v3412 = vsel %vm885, %v3379, 0
        %v3415 = vsel %vm885, %v3380, 0
        %v3418 = vsel %vm885, %v3381, 0
        %v3421 = vsel %vm885, %v3382, 0
        %3423 = vmatprep.subr.mxu0 0.0
        %3424 = vmatpush1.xpose.msra.mxu0 %v3412
        %3425 = vmatprep.subr.mxu0 0.0
        %3426 = vmatpush1.xpose.msra.mxu0 %v3415
        %3427 = vmatprep.subr.mxu0 0.0
        %3428 = vmatpush1.xpose.msra.mxu0 %v3418
        %3429 = vmatprep.subr.mxu0 0.0
        %3430 = vmatpush1.xpose.msra.mxu0 %v3421
        %3431 = vmatprep.subr.mxu0 0.0
        %3432 = vmatpush1.xpose.msra.mxu0 0.0
        %3433 = vmatprep.subr.mxu0 0.0
        %3434 = vmatpush1.xpose.msra.mxu0 0.0
        %3435 = vmatprep.subr.mxu0 0.0
        %3436 = vmatpush1.xpose.msra.mxu0 0.0
        %3437 = vmatprep.subr.mxu0 0.0
        %3438 = vmatpush1.xpose.msra.mxu0 0.0
        %3439 = vmatprep.subr.mxu0 0.0
        %3440 = vmatpush1.xpose.msra.mxu0 0.0
        %3441 = vmatprep.subr.mxu0 0.0
        %3442 = vmatpush1.xpose.msra.mxu0 0.0
        %3443 = vmatprep.subr.mxu0 0.0
        %3444 = vmatpush1.xpose.msra.mxu0 0.0
        %3445 = vmatprep.subr.mxu0 0.0
        %3446 = vmatpush1.xpose.msra.mxu0 0.0
        %3447 = vmatprep.subr.mxu0 0.0
        %3448 = vmatpush1.xpose.msra.mxu0 0.0
        %3449 = vmatprep.subr.mxu0 0.0
        %3450 = vmatpush1.xpose.msra.mxu0 0.0
        %3451 = vmatprep.subr.mxu0 0.0
        %3452 = vmatpush1.xpose.msra.mxu0 0.0
        %3453 = vmatprep.subr.mxu0 0.0
        %3454 = vmatpush1.xpose.msra.mxu0 0.0
        %3455 = vmatprep.subr.mxu0 0.0
        %3456 = vmatpush1.xpose.msra.mxu0 0.0
        %3457 = vmatprep.subr.mxu0 0.0
        %3458 = vmatpush1.xpose.msra.mxu0 0.0
        %3459 = vmatprep.subr.mxu0 0.0
        %3460 = vmatpush1.xpose.msra.mxu0 0.0
        %3461 = vmatprep.subr.mxu0 0.0
        %3462 = vmatpush1.xpose.msra.mxu0 0.0
        %3463 = vmatprep.subr.mxu0 0.0
        %3464 = vmatpush1.xpose.msra.mxu0 0.0
        %3465 = vmatprep.subr.mxu0 0.0
        %3466 = vmatpush1.xpose.msra.mxu0 0.0
        %3467 = vmatprep.subr.mxu0 0.0
        %3468 = vmatpush1.xpose.msra.mxu0 0.0
        %3469 = vmatprep.subr.mxu0 0.0
        %3470 = vmatpush1.xpose.msra.mxu0 0.0
        %3471 = vmatprep.subr.mxu0 0.0
        %3472 = vmatpush1.xpose.msra.mxu0 0.0
        %3473 = vmatprep.subr.mxu0 0.0
        %3474 = vmatpush1.xpose.msra.mxu0 0.0
        %3475 = vmatprep.subr.mxu0 0.0
        %3476 = vmatpush1.xpose.msra.mxu0 0.0
        %3477 = vmatprep.subr.mxu0 0.0
        %3478 = vmatpush1.xpose.msra.mxu0 0.0
        %3479 = vmatprep.subr.mxu0 0.0
        %3480 = vmatpush1.xpose.msra.mxu0 0.0
        %3481 = vmatprep.subr.mxu0 0.0
        %3482 = vmatpush1.xpose.msra.mxu0 0.0
        %3483 = vmatprep.subr.mxu0 0.0
        %3484 = vmatpush1.xpose.msra.mxu0 0.0
        %3485 = vmatprep.subr.mxu0 0.0
        %3486 = vmatpush1.xpose.msra.mxu0 0.0
        %3487 = vmatprep.mubr.f32.mxu0 0.0
        %3488 = vmatmul.mubr.f32.gmra.mrb[0].mxu0 %v2706
        %v3489 = vpop.f32.mrb[0].mxu0
        %v3490 = vadd.f32 0.0, %v3489
        %v3491 = vpop.f32.mrb[0].mxu0
        %3492 = vdwg.mxu0
        %v3494 = vsel %vm885, %v3383, 0
        %v3497 = vsel %vm885, %v3384, 0
        %v3500 = vsel %vm885, %v3385, 0
        %v3503 = vsel %vm885, %v3386, 0
        %3505 = vmatprep.subr.mxu0 0.0
        %3506 = vmatpush1.xpose.msra.mxu0 %v3494
        %3507 = vmatprep.subr.mxu0 0.0
        %3508 = vmatpush1.xpose.msra.mxu0 %v3497
        %3509 = vmatprep.subr.mxu0 0.0
        %3510 = vmatpush1.xpose.msra.mxu0 %v3500
        %3511 = vmatprep.subr.mxu0 0.0
        %3512 = vmatpush1.xpose.msra.mxu0 %v3503
        %3513 = vmatprep.subr.mxu0 0.0
        %3514 = vmatpush1.xpose.msra.mxu0 0.0
        %3515 = vmatprep.subr.mxu0 0.0
        %3516 = vmatpush1.xpose.msra.mxu0 0.0
        %3517 = vmatprep.subr.mxu0 0.0
        %3518 = vmatpush1.xpose.msra.mxu0 0.0
        %3519 = vmatprep.subr.mxu0 0.0
        %3520 = vmatpush1.xpose.msra.mxu0 0.0
        %3521 = vmatprep.subr.mxu0 0.0
        %3522 = vmatpush1.xpose.msra.mxu0 0.0
        %3523 = vmatprep.subr.mxu0 0.0
        %3524 = vmatpush1.xpose.msra.mxu0 0.0
        %3525 = vmatprep.subr.mxu0 0.0
        %3526 = vmatpush1.xpose.msra.mxu0 0.0
        %3527 = vmatprep.subr.mxu0 0.0
        %3528 = vmatpush1.xpose.msra.mxu0 0.0
        %3529 = vmatprep.subr.mxu0 0.0
        %3530 = vmatpush1.xpose.msra.mxu0 0.0
        %3531 = vmatprep.subr.mxu0 0.0
        %3532 = vmatpush1.xpose.msra.mxu0 0.0
        %3533 = vmatprep.subr.mxu0 0.0
        %3534 = vmatpush1.xpose.msra.mxu0 0.0
        %3535 = vmatprep.subr.mxu0 0.0
        %3536 = vmatpush1.xpose.msra.mxu0 0.0
        %3537 = vmatprep.subr.mxu0 0.0
        %3538 = vmatpush1.xpose.msra.mxu0 0.0
        %3539 = vmatprep.subr.mxu0 0.0
        %3540 = vmatpush1.xpose.msra.mxu0 0.0
        %3541 = vmatprep.subr.mxu0 0.0
        %3542 = vmatpush1.xpose.msra.mxu0 0.0
        %3543 = vmatprep.subr.mxu0 0.0
        %3544 = vmatpush1.xpose.msra.mxu0 0.0
        %3545 = vmatprep.subr.mxu0 0.0
        %3546 = vmatpush1.xpose.msra.mxu0 0.0
        %3547 = vmatprep.subr.mxu0 0.0
        %3548 = vmatpush1.xpose.msra.mxu0 0.0
        %3549 = vmatprep.subr.mxu0 0.0
        %3550 = vmatpush1.xpose.msra.mxu0 0.0
        %3551 = vmatprep.subr.mxu0 0.0
        %3552 = vmatpush1.xpose.msra.mxu0 0.0
        %3553 = vmatprep.subr.mxu0 0.0
        %3554 = vmatpush1.xpose.msra.mxu0 0.0
        %3555 = vmatprep.subr.mxu0 0.0
        %3556 = vmatpush1.xpose.msra.mxu0 0.0
        %3557 = vmatprep.subr.mxu0 0.0
        %3558 = vmatpush1.xpose.msra.mxu0 0.0
        %3559 = vmatprep.subr.mxu0 0.0
        %3560 = vmatpush1.xpose.msra.mxu0 0.0
        %3561 = vmatprep.subr.mxu0 0.0
        %3562 = vmatpush1.xpose.msra.mxu0 0.0
        %3563 = vmatprep.subr.mxu0 0.0
        %3564 = vmatpush1.xpose.msra.mxu0 0.0
        %3565 = vmatprep.subr.mxu0 0.0
        %3566 = vmatpush1.xpose.msra.mxu0 0.0
        %3567 = vmatprep.subr.mxu0 0.0
        %3568 = vmatpush1.xpose.msra.mxu0 0.0
        %3569 = vmatprep.mubr.f32.mxu0 0.0
        %3570 = vmatmul.mubr.f32.gmra.mrb[0].mxu0 %v2790
        %v3571 = vpop.f32.mrb[0].mxu0
        %v3572 = vadd.f32 0.0, %v3571
        %v3573 = vpop.f32.mrb[0].mxu0
        %3574 = vdwg.mxu0
        %v3576 = vsel %vm885, %v3387, 0
        %v3579 = vsel %vm885, %v3388, 0
        %v3582 = vsel %vm885, %v3389, 0
        %v3585 = vsel %vm885, %v3390, 0
        %3587 = vmatprep.subr.mxu0 0.0
        %3588 = vmatpush1.xpose.msra.mxu0 %v3576
        %3589 = vmatprep.subr.mxu0 0.0
        %3590 = vmatpush1.xpose.msra.mxu0 %v3579
        %3591 = vmatprep.subr.mxu0 0.0
        %3592 = vmatpush1.xpose.msra.mxu0 %v3582
        %3593 = vmatprep.subr.mxu0 0.0
        %3594 = vmatpush1.xpose.msra.mxu0 %v3585
        %3595 = vmatprep.subr.mxu0 0.0
        %3596 = vmatpush1.xpose.msra.mxu0 0.0
        %3597 = vmatprep.subr.mxu0 0.0
        %3598 = vmatpush1.xpose.msra.mxu0 0.0
        %3599 = vmatprep.subr.mxu0 0.0
        %3600 = vmatpush1.xpose.msra.mxu0 0.0
        %3601 = vmatprep.subr.mxu0 0.0
        %3602 = vmatpush1.xpose.msra.mxu0 0.0
        %3603 = vmatprep.subr.mxu0 0.0
        %3604 = vmatpush1.xpose.msra.mxu0 0.0
        %3605 = vmatprep.subr.mxu0 0.0
        %3606 = vmatpush1.xpose.msra.mxu0 0.0
        %3607 = vmatprep.subr.mxu0 0.0
        %3608 = vmatpush1.xpose.msra.mxu0 0.0
        %3609 = vmatprep.subr.mxu0 0.0
        %3610 = vmatpush1.xpose.msra.mxu0 0.0
        %3611 = vmatprep.subr.mxu0 0.0
        %3612 = vmatpush1.xpose.msra.mxu0 0.0
        %3613 = vmatprep.subr.mxu0 0.0
        %3614 = vmatpush1.xpose.msra.mxu0 0.0
        %3615 = vmatprep.subr.mxu0 0.0
        %3616 = vmatpush1.xpose.msra.mxu0 0.0
        %3617 = vmatprep.subr.mxu0 0.0
        %3618 = vmatpush1.xpose.msra.mxu0 0.0
        %3619 = vmatprep.subr.mxu0 0.0
        %3620 = vmatpush1.xpose.msra.mxu0 0.0
        %3621 = vmatprep.subr.mxu0 0.0
        %3622 = vmatpush1.xpose.msra.mxu0 0.0
        %3623 = vmatprep.subr.mxu0 0.0
        %3624 = vmatpush1.xpose.msra.mxu0 0.0
        %3625 = vmatprep.subr.mxu0 0.0
        %3626 = vmatpush1.xpose.msra.mxu0 0.0
        %3627 = vmatprep.subr.mxu0 0.0
        %3628 = vmatpush1.xpose.msra.mxu0 0.0
        %3629 = vmatprep.subr.mxu0 0.0
        %3630 = vmatpush1.xpose.msra.mxu0 0.0
        %3631 = vmatprep.subr.mxu0 0.0
        %3632 = vmatpush1.xpose.msra.mxu0 0.0
        %3633 = vmatprep.subr.mxu0 0.0
        %3634 = vmatpush1.xpose.msra.mxu0 0.0
        %3635 = vmatprep.subr.mxu0 0.0
        %3636 = vmatpush1.xpose.msra.mxu0 0.0
        %3637 = vmatprep.subr.mxu0 0.0
        %3638 = vmatpush1.xpose.msra.mxu0 0.0
        %3639 = vmatprep.subr.mxu0 0.0
        %3640 = vmatpush1.xpose.msra.mxu0 0.0
        %3641 = vmatprep.subr.mxu0 0.0
        %3642 = vmatpush1.xpose.msra.mxu0 0.0
        %3643 = vmatprep.subr.mxu0 0.0
        %3644 = vmatpush1.xpose.msra.mxu0 0.0
        %3645 = vmatprep.subr.mxu0 0.0
        %3646 = vmatpush1.xpose.msra.mxu0 0.0
        %3647 = vmatprep.subr.mxu0 0.0
        %3648 = vmatpush1.xpose.msra.mxu0 0.0
        %3649 = vmatprep.subr.mxu0 0.0
        %3650 = vmatpush1.xpose.msra.mxu0 0.0
        %3651 = vmatprep.mubr.f32.mxu0 0.0
        %3652 = vmatmul.mubr.f32.gmra.mrb[0].mxu0 %v2874
        %v3653 = vpop.f32.mrb[0].mxu0
        %v3654 = vadd.f32 0.0, %v3653
        %v3655 = vpop.f32.mrb[0].mxu0
        %3656 = vdwg.mxu0
        %v3658 = vsel %vm885, %v3391, 0
        %v3661 = vsel %vm885, %v3392, 0
        %v3664 = vsel %vm885, %v3393, 0
        %v3667 = vsel %vm885, %v3394, 0
        %3669 = vmatprep.subr.mxu0 0.0
        %3670 = vmatpush1.xpose.msra.mxu0 %v3658
        %3671 = vmatprep.subr.mxu0 0.0
        %3672 = vmatpush1.xpose.msra.mxu0 %v3661
        %3673 = vmatprep.subr.mxu0 0.0
        %3674 = vmatpush1.xpose.msra.mxu0 %v3664
        %3675 = vmatprep.subr.mxu0 0.0
        %3676 = vmatpush1.xpose.msra.mxu0 %v3667
        %3677 = vmatprep.subr.mxu0 0.0
        %3678 = vmatpush1.xpose.msra.mxu0 0.0
        %3679 = vmatprep.subr.mxu0 0.0
        %3680 = vmatpush1.xpose.msra.mxu0 0.0
        %3681 = vmatprep.subr.mxu0 0.0
        %3682 = vmatpush1.xpose.msra.mxu0 0.0
        %3683 = vmatprep.subr.mxu0 0.0
        %3684 = vmatpush1.xpose.msra.mxu0 0.0
        %3685 = vmatprep.subr.mxu0 0.0
        %3686 = vmatpush1.xpose.msra.mxu0 0.0
        %3687 = vmatprep.subr.mxu0 0.0
        %3688 = vmatpush1.xpose.msra.mxu0 0.0
        %3689 = vmatprep.subr.mxu0 0.0
        %3690 = vmatpush1.xpose.msra.mxu0 0.0
        %3691 = vmatprep.subr.mxu0 0.0
        %3692 = vmatpush1.xpose.msra.mxu0 0.0
        %3693 = vmatprep.subr.mxu0 0.0
        %3694 = vmatpush1.xpose.msra.mxu0 0.0
        %3695 = vmatprep.subr.mxu0 0.0
        %3696 = vmatpush1.xpose.msra.mxu0 0.0
        %3697 = vmatprep.subr.mxu0 0.0
        %3698 = vmatpush1.xpose.msra.mxu0 0.0
        %3699 = vmatprep.subr.mxu0 0.0
        %3700 = vmatpush1.xpose.msra.mxu0 0.0
        %3701 = vmatprep.subr.mxu0 0.0
        %3702 = vmatpush1.xpose.msra.mxu0 0.0
        %3703 = vmatprep.subr.mxu0 0.0
        %3704 = vmatpush1.xpose.msra.mxu0 0.0
        %3705 = vmatprep.subr.mxu0 0.0
        %3706 = vmatpush1.xpose.msra.mxu0 0.0
        %3707 = vmatprep.subr.mxu0 0.0
        %3708 = vmatpush1.xpose.msra.mxu0 0.0
        %3709 = vmatprep.subr.mxu0 0.0
        %3710 = vmatpush1.xpose.msra.mxu0 0.0
        %3711 = vmatprep.subr.mxu0 0.0
        %3712 = vmatpush1.xpose.msra.mxu0 0.0
        %3713 = vmatprep.subr.mxu0 0.0
        %3714 = vmatpush1.xpose.msra.mxu0 0.0
        %3715 = vmatprep.subr.mxu0 0.0
        %3716 = vmatpush1.xpose.msra.mxu0 0.0
        %3717 = vmatprep.subr.mxu0 0.0
        %3718 = vmatpush1.xpose.msra.mxu0 0.0
        %3719 = vmatprep.subr.mxu0 0.0
        %3720 = vmatpush1.xpose.msra.mxu0 0.0
        %3721 = vmatprep.subr.mxu0 0.0
        %3722 = vmatpush1.xpose.msra.mxu0 0.0
        %3723 = vmatprep.subr.mxu0 0.0
        %3724 = vmatpush1.xpose.msra.mxu0 0.0
        %3725 = vmatprep.subr.mxu0 0.0
        %3726 = vmatpush1.xpose.msra.mxu0 0.0
        %3727 = vmatprep.subr.mxu0 0.0
        %3728 = vmatpush1.xpose.msra.mxu0 0.0
        %3729 = vmatprep.subr.mxu0 0.0
        %3730 = vmatpush1.xpose.msra.mxu0 0.0
        %3731 = vmatprep.subr.mxu0 0.0
        %3732 = vmatpush1.xpose.msra.mxu0 0.0
        %3733 = vmatprep.mubr.f32.mxu0 0.0
        %3734 = vmatmul.mubr.f32.gmra.mrb[0].mxu0 %v2958
        %v3735 = vpop.f32.mrb[0].mxu0
        %v3736 = vadd.f32 0.0, %v3735
        %v3737 = vpop.f32.mrb[0].mxu0
        %3738 = vdwg.mxu0
        %v3740 = vsel %vm885, %v3395, 0
        %v3743 = vsel %vm885, %v3396, 0
        %v3746 = vsel %vm885, %v3397, 0
        %v3749 = vsel %vm885, %v3398, 0
        %3751 = vmatprep.subr.mxu0 0.0
        %3752 = vmatpush1.xpose.msra.mxu0 %v3740
        %3753 = vmatprep.subr.mxu0 0.0
        %3754 = vmatpush1.xpose.msra.mxu0 %v3743
        %3755 = vmatprep.subr.mxu0 0.0
        %3756 = vmatpush1.xpose.msra.mxu0 %v3746
        %3757 = vmatprep.subr.mxu0 0.0
        %3758 = vmatpush1.xpose.msra.mxu0 %v3749
        %3759 = vmatprep.subr.mxu0 0.0
        %3760 = vmatpush1.xpose.msra.mxu0 0.0
        %3761 = vmatprep.subr.mxu0 0.0
        %3762 = vmatpush1.xpose.msra.mxu0 0.0
        %3763 = vmatprep.subr.mxu0 0.0
        %3764 = vmatpush1.xpose.msra.mxu0 0.0
        %3765 = vmatprep.subr.mxu0 0.0
        %3766 = vmatpush1.xpose.msra.mxu0 0.0
        %3767 = vmatprep.subr.mxu0 0.0
        %3768 = vmatpush1.xpose.msra.mxu0 0.0
        %3769 = vmatprep.subr.mxu0 0.0
        %3770 = vmatpush1.xpose.msra.mxu0 0.0
        %3771 = vmatprep.subr.mxu0 0.0
        %3772 = vmatpush1.xpose.msra.mxu0 0.0
        %3773 = vmatprep.subr.mxu0 0.0
        %3774 = vmatpush1.xpose.msra.mxu0 0.0
        %3775 = vmatprep.subr.mxu0 0.0
        %3776 = vmatpush1.xpose.msra.mxu0 0.0
        %3777 = vmatprep.subr.mxu0 0.0
        %3778 = vmatpush1.xpose.msra.mxu0 0.0
        %3779 = vmatprep.subr.mxu0 0.0
        %3780 = vmatpush1.xpose.msra.mxu0 0.0
        %3781 = vmatprep.subr.mxu0 0.0
        %3782 = vmatpush1.xpose.msra.mxu0 0.0
        %3783 = vmatprep.subr.mxu0 0.0
        %3784 = vmatpush1.xpose.msra.mxu0 0.0
        %3785 = vmatprep.subr.mxu0 0.0
        %3786 = vmatpush1.xpose.msra.mxu0 0.0
        %3787 = vmatprep.subr.mxu0 0.0
        %3788 = vmatpush1.xpose.msra.mxu0 0.0
        %3789 = vmatprep.subr.mxu0 0.0
        %3790 = vmatpush1.xpose.msra.mxu0 0.0
        %3791 = vmatprep.subr.mxu0 0.0
        %3792 = vmatpush1.xpose.msra.mxu0 0.0
        %3793 = vmatprep.subr.mxu0 0.0
        %3794 = vmatpush1.xpose.msra.mxu0 0.0
        %3795 = vmatprep.subr.mxu0 0.0
        %3796 = vmatpush1.xpose.msra.mxu0 0.0
        %3797 = vmatprep.subr.mxu0 0.0
        %3798 = vmatpush1.xpose.msra.mxu0 0.0
        %3799 = vmatprep.subr.mxu0 0.0
        %3800 = vmatpush1.xpose.msra.mxu0 0.0
        %3801 = vmatprep.subr.mxu0 0.0
        %3802 = vmatpush1.xpose.msra.mxu0 0.0
        %3803 = vmatprep.subr.mxu0 0.0
        %3804 = vmatpush1.xpose.msra.mxu0 0.0
        %3805 = vmatprep.subr.mxu0 0.0
        %3806 = vmatpush1.xpose.msra.mxu0 0.0
        %3807 = vmatprep.subr.mxu0 0.0
        %3808 = vmatpush1.xpose.msra.mxu0 0.0
        %3809 = vmatprep.subr.mxu0 0.0
        %3810 = vmatpush1.xpose.msra.mxu0 0.0
        %3811 = vmatprep.subr.mxu0 0.0
        %3812 = vmatpush1.xpose.msra.mxu0 0.0
        %3813 = vmatprep.subr.mxu0 0.0
        %3814 = vmatpush1.xpose.msra.mxu0 0.0
        %3815 = vmatprep.mubr.f32.mxu0 0.0
        %3816 = vmatmul.mubr.f32.gmra.mrb[0].mxu0 %v3042
        %v3817 = vpop.f32.mrb[0].mxu0
        %v3818 = vadd.f32 0.0, %v3817
        %v3819 = vpop.f32.mrb[0].mxu0
        %3820 = vdwg.mxu0
        %v3822 = vsel %vm885, %v3399, 0
        %v3825 = vsel %vm885, %v3400, 0
        %v3828 = vsel %vm885, %v3401, 0
        %v3831 = vsel %vm885, %v3402, 0
        %3833 = vmatprep.subr.mxu0 0.0
        %3834 = vmatpush1.xpose.msra.mxu0 %v3822
        %3835 = vmatprep.subr.mxu0 0.0
        %3836 = vmatpush1.xpose.msra.mxu0 %v3825
        %3837 = vmatprep.subr.mxu0 0.0
        %3838 = vmatpush1.xpose.msra.mxu0 %v3828
        %3839 = vmatprep.subr.mxu0 0.0
        %3840 = vmatpush1.xpose.msra.mxu0 %v3831
        %3841 = vmatprep.subr.mxu0 0.0
        %3842 = vmatpush1.xpose.msra.mxu0 0.0
        %3843 = vmatprep.subr.mxu0 0.0
        %3844 = vmatpush1.xpose.msra.mxu0 0.0
        %3845 = vmatprep.subr.mxu0 0.0
        %3846 = vmatpush1.xpose.msra.mxu0 0.0
        %3847 = vmatprep.subr.mxu0 0.0
        %3848 = vmatpush1.xpose.msra.mxu0 0.0
        %3849 = vmatprep.subr.mxu0 0.0
        %3850 = vmatpush1.xpose.msra.mxu0 0.0
        %3851 = vmatprep.subr.mxu0 0.0
        %3852 = vmatpush1.xpose.msra.mxu0 0.0
        %3853 = vmatprep.subr.mxu0 0.0
        %3854 = vmatpush1.xpose.msra.mxu0 0.0
        %3855 = vmatprep.subr.mxu0 0.0
        %3856 = vmatpush1.xpose.msra.mxu0 0.0
        %3857 = vmatprep.subr.mxu0 0.0
        %3858 = vmatpush1.xpose.msra.mxu0 0.0
        %3859 = vmatprep.subr.mxu0 0.0
        %3860 = vmatpush1.xpose.msra.mxu0 0.0
        %3861 = vmatprep.subr.mxu0 0.0
        %3862 = vmatpush1.xpose.msra.mxu0 0.0
        %3863 = vmatprep.subr.mxu0 0.0
        %3864 = vmatpush1.xpose.msra.mxu0 0.0
        %3865 = vmatprep.subr.mxu0 0.0
        %3866 = vmatpush1.xpose.msra.mxu0 0.0
        %3867 = vmatprep.subr.mxu0 0.0
        %3868 = vmatpush1.xpose.msra.mxu0 0.0
        %3869 = vmatprep.subr.mxu0 0.0
        %3870 = vmatpush1.xpose.msra.mxu0 0.0
        %3871 = vmatprep.subr.mxu0 0.0
        %3872 = vmatpush1.xpose.msra.mxu0 0.0
        %3873 = vmatprep.subr.mxu0 0.0
        %3874 = vmatpush1.xpose.msra.mxu0 0.0
        %3875 = vmatprep.subr.mxu0 0.0
        %3876 = vmatpush1.xpose.msra.mxu0 0.0
        %3877 = vmatprep.subr.mxu0 0.0
        %3878 = vmatpush1.xpose.msra.mxu0 0.0
        %3879 = vmatprep.subr.mxu0 0.0
        %3880 = vmatpush1.xpose.msra.mxu0 0.0
        %3881 = vmatprep.subr.mxu0 0.0
        %3882 = vmatpush1.xpose.msra.mxu0 0.0
        %3883 = vmatprep.subr.mxu0 0.0
        %3884 = vmatpush1.xpose.msra.mxu0 0.0
        %3885 = vmatprep.subr.mxu0 0.0
        %3886 = vmatpush1.xpose.msra.mxu0 0.0
        %3887 = vmatprep.subr.mxu0 0.0
        %3888 = vmatpush1.xpose.msra.mxu0 0.0
        %3889 = vmatprep.subr.mxu0 0.0
        %3890 = vmatpush1.xpose.msra.mxu0 0.0
        %3891 = vmatprep.subr.mxu0 0.0
        %3892 = vmatpush1.xpose.msra.mxu0 0.0
        %3893 = vmatprep.subr.mxu0 0.0
        %3894 = vmatpush1.xpose.msra.mxu0 0.0
        %3895 = vmatprep.subr.mxu0 0.0
        %3896 = vmatpush1.xpose.msra.mxu0 0.0
        %3897 = vmatprep.mubr.f32.mxu0 0.0
        %3898 = vmatmul.mubr.f32.gmra.mrb[0].mxu0 %v3126
        %v3899 = vpop.f32.mrb[0].mxu0
        %v3900 = vadd.f32 0.0, %v3899
        %v3901 = vpop.f32.mrb[0].mxu0
        %3902 = vdwg.mxu0
        %v3904 = vsel %vm885, %v3403, 0
        %v3907 = vsel %vm885, %v3404, 0
        %v3910 = vsel %vm885, %v3405, 0
        %v3913 = vsel %vm885, %v3406, 0
        %3915 = vmatprep.subr.mxu0 0.0
        %3916 = vmatpush1.xpose.msra.mxu0 %v3904
        %3917 = vmatprep.subr.mxu0 0.0
        %3918 = vmatpush1.xpose.msra.mxu0 %v3907
        %3919 = vmatprep.subr.mxu0 0.0
        %3920 = vmatpush1.xpose.msra.mxu0 %v3910
        %3921 = vmatprep.subr.mxu0 0.0
        %3922 = vmatpush1.xpose.msra.mxu0 %v3913
        %3923 = vmatprep.subr.mxu0 0.0
        %3924 = vmatpush1.xpose.msra.mxu0 0.0
        %3925 = vmatprep.subr.mxu0 0.0
        %3926 = vmatpush1.xpose.msra.mxu0 0.0
        %3927 = vmatprep.subr.mxu0 0.0
        %3928 = vmatpush1.xpose.msra.mxu0 0.0
        %3929 = vmatprep.subr.mxu0 0.0
        %3930 = vmatpush1.xpose.msra.mxu0 0.0
        %3931 = vmatprep.subr.mxu0 0.0
        %3932 = vmatpush1.xpose.msra.mxu0 0.0
        %3933 = vmatprep.subr.mxu0 0.0
        %3934 = vmatpush1.xpose.msra.mxu0 0.0
        %3935 = vmatprep.subr.mxu0 0.0
        %3936 = vmatpush1.xpose.msra.mxu0 0.0
        %3937 = vmatprep.subr.mxu0 0.0
        %3938 = vmatpush1.xpose.msra.mxu0 0.0
        %3939 = vmatprep.subr.mxu0 0.0
        %3940 = vmatpush1.xpose.msra.mxu0 0.0
        %3941 = vmatprep.subr.mxu0 0.0
        %3942 = vmatpush1.xpose.msra.mxu0 0.0
        %3943 = vmatprep.subr.mxu0 0.0
        %3944 = vmatpush1.xpose.msra.mxu0 0.0
        %3945 = vmatprep.subr.mxu0 0.0
        %3946 = vmatpush1.xpose.msra.mxu0 0.0
        %3947 = vmatprep.subr.mxu0 0.0
        %3948 = vmatpush1.xpose.msra.mxu0 0.0
        %3949 = vmatprep.subr.mxu0 0.0
        %3950 = vmatpush1.xpose.msra.mxu0 0.0
        %3951 = vmatprep.subr.mxu0 0.0
        %3952 = vmatpush1.xpose.msra.mxu0 0.0
        %3953 = vmatprep.subr.mxu0 0.0
        %3954 = vmatpush1.xpose.msra.mxu0 0.0
        %3955 = vmatprep.subr.mxu0 0.0
        %3956 = vmatpush1.xpose.msra.mxu0 0.0
        %3957 = vmatprep.subr.mxu0 0.0
        %3958 = vmatpush1.xpose.msra.mxu0 0.0
        %3959 = vmatprep.subr.mxu0 0.0
        %3960 = vmatpush1.xpose.msra.mxu0 0.0
        %3961 = vmatprep.subr.mxu0 0.0
        %3962 = vmatpush1.xpose.msra.mxu0 0.0
        %3963 = vmatprep.subr.mxu0 0.0
        %3964 = vmatpush1.xpose.msra.mxu0 0.0
        %3965 = vmatprep.subr.mxu0 0.0
        %3966 = vmatpush1.xpose.msra.mxu0 0.0
        %3967 = vmatprep.subr.mxu0 0.0
        %3968 = vmatpush1.xpose.msra.mxu0 0.0
        %3969 = vmatprep.subr.mxu0 0.0
        %3970 = vmatpush1.xpose.msra.mxu0 0.0
        %3971 = vmatprep.subr.mxu0 0.0
        %3972 = vmatpush1.xpose.msra.mxu0 0.0
        %3973 = vmatprep.subr.mxu0 0.0
        %3974 = vmatpush1.xpose.msra.mxu0 0.0
        %3975 = vmatprep.subr.mxu0 0.0
        %3976 = vmatpush1.xpose.msra.mxu0 0.0
        %3977 = vmatprep.subr.mxu0 0.0
        %3978 = vmatpush1.xpose.msra.mxu0 0.0
        %3979 = vmatprep.mubr.f32.mxu0 0.0
        %3980 = vmatmul.mubr.f32.gmra.mrb[0].mxu0 %v3210
        %v3981 = vpop.f32.mrb[0].mxu0
        %v3982 = vadd.f32 0.0, %v3981
        %v3983 = vpop.f32.mrb[0].mxu0
        %3984 = vdwg.mxu0
        %v3986 = vsel %vm885, %v3407, 0
        %v3989 = vsel %vm885, %v3408, 0
        %v3992 = vsel %vm885, %v3409, 0
        %v3995 = vsel %vm885, %v3410, 0
        %3997 = vmatprep.subr.mxu0 0.0
        %3998 = vmatpush1.xpose.msra.mxu0 %v3986
        %3999 = vmatprep.subr.mxu0 0.0
        %4000 = vmatpush1.xpose.msra.mxu0 %v3989
        %4001 = vmatprep.subr.mxu0 0.0
        %4002 = vmatpush1.xpose.msra.mxu0 %v3992
        %4003 = vmatprep.subr.mxu0 0.0
        %4004 = vmatpush1.xpose.msra.mxu0 %v3995
        %4005 = vmatprep.subr.mxu0 0.0
        %4006 = vmatpush1.xpose.msra.mxu0 0.0
        %4007 = vmatprep.subr.mxu0 0.0
        %4008 = vmatpush1.xpose.msra.mxu0 0.0
        %4009 = vmatprep.subr.mxu0 0.0
        %4010 = vmatpush1.xpose.msra.mxu0 0.0
        %4011 = vmatprep.subr.mxu0 0.0
        %4012 = vmatpush1.xpose.msra.mxu0 0.0
        %4013 = vmatprep.subr.mxu0 0.0
        %4014 = vmatpush1.xpose.msra.mxu0 0.0
        %4015 = vmatprep.subr.mxu0 0.0
        %4016 = vmatpush1.xpose.msra.mxu0 0.0
        %4017 = vmatprep.subr.mxu0 0.0
        %4018 = vmatpush1.xpose.msra.mxu0 0.0
        %4019 = vmatprep.subr.mxu0 0.0
        %4020 = vmatpush1.xpose.msra.mxu0 0.0
        %4021 = vmatprep.subr.mxu0 0.0
        %4022 = vmatpush1.xpose.msra.mxu0 0.0
        %4023 = vmatprep.subr.mxu0 0.0
        %4024 = vmatpush1.xpose.msra.mxu0 0.0
        %4025 = vmatprep.subr.mxu0 0.0
        %4026 = vmatpush1.xpose.msra.mxu0 0.0
        %4027 = vmatprep.subr.mxu0 0.0
        %4028 = vmatpush1.xpose.msra.mxu0 0.0
        %4029 = vmatprep.subr.mxu0 0.0
        %4030 = vmatpush1.xpose.msra.mxu0 0.0
        %4031 = vmatprep.subr.mxu0 0.0
        %4032 = vmatpush1.xpose.msra.mxu0 0.0
        %4033 = vmatprep.subr.mxu0 0.0
        %4034 = vmatpush1.xpose.msra.mxu0 0.0
        %4035 = vmatprep.subr.mxu0 0.0
        %4036 = vmatpush1.xpose.msra.mxu0 0.0
        %4037 = vmatprep.subr.mxu0 0.0
        %4038 = vmatpush1.xpose.msra.mxu0 0.0
        %4039 = vmatprep.subr.mxu0 0.0
        %4040 = vmatpush1.xpose.msra.mxu0 0.0
        %4041 = vmatprep.subr.mxu0 0.0
        %4042 = vmatpush1.xpose.msra.mxu0 0.0
        %4043 = vmatprep.subr.mxu0 0.0
        %4044 = vmatpush1.xpose.msra.mxu0 0.0
        %4045 = vmatprep.subr.mxu0 0.0
        %4046 = vmatpush1.xpose.msra.mxu0 0.0
        %4047 = vmatprep.subr.mxu0 0.0
        %4048 = vmatpush1.xpose.msra.mxu0 0.0
        %4049 = vmatprep.subr.mxu0 0.0
        %4050 = vmatpush1.xpose.msra.mxu0 0.0
        %4051 = vmatprep.subr.mxu0 0.0
        %4052 = vmatpush1.xpose.msra.mxu0 0.0
        %4053 = vmatprep.subr.mxu0 0.0
        %4054 = vmatpush1.xpose.msra.mxu0 0.0
        %4055 = vmatprep.subr.mxu0 0.0
        %4056 = vmatpush1.xpose.msra.mxu0 0.0
        %4057 = vmatprep.subr.mxu0 0.0
        %4058 = vmatpush1.xpose.msra.mxu0 0.0
        %4059 = vmatprep.subr.mxu0 0.0
        %4060 = vmatpush1.xpose.msra.mxu0 0.0
        %4061 = vmatprep.mubr.f32.mxu0 0.0
        %4062 = vmatmul.mubr.f32.gmra.mrb[0].mxu0 %v3294
        %v4063 = vpop.f32.mrb[0].mxu0
        %v4064 = vadd.f32 0.0, %v4063
        %v4065 = vpop.f32.mrb[0].mxu0
        %4066 = vdwg.mxu0
        %v4075 = vrot.slane %v3490, 1
        %v4076 = vrot.slane %v3572, 1
        %v4077 = vrot.slane %v3654, 1
        %v4078 = vrot.slane %v3736, 1
        %v4079 = vrot.slane %v3818, 1
        %v4080 = vrot.slane %v3900, 1
        %v4081 = vrot.slane %v3982, 1
        %v4082 = vrot.slane %v4064, 1
        %v4091 = vsub.f32 %v2787, %v4075
        %v4092 = vsub.f32 %v2871, %v4076
        %v4093 = vsub.f32 %v2955, %v4077
        %v4094 = vsub.f32 %v3039, %v4078
        %v4095 = vsub.f32 %v3123, %v4079
        %v4096 = vsub.f32 %v3207, %v4080
        %v4097 = vsub.f32 %v3291, %v4081
        %v4098 = vsub.f32 %v3375, %v4082
        %v4107 = vrot.slane %v2787, 1
        %v4108 = vrot.slane %v2871, 1
        %v4109 = vrot.slane %v2955, 1
        %v4110 = vrot.slane %v3039, 1
        %v4111 = vrot.slane %v3123, 1
        %v4112 = vrot.slane %v3207, 1
        %v4113 = vrot.slane %v3291, 1
        %v4114 = vrot.slane %v3375, 1
        %v4123 = vadd.f32 %v3490, %v4107
        %v4124 = vadd.f32 %v3572, %v4108
        %v4125 = vadd.f32 %v3654, %v4109
        %v4126 = vadd.f32 %v3736, %v4110
        %v4127 = vadd.f32 %v3818, %v4111
        %v4128 = vadd.f32 %v3900, %v4112
        %v4129 = vadd.f32 %v3982, %v4113
        %v4130 = vadd.f32 %v4064, %v4114
        %v4139 = vrot.slane %v4092, 7
        %v4140 = vsel %vm2319, %v4139, %v4091
        %v4141 = vrot.slane %v4093, 6
        %v4142 = vsel %vm2322, %v4141, %v4140
        %v4143 = vrot.slane %v4094, 5
        %v4144 = vsel %vm2325, %v4143, %v4142
        %v4145 = vrot.slane %v4095, 4
        %v4146 = vsel %vm2328, %v4145, %v4144
        %v4147 = vrot.slane %v4096, 3
        %v4148 = vsel %vm2331, %v4147, %v4146
        %v4149 = vrot.slane %v4097, 2
        %v4150 = vsel %vm2334, %v4149, %v4148
        %v4151 = vrot.slane %v4098, 1
        %v4152 = vsel %vm2337, %v4151, %v4150
        %v4162 = vrot.slane %v4124, 7
        %v4163 = vsel %vm2319, %v4162, %v4123
        %v4164 = vrot.slane %v4125, 6
        %v4165 = vsel %vm2322, %v4164, %v4163
        %v4166 = vrot.slane %v4126, 5
        %v4167 = vsel %vm2325, %v4166, %v4165
        %v4168 = vrot.slane %v4127, 4
        %v4169 = vsel %vm2328, %v4168, %v4167
        %v4170 = vrot.slane %v4128, 3
        %v4171 = vsel %vm2331, %v4170, %v4169
        %v4172 = vrot.slane %v4129, 2
        %v4173 = vsel %vm2334, %v4172, %v4171
        %v4174 = vrot.slane %v4130, 1
        %v4175 = vsel %vm2337, %v4174, %v4173
        %s4177 = scalar_lea.vmem [#allocation14], 32
        %v4178 = vld [vmem:[%s4177] sm:$0xff]
        %v4179 = vld [vmem:[%s4177 + $0x8] sm:$0xff]
        %v4180 = vld [vmem:[%s4177 + $0x10] sm:$0xff]
        %v4181 = vld [vmem:[%s4177 + $0x18] sm:$0xff]
        %v4183 = vsel %vm885, %v2560, 0
        %v4186 = vsel %vm885, %v2561, 0
        %v4189 = vsel %vm885, %v4178, 0
        %v4192 = vsel %vm885, %v4179, 0
        %v4195 = vsel %vm885, %v4180, 0
        %v4198 = vsel %vm885, %v4181, 0
        %4200 = vmatprep.subr.mxu0 0.0
        %4201 = vmatpush1.xpose.msra.mxu0 %v4189
        %4202 = vmatprep.subr.mxu0 0.0
        %4203 = vmatpush1.xpose.msra.mxu0 %v4192
        %4204 = vmatprep.subr.mxu0 0.0
        %4205 = vmatpush1.xpose.msra.mxu0 %v4195
        %4206 = vmatprep.subr.mxu0 0.0
        %4207 = vmatpush1.xpose.msra.mxu0 %v4198
        %4208 = vmatprep.subr.mxu0 0.0
        %4209 = vmatpush1.xpose.msra.mxu0 0.0
        %4210 = vmatprep.subr.mxu0 0.0
        %4211 = vmatpush1.xpose.msra.mxu0 0.0
        %4212 = vmatprep.subr.mxu0 0.0
        %4213 = vmatpush1.xpose.msra.mxu0 0.0
        %4214 = vmatprep.subr.mxu0 0.0
        %4215 = vmatpush1.xpose.msra.mxu0 0.0
        %4216 = vmatprep.subr.mxu0 0.0
        %4217 = vmatpush1.xpose.msra.mxu0 0.0
        %4218 = vmatprep.subr.mxu0 0.0
        %4219 = vmatpush1.xpose.msra.mxu0 0.0
        %4220 = vmatprep.subr.mxu0 0.0
        %4221 = vmatpush1.xpose.msra.mxu0 0.0
        %4222 = vmatprep.subr.mxu0 0.0
        %4223 = vmatpush1.xpose.msra.mxu0 0.0
        %4224 = vmatprep.subr.mxu0 0.0
        %4225 = vmatpush1.xpose.msra.mxu0 0.0
        %4226 = vmatprep.subr.mxu0 0.0
        %4227 = vmatpush1.xpose.msra.mxu0 0.0
        %4228 = vmatprep.subr.mxu0 0.0
        %4229 = vmatpush1.xpose.msra.mxu0 0.0
        %4230 = vmatprep.subr.mxu0 0.0
        %4231 = vmatpush1.xpose.msra.mxu0 0.0
        %4232 = vmatprep.subr.mxu0 0.0
        %4233 = vmatpush1.xpose.msra.mxu0 0.0
        %4234 = vmatprep.subr.mxu0 0.0
        %4235 = vmatpush1.xpose.msra.mxu0 0.0
        %4236 = vmatprep.subr.mxu0 0.0
        %4237 = vmatpush1.xpose.msra.mxu0 0.0
        %4238 = vmatprep.subr.mxu0 0.0
        %4239 = vmatpush1.xpose.msra.mxu0 0.0
        %4240 = vmatprep.subr.mxu0 0.0
        %4241 = vmatpush1.xpose.msra.mxu0 0.0
        %4242 = vmatprep.subr.mxu0 0.0
        %4243 = vmatpush1.xpose.msra.mxu0 0.0
        %4244 = vmatprep.subr.mxu0 0.0
        %4245 = vmatpush1.xpose.msra.mxu0 0.0
        %4246 = vmatprep.subr.mxu0 0.0
        %4247 = vmatpush1.xpose.msra.mxu0 0.0
        %4248 = vmatprep.subr.mxu0 0.0
        %4249 = vmatpush1.xpose.msra.mxu0 0.0
        %4250 = vmatprep.subr.mxu0 0.0
        %4251 = vmatpush1.xpose.msra.mxu0 0.0
        %4252 = vmatprep.subr.mxu0 0.0
        %4253 = vmatpush1.xpose.msra.mxu0 0.0
        %4254 = vmatprep.subr.mxu0 0.0
        %4255 = vmatpush1.xpose.msra.mxu0 0.0
        %4256 = vmatprep.subr.mxu0 0.0
        %4257 = vmatpush1.xpose.msra.mxu0 0.0
        %4258 = vmatprep.subr.mxu0 0.0
        %4259 = vmatpush1.xpose.msra.mxu0 0.0
        %4260 = vmatprep.subr.mxu0 0.0
        %4261 = vmatpush1.xpose.msra.mxu0 0.0
        %4262 = vmatprep.subr.mxu0 0.0
        %4263 = vmatpush1.xpose.msra.mxu0 0.0
        %4264 = vmatprep.mubr.f32.mxu0 0.0
        %4265 = vmatmul.mubr.f32.gmra.mrb[0].mxu0 %v4183
        %v4266 = vpop.f32.mrb[0].mxu0
        %v4267 = vadd.f32 0.0, %v4266
        %v4268 = vpop.f32.mrb[0].mxu0
        %4269 = vmatprep.mubr.f32.mxu0 0.0
        %4270 = vmatmul.mubr.f32.gmra.mrb[0].mxu0 %v4186
        %v4271 = vpop.f32.mrb[0].mxu0
        %v4272 = vadd.f32 0.0, %v4271
        %v4273 = vpop.f32.mrb[0].mxu0
        %4274 = vdwg.mxu0
        %4275 = vmatprep.subr.mxu0 0.0
        %4276 = vmatpush1.msra.mxu0 %v4152
        %4277 = vmatprep.subr.mxu0 0.0
        %4278 = vmatpush1.msra.mxu0 %v4175
        %4279 = vmatprep.subr.mxu0 0.0
        %4280 = vmatpush1.msra.mxu0 0.0
        %4281 = vmatprep.subr.mxu0 0.0
        %4282 = vmatpush1.msra.mxu0 0.0
        %4283 = vmatprep.subr.mxu0 0.0
        %4284 = vmatpush1.msra.mxu0 0.0
        %4285 = vmatprep.subr.mxu0 0.0
        %4286 = vmatpush1.msra.mxu0 0.0
        %4287 = vmatprep.subr.mxu0 0.0
        %4288 = vmatpush1.msra.mxu0 0.0
        %4289 = vmatprep.subr.mxu0 0.0
        %4290 = vmatpush1.msra.mxu0 0.0
        %4291 = vmatprep.subr.mxu0 0.0
        %4292 = vmatpush1.msra.mxu0 0.0
        %4293 = vmatprep.subr.mxu0 0.0
        %4294 = vmatpush1.msra.mxu0 0.0
        %4295 = vmatprep.subr.mxu0 0.0
        %4296 = vmatpush1.msra.mxu0 0.0
        %4297 = vmatprep.subr.mxu0 0.0
        %4298 = vmatpush1.msra.mxu0 0.0
        %4299 = vmatprep.subr.mxu0 0.0
        %4300 = vmatpush1.msra.mxu0 0.0
        %4301 = vmatprep.subr.mxu0 0.0
        %4302 = vmatpush1.msra.mxu0 0.0
        %4303 = vmatprep.subr.mxu0 0.0
        %4304 = vmatpush1.msra.mxu0 0.0
        %4305 = vmatprep.subr.mxu0 0.0
        %4306 = vmatpush1.msra.mxu0 0.0
        %4307 = vmatprep.subr.mxu0 0.0
        %4308 = vmatpush1.msra.mxu0 0.0
        %4309 = vmatprep.subr.mxu0 0.0
        %4310 = vmatpush1.msra.mxu0 0.0
        %4311 = vmatprep.subr.mxu0 0.0
        %4312 = vmatpush1.msra.mxu0 0.0
        %4313 = vmatprep.subr.mxu0 0.0
        %4314 = vmatpush1.msra.mxu0 0.0
        %4315 = vmatprep.subr.mxu0 0.0
        %4316 = vmatpush1.msra.mxu0 0.0
        %4317 = vmatprep.subr.mxu0 0.0
        %4318 = vmatpush1.msra.mxu0 0.0
        %4319 = vmatprep.subr.mxu0 0.0
        %4320 = vmatpush1.msra.mxu0 0.0
        %4321 = vmatprep.subr.mxu0 0.0
        %4322 = vmatpush1.msra.mxu0 0.0
        %4323 = vmatprep.subr.mxu0 0.0
        %4324 = vmatpush1.msra.mxu0 0.0
        %4325 = vmatprep.subr.mxu0 0.0
        %4326 = vmatpush1.msra.mxu0 0.0
        %4327 = vmatprep.subr.mxu0 0.0
        %4328 = vmatpush1.msra.mxu0 0.0
        %4329 = vmatprep.subr.mxu0 0.0
        %4330 = vmatpush1.msra.mxu0 0.0
        %4331 = vmatprep.subr.mxu0 0.0
        %4332 = vmatpush1.msra.mxu0 0.0
        %4333 = vmatprep.subr.mxu0 0.0
        %4334 = vmatpush1.msra.mxu0 0.0
        %4335 = vmatprep.subr.mxu0 0.0
        %4336 = vmatpush1.msra.mxu0 0.0
        %4337 = vmatprep.subr.mxu0 0.0
        %4338 = vmatpush1.msra.mxu0 0.0
        %4339 = vmatprep.mubr.f32.mxu0 0.0
        %4340 = vmatmul.mubr.f32.gmra.mrb[0].mxu0 %v2463
        %v4341 = vpop.f32.mrb[0].mxu0
        %v4342 = vadd.f32 %v4267, %v4341
        %v4343 = vpop.f32.mrb[0].mxu0
        %4344 = vmatprep.mubr.f32.mxu0 0.0
        %4345 = vmatmul.mubr.f32.gmra.mrb[0].mxu0 %v2466
        %v4346 = vpop.f32.mrb[0].mxu0
        %v4347 = vadd.f32 %v4272, %v4346
        %v4348 = vpop.f32.mrb[0].mxu0
        %4349 = vdwg.mxu0
        %s4350 = scalar_lea.vmem [#allocation15], 1
        %v4351 = vld [vmem:[%s4350] sm:$0x1]
        %v4353 = vlaneseq
        %v4354 = vshrl.u32 %v4353, 7
        %v4355 = vsub.s32 0, %v4354
        %v4356 = vrot.slane %v4351, %v4355
        %v4358 = vadd.f32 %v4342, %v4356
        %v4359 = vadd.f32 %v4347, %v4356
        %v4360 = vmul.f32 %v4358, 0.5
        %v4361 = vmul.f32 %v4359, 0.5
        %v4362 = vmul.f32 %v4358, 0.70710677
        %v4363 = vmul.f32 %v4359, 0.70710677
        %v4364 = verf.f32.pop %v4362
        %v4365 = verf.f32.pop %v4363
        %v4366 = vadd.f32 %v4364, 1.0
        %v4367 = vadd.f32 %v4365, 1.0
        %v4368 = vmul.f32 %v4360, %v4366
        %v4369 = vmul.f32 %v4361, %v4367
        %4370 = vmatprep.subr.mxu0 0.0
        %4371 = vmatpush1.msra.mxu0 %v4368
        %4372 = vmatprep.subr.mxu0 0.0
        %4373 = vmatpush1.msra.mxu0 %v4369
        %4374 = vmatprep.subr.mxu0 0.0
        %4375 = vmatpush1.msra.mxu0 0.0
        %4376 = vmatprep.subr.mxu0 0.0
        %4377 = vmatpush1.msra.mxu0 0.0
        %4378 = vmatprep.subr.mxu0 0.0
        %4379 = vmatpush1.msra.mxu0 0.0
        %4380 = vmatprep.subr.mxu0 0.0
        %4381 = vmatpush1.msra.mxu0 0.0
        %4382 = vmatprep.subr.mxu0 0.0
        %4383 = vmatpush1.msra.mxu0 0.0
        %4384 = vmatprep.subr.mxu0 0.0
        %4385 = vmatpush1.msra.mxu0 0.0
        %4386 = vmatprep.subr.mxu0 0.0
        %4387 = vmatpush1.msra.mxu0 0.0
        %4388 = vmatprep.subr.mxu0 0.0
        %4389 = vmatpush1.msra.mxu0 0.0
        %4390 = vmatprep.subr.mxu0 0.0
        %4391 = vmatpush1.msra.mxu0 0.0
        %4392 = vmatprep.subr.mxu0 0.0
        %4393 = vmatpush1.msra.mxu0 0.0
        %4394 = vmatprep.subr.mxu0 0.0
        %4395 = vmatpush1.msra.mxu0 0.0
        %4396 = vmatprep.subr.mxu0 0.0
        %4397 = vmatpush1.msra.mxu0 0.0
        %4398 = vmatprep.subr.mxu0 0.0
        %4399 = vmatpush1.msra.mxu0 0.0
        %4400 = vmatprep.subr.mxu0 0.0
        %4401 = vmatpush1.msra.mxu0 0.0
        %4402 = vmatprep.subr.mxu0 0.0
        %4403 = vmatpush1.msra.mxu0 0.0
        %4404 = vmatprep.subr.mxu0 0.0
        %4405 = vmatpush1.msra.mxu0 0.0
        %4406 = vmatprep.subr.mxu0 0.0
        %4407 = vmatpush1.msra.mxu0 0.0
        %4408 = vmatprep.subr.mxu0 0.0
        %4409 = vmatpush1.msra.mxu0 0.0
        %4410 = vmatprep.subr.mxu0 0.0
        %4411 = vmatpush1.msra.mxu0 0.0
        %4412 = vmatprep.subr.mxu0 0.0
        %4413 = vmatpush1.msra.mxu0 0.0
        %4414 = vmatprep.subr.mxu0 0.0
        %4415 = vmatpush1.msra.mxu0 0.0
        %4416 = vmatprep.subr.mxu0 0.0
        %4417 = vmatpush1.msra.mxu0 0.0
        %4418 = vmatprep.subr.mxu0 0.0
        %4419 = vmatpush1.msra.mxu0 0.0
        %4420 = vmatprep.subr.mxu0 0.0
        %4421 = vmatpush1.msra.mxu0 0.0
        %4422 = vmatprep.subr.mxu0 0.0
        %4423 = vmatpush1.msra.mxu0 0.0
        %4424 = vmatprep.subr.mxu0 0.0
        %4425 = vmatpush1.msra.mxu0 0.0
        %4426 = vmatprep.subr.mxu0 0.0
        %4427 = vmatpush1.msra.mxu0 0.0
        %4428 = vmatprep.subr.mxu0 0.0
        %4429 = vmatpush1.msra.mxu0 0.0
        %4430 = vmatprep.subr.mxu0 0.0
        %4431 = vmatpush1.msra.mxu0 0.0
        %4432 = vmatprep.subr.mxu0 0.0
        %4433 = vmatpush1.msra.mxu0 0.0
        %4434 = vmatprep.mubr.f32.mxu0 0.0
        %4435 = vmatmul.mubr.f32.gmra.mrb[0].mxu0 %v737
        %v4436 = vpop.f32.mrb[0].mxu0
        %v4437 = vadd.f32 0.0, %v4436
        %v4438 = vpop.f32.mrb[0].mxu0
        %4439 = vmatprep.mubr.f32.mxu0 0.0
        %4440 = vmatmul.mubr.f32.gmra.mrb[0].mxu0 %v740
        %v4441 = vpop.f32.mrb[0].mxu0
        %v4442 = vadd.f32 0.0, %v4441
        %v4443 = vpop.f32.mrb[0].mxu0
        %4444 = vdwg.mxu0
        %v4447 = vcombine.high %v4437, %v4437
        %v4449 = vunpack.c.l.s4 1983009808
        %v4450 = vunpack.c.0.s8 %v4449
        %v4451 = vlaneseq
        %v4452 = vshrl.u32 %v4451, 7
        %v4453 = vsub.s32 %v4450, %v4452
        %v4454 = vrot.slane %v4437, %v4453
        %v4456 = vunpack.c.l.s4 1983009808
        %v4457 = vunpack.c.0.s8 %v4456
        %v4458 = vlaneseq
        %v4459 = vshrl.u32 %v4458, 7
        %v4460 = vsub.s32 %v4457, %v4459
        %v4461 = vrot.slane %v4447, %v4460
        %v4462 = vcombine.high %v4454, %v4454
        %v4463 = vcombine.high %v4461, %v4461
        %v4464 = vcombine.high %v4442, %v4442
        %v4466 = vunpack.c.l.s4 1983009808
        %v4467 = vunpack.c.0.s8 %v4466
        %v4468 = vlaneseq
        %v4469 = vshrl.u32 %v4468, 7
        %v4470 = vsub.s32 %v4467, %v4469
        %v4471 = vrot.slane %v4442, %v4470
        %v4473 = vunpack.c.l.s4 1983009808
        %v4474 = vunpack.c.0.s8 %v4473
        %v4475 = vlaneseq
        %v4476 = vshrl.u32 %v4475, 7
        %v4477 = vsub.s32 %v4474, %v4476
        %v4478 = vrot.slane %v4464, %v4477
        %v4479 = vcombine.high %v4471, %v4471
        %v4480 = vcombine.high %v4478, %v4478
        %s4481 = scalar_lea.vmem [#allocation11], 512
        %v4482 = vld [vmem:[%s4481] sm:$0xff]
        %v4483 = vld [vmem:[%s4481 + $0x8] sm:$0xff]
        %v4484 = vld [vmem:[%s4481 + $0x10] sm:$0xff]
        %v4485 = vld [vmem:[%s4481 + $0x18] sm:$0xff]
        %v4486 = vld [vmem:[%s4481 + $0x20] sm:$0xff]
        %v4487 = vld [vmem:[%s4481 + $0x28] sm:$0xff]
        %v4488 = vld [vmem:[%s4481 + $0x30] sm:$0xff]
        %v4489 = vld [vmem:[%s4481 + $0x38] sm:$0xff]
        %v4490 = vld [vmem:[%s4481 + $0x40] sm:$0xff]
        %v4491 = vld [vmem:[%s4481 + $0x48] sm:$0xff]
        %v4492 = vld [vmem:[%s4481 + $0x50] sm:$0xff]
        %v4493 = vld [vmem:[%s4481 + $0x58] sm:$0xff]
        %v4494 = vld [vmem:[%s4481 + $0x60] sm:$0xff]
        %v4495 = vld [vmem:[%s4481 + $0x68] sm:$0xff]
        %v4496 = vld [vmem:[%s4481 + $0x70] sm:$0xff]
        %v4497 = vld [vmem:[%s4481 + $0x78] sm:$0xff]
        %v4498 = vld [vmem:[%s4481 + $0x80] sm:$0xff]
        %v4499 = vld [vmem:[%s4481 + $0x88] sm:$0xff]
        %v4500 = vld [vmem:[%s4481 + $0x90] sm:$0xff]
        %v4501 = vld [vmem:[%s4481 + $0x98] sm:$0xff]
        %v4502 = vld [vmem:[%s4481 + $0xa0] sm:$0xff]
        %v4503 = vld [vmem:[%s4481 + $0xa8] sm:$0xff]
        %v4504 = vld [vmem:[%s4481 + $0xb0] sm:$0xff]
        %v4505 = vld [vmem:[%s4481 + $0xb8] sm:$0xff]
        %v4506 = vld [vmem:[%s4481 + $0xc0] sm:$0xff]
        %v4507 = vld [vmem:[%s4481 + $0xc8] sm:$0xff]
        %v4508 = vld [vmem:[%s4481 + $0xd0] sm:$0xff]
        %v4509 = vld [vmem:[%s4481 + $0xd8] sm:$0xff]
        %v4510 = vld [vmem:[%s4481 + $0xe0] sm:$0xff]
        %v4511 = vld [vmem:[%s4481 + $0xe8] sm:$0xff]
        %v4512 = vld [vmem:[%s4481 + $0xf0] sm:$0xff]
        %v4513 = vld [vmem:[%s4481 + $0xf8] sm:$0xff]
        %v4514 = vsel %vm885, %v4454, 0
        %v4517 = vsel %vm885, %v4482, 0
        %v4520 = vsel %vm885, %v4483, 0
        %v4523 = vsel %vm885, %v4484, 0
        %v4526 = vsel %vm885, %v4485, 0
        %4528 = vmatprep.subr.mxu0 0.0
        %4529 = vmatpush1.xpose.msra.mxu0 %v4517
        %4530 = vmatprep.subr.mxu0 0.0
        %4531 = vmatpush1.xpose.msra.mxu0 %v4520
        %4532 = vmatprep.subr.mxu0 0.0
        %4533 = vmatpush1.xpose.msra.mxu0 %v4523
        %4534 = vmatprep.subr.mxu0 0.0
        %4535 = vmatpush1.xpose.msra.mxu0 %v4526
        %4536 = vmatprep.subr.mxu0 0.0
        %4537 = vmatpush1.xpose.msra.mxu0 0.0
        %4538 = vmatprep.subr.mxu0 0.0
        %4539 = vmatpush1.xpose.msra.mxu0 0.0
        %4540 = vmatprep.subr.mxu0 0.0
        %4541 = vmatpush1.xpose.msra.mxu0 0.0
        %4542 = vmatprep.subr.mxu0 0.0
        %4543 = vmatpush1.xpose.msra.mxu0 0.0
        %4544 = vmatprep.subr.mxu0 0.0
        %4545 = vmatpush1.xpose.msra.mxu0 0.0
        %4546 = vmatprep.subr.mxu0 0.0
        %4547 = vmatpush1.xpose.msra.mxu0 0.0
        %4548 = vmatprep.subr.mxu0 0.0
        %4549 = vmatpush1.xpose.msra.mxu0 0.0
        %4550 = vmatprep.subr.mxu0 0.0
        %4551 = vmatpush1.xpose.msra.mxu0 0.0
        %4552 = vmatprep.subr.mxu0 0.0
        %4553 = vmatpush1.xpose.msra.mxu0 0.0
        %4554 = vmatprep.subr.mxu0 0.0
        %4555 = vmatpush1.xpose.msra.mxu0 0.0
        %4556 = vmatprep.subr.mxu0 0.0
        %4557 = vmatpush1.xpose.msra.mxu0 0.0
        %4558 = vmatprep.subr.mxu0 0.0
        %4559 = vmatpush1.xpose.msra.mxu0 0.0
        %4560 = vmatprep.subr.mxu0 0.0
        %4561 = vmatpush1.xpose.msra.mxu0 0.0
        %4562 = vmatprep.subr.mxu0 0.0
        %4563 = vmatpush1.xpose.msra.mxu0 0.0
        %4564 = vmatprep.subr.mxu0 0.0
        %4565 = vmatpush1.xpose.msra.mxu0 0.0
        %4566 = vmatprep.subr.mxu0 0.0
        %4567 = vmatpush1.xpose.msra.mxu0 0.0
        %4568 = vmatprep.subr.mxu0 0.0
        %4569 = vmatpush1.xpose.msra.mxu0 0.0
        %4570 = vmatprep.subr.mxu0 0.0
        %4571 = vmatpush1.xpose.msra.mxu0 0.0
        %4572 = vmatprep.subr.mxu0 0.0
        %4573 = vmatpush1.xpose.msra.mxu0 0.0
        %4574 = vmatprep.subr.mxu0 0.0
        %4575 = vmatpush1.xpose.msra.mxu0 0.0
        %4576 = vmatprep.subr.mxu0 0.0
        %4577 = vmatpush1.xpose.msra.mxu0 0.0
        %4578 = vmatprep.subr.mxu0 0.0
        %4579 = vmatpush1.xpose.msra.mxu0 0.0
        %4580 = vmatprep.subr.mxu0 0.0
        %4581 = vmatpush1.xpose.msra.mxu0 0.0
        %4582 = vmatprep.subr.mxu0 0.0
        %4583 = vmatpush1.xpose.msra.mxu0 0.0
        %4584 = vmatprep.subr.mxu0 0.0
        %4585 = vmatpush1.xpose.msra.mxu0 0.0
        %4586 = vmatprep.subr.mxu0 0.0
        %4587 = vmatpush1.xpose.msra.mxu0 0.0
        %4588 = vmatprep.subr.mxu0 0.0
        %4589 = vmatpush1.xpose.msra.mxu0 0.0
        %4590 = vmatprep.subr.mxu0 0.0
        %4591 = vmatpush1.xpose.msra.mxu0 0.0
        %4592 = vmatprep.mubr.f32.mxu0 0.0
        %4593 = vmatmul.mubr.f32.gmra.mrb[0].mxu0 %v4514
        %v4594 = vpop.f32.mrb[0].mxu0
        %v4595 = vadd.f32 0.0, %v4594
        %v4596 = vpop.f32.mrb[0].mxu0
        %4597 = vdwg.mxu0
        %v4598 = vsel %vm885, %v4462, 0
        %v4601 = vsel %vm885, %v4486, 0
        %v4604 = vsel %vm885, %v4487, 0
        %v4607 = vsel %vm885, %v4488, 0
        %v4610 = vsel %vm885, %v4489, 0
        %4612 = vmatprep.subr.mxu0 0.0
        %4613 = vmatpush1.xpose.msra.mxu0 %v4601
        %4614 = vmatprep.subr.mxu0 0.0
        %4615 = vmatpush1.xpose.msra.mxu0 %v4604
        %4616 = vmatprep.subr.mxu0 0.0
        %4617 = vmatpush1.xpose.msra.mxu0 %v4607
        %4618 = vmatprep.subr.mxu0 0.0
        %4619 = vmatpush1.xpose.msra.mxu0 %v4610
        %4620 = vmatprep.subr.mxu0 0.0
        %4621 = vmatpush1.xpose.msra.mxu0 0.0
        %4622 = vmatprep.subr.mxu0 0.0
        %4623 = vmatpush1.xpose.msra.mxu0 0.0
        %4624 = vmatprep.subr.mxu0 0.0
        %4625 = vmatpush1.xpose.msra.mxu0 0.0
        %4626 = vmatprep.subr.mxu0 0.0
        %4627 = vmatpush1.xpose.msra.mxu0 0.0
        %4628 = vmatprep.subr.mxu0 0.0
        %4629 = vmatpush1.xpose.msra.mxu0 0.0
        %4630 = vmatprep.subr.mxu0 0.0
        %4631 = vmatpush1.xpose.msra.mxu0 0.0
        %4632 = vmatprep.subr.mxu0 0.0
        %4633 = vmatpush1.xpose.msra.mxu0 0.0
        %4634 = vmatprep.subr.mxu0 0.0
        %4635 = vmatpush1.xpose.msra.mxu0 0.0
        %4636 = vmatprep.subr.mxu0 0.0
        %4637 = vmatpush1.xpose.msra.mxu0 0.0
        %4638 = vmatprep.subr.mxu0 0.0
        %4639 = vmatpush1.xpose.msra.mxu0 0.0
        %4640 = vmatprep.subr.mxu0 0.0
        %4641 = vmatpush1.xpose.msra.mxu0 0.0
        %4642 = vmatprep.subr.mxu0 0.0
        %4643 = vmatpush1.xpose.msra.mxu0 0.0
        %4644 = vmatprep.subr.mxu0 0.0
        %4645 = vmatpush1.xpose.msra.mxu0 0.0
        %4646 = vmatprep.subr.mxu0 0.0
        %4647 = vmatpush1.xpose.msra.mxu0 0.0
        %4648 = vmatprep.subr.mxu0 0.0
        %4649 = vmatpush1.xpose.msra.mxu0 0.0
        %4650 = vmatprep.subr.mxu0 0.0
        %4651 = vmatpush1.xpose.msra.mxu0 0.0
        %4652 = vmatprep.subr.mxu0 0.0
        %4653 = vmatpush1.xpose.msra.mxu0 0.0
        %4654 = vmatprep.subr.mxu0 0.0
        %4655 = vmatpush1.xpose.msra.mxu0 0.0
        %4656 = vmatprep.subr.mxu0 0.0
        %4657 = vmatpush1.xpose.msra.mxu0 0.0
        %4658 = vmatprep.subr.mxu0 0.0
        %4659 = vmatpush1.xpose.msra.mxu0 0.0
        %4660 = vmatprep.subr.mxu0 0.0
        %4661 = vmatpush1.xpose.msra.mxu0 0.0
        %4662 = vmatprep.subr.mxu0 0.0
        %4663 = vmatpush1.xpose.msra.mxu0 0.0
        %4664 = vmatprep.subr.mxu0 0.0
        %4665 = vmatpush1.xpose.msra.mxu0 0.0
        %4666 = vmatprep.subr.mxu0 0.0
        %4667 = vmatpush1.xpose.msra.mxu0 0.0
        %4668 = vmatprep.subr.mxu0 0.0
        %4669 = vmatpush1.xpose.msra.mxu0 0.0
        %4670 = vmatprep.subr.mxu0 0.0
        %4671 = vmatpush1.xpose.msra.mxu0 0.0
        %4672 = vmatprep.subr.mxu0 0.0
        %4673 = vmatpush1.xpose.msra.mxu0 0.0
        %4674 = vmatprep.subr.mxu0 0.0
        %4675 = vmatpush1.xpose.msra.mxu0 0.0
        %4676 = vmatprep.mubr.f32.mxu0 0.0
        %4677 = vmatmul.mubr.f32.gmra.mrb[0].mxu0 %v4598
        %v4678 = vpop.f32.mrb[0].mxu0
        %v4679 = vadd.f32 0.0, %v4678
        %v4680 = vpop.f32.mrb[0].mxu0
        %4681 = vdwg.mxu0
        %v4682 = vsel %vm885, %v4461, 0
        %v4685 = vsel %vm885, %v4490, 0
        %v4688 = vsel %vm885, %v4491, 0
        %v4691 = vsel %vm885, %v4492, 0
        %v4694 = vsel %vm885, %v4493, 0
        %4696 = vmatprep.subr.mxu0 0.0
        %4697 = vmatpush1.xpose.msra.mxu0 %v4685
        %4698 = vmatprep.subr.mxu0 0.0
        %4699 = vmatpush1.xpose.msra.mxu0 %v4688
        %4700 = vmatprep.subr.mxu0 0.0
        %4701 = vmatpush1.xpose.msra.mxu0 %v4691
        %4702 = vmatprep.subr.mxu0 0.0
        %4703 = vmatpush1.xpose.msra.mxu0 %v4694
        %4704 = vmatprep.subr.mxu0 0.0
        %4705 = vmatpush1.xpose.msra.mxu0 0.0
        %4706 = vmatprep.subr.mxu0 0.0
        %4707 = vmatpush1.xpose.msra.mxu0 0.0
        %4708 = vmatprep.subr.mxu0 0.0
        %4709 = vmatpush1.xpose.msra.mxu0 0.0
        %4710 = vmatprep.subr.mxu0 0.0
        %4711 = vmatpush1.xpose.msra.mxu0 0.0
        %4712 = vmatprep.subr.mxu0 0.0
        %4713 = vmatpush1.xpose.msra.mxu0 0.0
        %4714 = vmatprep.subr.mxu0 0.0
        %4715 = vmatpush1.xpose.msra.mxu0 0.0
        %4716 = vmatprep.subr.mxu0 0.0
        %4717 = vmatpush1.xpose.msra.mxu0 0.0
        %4718 = vmatprep.subr.mxu0 0.0
        %4719 = vmatpush1.xpose.msra.mxu0 0.0
        %4720 = vmatprep.subr.mxu0 0.0
        %4721 = vmatpush1.xpose.msra.mxu0 0.0
        %4722 = vmatprep.subr.mxu0 0.0
        %4723 = vmatpush1.xpose.msra.mxu0 0.0
        %4724 = vmatprep.subr.mxu0 0.0
        %4725 = vmatpush1.xpose.msra.mxu0 0.0
        %4726 = vmatprep.subr.mxu0 0.0
        %4727 = vmatpush1.xpose.msra.mxu0 0.0
        %4728 = vmatprep.subr.mxu0 0.0
        %4729 = vmatpush1.xpose.msra.mxu0 0.0
        %4730 = vmatprep.subr.mxu0 0.0
        %4731 = vmatpush1.xpose.msra.mxu0 0.0
        %4732 = vmatprep.subr.mxu0 0.0
        %4733 = vmatpush1.xpose.msra.mxu0 0.0
        %4734 = vmatprep.subr.mxu0 0.0
        %4735 = vmatpush1.xpose.msra.mxu0 0.0
        %4736 = vmatprep.subr.mxu0 0.0
        %4737 = vmatpush1.xpose.msra.mxu0 0.0
        %4738 = vmatprep.subr.mxu0 0.0
        %4739 = vmatpush1.xpose.msra.mxu0 0.0
        %4740 = vmatprep.subr.mxu0 0.0
        %4741 = vmatpush1.xpose.msra.mxu0 0.0
        %4742 = vmatprep.subr.mxu0 0.0
        %4743 = vmatpush1.xpose.msra.mxu0 0.0
        %4744 = vmatprep.subr.mxu0 0.0
        %4745 = vmatpush1.xpose.msra.mxu0 0.0
        %4746 = vmatprep.subr.mxu0 0.0
        %4747 = vmatpush1.xpose.msra.mxu0 0.0
        %4748 = vmatprep.subr.mxu0 0.0
        %4749 = vmatpush1.xpose.msra.mxu0 0.0
        %4750 = vmatprep.subr.mxu0 0.0
        %4751 = vmatpush1.xpose.msra.mxu0 0.0
        %4752 = vmatprep.subr.mxu0 0.0
        %4753 = vmatpush1.xpose.msra.mxu0 0.0
        %4754 = vmatprep.subr.mxu0 0.0
        %4755 = vmatpush1.xpose.msra.mxu0 0.0
        %4756 = vmatprep.subr.mxu0 0.0
        %4757 = vmatpush1.xpose.msra.mxu0 0.0
        %4758 = vmatprep.subr.mxu0 0.0
        %4759 = vmatpush1.xpose.msra.mxu0 0.0
        %4760 = vmatprep.mubr.f32.mxu0 0.0
        %4761 = vmatmul.mubr.f32.gmra.mrb[0].mxu0 %v4682
        %v4762 = vpop.f32.mrb[0].mxu0
        %v4763 = vadd.f32 0.0, %v4762
        %v4764 = vpop.f32.mrb[0].mxu0
        %4765 = vdwg.mxu0
        %v4766 = vsel %vm885, %v4463, 0
        %v4769 = vsel %vm885, %v4494, 0
        %v4772 = vsel %vm885, %v4495, 0
        %v4775 = vsel %vm885, %v4496, 0
        %v4778 = vsel %vm885, %v4497, 0
        %4780 = vmatprep.subr.mxu0 0.0
        %4781 = vmatpush1.xpose.msra.mxu0 %v4769
        %4782 = vmatprep.subr.mxu0 0.0
        %4783 = vmatpush1.xpose.msra.mxu0 %v4772
        %4784 = vmatprep.subr.mxu0 0.0
        %4785 = vmatpush1.xpose.msra.mxu0 %v4775
        %4786 = vmatprep.subr.mxu0 0.0
        %4787 = vmatpush1.xpose.msra.mxu0 %v4778
        %4788 = vmatprep.subr.mxu0 0.0
        %4789 = vmatpush1.xpose.msra.mxu0 0.0
        %4790 = vmatprep.subr.mxu0 0.0
        %4791 = vmatpush1.xpose.msra.mxu0 0.0
        %4792 = vmatprep.subr.mxu0 0.0
        %4793 = vmatpush1.xpose.msra.mxu0 0.0
        %4794 = vmatprep.subr.mxu0 0.0
        %4795 = vmatpush1.xpose.msra.mxu0 0.0
        %4796 = vmatprep.subr.mxu0 0.0
        %4797 = vmatpush1.xpose.msra.mxu0 0.0
        %4798 = vmatprep.subr.mxu0 0.0
        %4799 = vmatpush1.xpose.msra.mxu0 0.0
        %4800 = vmatprep.subr.mxu0 0.0
        %4801 = vmatpush1.xpose.msra.mxu0 0.0
        %4802 = vmatprep.subr.mxu0 0.0
        %4803 = vmatpush1.xpose.msra.mxu0 0.0
        %4804 = vmatprep.subr.mxu0 0.0
        %4805 = vmatpush1.xpose.msra.mxu0 0.0
        %4806 = vmatprep.subr.mxu0 0.0
        %4807 = vmatpush1.xpose.msra.mxu0 0.0
        %4808 = vmatprep.subr.mxu0 0.0
        %4809 = vmatpush1.xpose.msra.mxu0 0.0
        %4810 = vmatprep.subr.mxu0 0.0
        %4811 = vmatpush1.xpose.msra.mxu0 0.0
        %4812 = vmatprep.subr.mxu0 0.0
        %4813 = vmatpush1.xpose.msra.mxu0 0.0
        %4814 = vmatprep.subr.mxu0 0.0
        %4815 = vmatpush1.xpose.msra.mxu0 0.0
        %4816 = vmatprep.subr.mxu0 0.0
        %4817 = vmatpush1.xpose.msra.mxu0 0.0
        %4818 = vmatprep.subr.mxu0 0.0
        %4819 = vmatpush1.xpose.msra.mxu0 0.0
        %4820 = vmatprep.subr.mxu0 0.0
        %4821 = vmatpush1.xpose.msra.mxu0 0.0
        %4822 = vmatprep.subr.mxu0 0.0
        %4823 = vmatpush1.xpose.msra.mxu0 0.0
        %4824 = vmatprep.subr.mxu0 0.0
        %4825 = vmatpush1.xpose.msra.mxu0 0.0
        %4826 = vmatprep.subr.mxu0 0.0
        %4827 = vmatpush1.xpose.msra.mxu0 0.0
        %4828 = vmatprep.subr.mxu0 0.0
        %4829 = vmatpush1.xpose.msra.mxu0 0.0
        %4830 = vmatprep.subr.mxu0 0.0
        %4831 = vmatpush1.xpose.msra.mxu0 0.0
        %4832 = vmatprep.subr.mxu0 0.0
        %4833 = vmatpush1.xpose.msra.mxu0 0.0
        %4834 = vmatprep.subr.mxu0 0.0
        %4835 = vmatpush1.xpose.msra.mxu0 0.0
        %4836 = vmatprep.subr.mxu0 0.0
        %4837 = vmatpush1.xpose.msra.mxu0 0.0
        %4838 = vmatprep.subr.mxu0 0.0
        %4839 = vmatpush1.xpose.msra.mxu0 0.0
        %4840 = vmatprep.subr.mxu0 0.0
        %4841 = vmatpush1.xpose.msra.mxu0 0.0
        %4842 = vmatprep.subr.mxu0 0.0
        %4843 = vmatpush1.xpose.msra.mxu0 0.0
        %4844 = vmatprep.mubr.f32.mxu0 0.0
        %4845 = vmatmul.mubr.f32.gmra.mrb[0].mxu0 %v4766
        %v4846 = vpop.f32.mrb[0].mxu0
        %v4847 = vadd.f32 0.0, %v4846
        %v4848 = vpop.f32.mrb[0].mxu0
        %4849 = vdwg.mxu0
        %v4850 = vsel %vm885, %v4471, 0
        %v4853 = vsel %vm885, %v4498, 0
        %v4856 = vsel %vm885, %v4499, 0
        %v4859 = vsel %vm885, %v4500, 0
        %v4862 = vsel %vm885, %v4501, 0
        %4864 = vmatprep.subr.mxu0 0.0
        %4865 = vmatpush1.xpose.msra.mxu0 %v4853
        %4866 = vmatprep.subr.mxu0 0.0
        %4867 = vmatpush1.xpose.msra.mxu0 %v4856
        %4868 = vmatprep.subr.mxu0 0.0
        %4869 = vmatpush1.xpose.msra.mxu0 %v4859
        %4870 = vmatprep.subr.mxu0 0.0
        %4871 = vmatpush1.xpose.msra.mxu0 %v4862
        %4872 = vmatprep.subr.mxu0 0.0
        %4873 = vmatpush1.xpose.msra.mxu0 0.0
        %4874 = vmatprep.subr.mxu0 0.0
        %4875 = vmatpush1.xpose.msra.mxu0 0.0
        %4876 = vmatprep.subr.mxu0 0.0
        %4877 = vmatpush1.xpose.msra.mxu0 0.0
        %4878 = vmatprep.subr.mxu0 0.0
        %4879 = vmatpush1.xpose.msra.mxu0 0.0
        %4880 = vmatprep.subr.mxu0 0.0
        %4881 = vmatpush1.xpose.msra.mxu0 0.0
        %4882 = vmatprep.subr.mxu0 0.0
        %4883 = vmatpush1.xpose.msra.mxu0 0.0
        %4884 = vmatprep.subr.mxu0 0.0
        %4885 = vmatpush1.xpose.msra.mxu0 0.0
        %4886 = vmatprep.subr.mxu0 0.0
        %4887 = vmatpush1.xpose.msra.mxu0 0.0
        %4888 = vmatprep.subr.mxu0 0.0
        %4889 = vmatpush1.xpose.msra.mxu0 0.0
        %4890 = vmatprep.subr.mxu0 0.0
        %4891 = vmatpush1.xpose.msra.mxu0 0.0
        %4892 = vmatprep.subr.mxu0 0.0
        %4893 = vmatpush1.xpose.msra.mxu0 0.0
        %4894 = vmatprep.subr.mxu0 0.0
        %4895 = vmatpush1.xpose.msra.mxu0 0.0
        %4896 = vmatprep.subr.mxu0 0.0
        %4897 = vmatpush1.xpose.msra.mxu0 0.0
        %4898 = vmatprep.subr.mxu0 0.0
        %4899 = vmatpush1.xpose.msra.mxu0 0.0
        %4900 = vmatprep.subr.mxu0 0.0
        %4901 = vmatpush1.xpose.msra.mxu0 0.0
        %4902 = vmatprep.subr.mxu0 0.0
        %4903 = vmatpush1.xpose.msra.mxu0 0.0
        %4904 = vmatprep.subr.mxu0 0.0
        %4905 = vmatpush1.xpose.msra.mxu0 0.0
        %4906 = vmatprep.subr.mxu0 0.0
        %4907 = vmatpush1.xpose.msra.mxu0 0.0
        %4908 = vmatprep.subr.mxu0 0.0
        %4909 = vmatpush1.xpose.msra.mxu0 0.0
        %4910 = vmatprep.subr.mxu0 0.0
        %4911 = vmatpush1.xpose.msra.mxu0 0.0
        %4912 = vmatprep.subr.mxu0 0.0
        %4913 = vmatpush1.xpose.msra.mxu0 0.0
        %4914 = vmatprep.subr.mxu0 0.0
        %4915 = vmatpush1.xpose.msra.mxu0 0.0
        %4916 = vmatprep.subr.mxu0 0.0
        %4917 = vmatpush1.xpose.msra.mxu0 0.0
        %4918 = vmatprep.subr.mxu0 0.0
        %4919 = vmatpush1.xpose.msra.mxu0 0.0
        %4920 = vmatprep.subr.mxu0 0.0
        %4921 = vmatpush1.xpose.msra.mxu0 0.0
        %4922 = vmatprep.subr.mxu0 0.0
        %4923 = vmatpush1.xpose.msra.mxu0 0.0
        %4924 = vmatprep.subr.mxu0 0.0
        %4925 = vmatpush1.xpose.msra.mxu0 0.0
        %4926 = vmatprep.subr.mxu0 0.0
        %4927 = vmatpush1.xpose.msra.mxu0 0.0
        %4928 = vmatprep.mubr.f32.mxu0 0.0
        %4929 = vmatmul.mubr.f32.gmra.mrb[0].mxu0 %v4850
        %v4930 = vpop.f32.mrb[0].mxu0
        %v4931 = vadd.f32 0.0, %v4930
        %v4932 = vpop.f32.mrb[0].mxu0
        %4933 = vdwg.mxu0
        %v4934 = vsel %vm885, %v4479, 0
        %v4937 = vsel %vm885, %v4502, 0
        %v4940 = vsel %vm885, %v4503, 0
        %v4943 = vsel %vm885, %v4504, 0
        %v4946 = vsel %vm885, %v4505, 0
        %4948 = vmatprep.subr.mxu0 0.0
        %4949 = vmatpush1.xpose.msra.mxu0 %v4937
        %4950 = vmatprep.subr.mxu0 0.0
        %4951 = vmatpush1.xpose.msra.mxu0 %v4940
        %4952 = vmatprep.subr.mxu0 0.0
        %4953 = vmatpush1.xpose.msra.mxu0 %v4943
        %4954 = vmatprep.subr.mxu0 0.0
        %4955 = vmatpush1.xpose.msra.mxu0 %v4946
        %4956 = vmatprep.subr.mxu0 0.0
        %4957 = vmatpush1.xpose.msra.mxu0 0.0
        %4958 = vmatprep.subr.mxu0 0.0
        %4959 = vmatpush1.xpose.msra.mxu0 0.0
        %4960 = vmatprep.subr.mxu0 0.0
        %4961 = vmatpush1.xpose.msra.mxu0 0.0
        %4962 = vmatprep.subr.mxu0 0.0
        %4963 = vmatpush1.xpose.msra.mxu0 0.0
        %4964 = vmatprep.subr.mxu0 0.0
        %4965 = vmatpush1.xpose.msra.mxu0 0.0
        %4966 = vmatprep.subr.mxu0 0.0
        %4967 = vmatpush1.xpose.msra.mxu0 0.0
        %4968 = vmatprep.subr.mxu0 0.0
        %4969 = vmatpush1.xpose.msra.mxu0 0.0
        %4970 = vmatprep.subr.mxu0 0.0
        %4971 = vmatpush1.xpose.msra.mxu0 0.0
        %4972 = vmatprep.subr.mxu0 0.0
        %4973 = vmatpush1.xpose.msra.mxu0 0.0
        %4974 = vmatprep.subr.mxu0 0.0
        %4975 = vmatpush1.xpose.msra.mxu0 0.0
        %4976 = vmatprep.subr.mxu0 0.0
        %4977 = vmatpush1.xpose.msra.mxu0 0.0
        %4978 = vmatprep.subr.mxu0 0.0
        %4979 = vmatpush1.xpose.msra.mxu0 0.0
        %4980 = vmatprep.subr.mxu0 0.0
        %4981 = vmatpush1.xpose.msra.mxu0 0.0
        %4982 = vmatprep.subr.mxu0 0.0
        %4983 = vmatpush1.xpose.msra.mxu0 0.0
        %4984 = vmatprep.subr.mxu0 0.0
        %4985 = vmatpush1.xpose.msra.mxu0 0.0
        %4986 = vmatprep.subr.mxu0 0.0
        %4987 = vmatpush1.xpose.msra.mxu0 0.0
        %4988 = vmatprep.subr.mxu0 0.0
        %4989 = vmatpush1.xpose.msra.mxu0 0.0
        %4990 = vmatprep.subr.mxu0 0.0
        %4991 = vmatpush1.xpose.msra.mxu0 0.0
        %4992 = vmatprep.subr.mxu0 0.0
        %4993 = vmatpush1.xpose.msra.mxu0 0.0
        %4994 = vmatprep.subr.mxu0 0.0
        %4995 = vmatpush1.xpose.msra.mxu0 0.0
        %4996 = vmatprep.subr.mxu0 0.0
        %4997 = vmatpush1.xpose.msra.mxu0 0.0
        %4998 = vmatprep.subr.mxu0 0.0
        %4999 = vmatpush1.xpose.msra.mxu0 0.0
        %5000 = vmatprep.subr.mxu0 0.0
        %5001 = vmatpush1.xpose.msra.mxu0 0.0
        %5002 = vmatprep.subr.mxu0 0.0
        %5003 = vmatpush1.xpose.msra.mxu0 0.0
        %5004 = vmatprep.subr.mxu0 0.0
        %5005 = vmatpush1.xpose.msra.mxu0 0.0
        %5006 = vmatprep.subr.mxu0 0.0
        %5007 = vmatpush1.xpose.msra.mxu0 0.0
        %5008 = vmatprep.subr.mxu0 0.0
        %5009 = vmatpush1.xpose.msra.mxu0 0.0
        %5010 = vmatprep.subr.mxu0 0.0
        %5011 = vmatpush1.xpose.msra.mxu0 0.0
        %5012 = vmatprep.mubr.f32.mxu0 0.0
        %5013 = vmatmul.mubr.f32.gmra.mrb[0].mxu0 %v4934
        %v5014 = vpop.f32.mrb[0].mxu0
        %v5015 = vadd.f32 0.0, %v5014
        %v5016 = vpop.f32.mrb[0].mxu0
        %5017 = vdwg.mxu0
        %v5018 = vsel %vm885, %v4478, 0
        %v5021 = vsel %vm885, %v4506, 0
        %v5024 = vsel %vm885, %v4507, 0
        %v5027 = vsel %vm885, %v4508, 0
        %v5030 = vsel %vm885, %v4509, 0
        %5032 = vmatprep.subr.mxu0 0.0
        %5033 = vmatpush1.xpose.msra.mxu0 %v5021
        %5034 = vmatprep.subr.mxu0 0.0
        %5035 = vmatpush1.xpose.msra.mxu0 %v5024
        %5036 = vmatprep.subr.mxu0 0.0
        %5037 = vmatpush1.xpose.msra.mxu0 %v5027
        %5038 = vmatprep.subr.mxu0 0.0
        %5039 = vmatpush1.xpose.msra.mxu0 %v5030
        %5040 = vmatprep.subr.mxu0 0.0
        %5041 = vmatpush1.xpose.msra.mxu0 0.0
        %5042 = vmatprep.subr.mxu0 0.0
        %5043 = vmatpush1.xpose.msra.mxu0 0.0
        %5044 = vmatprep.subr.mxu0 0.0
        %5045 = vmatpush1.xpose.msra.mxu0 0.0
        %5046 = vmatprep.subr.mxu0 0.0
        %5047 = vmatpush1.xpose.msra.mxu0 0.0
        %5048 = vmatprep.subr.mxu0 0.0
        %5049 = vmatpush1.xpose.msra.mxu0 0.0
        %5050 = vmatprep.subr.mxu0 0.0
        %5051 = vmatpush1.xpose.msra.mxu0 0.0
        %5052 = vmatprep.subr.mxu0 0.0
        %5053 = vmatpush1.xpose.msra.mxu0 0.0
        %5054 = vmatprep.subr.mxu0 0.0
        %5055 = vmatpush1.xpose.msra.mxu0 0.0
        %5056 = vmatprep.subr.mxu0 0.0
        %5057 = vmatpush1.xpose.msra.mxu0 0.0
        %5058 = vmatprep.subr.mxu0 0.0
        %5059 = vmatpush1.xpose.msra.mxu0 0.0
        %5060 = vmatprep.subr.mxu0 0.0
        %5061 = vmatpush1.xpose.msra.mxu0 0.0
        %5062 = vmatprep.subr.mxu0 0.0
        %5063 = vmatpush1.xpose.msra.mxu0 0.0
        %5064 = vmatprep.subr.mxu0 0.0
        %5065 = vmatpush1.xpose.msra.mxu0 0.0
        %5066 = vmatprep.subr.mxu0 0.0
        %5067 = vmatpush1.xpose.msra.mxu0 0.0
        %5068 = vmatprep.subr.mxu0 0.0
        %5069 = vmatpush1.xpose.msra.mxu0 0.0
        %5070 = vmatprep.subr.mxu0 0.0
        %5071 = vmatpush1.xpose.msra.mxu0 0.0
        %5072 = vmatprep.subr.mxu0 0.0
        %5073 = vmatpush1.xpose.msra.mxu0 0.0
        %5074 = vmatprep.subr.mxu0 0.0
        %5075 = vmatpush1.xpose.msra.mxu0 0.0
        %5076 = vmatprep.subr.mxu0 0.0
        %5077 = vmatpush1.xpose.msra.mxu0 0.0
        %5078 = vmatprep.subr.mxu0 0.0
        %5079 = vmatpush1.xpose.msra.mxu0 0.0
        %5080 = vmatprep.subr.mxu0 0.0
        %5081 = vmatpush1.xpose.msra.mxu0 0.0
        %5082 = vmatprep.subr.mxu0 0.0
        %5083 = vmatpush1.xpose.msra.mxu0 0.0
        %5084 = vmatprep.subr.mxu0 0.0
        %5085 = vmatpush1.xpose.msra.mxu0 0.0
        %5086 = vmatprep.subr.mxu0 0.0
        %5087 = vmatpush1.xpose.msra.mxu0 0.0
        %5088 = vmatprep.subr.mxu0 0.0
        %5089 = vmatpush1.xpose.msra.mxu0 0.0
        %5090 = vmatprep.subr.mxu0 0.0
        %5091 = vmatpush1.xpose.msra.mxu0 0.0
        %5092 = vmatprep.subr.mxu0 0.0
        %5093 = vmatpush1.xpose.msra.mxu0 0.0
        %5094 = vmatprep.subr.mxu0 0.0
        %5095 = vmatpush1.xpose.msra.mxu0 0.0
        %5096 = vmatprep.mubr.f32.mxu0 0.0
        %5097 = vmatmul.mubr.f32.gmra.mrb[0].mxu0 %v5018
        %v5098 = vpop.f32.mrb[0].mxu0
        %v5099 = vadd.f32 0.0, %v5098
        %v5100 = vpop.f32.mrb[0].mxu0
        %5101 = vdwg.mxu0
        %v5102 = vsel %vm885, %v4480, 0
        %v5105 = vsel %vm885, %v4510, 0
        %v5108 = vsel %vm885, %v4511, 0
        %v5111 = vsel %vm885, %v4512, 0
        %v5114 = vsel %vm885, %v4513, 0
        %5116 = vmatprep.subr.mxu0 0.0
        %5117 = vmatpush1.xpose.msra.mxu0 %v5105
        %5118 = vmatprep.subr.mxu0 0.0
        %5119 = vmatpush1.xpose.msra.mxu0 %v5108
        %5120 = vmatprep.subr.mxu0 0.0
        %5121 = vmatpush1.xpose.msra.mxu0 %v5111
        %5122 = vmatprep.subr.mxu0 0.0
        %5123 = vmatpush1.xpose.msra.mxu0 %v5114
        %5124 = vmatprep.subr.mxu0 0.0
        %5125 = vmatpush1.xpose.msra.mxu0 0.0
        %5126 = vmatprep.subr.mxu0 0.0
        %5127 = vmatpush1.xpose.msra.mxu0 0.0
        %5128 = vmatprep.subr.mxu0 0.0
        %5129 = vmatpush1.xpose.msra.mxu0 0.0
        %5130 = vmatprep.subr.mxu0 0.0
        %5131 = vmatpush1.xpose.msra.mxu0 0.0
        %5132 = vmatprep.subr.mxu0 0.0
        %5133 = vmatpush1.xpose.msra.mxu0 0.0
        %5134 = vmatprep.subr.mxu0 0.0
        %5135 = vmatpush1.xpose.msra.mxu0 0.0
        %5136 = vmatprep.subr.mxu0 0.0
        %5137 = vmatpush1.xpose.msra.mxu0 0.0
        %5138 = vmatprep.subr.mxu0 0.0
        %5139 = vmatpush1.xpose.msra.mxu0 0.0
        %5140 = vmatprep.subr.mxu0 0.0
        %5141 = vmatpush1.xpose.msra.mxu0 0.0
        %5142 = vmatprep.subr.mxu0 0.0
        %5143 = vmatpush1.xpose.msra.mxu0 0.0
        %5144 = vmatprep.subr.mxu0 0.0
        %5145 = vmatpush1.xpose.msra.mxu0 0.0
        %5146 = vmatprep.subr.mxu0 0.0
        %5147 = vmatpush1.xpose.msra.mxu0 0.0
        %5148 = vmatprep.subr.mxu0 0.0
        %5149 = vmatpush1.xpose.msra.mxu0 0.0
        %5150 = vmatprep.subr.mxu0 0.0
        %5151 = vmatpush1.xpose.msra.mxu0 0.0
        %5152 = vmatprep.subr.mxu0 0.0
        %5153 = vmatpush1.xpose.msra.mxu0 0.0
        %5154 = vmatprep.subr.mxu0 0.0
        %5155 = vmatpush1.xpose.msra.mxu0 0.0
        %5156 = vmatprep.subr.mxu0 0.0
        %5157 = vmatpush1.xpose.msra.mxu0 0.0
        %5158 = vmatprep.subr.mxu0 0.0
        %5159 = vmatpush1.xpose.msra.mxu0 0.0
        %5160 = vmatprep.subr.mxu0 0.0
        %5161 = vmatpush1.xpose.msra.mxu0 0.0
        %5162 = vmatprep.subr.mxu0 0.0
        %5163 = vmatpush1.xpose.msra.mxu0 0.0
        %5164 = vmatprep.subr.mxu0 0.0
        %5165 = vmatpush1.xpose.msra.mxu0 0.0
        %5166 = vmatprep.subr.mxu0 0.0
        %5167 = vmatpush1.xpose.msra.mxu0 0.0
        %5168 = vmatprep.subr.mxu0 0.0
        %5169 = vmatpush1.xpose.msra.mxu0 0.0
        %5170 = vmatprep.subr.mxu0 0.0
        %5171 = vmatpush1.xpose.msra.mxu0 0.0
        %5172 = vmatprep.subr.mxu0 0.0
        %5173 = vmatpush1.xpose.msra.mxu0 0.0
        %5174 = vmatprep.subr.mxu0 0.0
        %5175 = vmatpush1.xpose.msra.mxu0 0.0
        %5176 = vmatprep.subr.mxu0 0.0
        %5177 = vmatpush1.xpose.msra.mxu0 0.0
        %5178 = vmatprep.subr.mxu0 0.0
        %5179 = vmatpush1.xpose.msra.mxu0 0.0
        %5180 = vmatprep.mubr.f32.mxu0 0.0
        %5181 = vmatmul.mubr.f32.gmra.mrb[0].mxu0 %v5102
        %v5182 = vpop.f32.mrb[0].mxu0
        %v5183 = vadd.f32 0.0, %v5182
        %v5184 = vpop.f32.mrb[0].mxu0
        %5185 = vdwg.mxu0
        %s5186 = scalar_lea.vmem [#allocation12], 512
        %v5187 = vld [vmem:[%s5186] sm:$0xff]
        %v5188 = vld [vmem:[%s5186 + $0x8] sm:$0xff]
        %v5189 = vld [vmem:[%s5186 + $0x10] sm:$0xff]
        %v5190 = vld [vmem:[%s5186 + $0x18] sm:$0xff]
        %v5191 = vld [vmem:[%s5186 + $0x20] sm:$0xff]
        %v5192 = vld [vmem:[%s5186 + $0x28] sm:$0xff]
        %v5193 = vld [vmem:[%s5186 + $0x30] sm:$0xff]
        %v5194 = vld [vmem:[%s5186 + $0x38] sm:$0xff]
        %v5195 = vld [vmem:[%s5186 + $0x40] sm:$0xff]
        %v5196 = vld [vmem:[%s5186 + $0x48] sm:$0xff]
        %v5197 = vld [vmem:[%s5186 + $0x50] sm:$0xff]
        %v5198 = vld [vmem:[%s5186 + $0x58] sm:$0xff]
        %v5199 = vld [vmem:[%s5186 + $0x60] sm:$0xff]
        %v5200 = vld [vmem:[%s5186 + $0x68] sm:$0xff]
        %v5201 = vld [vmem:[%s5186 + $0x70] sm:$0xff]
        %v5202 = vld [vmem:[%s5186 + $0x78] sm:$0xff]
        %v5203 = vld [vmem:[%s5186 + $0x80] sm:$0xff]
        %v5204 = vld [vmem:[%s5186 + $0x88] sm:$0xff]
        %v5205 = vld [vmem:[%s5186 + $0x90] sm:$0xff]
        %v5206 = vld [vmem:[%s5186 + $0x98] sm:$0xff]
        %v5207 = vld [vmem:[%s5186 + $0xa0] sm:$0xff]
        %v5208 = vld [vmem:[%s5186 + $0xa8] sm:$0xff]
        %v5209 = vld [vmem:[%s5186 + $0xb0] sm:$0xff]
        %v5210 = vld [vmem:[%s5186 + $0xb8] sm:$0xff]
        %v5211 = vld [vmem:[%s5186 + $0xc0] sm:$0xff]
        %v5212 = vld [vmem:[%s5186 + $0xc8] sm:$0xff]
        %v5213 = vld [vmem:[%s5186 + $0xd0] sm:$0xff]
        %v5214 = vld [vmem:[%s5186 + $0xd8] sm:$0xff]
        %v5215 = vld [vmem:[%s5186 + $0xe0] sm:$0xff]
        %v5216 = vld [vmem:[%s5186 + $0xe8] sm:$0xff]
        %v5217 = vld [vmem:[%s5186 + $0xf0] sm:$0xff]
        %v5218 = vld [vmem:[%s5186 + $0xf8] sm:$0xff]
        %v5220 = vsel %vm885, %v5187, 0
        %v5223 = vsel %vm885, %v5188, 0
        %v5226 = vsel %vm885, %v5189, 0
        %v5229 = vsel %vm885, %v5190, 0
        %5231 = vmatprep.subr.mxu0 0.0
        %5232 = vmatpush1.xpose.msra.mxu0 %v5220
        %5233 = vmatprep.subr.mxu0 0.0
        %5234 = vmatpush1.xpose.msra.mxu0 %v5223
        %5235 = vmatprep.subr.mxu0 0.0
        %5236 = vmatpush1.xpose.msra.mxu0 %v5226
        %5237 = vmatprep.subr.mxu0 0.0
        %5238 = vmatpush1.xpose.msra.mxu0 %v5229
        %5239 = vmatprep.subr.mxu0 0.0
        %5240 = vmatpush1.xpose.msra.mxu0 0.0
        %5241 = vmatprep.subr.mxu0 0.0
        %5242 = vmatpush1.xpose.msra.mxu0 0.0
        %5243 = vmatprep.subr.mxu0 0.0
        %5244 = vmatpush1.xpose.msra.mxu0 0.0
        %5245 = vmatprep.subr.mxu0 0.0
        %5246 = vmatpush1.xpose.msra.mxu0 0.0
        %5247 = vmatprep.subr.mxu0 0.0
        %5248 = vmatpush1.xpose.msra.mxu0 0.0
        %5249 = vmatprep.subr.mxu0 0.0
        %5250 = vmatpush1.xpose.msra.mxu0 0.0
        %5251 = vmatprep.subr.mxu0 0.0
        %5252 = vmatpush1.xpose.msra.mxu0 0.0
        %5253 = vmatprep.subr.mxu0 0.0
        %5254 = vmatpush1.xpose.msra.mxu0 0.0
        %5255 = vmatprep.subr.mxu0 0.0
        %5256 = vmatpush1.xpose.msra.mxu0 0.0
        %5257 = vmatprep.subr.mxu0 0.0
        %5258 = vmatpush1.xpose.msra.mxu0 0.0
        %5259 = vmatprep.subr.mxu0 0.0
        %5260 = vmatpush1.xpose.msra.mxu0 0.0
        %5261 = vmatprep.subr.mxu0 0.0
        %5262 = vmatpush1.xpose.msra.mxu0 0.0
        %5263 = vmatprep.subr.mxu0 0.0
        %5264 = vmatpush1.xpose.msra.mxu0 0.0
        %5265 = vmatprep.subr.mxu0 0.0
        %5266 = vmatpush1.xpose.msra.mxu0 0.0
        %5267 = vmatprep.subr.mxu0 0.0
        %5268 = vmatpush1.xpose.msra.mxu0 0.0
        %5269 = vmatprep.subr.mxu0 0.0
        %5270 = vmatpush1.xpose.msra.mxu0 0.0
        %5271 = vmatprep.subr.mxu0 0.0
        %5272 = vmatpush1.xpose.msra.mxu0 0.0
        %5273 = vmatprep.subr.mxu0 0.0
        %5274 = vmatpush1.xpose.msra.mxu0 0.0
        %5275 = vmatprep.subr.mxu0 0.0
        %5276 = vmatpush1.xpose.msra.mxu0 0.0
        %5277 = vmatprep.subr.mxu0 0.0
        %5278 = vmatpush1.xpose.msra.mxu0 0.0
        %5279 = vmatprep.subr.mxu0 0.0
        %5280 = vmatpush1.xpose.msra.mxu0 0.0
        %5281 = vmatprep.subr.mxu0 0.0
        %5282 = vmatpush1.xpose.msra.mxu0 0.0
        %5283 = vmatprep.subr.mxu0 0.0
        %5284 = vmatpush1.xpose.msra.mxu0 0.0
        %5285 = vmatprep.subr.mxu0 0.0
        %5286 = vmatpush1.xpose.msra.mxu0 0.0
        %5287 = vmatprep.subr.mxu0 0.0
        %5288 = vmatpush1.xpose.msra.mxu0 0.0
        %5289 = vmatprep.subr.mxu0 0.0
        %5290 = vmatpush1.xpose.msra.mxu0 0.0
        %5291 = vmatprep.subr.mxu0 0.0
        %5292 = vmatpush1.xpose.msra.mxu0 0.0
        %5293 = vmatprep.subr.mxu0 0.0
        %5294 = vmatpush1.xpose.msra.mxu0 0.0
        %5295 = vmatprep.mubr.f32.mxu0 0.0
        %5296 = vmatmul.mubr.f32.gmra.mrb[0].mxu0 %v4514
        %v5297 = vpop.f32.mrb[0].mxu0
        %v5298 = vadd.f32 0.0, %v5297
        %v5299 = vpop.f32.mrb[0].mxu0
        %5300 = vdwg.mxu0
        %v5302 = vsel %vm885, %v5191, 0
        %v5305 = vsel %vm885, %v5192, 0
        %v5308 = vsel %vm885, %v5193, 0
        %v5311 = vsel %vm885, %v5194, 0
        %5313 = vmatprep.subr.mxu0 0.0
        %5314 = vmatpush1.xpose.msra.mxu0 %v5302
        %5315 = vmatprep.subr.mxu0 0.0
        %5316 = vmatpush1.xpose.msra.mxu0 %v5305
        %5317 = vmatprep.subr.mxu0 0.0
        %5318 = vmatpush1.xpose.msra.mxu0 %v5308
        %5319 = vmatprep.subr.mxu0 0.0
        %5320 = vmatpush1.xpose.msra.mxu0 %v5311
        %5321 = vmatprep.subr.mxu0 0.0
        %5322 = vmatpush1.xpose.msra.mxu0 0.0
        %5323 = vmatprep.subr.mxu0 0.0
        %5324 = vmatpush1.xpose.msra.mxu0 0.0
        %5325 = vmatprep.subr.mxu0 0.0
        %5326 = vmatpush1.xpose.msra.mxu0 0.0
        %5327 = vmatprep.subr.mxu0 0.0
        %5328 = vmatpush1.xpose.msra.mxu0 0.0
        %5329 = vmatprep.subr.mxu0 0.0
        %5330 = vmatpush1.xpose.msra.mxu0 0.0
        %5331 = vmatprep.subr.mxu0 0.0
        %5332 = vmatpush1.xpose.msra.mxu0 0.0
        %5333 = vmatprep.subr.mxu0 0.0
        %5334 = vmatpush1.xpose.msra.mxu0 0.0
        %5335 = vmatprep.subr.mxu0 0.0
        %5336 = vmatpush1.xpose.msra.mxu0 0.0
        %5337 = vmatprep.subr.mxu0 0.0
        %5338 = vmatpush1.xpose.msra.mxu0 0.0
        %5339 = vmatprep.subr.mxu0 0.0
        %5340 = vmatpush1.xpose.msra.mxu0 0.0
        %5341 = vmatprep.subr.mxu0 0.0
        %5342 = vmatpush1.xpose.msra.mxu0 0.0
        %5343 = vmatprep.subr.mxu0 0.0
        %5344 = vmatpush1.xpose.msra.mxu0 0.0
        %5345 = vmatprep.subr.mxu0 0.0
        %5346 = vmatpush1.xpose.msra.mxu0 0.0
        %5347 = vmatprep.subr.mxu0 0.0
        %5348 = vmatpush1.xpose.msra.mxu0 0.0
        %5349 = vmatprep.subr.mxu0 0.0
        %5350 = vmatpush1.xpose.msra.mxu0 0.0
        %5351 = vmatprep.subr.mxu0 0.0
        %5352 = vmatpush1.xpose.msra.mxu0 0.0
        %5353 = vmatprep.subr.mxu0 0.0
        %5354 = vmatpush1.xpose.msra.mxu0 0.0
        %5355 = vmatprep.subr.mxu0 0.0
        %5356 = vmatpush1.xpose.msra.mxu0 0.0
        %5357 = vmatprep.subr.mxu0 0.0
        %5358 = vmatpush1.xpose.msra.mxu0 0.0
        %5359 = vmatprep.subr.mxu0 0.0
        %5360 = vmatpush1.xpose.msra.mxu0 0.0
        %5361 = vmatprep.subr.mxu0 0.0
        %5362 = vmatpush1.xpose.msra.mxu0 0.0
        %5363 = vmatprep.subr.mxu0 0.0
        %5364 = vmatpush1.xpose.msra.mxu0 0.0
        %5365 = vmatprep.subr.mxu0 0.0
        %5366 = vmatpush1.xpose.msra.mxu0 0.0
        %5367 = vmatprep.subr.mxu0 0.0
        %5368 = vmatpush1.xpose.msra.mxu0 0.0
        %5369 = vmatprep.subr.mxu0 0.0
        %5370 = vmatpush1.xpose.msra.mxu0 0.0
        %5371 = vmatprep.subr.mxu0 0.0
        %5372 = vmatpush1.xpose.msra.mxu0 0.0
        %5373 = vmatprep.subr.mxu0 0.0
        %5374 = vmatpush1.xpose.msra.mxu0 0.0
        %5375 = vmatprep.subr.mxu0 0.0
        %5376 = vmatpush1.xpose.msra.mxu0 0.0
        %5377 = vmatprep.mubr.f32.mxu0 0.0
        %5378 = vmatmul.mubr.f32.gmra.mrb[0].mxu0 %v4598
        %v5379 = vpop.f32.mrb[0].mxu0
        %v5380 = vadd.f32 0.0, %v5379
        %v5381 = vpop.f32.mrb[0].mxu0
        %5382 = vdwg.mxu0
        %v5384 = vsel %vm885, %v5195, 0
        %v5387 = vsel %vm885, %v5196, 0
        %v5390 = vsel %vm885, %v5197, 0
        %v5393 = vsel %vm885, %v5198, 0
        %5395 = vmatprep.subr.mxu0 0.0
        %5396 = vmatpush1.xpose.msra.mxu0 %v5384
        %5397 = vmatprep.subr.mxu0 0.0
        %5398 = vmatpush1.xpose.msra.mxu0 %v5387
        %5399 = vmatprep.subr.mxu0 0.0
        %5400 = vmatpush1.xpose.msra.mxu0 %v5390
        %5401 = vmatprep.subr.mxu0 0.0
        %5402 = vmatpush1.xpose.msra.mxu0 %v5393
        %5403 = vmatprep.subr.mxu0 0.0
        %5404 = vmatpush1.xpose.msra.mxu0 0.0
        %5405 = vmatprep.subr.mxu0 0.0
        %5406 = vmatpush1.xpose.msra.mxu0 0.0
        %5407 = vmatprep.subr.mxu0 0.0
        %5408 = vmatpush1.xpose.msra.mxu0 0.0
        %5409 = vmatprep.subr.mxu0 0.0
        %5410 = vmatpush1.xpose.msra.mxu0 0.0
        %5411 = vmatprep.subr.mxu0 0.0
        %5412 = vmatpush1.xpose.msra.mxu0 0.0
        %5413 = vmatprep.subr.mxu0 0.0
        %5414 = vmatpush1.xpose.msra.mxu0 0.0
        %5415 = vmatprep.subr.mxu0 0.0
        %5416 = vmatpush1.xpose.msra.mxu0 0.0
        %5417 = vmatprep.subr.mxu0 0.0
        %5418 = vmatpush1.xpose.msra.mxu0 0.0
        %5419 = vmatprep.subr.mxu0 0.0
        %5420 = vmatpush1.xpose.msra.mxu0 0.0
        %5421 = vmatprep.subr.mxu0 0.0
        %5422 = vmatpush1.xpose.msra.mxu0 0.0
        %5423 = vmatprep.subr.mxu0 0.0
        %5424 = vmatpush1.xpose.msra.mxu0 0.0
        %5425 = vmatprep.subr.mxu0 0.0
        %5426 = vmatpush1.xpose.msra.mxu0 0.0
        %5427 = vmatprep.subr.mxu0 0.0
        %5428 = vmatpush1.xpose.msra.mxu0 0.0
        %5429 = vmatprep.subr.mxu0 0.0
        %5430 = vmatpush1.xpose.msra.mxu0 0.0
        %5431 = vmatprep.subr.mxu0 0.0
        %5432 = vmatpush1.xpose.msra.mxu0 0.0
        %5433 = vmatprep.subr.mxu0 0.0
        %5434 = vmatpush1.xpose.msra.mxu0 0.0
        %5435 = vmatprep.subr.mxu0 0.0
        %5436 = vmatpush1.xpose.msra.mxu0 0.0
        %5437 = vmatprep.subr.mxu0 0.0
        %5438 = vmatpush1.xpose.msra.mxu0 0.0
        %5439 = vmatprep.subr.mxu0 0.0
        %5440 = vmatpush1.xpose.msra.mxu0 0.0
        %5441 = vmatprep.subr.mxu0 0.0
        %5442 = vmatpush1.xpose.msra.mxu0 0.0
        %5443 = vmatprep.subr.mxu0 0.0
        %5444 = vmatpush1.xpose.msra.mxu0 0.0
        %5445 = vmatprep.subr.mxu0 0.0
        %5446 = vmatpush1.xpose.msra.mxu0 0.0
        %5447 = vmatprep.subr.mxu0 0.0
        %5448 = vmatpush1.xpose.msra.mxu0 0.0
        %5449 = vmatprep.subr.mxu0 0.0
        %5450 = vmatpush1.xpose.msra.mxu0 0.0
        %5451 = vmatprep.subr.mxu0 0.0
        %5452 = vmatpush1.xpose.msra.mxu0 0.0
        %5453 = vmatprep.subr.mxu0 0.0
        %5454 = vmatpush1.xpose.msra.mxu0 0.0
        %5455 = vmatprep.subr.mxu0 0.0
        %5456 = vmatpush1.xpose.msra.mxu0 0.0
        %5457 = vmatprep.subr.mxu0 0.0
        %5458 = vmatpush1.xpose.msra.mxu0 0.0
        %5459 = vmatprep.mubr.f32.mxu0 0.0
        %5460 = vmatmul.mubr.f32.gmra.mrb[0].mxu0 %v4682
        %v5461 = vpop.f32.mrb[0].mxu0
        %v5462 = vadd.f32 0.0, %v5461
        %v5463 = vpop.f32.mrb[0].mxu0
        %5464 = vdwg.mxu0
        %v5466 = vsel %vm885, %v5199, 0
        %v5469 = vsel %vm885, %v5200, 0
        %v5472 = vsel %vm885, %v5201, 0
        %v5475 = vsel %vm885, %v5202, 0
        %5477 = vmatprep.subr.mxu0 0.0
        %5478 = vmatpush1.xpose.msra.mxu0 %v5466
        %5479 = vmatprep.subr.mxu0 0.0
        %5480 = vmatpush1.xpose.msra.mxu0 %v5469
        %5481 = vmatprep.subr.mxu0 0.0
        %5482 = vmatpush1.xpose.msra.mxu0 %v5472
        %5483 = vmatprep.subr.mxu0 0.0
        %5484 = vmatpush1.xpose.msra.mxu0 %v5475
        %5485 = vmatprep.subr.mxu0 0.0
        %5486 = vmatpush1.xpose.msra.mxu0 0.0
        %5487 = vmatprep.subr.mxu0 0.0
        %5488 = vmatpush1.xpose.msra.mxu0 0.0
        %5489 = vmatprep.subr.mxu0 0.0
        %5490 = vmatpush1.xpose.msra.mxu0 0.0
        %5491 = vmatprep.subr.mxu0 0.0
        %5492 = vmatpush1.xpose.msra.mxu0 0.0
        %5493 = vmatprep.subr.mxu0 0.0
        %5494 = vmatpush1.xpose.msra.mxu0 0.0
        %5495 = vmatprep.subr.mxu0 0.0
        %5496 = vmatpush1.xpose.msra.mxu0 0.0
        %5497 = vmatprep.subr.mxu0 0.0
        %5498 = vmatpush1.xpose.msra.mxu0 0.0
        %5499 = vmatprep.subr.mxu0 0.0
        %5500 = vmatpush1.xpose.msra.mxu0 0.0
        %5501 = vmatprep.subr.mxu0 0.0
        %5502 = vmatpush1.xpose.msra.mxu0 0.0
        %5503 = vmatprep.subr.mxu0 0.0
        %5504 = vmatpush1.xpose.msra.mxu0 0.0
        %5505 = vmatprep.subr.mxu0 0.0
        %5506 = vmatpush1.xpose.msra.mxu0 0.0
        %5507 = vmatprep.subr.mxu0 0.0
        %5508 = vmatpush1.xpose.msra.mxu0 0.0
        %5509 = vmatprep.subr.mxu0 0.0
        %5510 = vmatpush1.xpose.msra.mxu0 0.0
        %5511 = vmatprep.subr.mxu0 0.0
        %5512 = vmatpush1.xpose.msra.mxu0 0.0
        %5513 = vmatprep.subr.mxu0 0.0
        %5514 = vmatpush1.xpose.msra.mxu0 0.0
        %5515 = vmatprep.subr.mxu0 0.0
        %5516 = vmatpush1.xpose.msra.mxu0 0.0
        %5517 = vmatprep.subr.mxu0 0.0
        %5518 = vmatpush1.xpose.msra.mxu0 0.0
        %5519 = vmatprep.subr.mxu0 0.0
        %5520 = vmatpush1.xpose.msra.mxu0 0.0
        %5521 = vmatprep.subr.mxu0 0.0
        %5522 = vmatpush1.xpose.msra.mxu0 0.0
        %5523 = vmatprep.subr.mxu0 0.0
        %5524 = vmatpush1.xpose.msra.mxu0 0.0
        %5525 = vmatprep.subr.mxu0 0.0
        %5526 = vmatpush1.xpose.msra.mxu0 0.0
        %5527 = vmatprep.subr.mxu0 0.0
        %5528 = vmatpush1.xpose.msra.mxu0 0.0
        %5529 = vmatprep.subr.mxu0 0.0
        %5530 = vmatpush1.xpose.msra.mxu0 0.0
        %5531 = vmatprep.subr.mxu0 0.0
        %5532 = vmatpush1.xpose.msra.mxu0 0.0
        %5533 = vmatprep.subr.mxu0 0.0
        %5534 = vmatpush1.xpose.msra.mxu0 0.0
        %5535 = vmatprep.subr.mxu0 0.0
        %5536 = vmatpush1.xpose.msra.mxu0 0.0
        %5537 = vmatprep.subr.mxu0 0.0
        %5538 = vmatpush1.xpose.msra.mxu0 0.0
        %5539 = vmatprep.subr.mxu0 0.0
        %5540 = vmatpush1.xpose.msra.mxu0 0.0
        %5541 = vmatprep.mubr.f32.mxu0 0.0
        %5542 = vmatmul.mubr.f32.gmra.mrb[0].mxu0 %v4766
        %v5543 = vpop.f32.mrb[0].mxu0
        %v5544 = vadd.f32 0.0, %v5543
        %v5545 = vpop.f32.mrb[0].mxu0
        %5546 = vdwg.mxu0
        %v5548 = vsel %vm885, %v5203, 0
        %v5551 = vsel %vm885, %v5204, 0
        %v5554 = vsel %vm885, %v5205, 0
        %v5557 = vsel %vm885, %v5206, 0
        %5559 = vmatprep.subr.mxu0 0.0
        %5560 = vmatpush1.xpose.msra.mxu0 %v5548
        %5561 = vmatprep.subr.mxu0 0.0
        %5562 = vmatpush1.xpose.msra.mxu0 %v5551
        %5563 = vmatprep.subr.mxu0 0.0
        %5564 = vmatpush1.xpose.msra.mxu0 %v5554
        %5565 = vmatprep.subr.mxu0 0.0
        %5566 = vmatpush1.xpose.msra.mxu0 %v5557
        %5567 = vmatprep.subr.mxu0 0.0
        %5568 = vmatpush1.xpose.msra.mxu0 0.0
        %5569 = vmatprep.subr.mxu0 0.0
        %5570 = vmatpush1.xpose.msra.mxu0 0.0
        %5571 = vmatprep.subr.mxu0 0.0
        %5572 = vmatpush1.xpose.msra.mxu0 0.0
        %5573 = vmatprep.subr.mxu0 0.0
        %5574 = vmatpush1.xpose.msra.mxu0 0.0
        %5575 = vmatprep.subr.mxu0 0.0
        %5576 = vmatpush1.xpose.msra.mxu0 0.0
        %5577 = vmatprep.subr.mxu0 0.0
        %5578 = vmatpush1.xpose.msra.mxu0 0.0
        %5579 = vmatprep.subr.mxu0 0.0
        %5580 = vmatpush1.xpose.msra.mxu0 0.0
        %5581 = vmatprep.subr.mxu0 0.0
        %5582 = vmatpush1.xpose.msra.mxu0 0.0
        %5583 = vmatprep.subr.mxu0 0.0
        %5584 = vmatpush1.xpose.msra.mxu0 0.0
        %5585 = vmatprep.subr.mxu0 0.0
        %5586 = vmatpush1.xpose.msra.mxu0 0.0
        %5587 = vmatprep.subr.mxu0 0.0
        %5588 = vmatpush1.xpose.msra.mxu0 0.0
        %5589 = vmatprep.subr.mxu0 0.0
        %5590 = vmatpush1.xpose.msra.mxu0 0.0
        %5591 = vmatprep.subr.mxu0 0.0
        %5592 = vmatpush1.xpose.msra.mxu0 0.0
        %5593 = vmatprep.subr.mxu0 0.0
        %5594 = vmatpush1.xpose.msra.mxu0 0.0
        %5595 = vmatprep.subr.mxu0 0.0
        %5596 = vmatpush1.xpose.msra.mxu0 0.0
        %5597 = vmatprep.subr.mxu0 0.0
        %5598 = vmatpush1.xpose.msra.mxu0 0.0
        %5599 = vmatprep.subr.mxu0 0.0
        %5600 = vmatpush1.xpose.msra.mxu0 0.0
        %5601 = vmatprep.subr.mxu0 0.0
        %5602 = vmatpush1.xpose.msra.mxu0 0.0
        %5603 = vmatprep.subr.mxu0 0.0
        %5604 = vmatpush1.xpose.msra.mxu0 0.0
        %5605 = vmatprep.subr.mxu0 0.0
        %5606 = vmatpush1.xpose.msra.mxu0 0.0
        %5607 = vmatprep.subr.mxu0 0.0
        %5608 = vmatpush1.xpose.msra.mxu0 0.0
        %5609 = vmatprep.subr.mxu0 0.0
        %5610 = vmatpush1.xpose.msra.mxu0 0.0
        %5611 = vmatprep.subr.mxu0 0.0
        %5612 = vmatpush1.xpose.msra.mxu0 0.0
        %5613 = vmatprep.subr.mxu0 0.0
        %5614 = vmatpush1.xpose.msra.mxu0 0.0
        %5615 = vmatprep.subr.mxu0 0.0
        %5616 = vmatpush1.xpose.msra.mxu0 0.0
        %5617 = vmatprep.subr.mxu0 0.0
        %5618 = vmatpush1.xpose.msra.mxu0 0.0
        %5619 = vmatprep.subr.mxu0 0.0
        %5620 = vmatpush1.xpose.msra.mxu0 0.0
        %5621 = vmatprep.subr.mxu0 0.0
        %5622 = vmatpush1.xpose.msra.mxu0 0.0
        %5623 = vmatprep.mubr.f32.mxu0 0.0
        %5624 = vmatmul.mubr.f32.gmra.mrb[0].mxu0 %v4850
        %v5625 = vpop.f32.mrb[0].mxu0
        %v5626 = vadd.f32 0.0, %v5625
        %v5627 = vpop.f32.mrb[0].mxu0
        %5628 = vdwg.mxu0
        %v5630 = vsel %vm885, %v5207, 0
        %v5633 = vsel %vm885, %v5208, 0
        %v5636 = vsel %vm885, %v5209, 0
        %v5639 = vsel %vm885, %v5210, 0
        %5641 = vmatprep.subr.mxu0 0.0
        %5642 = vmatpush1.xpose.msra.mxu0 %v5630
        %5643 = vmatprep.subr.mxu0 0.0
        %5644 = vmatpush1.xpose.msra.mxu0 %v5633
        %5645 = vmatprep.subr.mxu0 0.0
        %5646 = vmatpush1.xpose.msra.mxu0 %v5636
        %5647 = vmatprep.subr.mxu0 0.0
        %5648 = vmatpush1.xpose.msra.mxu0 %v5639
        %5649 = vmatprep.subr.mxu0 0.0
        %5650 = vmatpush1.xpose.msra.mxu0 0.0
        %5651 = vmatprep.subr.mxu0 0.0
        %5652 = vmatpush1.xpose.msra.mxu0 0.0
        %5653 = vmatprep.subr.mxu0 0.0
        %5654 = vmatpush1.xpose.msra.mxu0 0.0
        %5655 = vmatprep.subr.mxu0 0.0
        %5656 = vmatpush1.xpose.msra.mxu0 0.0
        %5657 = vmatprep.subr.mxu0 0.0
        %5658 = vmatpush1.xpose.msra.mxu0 0.0
        %5659 = vmatprep.subr.mxu0 0.0
        %5660 = vmatpush1.xpose.msra.mxu0 0.0
        %5661 = vmatprep.subr.mxu0 0.0
        %5662 = vmatpush1.xpose.msra.mxu0 0.0
        %5663 = vmatprep.subr.mxu0 0.0
        %5664 = vmatpush1.xpose.msra.mxu0 0.0
        %5665 = vmatprep.subr.mxu0 0.0
        %5666 = vmatpush1.xpose.msra.mxu0 0.0
        %5667 = vmatprep.subr.mxu0 0.0
        %5668 = vmatpush1.xpose.msra.mxu0 0.0
        %5669 = vmatprep.subr.mxu0 0.0
        %5670 = vmatpush1.xpose.msra.mxu0 0.0
        %5671 = vmatprep.subr.mxu0 0.0
        %5672 = vmatpush1.xpose.msra.mxu0 0.0
        %5673 = vmatprep.subr.mxu0 0.0
        %5674 = vmatpush1.xpose.msra.mxu0 0.0
        %5675 = vmatprep.subr.mxu0 0.0
        %5676 = vmatpush1.xpose.msra.mxu0 0.0
        %5677 = vmatprep.subr.mxu0 0.0
        %5678 = vmatpush1.xpose.msra.mxu0 0.0
        %5679 = vmatprep.subr.mxu0 0.0
        %5680 = vmatpush1.xpose.msra.mxu0 0.0
        %5681 = vmatprep.subr.mxu0 0.0
        %5682 = vmatpush1.xpose.msra.mxu0 0.0
        %5683 = vmatprep.subr.mxu0 0.0
        %5684 = vmatpush1.xpose.msra.mxu0 0.0
        %5685 = vmatprep.subr.mxu0 0.0
        %5686 = vmatpush1.xpose.msra.mxu0 0.0
        %5687 = vmatprep.subr.mxu0 0.0
        %5688 = vmatpush1.xpose.msra.mxu0 0.0
        %5689 = vmatprep.subr.mxu0 0.0
        %5690 = vmatpush1.xpose.msra.mxu0 0.0
        %5691 = vmatprep.subr.mxu0 0.0
        %5692 = vmatpush1.xpose.msra.mxu0 0.0
        %5693 = vmatprep.subr.mxu0 0.0
        %5694 = vmatpush1.xpose.msra.mxu0 0.0
        %5695 = vmatprep.subr.mxu0 0.0
        %5696 = vmatpush1.xpose.msra.mxu0 0.0
        %5697 = vmatprep.subr.mxu0 0.0
        %5698 = vmatpush1.xpose.msra.mxu0 0.0
        %5699 = vmatprep.subr.mxu0 0.0
        %5700 = vmatpush1.xpose.msra.mxu0 0.0
        %5701 = vmatprep.subr.mxu0 0.0
        %5702 = vmatpush1.xpose.msra.mxu0 0.0
        %5703 = vmatprep.subr.mxu0 0.0
        %5704 = vmatpush1.xpose.msra.mxu0 0.0
        %5705 = vmatprep.mubr.f32.mxu0 0.0
        %5706 = vmatmul.mubr.f32.gmra.mrb[0].mxu0 %v4934
        %v5707 = vpop.f32.mrb[0].mxu0
        %v5708 = vadd.f32 0.0, %v5707
        %v5709 = vpop.f32.mrb[0].mxu0
        %5710 = vdwg.mxu0
        %v5712 = vsel %vm885, %v5211, 0
        %v5715 = vsel %vm885, %v5212, 0
        %v5718 = vsel %vm885, %v5213, 0
        %v5721 = vsel %vm885, %v5214, 0
        %5723 = vmatprep.subr.mxu0 0.0
        %5724 = vmatpush1.xpose.msra.mxu0 %v5712
        %5725 = vmatprep.subr.mxu0 0.0
        %5726 = vmatpush1.xpose.msra.mxu0 %v5715
        %5727 = vmatprep.subr.mxu0 0.0
        %5728 = vmatpush1.xpose.msra.mxu0 %v5718
        %5729 = vmatprep.subr.mxu0 0.0
        %5730 = vmatpush1.xpose.msra.mxu0 %v5721
        %5731 = vmatprep.subr.mxu0 0.0
        %5732 = vmatpush1.xpose.msra.mxu0 0.0
        %5733 = vmatprep.subr.mxu0 0.0
        %5734 = vmatpush1.xpose.msra.mxu0 0.0
        %5735 = vmatprep.subr.mxu0 0.0
        %5736 = vmatpush1.xpose.msra.mxu0 0.0
        %5737 = vmatprep.subr.mxu0 0.0
        %5738 = vmatpush1.xpose.msra.mxu0 0.0
        %5739 = vmatprep.subr.mxu0 0.0
        %5740 = vmatpush1.xpose.msra.mxu0 0.0
        %5741 = vmatprep.subr.mxu0 0.0
        %5742 = vmatpush1.xpose.msra.mxu0 0.0
        %5743 = vmatprep.subr.mxu0 0.0
        %5744 = vmatpush1.xpose.msra.mxu0 0.0
        %5745 = vmatprep.subr.mxu0 0.0
        %5746 = vmatpush1.xpose.msra.mxu0 0.0
        %5747 = vmatprep.subr.mxu0 0.0
        %5748 = vmatpush1.xpose.msra.mxu0 0.0
        %5749 = vmatprep.subr.mxu0 0.0
        %5750 = vmatpush1.xpose.msra.mxu0 0.0
        %5751 = vmatprep.subr.mxu0 0.0
        %5752 = vmatpush1.xpose.msra.mxu0 0.0
        %5753 = vmatprep.subr.mxu0 0.0
        %5754 = vmatpush1.xpose.msra.mxu0 0.0
        %5755 = vmatprep.subr.mxu0 0.0
        %5756 = vmatpush1.xpose.msra.mxu0 0.0
        %5757 = vmatprep.subr.mxu0 0.0
        %5758 = vmatpush1.xpose.msra.mxu0 0.0
        %5759 = vmatprep.subr.mxu0 0.0
        %5760 = vmatpush1.xpose.msra.mxu0 0.0
        %5761 = vmatprep.subr.mxu0 0.0
        %5762 = vmatpush1.xpose.msra.mxu0 0.0
        %5763 = vmatprep.subr.mxu0 0.0
        %5764 = vmatpush1.xpose.msra.mxu0 0.0
        %5765 = vmatprep.subr.mxu0 0.0
        %5766 = vmatpush1.xpose.msra.mxu0 0.0
        %5767 = vmatprep.subr.mxu0 0.0
        %5768 = vmatpush1.xpose.msra.mxu0 0.0
        %5769 = vmatprep.subr.mxu0 0.0
        %5770 = vmatpush1.xpose.msra.mxu0 0.0
        %5771 = vmatprep.subr.mxu0 0.0
        %5772 = vmatpush1.xpose.msra.mxu0 0.0
        %5773 = vmatprep.subr.mxu0 0.0
        %5774 = vmatpush1.xpose.msra.mxu0 0.0
        %5775 = vmatprep.subr.mxu0 0.0
        %5776 = vmatpush1.xpose.msra.mxu0 0.0
        %5777 = vmatprep.subr.mxu0 0.0
        %5778 = vmatpush1.xpose.msra.mxu0 0.0
        %5779 = vmatprep.subr.mxu0 0.0
        %5780 = vmatpush1.xpose.msra.mxu0 0.0
        %5781 = vmatprep.subr.mxu0 0.0
        %5782 = vmatpush1.xpose.msra.mxu0 0.0
        %5783 = vmatprep.subr.mxu0 0.0
        %5784 = vmatpush1.xpose.msra.mxu0 0.0
        %5785 = vmatprep.subr.mxu0 0.0
        %5786 = vmatpush1.xpose.msra.mxu0 0.0
        %5787 = vmatprep.mubr.f32.mxu0 0.0
        %5788 = vmatmul.mubr.f32.gmra.mrb[0].mxu0 %v5018
        %v5789 = vpop.f32.mrb[0].mxu0
        %v5790 = vadd.f32 0.0, %v5789
        %v5791 = vpop.f32.mrb[0].mxu0
        %5792 = vdwg.mxu0
        %v5794 = vsel %vm885, %v5215, 0
        %v5797 = vsel %vm885, %v5216, 0
        %v5800 = vsel %vm885, %v5217, 0
        %v5803 = vsel %vm885, %v5218, 0
        %5805 = vmatprep.subr.mxu0 0.0
        %5806 = vmatpush1.xpose.msra.mxu0 %v5794
        %5807 = vmatprep.subr.mxu0 0.0
        %5808 = vmatpush1.xpose.msra.mxu0 %v5797
        %5809 = vmatprep.subr.mxu0 0.0
        %5810 = vmatpush1.xpose.msra.mxu0 %v5800
        %5811 = vmatprep.subr.mxu0 0.0
        %5812 = vmatpush1.xpose.msra.mxu0 %v5803
        %5813 = vmatprep.subr.mxu0 0.0
        %5814 = vmatpush1.xpose.msra.mxu0 0.0
        %5815 = vmatprep.subr.mxu0 0.0
        %5816 = vmatpush1.xpose.msra.mxu0 0.0
        %5817 = vmatprep.subr.mxu0 0.0
        %5818 = vmatpush1.xpose.msra.mxu0 0.0
        %5819 = vmatprep.subr.mxu0 0.0
        %5820 = vmatpush1.xpose.msra.mxu0 0.0
        %5821 = vmatprep.subr.mxu0 0.0
        %5822 = vmatpush1.xpose.msra.mxu0 0.0
        %5823 = vmatprep.subr.mxu0 0.0
        %5824 = vmatpush1.xpose.msra.mxu0 0.0
        %5825 = vmatprep.subr.mxu0 0.0
        %5826 = vmatpush1.xpose.msra.mxu0 0.0
        %5827 = vmatprep.subr.mxu0 0.0
        %5828 = vmatpush1.xpose.msra.mxu0 0.0
        %5829 = vmatprep.subr.mxu0 0.0
        %5830 = vmatpush1.xpose.msra.mxu0 0.0
        %5831 = vmatprep.subr.mxu0 0.0
        %5832 = vmatpush1.xpose.msra.mxu0 0.0
        %5833 = vmatprep.subr.mxu0 0.0
        %5834 = vmatpush1.xpose.msra.mxu0 0.0
        %5835 = vmatprep.subr.mxu0 0.0
        %5836 = vmatpush1.xpose.msra.mxu0 0.0
        %5837 = vmatprep.subr.mxu0 0.0
        %5838 = vmatpush1.xpose.msra.mxu0 0.0
        %5839 = vmatprep.subr.mxu0 0.0
        %5840 = vmatpush1.xpose.msra.mxu0 0.0
        %5841 = vmatprep.subr.mxu0 0.0
        %5842 = vmatpush1.xpose.msra.mxu0 0.0
        %5843 = vmatprep.subr.mxu0 0.0
        %5844 = vmatpush1.xpose.msra.mxu0 0.0
        %5845 = vmatprep.subr.mxu0 0.0
        %5846 = vmatpush1.xpose.msra.mxu0 0.0
        %5847 = vmatprep.subr.mxu0 0.0
        %5848 = vmatpush1.xpose.msra.mxu0 0.0
        %5849 = vmatprep.subr.mxu0 0.0
        %5850 = vmatpush1.xpose.msra.mxu0 0.0
        %5851 = vmatprep.subr.mxu0 0.0
        %5852 = vmatpush1.xpose.msra.mxu0 0.0
        %5853 = vmatprep.subr.mxu0 0.0
        %5854 = vmatpush1.xpose.msra.mxu0 0.0
        %5855 = vmatprep.subr.mxu0 0.0
        %5856 = vmatpush1.xpose.msra.mxu0 0.0
        %5857 = vmatprep.subr.mxu0 0.0
        %5858 = vmatpush1.xpose.msra.mxu0 0.0
        %5859 = vmatprep.subr.mxu0 0.0
        %5860 = vmatpush1.xpose.msra.mxu0 0.0
        %5861 = vmatprep.subr.mxu0 0.0
        %5862 = vmatpush1.xpose.msra.mxu0 0.0
        %5863 = vmatprep.subr.mxu0 0.0
        %5864 = vmatpush1.xpose.msra.mxu0 0.0
        %5865 = vmatprep.subr.mxu0 0.0
        %5866 = vmatpush1.xpose.msra.mxu0 0.0
        %5867 = vmatprep.subr.mxu0 0.0
        %5868 = vmatpush1.xpose.msra.mxu0 0.0
        %5869 = vmatprep.mubr.f32.mxu0 0.0
        %5870 = vmatmul.mubr.f32.gmra.mrb[0].mxu0 %v5102
        %v5871 = vpop.f32.mrb[0].mxu0
        %v5872 = vadd.f32 0.0, %v5871
        %v5873 = vpop.f32.mrb[0].mxu0
        %5874 = vdwg.mxu0
        %v5883 = vrot.slane %v5298, 1
        %v5884 = vrot.slane %v5380, 1
        %v5885 = vrot.slane %v5462, 1
        %v5886 = vrot.slane %v5544, 1
        %v5887 = vrot.slane %v5626, 1
        %v5888 = vrot.slane %v5708, 1
        %v5889 = vrot.slane %v5790, 1
        %v5890 = vrot.slane %v5872, 1
        %v5899 = vsub.f32 %v4595, %v5883
        %v5900 = vsub.f32 %v4679, %v5884
        %v5901 = vsub.f32 %v4763, %v5885
        %v5902 = vsub.f32 %v4847, %v5886
        %v5903 = vsub.f32 %v4931, %v5887
        %v5904 = vsub.f32 %v5015, %v5888
        %v5905 = vsub.f32 %v5099, %v5889
        %v5906 = vsub.f32 %v5183, %v5890
        %v5915 = vrot.slane %v4595, 1
        %v5916 = vrot.slane %v4679, 1
        %v5917 = vrot.slane %v4763, 1
        %v5918 = vrot.slane %v4847, 1
        %v5919 = vrot.slane %v4931, 1
        %v5920 = vrot.slane %v5015, 1
        %v5921 = vrot.slane %v5099, 1
        %v5922 = vrot.slane %v5183, 1
        %v5931 = vadd.f32 %v5298, %v5915
        %v5932 = vadd.f32 %v5380, %v5916
        %v5933 = vadd.f32 %v5462, %v5917
        %v5934 = vadd.f32 %v5544, %v5918
        %v5935 = vadd.f32 %v5626, %v5919
        %v5936 = vadd.f32 %v5708, %v5920
        %v5937 = vadd.f32 %v5790, %v5921
        %v5938 = vadd.f32 %v5872, %v5922
        %v5947 = vrot.slane %v5900, 7
        %v5948 = vsel %vm2319, %v5947, %v5899
        %v5949 = vrot.slane %v5901, 6
        %v5950 = vsel %vm2322, %v5949, %v5948
        %v5951 = vrot.slane %v5902, 5
        %v5952 = vsel %vm2325, %v5951, %v5950
        %v5953 = vrot.slane %v5903, 4
        %v5954 = vsel %vm2328, %v5953, %v5952
        %v5955 = vrot.slane %v5904, 3
        %v5956 = vsel %vm2331, %v5955, %v5954
        %v5957 = vrot.slane %v5905, 2
        %v5958 = vsel %vm2334, %v5957, %v5956
        %v5959 = vrot.slane %v5906, 1
        %v5960 = vsel %vm2337, %v5959, %v5958
        %v5970 = vrot.slane %v5932, 7
        %v5971 = vsel %vm2319, %v5970, %v5931
        %v5972 = vrot.slane %v5933, 6
        %v5973 = vsel %vm2322, %v5972, %v5971
        %v5974 = vrot.slane %v5934, 5
        %v5975 = vsel %vm2325, %v5974, %v5973
        %v5976 = vrot.slane %v5935, 4
        %v5977 = vsel %vm2328, %v5976, %v5975
        %v5978 = vrot.slane %v5936, 3
        %v5979 = vsel %vm2331, %v5978, %v5977
        %v5980 = vrot.slane %v5937, 2
        %v5981 = vsel %vm2334, %v5980, %v5979
        %v5982 = vrot.slane %v5938, 1
        %v5983 = vsel %vm2337, %v5982, %v5981
        %s5985 = scalar_lea.vmem [#allocation14], 64
        %v5986 = vld [vmem:[%s5985] sm:$0xff]
        %v5987 = vld [vmem:[%s5985 + $0x8] sm:$0xff]
        %v5988 = vld [vmem:[%s5985 + $0x10] sm:$0xff]
        %v5989 = vld [vmem:[%s5985 + $0x18] sm:$0xff]
        %v5991 = vsel %vm885, %v4368, 0
        %v5994 = vsel %vm885, %v4369, 0
        %v5997 = vsel %vm885, %v5986, 0
        %v6000 = vsel %vm885, %v5987, 0
        %v6003 = vsel %vm885, %v5988, 0
        %v6006 = vsel %vm885, %v5989, 0
        %6008 = vmatprep.subr.mxu0 0.0
        %6009 = vmatpush1.xpose.msra.mxu0 %v5997
        %6010 = vmatprep.subr.mxu0 0.0
        %6011 = vmatpush1.xpose.msra.mxu0 %v6000
        %6012 = vmatprep.subr.mxu0 0.0
        %6013 = vmatpush1.xpose.msra.mxu0 %v6003
        %6014 = vmatprep.subr.mxu0 0.0
        %6015 = vmatpush1.xpose.msra.mxu0 %v6006
        %6016 = vmatprep.subr.mxu0 0.0
        %6017 = vmatpush1.xpose.msra.mxu0 0.0
        %6018 = vmatprep.subr.mxu0 0.0
        %6019 = vmatpush1.xpose.msra.mxu0 0.0
        %6020 = vmatprep.subr.mxu0 0.0
        %6021 = vmatpush1.xpose.msra.mxu0 0.0
        %6022 = vmatprep.subr.mxu0 0.0
        %6023 = vmatpush1.xpose.msra.mxu0 0.0
        %6024 = vmatprep.subr.mxu0 0.0
        %6025 = vmatpush1.xpose.msra.mxu0 0.0
        %6026 = vmatprep.subr.mxu0 0.0
        %6027 = vmatpush1.xpose.msra.mxu0 0.0
        %6028 = vmatprep.subr.mxu0 0.0
        %6029 = vmatpush1.xpose.msra.mxu0 0.0
        %6030 = vmatprep.subr.mxu0 0.0
        %6031 = vmatpush1.xpose.msra.mxu0 0.0
        %6032 = vmatprep.subr.mxu0 0.0
        %6033 = vmatpush1.xpose.msra.mxu0 0.0
        %6034 = vmatprep.subr.mxu0 0.0
        %6035 = vmatpush1.xpose.msra.mxu0 0.0
        %6036 = vmatprep.subr.mxu0 0.0
        %6037 = vmatpush1.xpose.msra.mxu0 0.0
        %6038 = vmatprep.subr.mxu0 0.0
        %6039 = vmatpush1.xpose.msra.mxu0 0.0
        %6040 = vmatprep.subr.mxu0 0.0
        %6041 = vmatpush1.xpose.msra.mxu0 0.0
        %6042 = vmatprep.subr.mxu0 0.0
        %6043 = vmatpush1.xpose.msra.mxu0 0.0
        %6044 = vmatprep.subr.mxu0 0.0
        %6045 = vmatpush1.xpose.msra.mxu0 0.0
        %6046 = vmatprep.subr.mxu0 0.0
        %6047 = vmatpush1.xpose.msra.mxu0 0.0
        %6048 = vmatprep.subr.mxu0 0.0
        %6049 = vmatpush1.xpose.msra.mxu0 0.0
        %6050 = vmatprep.subr.mxu0 0.0
        %6051 = vmatpush1.xpose.msra.mxu0 0.0
        %6052 = vmatprep.subr.mxu0 0.0
        %6053 = vmatpush1.xpose.msra.mxu0 0.0
        %6054 = vmatprep.subr.mxu0 0.0
        %6055 = vmatpush1.xpose.msra.mxu0 0.0
        %6056 = vmatprep.subr.mxu0 0.0
        %6057 = vmatpush1.xpose.msra.mxu0 0.0
        %6058 = vmatprep.subr.mxu0 0.0
        %6059 = vmatpush1.xpose.msra.mxu0 0.0
        %6060 = vmatprep.subr.mxu0 0.0
        %6061 = vmatpush1.xpose.msra.mxu0 0.0
        %6062 = vmatprep.subr.mxu0 0.0
        %6063 = vmatpush1.xpose.msra.mxu0 0.0
        %6064 = vmatprep.subr.mxu0 0.0
        %6065 = vmatpush1.xpose.msra.mxu0 0.0
        %6066 = vmatprep.subr.mxu0 0.0
        %6067 = vmatpush1.xpose.msra.mxu0 0.0
        %6068 = vmatprep.subr.mxu0 0.0
        %6069 = vmatpush1.xpose.msra.mxu0 0.0
        %6070 = vmatprep.subr.mxu0 0.0
        %6071 = vmatpush1.xpose.msra.mxu0 0.0
        %6072 = vmatprep.mubr.f32.mxu0 0.0
        %6073 = vmatmul.mubr.f32.gmra.mrb[0].mxu0 %v5991
        %v6074 = vpop.f32.mrb[0].mxu0
        %v6075 = vadd.f32 0.0, %v6074
        %v6076 = vpop.f32.mrb[0].mxu0
        %6077 = vmatprep.mubr.f32.mxu0 0.0
        %6078 = vmatmul.mubr.f32.gmra.mrb[0].mxu0 %v5994
        %v6079 = vpop.f32.mrb[0].mxu0
        %v6080 = vadd.f32 0.0, %v6079
        %v6081 = vpop.f32.mrb[0].mxu0
        %6082 = vdwg.mxu0
        %6083 = vmatprep.subr.mxu0 0.0
        %6084 = vmatpush1.msra.mxu0 %v5960
        %6085 = vmatprep.subr.mxu0 0.0
        %6086 = vmatpush1.msra.mxu0 %v5983
        %6087 = vmatprep.subr.mxu0 0.0
        %6088 = vmatpush1.msra.mxu0 0.0
        %6089 = vmatprep.subr.mxu0 0.0
        %6090 = vmatpush1.msra.mxu0 0.0
        %6091 = vmatprep.subr.mxu0 0.0
        %6092 = vmatpush1.msra.mxu0 0.0
        %6093 = vmatprep.subr.mxu0 0.0
        %6094 = vmatpush1.msra.mxu0 0.0
        %6095 = vmatprep.subr.mxu0 0.0
        %6096 = vmatpush1.msra.mxu0 0.0
        %6097 = vmatprep.subr.mxu0 0.0
        %6098 = vmatpush1.msra.mxu0 0.0
        %6099 = vmatprep.subr.mxu0 0.0
        %6100 = vmatpush1.msra.mxu0 0.0
        %6101 = vmatprep.subr.mxu0 0.0
        %6102 = vmatpush1.msra.mxu0 0.0
        %6103 = vmatprep.subr.mxu0 0.0
        %6104 = vmatpush1.msra.mxu0 0.0
        %6105 = vmatprep.subr.mxu0 0.0
        %6106 = vmatpush1.msra.mxu0 0.0
        %6107 = vmatprep.subr.mxu0 0.0
        %6108 = vmatpush1.msra.mxu0 0.0
        %6109 = vmatprep.subr.mxu0 0.0
        %6110 = vmatpush1.msra.mxu0 0.0
        %6111 = vmatprep.subr.mxu0 0.0
        %6112 = vmatpush1.msra.mxu0 0.0
        %6113 = vmatprep.subr.mxu0 0.0
        %6114 = vmatpush1.msra.mxu0 0.0
        %6115 = vmatprep.subr.mxu0 0.0
        %6116 = vmatpush1.msra.mxu0 0.0
        %6117 = vmatprep.subr.mxu0 0.0
        %6118 = vmatpush1.msra.mxu0 0.0
        %6119 = vmatprep.subr.mxu0 0.0
        %6120 = vmatpush1.msra.mxu0 0.0
        %6121 = vmatprep.subr.mxu0 0.0
        %6122 = vmatpush1.msra.mxu0 0.0
        %6123 = vmatprep.subr.mxu0 0.0
        %6124 = vmatpush1.msra.mxu0 0.0
        %6125 = vmatprep.subr.mxu0 0.0
        %6126 = vmatpush1.msra.mxu0 0.0
        %6127 = vmatprep.subr.mxu0 0.0
        %6128 = vmatpush1.msra.mxu0 0.0
        %6129 = vmatprep.subr.mxu0 0.0
        %6130 = vmatpush1.msra.mxu0 0.0
        %6131 = vmatprep.subr.mxu0 0.0
        %6132 = vmatpush1.msra.mxu0 0.0
        %6133 = vmatprep.subr.mxu0 0.0
        %6134 = vmatpush1.msra.mxu0 0.0
        %6135 = vmatprep.subr.mxu0 0.0
        %6136 = vmatpush1.msra.mxu0 0.0
        %6137 = vmatprep.subr.mxu0 0.0
        %6138 = vmatpush1.msra.mxu0 0.0
        %6139 = vmatprep.subr.mxu0 0.0
        %6140 = vmatpush1.msra.mxu0 0.0
        %6141 = vmatprep.subr.mxu0 0.0
        %6142 = vmatpush1.msra.mxu0 0.0
        %6143 = vmatprep.subr.mxu0 0.0
        %6144 = vmatpush1.msra.mxu0 0.0
        %6145 = vmatprep.subr.mxu0 0.0
        %6146 = vmatpush1.msra.mxu0 0.0
        %6147 = vmatprep.mubr.f32.mxu0 0.0
        %6148 = vmatmul.mubr.f32.gmra.mrb[0].mxu0 %v2463
        %v6149 = vpop.f32.mrb[0].mxu0
        %v6150 = vadd.f32 %v6075, %v6149
        %v6151 = vpop.f32.mrb[0].mxu0
        %6152 = vmatprep.mubr.f32.mxu0 0.0
        %6153 = vmatmul.mubr.f32.gmra.mrb[0].mxu0 %v2466
        %v6154 = vpop.f32.mrb[0].mxu0
        %v6155 = vadd.f32 %v6080, %v6154
        %v6156 = vpop.f32.mrb[0].mxu0
        %6157 = vdwg.mxu0
        %s6158 = scalar_lea.vmem [#allocation15], 2
        %v6159 = vld [vmem:[%s6158] sm:$0x1]
        %v6161 = vlaneseq
        %v6162 = vshrl.u32 %v6161, 7
        %v6163 = vsub.s32 0, %v6162
        %v6164 = vrot.slane %v6159, %v6163
        %v6166 = vadd.f32 %v6150, %v6164
        %v6167 = vadd.f32 %v6155, %v6164
        %v6168 = vmul.f32 %v6166, 0.5
        %v6169 = vmul.f32 %v6167, 0.5
        %v6170 = vmul.f32 %v6166, 0.70710677
        %v6171 = vmul.f32 %v6167, 0.70710677
        %v6172 = verf.f32.pop %v6170
        %v6173 = verf.f32.pop %v6171
        %v6174 = vadd.f32 %v6172, 1.0
        %v6175 = vadd.f32 %v6173, 1.0
        %v6176 = vmul.f32 %v6168, %v6174
        %v6177 = vmul.f32 %v6169, %v6175
        %6178 = vmatprep.subr.mxu0 0.0
        %6179 = vmatpush1.msra.mxu0 %v6176
        %6180 = vmatprep.subr.mxu0 0.0
        %6181 = vmatpush1.msra.mxu0 %v6177
        %6182 = vmatprep.subr.mxu0 0.0
        %6183 = vmatpush1.msra.mxu0 0.0
        %6184 = vmatprep.subr.mxu0 0.0
        %6185 = vmatpush1.msra.mxu0 0.0
        %6186 = vmatprep.subr.mxu0 0.0
        %6187 = vmatpush1.msra.mxu0 0.0
        %6188 = vmatprep.subr.mxu0 0.0
        %6189 = vmatpush1.msra.mxu0 0.0
        %6190 = vmatprep.subr.mxu0 0.0
        %6191 = vmatpush1.msra.mxu0 0.0
        %6192 = vmatprep.subr.mxu0 0.0
        %6193 = vmatpush1.msra.mxu0 0.0
        %6194 = vmatprep.subr.mxu0 0.0
        %6195 = vmatpush1.msra.mxu0 0.0
        %6196 = vmatprep.subr.mxu0 0.0
        %6197 = vmatpush1.msra.mxu0 0.0
        %6198 = vmatprep.subr.mxu0 0.0
        %6199 = vmatpush1.msra.mxu0 0.0
        %6200 = vmatprep.subr.mxu0 0.0
        %6201 = vmatpush1.msra.mxu0 0.0
        %6202 = vmatprep.subr.mxu0 0.0
        %6203 = vmatpush1.msra.mxu0 0.0
        %6204 = vmatprep.subr.mxu0 0.0
        %6205 = vmatpush1.msra.mxu0 0.0
        %6206 = vmatprep.subr.mxu0 0.0
        %6207 = vmatpush1.msra.mxu0 0.0
        %6208 = vmatprep.subr.mxu0 0.0
        %6209 = vmatpush1.msra.mxu0 0.0
        %6210 = vmatprep.subr.mxu0 0.0
        %6211 = vmatpush1.msra.mxu0 0.0
        %6212 = vmatprep.subr.mxu0 0.0
        %6213 = vmatpush1.msra.mxu0 0.0
        %6214 = vmatprep.subr.mxu0 0.0
        %6215 = vmatpush1.msra.mxu0 0.0
        %6216 = vmatprep.subr.mxu0 0.0
        %6217 = vmatpush1.msra.mxu0 0.0
        %6218 = vmatprep.subr.mxu0 0.0
        %6219 = vmatpush1.msra.mxu0 0.0
        %6220 = vmatprep.subr.mxu0 0.0
        %6221 = vmatpush1.msra.mxu0 0.0
        %6222 = vmatprep.subr.mxu0 0.0
        %6223 = vmatpush1.msra.mxu0 0.0
        %6224 = vmatprep.subr.mxu0 0.0
        %6225 = vmatpush1.msra.mxu0 0.0
        %6226 = vmatprep.subr.mxu0 0.0
        %6227 = vmatpush1.msra.mxu0 0.0
        %6228 = vmatprep.subr.mxu0 0.0
        %6229 = vmatpush1.msra.mxu0 0.0
        %6230 = vmatprep.subr.mxu0 0.0
        %6231 = vmatpush1.msra.mxu0 0.0
        %6232 = vmatprep.subr.mxu0 0.0
        %6233 = vmatpush1.msra.mxu0 0.0
        %6234 = vmatprep.subr.mxu0 0.0
        %6235 = vmatpush1.msra.mxu0 0.0
        %6236 = vmatprep.subr.mxu0 0.0
        %6237 = vmatpush1.msra.mxu0 0.0
        %6238 = vmatprep.subr.mxu0 0.0
        %6239 = vmatpush1.msra.mxu0 0.0
        %6240 = vmatprep.subr.mxu0 0.0
        %6241 = vmatpush1.msra.mxu0 0.0
        %6242 = vmatprep.mubr.f32.mxu0 0.0
        %6243 = vmatmul.mubr.f32.gmra.mrb[0].mxu0 %v737
        %v6244 = vpop.f32.mrb[0].mxu0
        %v6245 = vadd.f32 0.0, %v6244
        %v6246 = vpop.f32.mrb[0].mxu0
        %6247 = vmatprep.mubr.f32.mxu0 0.0
        %6248 = vmatmul.mubr.f32.gmra.mrb[0].mxu0 %v740
        %v6249 = vpop.f32.mrb[0].mxu0
        %v6250 = vadd.f32 0.0, %v6249
        %v6251 = vpop.f32.mrb[0].mxu0
        %6252 = vdwg.mxu0
        %v6255 = vcombine.high %v6245, %v6245
        %v6257 = vunpack.c.l.s4 1983009808
        %v6258 = vunpack.c.0.s8 %v6257
        %v6259 = vlaneseq
        %v6260 = vshrl.u32 %v6259, 7
        %v6261 = vsub.s32 %v6258, %v6260
        %v6262 = vrot.slane %v6245, %v6261
        %v6264 = vunpack.c.l.s4 1983009808
        %v6265 = vunpack.c.0.s8 %v6264
        %v6266 = vlaneseq
        %v6267 = vshrl.u32 %v6266, 7
        %v6268 = vsub.s32 %v6265, %v6267
        %v6269 = vrot.slane %v6255, %v6268
        %v6270 = vcombine.high %v6262, %v6262
        %v6271 = vcombine.high %v6269, %v6269
        %v6272 = vcombine.high %v6250, %v6250
        %v6274 = vunpack.c.l.s4 1983009808
        %v6275 = vunpack.c.0.s8 %v6274
        %v6276 = vlaneseq
        %v6277 = vshrl.u32 %v6276, 7
        %v6278 = vsub.s32 %v6275, %v6277
        %v6279 = vrot.slane %v6250, %v6278
        %v6281 = vunpack.c.l.s4 1983009808
        %v6282 = vunpack.c.0.s8 %v6281
        %v6283 = vlaneseq
        %v6284 = vshrl.u32 %v6283, 7
        %v6285 = vsub.s32 %v6282, %v6284
        %v6286 = vrot.slane %v6272, %v6285
        %v6287 = vcombine.high %v6279, %v6279
        %v6288 = vcombine.high %v6286, %v6286
        %s6289 = scalar_lea.vmem [#allocation11], 768
        %v6290 = vld [vmem:[%s6289] sm:$0xff]
        %v6291 = vld [vmem:[%s6289 + $0x8] sm:$0xff]
        %v6292 = vld [vmem:[%s6289 + $0x10] sm:$0xff]
        %v6293 = vld [vmem:[%s6289 + $0x18] sm:$0xff]
        %v6294 = vld [vmem:[%s6289 + $0x20] sm:$0xff]
        %v6295 = vld [vmem:[%s6289 + $0x28] sm:$0xff]
        %v6296 = vld [vmem:[%s6289 + $0x30] sm:$0xff]
        %v6297 = vld [vmem:[%s6289 + $0x38] sm:$0xff]
        %v6298 = vld [vmem:[%s6289 + $0x40] sm:$0xff]
        %v6299 = vld [vmem:[%s6289 + $0x48] sm:$0xff]
        %v6300 = vld [vmem:[%s6289 + $0x50] sm:$0xff]
        %v6301 = vld [vmem:[%s6289 + $0x58] sm:$0xff]
        %v6302 = vld [vmem:[%s6289 + $0x60] sm:$0xff]
        %v6303 = vld [vmem:[%s6289 + $0x68] sm:$0xff]
        %v6304 = vld [vmem:[%s6289 + $0x70] sm:$0xff]
        %v6305 = vld [vmem:[%s6289 + $0x78] sm:$0xff]
        %v6306 = vld [vmem:[%s6289 + $0x80] sm:$0xff]
        %v6307 = vld [vmem:[%s6289 + $0x88] sm:$0xff]
        %v6308 = vld [vmem:[%s6289 + $0x90] sm:$0xff]
        %v6309 = vld [vmem:[%s6289 + $0x98] sm:$0xff]
        %v6310 = vld [vmem:[%s6289 + $0xa0] sm:$0xff]
        %v6311 = vld [vmem:[%s6289 + $0xa8] sm:$0xff]
        %v6312 = vld [vmem:[%s6289 + $0xb0] sm:$0xff]
        %v6313 = vld [vmem:[%s6289 + $0xb8] sm:$0xff]
        %v6314 = vld [vmem:[%s6289 + $0xc0] sm:$0xff]
        %v6315 = vld [vmem:[%s6289 + $0xc8] sm:$0xff]
        %v6316 = vld [vmem:[%s6289 + $0xd0] sm:$0xff]
        %v6317 = vld [vmem:[%s6289 + $0xd8] sm:$0xff]
        %v6318 = vld [vmem:[%s6289 + $0xe0] sm:$0xff]
        %v6319 = vld [vmem:[%s6289 + $0xe8] sm:$0xff]
        %v6320 = vld [vmem:[%s6289 + $0xf0] sm:$0xff]
        %v6321 = vld [vmem:[%s6289 + $0xf8] sm:$0xff]
        %v6322 = vsel %vm885, %v6262, 0
        %v6325 = vsel %vm885, %v6290, 0
        %v6328 = vsel %vm885, %v6291, 0
        %v6331 = vsel %vm885, %v6292, 0
        %v6334 = vsel %vm885, %v6293, 0
        %6336 = vmatprep.subr.mxu0 0.0
        %6337 = vmatpush1.xpose.msra.mxu0 %v6325
        %6338 = vmatprep.subr.mxu0 0.0
        %6339 = vmatpush1.xpose.msra.mxu0 %v6328
        %6340 = vmatprep.subr.mxu0 0.0
        %6341 = vmatpush1.xpose.msra.mxu0 %v6331
        %6342 = vmatprep.subr.mxu0 0.0
        %6343 = vmatpush1.xpose.msra.mxu0 %v6334
        %6344 = vmatprep.subr.mxu0 0.0
        %6345 = vmatpush1.xpose.msra.mxu0 0.0
        %6346 = vmatprep.subr.mxu0 0.0
        %6347 = vmatpush1.xpose.msra.mxu0 0.0
        %6348 = vmatprep.subr.mxu0 0.0
        %6349 = vmatpush1.xpose.msra.mxu0 0.0
        %6350 = vmatprep.subr.mxu0 0.0
        %6351 = vmatpush1.xpose.msra.mxu0 0.0
        %6352 = vmatprep.subr.mxu0 0.0
        %6353 = vmatpush1.xpose.msra.mxu0 0.0
        %6354 = vmatprep.subr.mxu0 0.0
        %6355 = vmatpush1.xpose.msra.mxu0 0.0
        %6356 = vmatprep.subr.mxu0 0.0
        %6357 = vmatpush1.xpose.msra.mxu0 0.0
        %6358 = vmatprep.subr.mxu0 0.0
        %6359 = vmatpush1.xpose.msra.mxu0 0.0
        %6360 = vmatprep.subr.mxu0 0.0
        %6361 = vmatpush1.xpose.msra.mxu0 0.0
        %6362 = vmatprep.subr.mxu0 0.0
        %6363 = vmatpush1.xpose.msra.mxu0 0.0
        %6364 = vmatprep.subr.mxu0 0.0
        %6365 = vmatpush1.xpose.msra.mxu0 0.0
        %6366 = vmatprep.subr.mxu0 0.0
        %6367 = vmatpush1.xpose.msra.mxu0 0.0
        %6368 = vmatprep.subr.mxu0 0.0
        %6369 = vmatpush1.xpose.msra.mxu0 0.0
        %6370 = vmatprep.subr.mxu0 0.0
        %6371 = vmatpush1.xpose.msra.mxu0 0.0
        %6372 = vmatprep.subr.mxu0 0.0
        %6373 = vmatpush1.xpose.msra.mxu0 0.0
        %6374 = vmatprep.subr.mxu0 0.0
        %6375 = vmatpush1.xpose.msra.mxu0 0.0
        %6376 = vmatprep.subr.mxu0 0.0
        %6377 = vmatpush1.xpose.msra.mxu0 0.0
        %6378 = vmatprep.subr.mxu0 0.0
        %6379 = vmatpush1.xpose.msra.mxu0 0.0
        %6380 = vmatprep.subr.mxu0 0.0
        %6381 = vmatpush1.xpose.msra.mxu0 0.0
        %6382 = vmatprep.subr.mxu0 0.0
        %6383 = vmatpush1.xpose.msra.mxu0 0.0
        %6384 = vmatprep.subr.mxu0 0.0
        %6385 = vmatpush1.xpose.msra.mxu0 0.0
        %6386 = vmatprep.subr.mxu0 0.0
        %6387 = vmatpush1.xpose.msra.mxu0 0.0
        %6388 = vmatprep.subr.mxu0 0.0
        %6389 = vmatpush1.xpose.msra.mxu0 0.0
        %6390 = vmatprep.subr.mxu0 0.0
        %6391 = vmatpush1.xpose.msra.mxu0 0.0
        %6392 = vmatprep.subr.mxu0 0.0
        %6393 = vmatpush1.xpose.msra.mxu0 0.0
        %6394 = vmatprep.subr.mxu0 0.0
        %6395 = vmatpush1.xpose.msra.mxu0 0.0
        %6396 = vmatprep.subr.mxu0 0.0
        %6397 = vmatpush1.xpose.msra.mxu0 0.0
        %6398 = vmatprep.subr.mxu0 0.0
        %6399 = vmatpush1.xpose.msra.mxu0 0.0
        %6400 = vmatprep.mubr.f32.mxu0 0.0
        %6401 = vmatmul.mubr.f32.gmra.mrb[0].mxu0 %v6322
        %v6402 = vpop.f32.mrb[0].mxu0
        %v6403 = vadd.f32 0.0, %v6402
        %v6404 = vpop.f32.mrb[0].mxu0
        %6405 = vdwg.mxu0
        %v6406 = vsel %vm885, %v6270, 0
        %v6409 = vsel %vm885, %v6294, 0
        %v6412 = vsel %vm885, %v6295, 0
        %v6415 = vsel %vm885, %v6296, 0
        %v6418 = vsel %vm885, %v6297, 0
        %6420 = vmatprep.subr.mxu0 0.0
        %6421 = vmatpush1.xpose.msra.mxu0 %v6409
        %6422 = vmatprep.subr.mxu0 0.0
        %6423 = vmatpush1.xpose.msra.mxu0 %v6412
        %6424 = vmatprep.subr.mxu0 0.0
        %6425 = vmatpush1.xpose.msra.mxu0 %v6415
        %6426 = vmatprep.subr.mxu0 0.0
        %6427 = vmatpush1.xpose.msra.mxu0 %v6418
        %6428 = vmatprep.subr.mxu0 0.0
        %6429 = vmatpush1.xpose.msra.mxu0 0.0
        %6430 = vmatprep.subr.mxu0 0.0
        %6431 = vmatpush1.xpose.msra.mxu0 0.0
        %6432 = vmatprep.subr.mxu0 0.0
        %6433 = vmatpush1.xpose.msra.mxu0 0.0
        %6434 = vmatprep.subr.mxu0 0.0
        %6435 = vmatpush1.xpose.msra.mxu0 0.0
        %6436 = vmatprep.subr.mxu0 0.0
        %6437 = vmatpush1.xpose.msra.mxu0 0.0
        %6438 = vmatprep.subr.mxu0 0.0
        %6439 = vmatpush1.xpose.msra.mxu0 0.0
        %6440 = vmatprep.subr.mxu0 0.0
        %6441 = vmatpush1.xpose.msra.mxu0 0.0
        %6442 = vmatprep.subr.mxu0 0.0
        %6443 = vmatpush1.xpose.msra.mxu0 0.0
        %6444 = vmatprep.subr.mxu0 0.0
        %6445 = vmatpush1.xpose.msra.mxu0 0.0
        %6446 = vmatprep.subr.mxu0 0.0
        %6447 = vmatpush1.xpose.msra.mxu0 0.0
        %6448 = vmatprep.subr.mxu0 0.0
        %6449 = vmatpush1.xpose.msra.mxu0 0.0
        %6450 = vmatprep.subr.mxu0 0.0
        %6451 = vmatpush1.xpose.msra.mxu0 0.0
        %6452 = vmatprep.subr.mxu0 0.0
        %6453 = vmatpush1.xpose.msra.mxu0 0.0
        %6454 = vmatprep.subr.mxu0 0.0
        %6455 = vmatpush1.xpose.msra.mxu0 0.0
        %6456 = vmatprep.subr.mxu0 0.0
        %6457 = vmatpush1.xpose.msra.mxu0 0.0
        %6458 = vmatprep.subr.mxu0 0.0
        %6459 = vmatpush1.xpose.msra.mxu0 0.0
        %6460 = vmatprep.subr.mxu0 0.0
        %6461 = vmatpush1.xpose.msra.mxu0 0.0
        %6462 = vmatprep.subr.mxu0 0.0
        %6463 = vmatpush1.xpose.msra.mxu0 0.0
        %6464 = vmatprep.subr.mxu0 0.0
        %6465 = vmatpush1.xpose.msra.mxu0 0.0
        %6466 = vmatprep.subr.mxu0 0.0
        %6467 = vmatpush1.xpose.msra.mxu0 0.0
        %6468 = vmatprep.subr.mxu0 0.0
        %6469 = vmatpush1.xpose.msra.mxu0 0.0
        %6470 = vmatprep.subr.mxu0 0.0
        %6471 = vmatpush1.xpose.msra.mxu0 0.0
        %6472 = vmatprep.subr.mxu0 0.0
        %6473 = vmatpush1.xpose.msra.mxu0 0.0
        %6474 = vmatprep.subr.mxu0 0.0
        %6475 = vmatpush1.xpose.msra.mxu0 0.0
        %6476 = vmatprep.subr.mxu0 0.0
        %6477 = vmatpush1.xpose.msra.mxu0 0.0
        %6478 = vmatprep.subr.mxu0 0.0
        %6479 = vmatpush1.xpose.msra.mxu0 0.0
        %6480 = vmatprep.subr.mxu0 0.0
        %6481 = vmatpush1.xpose.msra.mxu0 0.0
        %6482 = vmatprep.subr.mxu0 0.0
        %6483 = vmatpush1.xpose.msra.mxu0 0.0
        %6484 = vmatprep.mubr.f32.mxu0 0.0
        %6485 = vmatmul.mubr.f32.gmra.mrb[0].mxu0 %v6406
        %v6486 = vpop.f32.mrb[0].mxu0
        %v6487 = vadd.f32 0.0, %v6486
        %v6488 = vpop.f32.mrb[0].mxu0
        %6489 = vdwg.mxu0
        %v6490 = vsel %vm885, %v6269, 0
        %v6493 = vsel %vm885, %v6298, 0
        %v6496 = vsel %vm885, %v6299, 0
        %v6499 = vsel %vm885, %v6300, 0
        %v6502 = vsel %vm885, %v6301, 0
        %6504 = vmatprep.subr.mxu0 0.0
        %6505 = vmatpush1.xpose.msra.mxu0 %v6493
        %6506 = vmatprep.subr.mxu0 0.0
        %6507 = vmatpush1.xpose.msra.mxu0 %v6496
        %6508 = vmatprep.subr.mxu0 0.0
        %6509 = vmatpush1.xpose.msra.mxu0 %v6499
        %6510 = vmatprep.subr.mxu0 0.0
        %6511 = vmatpush1.xpose.msra.mxu0 %v6502
        %6512 = vmatprep.subr.mxu0 0.0
        %6513 = vmatpush1.xpose.msra.mxu0 0.0
        %6514 = vmatprep.subr.mxu0 0.0
        %6515 = vmatpush1.xpose.msra.mxu0 0.0
        %6516 = vmatprep.subr.mxu0 0.0
        %6517 = vmatpush1.xpose.msra.mxu0 0.0
        %6518 = vmatprep.subr.mxu0 0.0
        %6519 = vmatpush1.xpose.msra.mxu0 0.0
        %6520 = vmatprep.subr.mxu0 0.0
        %6521 = vmatpush1.xpose.msra.mxu0 0.0
        %6522 = vmatprep.subr.mxu0 0.0
        %6523 = vmatpush1.xpose.msra.mxu0 0.0
        %6524 = vmatprep.subr.mxu0 0.0
        %6525 = vmatpush1.xpose.msra.mxu0 0.0
        %6526 = vmatprep.subr.mxu0 0.0
        %6527 = vmatpush1.xpose.msra.mxu0 0.0
        %6528 = vmatprep.subr.mxu0 0.0
        %6529 = vmatpush1.xpose.msra.mxu0 0.0
        %6530 = vmatprep.subr.mxu0 0.0
        %6531 = vmatpush1.xpose.msra.mxu0 0.0
        %6532 = vmatprep.subr.mxu0 0.0
        %6533 = vmatpush1.xpose.msra.mxu0 0.0
        %6534 = vmatprep.subr.mxu0 0.0
        %6535 = vmatpush1.xpose.msra.mxu0 0.0
        %6536 = vmatprep.subr.mxu0 0.0
        %6537 = vmatpush1.xpose.msra.mxu0 0.0
        %6538 = vmatprep.subr.mxu0 0.0
        %6539 = vmatpush1.xpose.msra.mxu0 0.0
        %6540 = vmatprep.subr.mxu0 0.0
        %6541 = vmatpush1.xpose.msra.mxu0 0.0
        %6542 = vmatprep.subr.mxu0 0.0
        %6543 = vmatpush1.xpose.msra.mxu0 0.0
        %6544 = vmatprep.subr.mxu0 0.0
        %6545 = vmatpush1.xpose.msra.mxu0 0.0
        %6546 = vmatprep.subr.mxu0 0.0
        %6547 = vmatpush1.xpose.msra.mxu0 0.0
        %6548 = vmatprep.subr.mxu0 0.0
        %6549 = vmatpush1.xpose.msra.mxu0 0.0
        %6550 = vmatprep.subr.mxu0 0.0
        %6551 = vmatpush1.xpose.msra.mxu0 0.0
        %6552 = vmatprep.subr.mxu0 0.0
        %6553 = vmatpush1.xpose.msra.mxu0 0.0
        %6554 = vmatprep.subr.mxu0 0.0
        %6555 = vmatpush1.xpose.msra.mxu0 0.0
        %6556 = vmatprep.subr.mxu0 0.0
        %6557 = vmatpush1.xpose.msra.mxu0 0.0
        %6558 = vmatprep.subr.mxu0 0.0
        %6559 = vmatpush1.xpose.msra.mxu0 0.0
        %6560 = vmatprep.subr.mxu0 0.0
        %6561 = vmatpush1.xpose.msra.mxu0 0.0
        %6562 = vmatprep.subr.mxu0 0.0
        %6563 = vmatpush1.xpose.msra.mxu0 0.0
        %6564 = vmatprep.subr.mxu0 0.0
        %6565 = vmatpush1.xpose.msra.mxu0 0.0
        %6566 = vmatprep.subr.mxu0 0.0
        %6567 = vmatpush1.xpose.msra.mxu0 0.0
        %6568 = vmatprep.mubr.f32.mxu0 0.0
        %6569 = vmatmul.mubr.f32.gmra.mrb[0].mxu0 %v6490
        %v6570 = vpop.f32.mrb[0].mxu0
        %v6571 = vadd.f32 0.0, %v6570
        %v6572 = vpop.f32.mrb[0].mxu0
        %6573 = vdwg.mxu0
        %v6574 = vsel %vm885, %v6271, 0
        %v6577 = vsel %vm885, %v6302, 0
        %v6580 = vsel %vm885, %v6303, 0
        %v6583 = vsel %vm885, %v6304, 0
        %v6586 = vsel %vm885, %v6305, 0
        %6588 = vmatprep.subr.mxu0 0.0
        %6589 = vmatpush1.xpose.msra.mxu0 %v6577
        %6590 = vmatprep.subr.mxu0 0.0
        %6591 = vmatpush1.xpose.msra.mxu0 %v6580
        %6592 = vmatprep.subr.mxu0 0.0
        %6593 = vmatpush1.xpose.msra.mxu0 %v6583
        %6594 = vmatprep.subr.mxu0 0.0
        %6595 = vmatpush1.xpose.msra.mxu0 %v6586
        %6596 = vmatprep.subr.mxu0 0.0
        %6597 = vmatpush1.xpose.msra.mxu0 0.0
        %6598 = vmatprep.subr.mxu0 0.0
        %6599 = vmatpush1.xpose.msra.mxu0 0.0
        %6600 = vmatprep.subr.mxu0 0.0
        %6601 = vmatpush1.xpose.msra.mxu0 0.0
        %6602 = vmatprep.subr.mxu0 0.0
        %6603 = vmatpush1.xpose.msra.mxu0 0.0
        %6604 = vmatprep.subr.mxu0 0.0
        %6605 = vmatpush1.xpose.msra.mxu0 0.0
        %6606 = vmatprep.subr.mxu0 0.0
        %6607 = vmatpush1.xpose.msra.mxu0 0.0
        %6608 = vmatprep.subr.mxu0 0.0
        %6609 = vmatpush1.xpose.msra.mxu0 0.0
        %6610 = vmatprep.subr.mxu0 0.0
        %6611 = vmatpush1.xpose.msra.mxu0 0.0
        %6612 = vmatprep.subr.mxu0 0.0
        %6613 = vmatpush1.xpose.msra.mxu0 0.0
        %6614 = vmatprep.subr.mxu0 0.0
        %6615 = vmatpush1.xpose.msra.mxu0 0.0
        %6616 = vmatprep.subr.mxu0 0.0
        %6617 = vmatpush1.xpose.msra.mxu0 0.0
        %6618 = vmatprep.subr.mxu0 0.0
        %6619 = vmatpush1.xpose.msra.mxu0 0.0
        %6620 = vmatprep.subr.mxu0 0.0
        %6621 = vmatpush1.xpose.msra.mxu0 0.0
        %6622 = vmatprep.subr.mxu0 0.0
        %6623 = vmatpush1.xpose.msra.mxu0 0.0
        %6624 = vmatprep.subr.mxu0 0.0
        %6625 = vmatpush1.xpose.msra.mxu0 0.0
        %6626 = vmatprep.subr.mxu0 0.0
        %6627 = vmatpush1.xpose.msra.mxu0 0.0
        %6628 = vmatprep.subr.mxu0 0.0
        %6629 = vmatpush1.xpose.msra.mxu0 0.0
        %6630 = vmatprep.subr.mxu0 0.0
        %6631 = vmatpush1.xpose.msra.mxu0 0.0
        %6632 = vmatprep.subr.mxu0 0.0
        %6633 = vmatpush1.xpose.msra.mxu0 0.0
        %6634 = vmatprep.subr.mxu0 0.0
        %6635 = vmatpush1.xpose.msra.mxu0 0.0
        %6636 = vmatprep.subr.mxu0 0.0
        %6637 = vmatpush1.xpose.msra.mxu0 0.0
        %6638 = vmatprep.subr.mxu0 0.0
        %6639 = vmatpush1.xpose.msra.mxu0 0.0
        %6640 = vmatprep.subr.mxu0 0.0
        %6641 = vmatpush1.xpose.msra.mxu0 0.0
        %6642 = vmatprep.subr.mxu0 0.0
        %6643 = vmatpush1.xpose.msra.mxu0 0.0
        %6644 = vmatprep.subr.mxu0 0.0
        %6645 = vmatpush1.xpose.msra.mxu0 0.0
        %6646 = vmatprep.subr.mxu0 0.0
        %6647 = vmatpush1.xpose.msra.mxu0 0.0
        %6648 = vmatprep.subr.mxu0 0.0
        %6649 = vmatpush1.xpose.msra.mxu0 0.0
        %6650 = vmatprep.subr.mxu0 0.0
        %6651 = vmatpush1.xpose.msra.mxu0 0.0
        %6652 = vmatprep.mubr.f32.mxu0 0.0
        %6653 = vmatmul.mubr.f32.gmra.mrb[0].mxu0 %v6574
        %v6654 = vpop.f32.mrb[0].mxu0
        %v6655 = vadd.f32 0.0, %v6654
        %v6656 = vpop.f32.mrb[0].mxu0
        %6657 = vdwg.mxu0
        %v6658 = vsel %vm885, %v6279, 0
        %v6661 = vsel %vm885, %v6306, 0
        %v6664 = vsel %vm885, %v6307, 0
        %v6667 = vsel %vm885, %v6308, 0
        %v6670 = vsel %vm885, %v6309, 0
        %6672 = vmatprep.subr.mxu0 0.0
        %6673 = vmatpush1.xpose.msra.mxu0 %v6661
        %6674 = vmatprep.subr.mxu0 0.0
        %6675 = vmatpush1.xpose.msra.mxu0 %v6664
        %6676 = vmatprep.subr.mxu0 0.0
        %6677 = vmatpush1.xpose.msra.mxu0 %v6667
        %6678 = vmatprep.subr.mxu0 0.0
        %6679 = vmatpush1.xpose.msra.mxu0 %v6670
        %6680 = vmatprep.subr.mxu0 0.0
        %6681 = vmatpush1.xpose.msra.mxu0 0.0
        %6682 = vmatprep.subr.mxu0 0.0
        %6683 = vmatpush1.xpose.msra.mxu0 0.0
        %6684 = vmatprep.subr.mxu0 0.0
        %6685 = vmatpush1.xpose.msra.mxu0 0.0
        %6686 = vmatprep.subr.mxu0 0.0
        %6687 = vmatpush1.xpose.msra.mxu0 0.0
        %6688 = vmatprep.subr.mxu0 0.0
        %6689 = vmatpush1.xpose.msra.mxu0 0.0
        %6690 = vmatprep.subr.mxu0 0.0
        %6691 = vmatpush1.xpose.msra.mxu0 0.0
        %6692 = vmatprep.subr.mxu0 0.0
        %6693 = vmatpush1.xpose.msra.mxu0 0.0
        %6694 = vmatprep.subr.mxu0 0.0
        %6695 = vmatpush1.xpose.msra.mxu0 0.0
        %6696 = vmatprep.subr.mxu0 0.0
        %6697 = vmatpush1.xpose.msra.mxu0 0.0
        %6698 = vmatprep.subr.mxu0 0.0
        %6699 = vmatpush1.xpose.msra.mxu0 0.0
        %6700 = vmatprep.subr.mxu0 0.0
        %6701 = vmatpush1.xpose.msra.mxu0 0.0
        %6702 = vmatprep.subr.mxu0 0.0
        %6703 = vmatpush1.xpose.msra.mxu0 0.0
        %6704 = vmatprep.subr.mxu0 0.0
        %6705 = vmatpush1.xpose.msra.mxu0 0.0
        %6706 = vmatprep.subr.mxu0 0.0
        %6707 = vmatpush1.xpose.msra.mxu0 0.0
        %6708 = vmatprep.subr.mxu0 0.0
        %6709 = vmatpush1.xpose.msra.mxu0 0.0
        %6710 = vmatprep.subr.mxu0 0.0
        %6711 = vmatpush1.xpose.msra.mxu0 0.0
        %6712 = vmatprep.subr.mxu0 0.0
        %6713 = vmatpush1.xpose.msra.mxu0 0.0
        %6714 = vmatprep.subr.mxu0 0.0
        %6715 = vmatpush1.xpose.msra.mxu0 0.0
        %6716 = vmatprep.subr.mxu0 0.0
        %6717 = vmatpush1.xpose.msra.mxu0 0.0
        %6718 = vmatprep.subr.mxu0 0.0
        %6719 = vmatpush1.xpose.msra.mxu0 0.0
        %6720 = vmatprep.subr.mxu0 0.0
        %6721 = vmatpush1.xpose.msra.mxu0 0.0
        %6722 = vmatprep.subr.mxu0 0.0
        %6723 = vmatpush1.xpose.msra.mxu0 0.0
        %6724 = vmatprep.subr.mxu0 0.0
        %6725 = vmatpush1.xpose.msra.mxu0 0.0
        %6726 = vmatprep.subr.mxu0 0.0
        %6727 = vmatpush1.xpose.msra.mxu0 0.0
        %6728 = vmatprep.subr.mxu0 0.0
        %6729 = vmatpush1.xpose.msra.mxu0 0.0
        %6730 = vmatprep.subr.mxu0 0.0
        %6731 = vmatpush1.xpose.msra.mxu0 0.0
        %6732 = vmatprep.subr.mxu0 0.0
        %6733 = vmatpush1.xpose.msra.mxu0 0.0
        %6734 = vmatprep.subr.mxu0 0.0
        %6735 = vmatpush1.xpose.msra.mxu0 0.0
        %6736 = vmatprep.mubr.f32.mxu0 0.0
        %6737 = vmatmul.mubr.f32.gmra.mrb[0].mxu0 %v6658
        %v6738 = vpop.f32.mrb[0].mxu0
        %v6739 = vadd.f32 0.0, %v6738
        %v6740 = vpop.f32.mrb[0].mxu0
        %6741 = vdwg.mxu0
        %v6742 = vsel %vm885, %v6287, 0
        %v6745 = vsel %vm885, %v6310, 0
        %v6748 = vsel %vm885, %v6311, 0
        %v6751 = vsel %vm885, %v6312, 0
        %v6754 = vsel %vm885, %v6313, 0
        %6756 = vmatprep.subr.mxu0 0.0
        %6757 = vmatpush1.xpose.msra.mxu0 %v6745
        %6758 = vmatprep.subr.mxu0 0.0
        %6759 = vmatpush1.xpose.msra.mxu0 %v6748
        %6760 = vmatprep.subr.mxu0 0.0
        %6761 = vmatpush1.xpose.msra.mxu0 %v6751
        %6762 = vmatprep.subr.mxu0 0.0
        %6763 = vmatpush1.xpose.msra.mxu0 %v6754
        %6764 = vmatprep.subr.mxu0 0.0
        %6765 = vmatpush1.xpose.msra.mxu0 0.0
        %6766 = vmatprep.subr.mxu0 0.0
        %6767 = vmatpush1.xpose.msra.mxu0 0.0
        %6768 = vmatprep.subr.mxu0 0.0
        %6769 = vmatpush1.xpose.msra.mxu0 0.0
        %6770 = vmatprep.subr.mxu0 0.0
        %6771 = vmatpush1.xpose.msra.mxu0 0.0
        %6772 = vmatprep.subr.mxu0 0.0
        %6773 = vmatpush1.xpose.msra.mxu0 0.0
        %6774 = vmatprep.subr.mxu0 0.0
        %6775 = vmatpush1.xpose.msra.mxu0 0.0
        %6776 = vmatprep.subr.mxu0 0.0
        %6777 = vmatpush1.xpose.msra.mxu0 0.0
        %6778 = vmatprep.subr.mxu0 0.0
        %6779 = vmatpush1.xpose.msra.mxu0 0.0
        %6780 = vmatprep.subr.mxu0 0.0
        %6781 = vmatpush1.xpose.msra.mxu0 0.0
        %6782 = vmatprep.subr.mxu0 0.0
        %6783 = vmatpush1.xpose.msra.mxu0 0.0
        %6784 = vmatprep.subr.mxu0 0.0
        %6785 = vmatpush1.xpose.msra.mxu0 0.0
        %6786 = vmatprep.subr.mxu0 0.0
        %6787 = vmatpush1.xpose.msra.mxu0 0.0
        %6788 = vmatprep.subr.mxu0 0.0
        %6789 = vmatpush1.xpose.msra.mxu0 0.0
        %6790 = vmatprep.subr.mxu0 0.0
        %6791 = vmatpush1.xpose.msra.mxu0 0.0
        %6792 = vmatprep.subr.mxu0 0.0
        %6793 = vmatpush1.xpose.msra.mxu0 0.0
        %6794 = vmatprep.subr.mxu0 0.0
        %6795 = vmatpush1.xpose.msra.mxu0 0.0
        %6796 = vmatprep.subr.mxu0 0.0
        %6797 = vmatpush1.xpose.msra.mxu0 0.0
        %6798 = vmatprep.subr.mxu0 0.0
        %6799 = vmatpush1.xpose.msra.mxu0 0.0
        %6800 = vmatprep.subr.mxu0 0.0
        %6801 = vmatpush1.xpose.msra.mxu0 0.0
        %6802 = vmatprep.subr.mxu0 0.0
        %6803 = vmatpush1.xpose.msra.mxu0 0.0
        %6804 = vmatprep.subr.mxu0 0.0
        %6805 = vmatpush1.xpose.msra.mxu0 0.0
        %6806 = vmatprep.subr.mxu0 0.0
        %6807 = vmatpush1.xpose.msra.mxu0 0.0
        %6808 = vmatprep.subr.mxu0 0.0
        %6809 = vmatpush1.xpose.msra.mxu0 0.0
        %6810 = vmatprep.subr.mxu0 0.0
        %6811 = vmatpush1.xpose.msra.mxu0 0.0
        %6812 = vmatprep.subr.mxu0 0.0
        %6813 = vmatpush1.xpose.msra.mxu0 0.0
        %6814 = vmatprep.subr.mxu0 0.0
        %6815 = vmatpush1.xpose.msra.mxu0 0.0
        %6816 = vmatprep.subr.mxu0 0.0
        %6817 = vmatpush1.xpose.msra.mxu0 0.0
        %6818 = vmatprep.subr.mxu0 0.0
        %6819 = vmatpush1.xpose.msra.mxu0 0.0
        %6820 = vmatprep.mubr.f32.mxu0 0.0
        %6821 = vmatmul.mubr.f32.gmra.mrb[0].mxu0 %v6742
        %v6822 = vpop.f32.mrb[0].mxu0
        %v6823 = vadd.f32 0.0, %v6822
        %v6824 = vpop.f32.mrb[0].mxu0
        %6825 = vdwg.mxu0
        %v6826 = vsel %vm885, %v6286, 0
        %v6829 = vsel %vm885, %v6314, 0
        %v6832 = vsel %vm885, %v6315, 0
        %v6835 = vsel %vm885, %v6316, 0
        %v6838 = vsel %vm885, %v6317, 0
        %6840 = vmatprep.subr.mxu0 0.0
        %6841 = vmatpush1.xpose.msra.mxu0 %v6829
        %6842 = vmatprep.subr.mxu0 0.0
        %6843 = vmatpush1.xpose.msra.mxu0 %v6832
        %6844 = vmatprep.subr.mxu0 0.0
        %6845 = vmatpush1.xpose.msra.mxu0 %v6835
        %6846 = vmatprep.subr.mxu0 0.0
        %6847 = vmatpush1.xpose.msra.mxu0 %v6838
        %6848 = vmatprep.subr.mxu0 0.0
        %6849 = vmatpush1.xpose.msra.mxu0 0.0
        %6850 = vmatprep.subr.mxu0 0.0
        %6851 = vmatpush1.xpose.msra.mxu0 0.0
        %6852 = vmatprep.subr.mxu0 0.0
        %6853 = vmatpush1.xpose.msra.mxu0 0.0
        %6854 = vmatprep.subr.mxu0 0.0
        %6855 = vmatpush1.xpose.msra.mxu0 0.0
        %6856 = vmatprep.subr.mxu0 0.0
        %6857 = vmatpush1.xpose.msra.mxu0 0.0
        %6858 = vmatprep.subr.mxu0 0.0
        %6859 = vmatpush1.xpose.msra.mxu0 0.0
        %6860 = vmatprep.subr.mxu0 0.0
        %6861 = vmatpush1.xpose.msra.mxu0 0.0
        %6862 = vmatprep.subr.mxu0 0.0
        %6863 = vmatpush1.xpose.msra.mxu0 0.0
        %6864 = vmatprep.subr.mxu0 0.0
        %6865 = vmatpush1.xpose.msra.mxu0 0.0
        %6866 = vmatprep.subr.mxu0 0.0
        %6867 = vmatpush1.xpose.msra.mxu0 0.0
        %6868 = vmatprep.subr.mxu0 0.0
        %6869 = vmatpush1.xpose.msra.mxu0 0.0
        %6870 = vmatprep.subr.mxu0 0.0
        %6871 = vmatpush1.xpose.msra.mxu0 0.0
        %6872 = vmatprep.subr.mxu0 0.0
        %6873 = vmatpush1.xpose.msra.mxu0 0.0
        %6874 = vmatprep.subr.mxu0 0.0
        %6875 = vmatpush1.xpose.msra.mxu0 0.0
        %6876 = vmatprep.subr.mxu0 0.0
        %6877 = vmatpush1.xpose.msra.mxu0 0.0
        %6878 = vmatprep.subr.mxu0 0.0
        %6879 = vmatpush1.xpose.msra.mxu0 0.0
        %6880 = vmatprep.subr.mxu0 0.0
        %6881 = vmatpush1.xpose.msra.mxu0 0.0
        %6882 = vmatprep.subr.mxu0 0.0
        %6883 = vmatpush1.xpose.msra.mxu0 0.0
        %6884 = vmatprep.subr.mxu0 0.0
        %6885 = vmatpush1.xpose.msra.mxu0 0.0
        %6886 = vmatprep.subr.mxu0 0.0
        %6887 = vmatpush1.xpose.msra.mxu0 0.0
        %6888 = vmatprep.subr.mxu0 0.0
        %6889 = vmatpush1.xpose.msra.mxu0 0.0
        %6890 = vmatprep.subr.mxu0 0.0
        %6891 = vmatpush1.xpose.msra.mxu0 0.0
        %6892 = vmatprep.subr.mxu0 0.0
        %6893 = vmatpush1.xpose.msra.mxu0 0.0
        %6894 = vmatprep.subr.mxu0 0.0
        %6895 = vmatpush1.xpose.msra.mxu0 0.0
        %6896 = vmatprep.subr.mxu0 0.0
        %6897 = vmatpush1.xpose.msra.mxu0 0.0
        %6898 = vmatprep.subr.mxu0 0.0
        %6899 = vmatpush1.xpose.msra.mxu0 0.0
        %6900 = vmatprep.subr.mxu0 0.0
        %6901 = vmatpush1.xpose.msra.mxu0 0.0
        %6902 = vmatprep.subr.mxu0 0.0
        %6903 = vmatpush1.xpose.msra.mxu0 0.0
        %6904 = vmatprep.mubr.f32.mxu0 0.0
        %6905 = vmatmul.mubr.f32.gmra.mrb[0].mxu0 %v6826
        %v6906 = vpop.f32.mrb[0].mxu0
        %v6907 = vadd.f32 0.0, %v6906
        %v6908 = vpop.f32.mrb[0].mxu0
        %6909 = vdwg.mxu0
        %v6910 = vsel %vm885, %v6288, 0
        %v6913 = vsel %vm885, %v6318, 0
        %v6916 = vsel %vm885, %v6319, 0
        %v6919 = vsel %vm885, %v6320, 0
        %v6922 = vsel %vm885, %v6321, 0
        %6924 = vmatprep.subr.mxu0 0.0
        %6925 = vmatpush1.xpose.msra.mxu0 %v6913
        %6926 = vmatprep.subr.mxu0 0.0
        %6927 = vmatpush1.xpose.msra.mxu0 %v6916
        %6928 = vmatprep.subr.mxu0 0.0
        %6929 = vmatpush1.xpose.msra.mxu0 %v6919
        %6930 = vmatprep.subr.mxu0 0.0
        %6931 = vmatpush1.xpose.msra.mxu0 %v6922
        %6932 = vmatprep.subr.mxu0 0.0
        %6933 = vmatpush1.xpose.msra.mxu0 0.0
        %6934 = vmatprep.subr.mxu0 0.0
        %6935 = vmatpush1.xpose.msra.mxu0 0.0
        %6936 = vmatprep.subr.mxu0 0.0
        %6937 = vmatpush1.xpose.msra.mxu0 0.0
        %6938 = vmatprep.subr.mxu0 0.0
        %6939 = vmatpush1.xpose.msra.mxu0 0.0
        %6940 = vmatprep.subr.mxu0 0.0
        %6941 = vmatpush1.xpose.msra.mxu0 0.0
        %6942 = vmatprep.subr.mxu0 0.0
        %6943 = vmatpush1.xpose.msra.mxu0 0.0
        %6944 = vmatprep.subr.mxu0 0.0
        %6945 = vmatpush1.xpose.msra.mxu0 0.0
        %6946 = vmatprep.subr.mxu0 0.0
        %6947 = vmatpush1.xpose.msra.mxu0 0.0
        %6948 = vmatprep.subr.mxu0 0.0
        %6949 = vmatpush1.xpose.msra.mxu0 0.0
        %6950 = vmatprep.subr.mxu0 0.0
        %6951 = vmatpush1.xpose.msra.mxu0 0.0
        %6952 = vmatprep.subr.mxu0 0.0
        %6953 = vmatpush1.xpose.msra.mxu0 0.0
        %6954 = vmatprep.subr.mxu0 0.0
        %6955 = vmatpush1.xpose.msra.mxu0 0.0
        %6956 = vmatprep.subr.mxu0 0.0
        %6957 = vmatpush1.xpose.msra.mxu0 0.0
        %6958 = vmatprep.subr.mxu0 0.0
        %6959 = vmatpush1.xpose.msra.mxu0 0.0
        %6960 = vmatprep.subr.mxu0 0.0
        %6961 = vmatpush1.xpose.msra.mxu0 0.0
        %6962 = vmatprep.subr.mxu0 0.0
        %6963 = vmatpush1.xpose.msra.mxu0 0.0
        %6964 = vmatprep.subr.mxu0 0.0
        %6965 = vmatpush1.xpose.msra.mxu0 0.0
        %6966 = vmatprep.subr.mxu0 0.0
        %6967 = vmatpush1.xpose.msra.mxu0 0.0
        %6968 = vmatprep.subr.mxu0 0.0
        %6969 = vmatpush1.xpose.msra.mxu0 0.0
        %6970 = vmatprep.subr.mxu0 0.0
        %6971 = vmatpush1.xpose.msra.mxu0 0.0
        %6972 = vmatprep.subr.mxu0 0.0
        %6973 = vmatpush1.xpose.msra.mxu0 0.0
        %6974 = vmatprep.subr.mxu0 0.0
        %6975 = vmatpush1.xpose.msra.mxu0 0.0
        %6976 = vmatprep.subr.mxu0 0.0
        %6977 = vmatpush1.xpose.msra.mxu0 0.0
        %6978 = vmatprep.subr.mxu0 0.0
        %6979 = vmatpush1.xpose.msra.mxu0 0.0
        %6980 = vmatprep.subr.mxu0 0.0
        %6981 = vmatpush1.xpose.msra.mxu0 0.0
        %6982 = vmatprep.subr.mxu0 0.0
        %6983 = vmatpush1.xpose.msra.mxu0 0.0
        %6984 = vmatprep.subr.mxu0 0.0
        %6985 = vmatpush1.xpose.msra.mxu0 0.0
        %6986 = vmatprep.subr.mxu0 0.0
        %6987 = vmatpush1.xpose.msra.mxu0 0.0
        %6988 = vmatprep.mubr.f32.mxu0 0.0
        %6989 = vmatmul.mubr.f32.gmra.mrb[0].mxu0 %v6910
        %v6990 = vpop.f32.mrb[0].mxu0
        %v6991 = vadd.f32 0.0, %v6990
        %v6992 = vpop.f32.mrb[0].mxu0
        %6993 = vdwg.mxu0
        %s6994 = scalar_lea.vmem [#allocation12], 768
        %v6995 = vld [vmem:[%s6994] sm:$0xff]
        %v6996 = vld [vmem:[%s6994 + $0x8] sm:$0xff]
        %v6997 = vld [vmem:[%s6994 + $0x10] sm:$0xff]
        %v6998 = vld [vmem:[%s6994 + $0x18] sm:$0xff]
        %v6999 = vld [vmem:[%s6994 + $0x20] sm:$0xff]
        %v7000 = vld [vmem:[%s6994 + $0x28] sm:$0xff]
        %v7001 = vld [vmem:[%s6994 + $0x30] sm:$0xff]
        %v7002 = vld [vmem:[%s6994 + $0x38] sm:$0xff]
        %v7003 = vld [vmem:[%s6994 + $0x40] sm:$0xff]
        %v7004 = vld [vmem:[%s6994 + $0x48] sm:$0xff]
        %v7005 = vld [vmem:[%s6994 + $0x50] sm:$0xff]
        %v7006 = vld [vmem:[%s6994 + $0x58] sm:$0xff]
        %v7007 = vld [vmem:[%s6994 + $0x60] sm:$0xff]
        %v7008 = vld [vmem:[%s6994 + $0x68] sm:$0xff]
        %v7009 = vld [vmem:[%s6994 + $0x70] sm:$0xff]
        %v7010 = vld [vmem:[%s6994 + $0x78] sm:$0xff]
        %v7011 = vld [vmem:[%s6994 + $0x80] sm:$0xff]
        %v7012 = vld [vmem:[%s6994 + $0x88] sm:$0xff]
        %v7013 = vld [vmem:[%s6994 + $0x90] sm:$0xff]
        %v7014 = vld [vmem:[%s6994 + $0x98] sm:$0xff]
        %v7015 = vld [vmem:[%s6994 + $0xa0] sm:$0xff]
        %v7016 = vld [vmem:[%s6994 + $0xa8] sm:$0xff]
        %v7017 = vld [vmem:[%s6994 + $0xb0] sm:$0xff]
        %v7018 = vld [vmem:[%s6994 + $0xb8] sm:$0xff]
        %v7019 = vld [vmem:[%s6994 + $0xc0] sm:$0xff]
        %v7020 = vld [vmem:[%s6994 + $0xc8] sm:$0xff]
        %v7021 = vld [vmem:[%s6994 + $0xd0] sm:$0xff]
        %v7022 = vld [vmem:[%s6994 + $0xd8] sm:$0xff]
        %v7023 = vld [vmem:[%s6994 + $0xe0] sm:$0xff]
        %v7024 = vld [vmem:[%s6994 + $0xe8] sm:$0xff]
        %v7025 = vld [vmem:[%s6994 + $0xf0] sm:$0xff]
        %v7026 = vld [vmem:[%s6994 + $0xf8] sm:$0xff]
        %v7028 = vsel %vm885, %v6995, 0
        %v7031 = vsel %vm885, %v6996, 0
        %v7034 = vsel %vm885, %v6997, 0
        %v7037 = vsel %vm885, %v6998, 0
        %7039 = vmatprep.subr.mxu0 0.0
        %7040 = vmatpush1.xpose.msra.mxu0 %v7028
        %7041 = vmatprep.subr.mxu0 0.0
        %7042 = vmatpush1.xpose.msra.mxu0 %v7031
        %7043 = vmatprep.subr.mxu0 0.0
        %7044 = vmatpush1.xpose.msra.mxu0 %v7034
        %7045 = vmatprep.subr.mxu0 0.0
        %7046 = vmatpush1.xpose.msra.mxu0 %v7037
        %7047 = vmatprep.subr.mxu0 0.0
        %7048 = vmatpush1.xpose.msra.mxu0 0.0
        %7049 = vmatprep.subr.mxu0 0.0
        %7050 = vmatpush1.xpose.msra.mxu0 0.0
        %7051 = vmatprep.subr.mxu0 0.0
        %7052 = vmatpush1.xpose.msra.mxu0 0.0
        %7053 = vmatprep.subr.mxu0 0.0
        %7054 = vmatpush1.xpose.msra.mxu0 0.0
        %7055 = vmatprep.subr.mxu0 0.0
        %7056 = vmatpush1.xpose.msra.mxu0 0.0
        %7057 = vmatprep.subr.mxu0 0.0
        %7058 = vmatpush1.xpose.msra.mxu0 0.0
        %7059 = vmatprep.subr.mxu0 0.0
        %7060 = vmatpush1.xpose.msra.mxu0 0.0
        %7061 = vmatprep.subr.mxu0 0.0
        %7062 = vmatpush1.xpose.msra.mxu0 0.0
        %7063 = vmatprep.subr.mxu0 0.0
        %7064 = vmatpush1.xpose.msra.mxu0 0.0
        %7065 = vmatprep.subr.mxu0 0.0
        %7066 = vmatpush1.xpose.msra.mxu0 0.0
        %7067 = vmatprep.subr.mxu0 0.0
        %7068 = vmatpush1.xpose.msra.mxu0 0.0
        %7069 = vmatprep.subr.mxu0 0.0
        %7070 = vmatpush1.xpose.msra.mxu0 0.0
        %7071 = vmatprep.subr.mxu0 0.0
        %7072 = vmatpush1.xpose.msra.mxu0 0.0
        %7073 = vmatprep.subr.mxu0 0.0
        %7074 = vmatpush1.xpose.msra.mxu0 0.0
        %7075 = vmatprep.subr.mxu0 0.0
        %7076 = vmatpush1.xpose.msra.mxu0 0.0
        %7077 = vmatprep.subr.mxu0 0.0
        %7078 = vmatpush1.xpose.msra.mxu0 0.0
        %7079 = vmatprep.subr.mxu0 0.0
        %7080 = vmatpush1.xpose.msra.mxu0 0.0
        %7081 = vmatprep.subr.mxu0 0.0
        %7082 = vmatpush1.xpose.msra.mxu0 0.0
        %7083 = vmatprep.subr.mxu0 0.0
        %7084 = vmatpush1.xpose.msra.mxu0 0.0
        %7085 = vmatprep.subr.mxu0 0.0
        %7086 = vmatpush1.xpose.msra.mxu0 0.0
        %7087 = vmatprep.subr.mxu0 0.0
        %7088 = vmatpush1.xpose.msra.mxu0 0.0
        %7089 = vmatprep.subr.mxu0 0.0
        %7090 = vmatpush1.xpose.msra.mxu0 0.0
        %7091 = vmatprep.subr.mxu0 0.0
        %7092 = vmatpush1.xpose.msra.mxu0 0.0
        %7093 = vmatprep.subr.mxu0 0.0
        %7094 = vmatpush1.xpose.msra.mxu0 0.0
        %7095 = vmatprep.subr.mxu0 0.0
        %7096 = vmatpush1.xpose.msra.mxu0 0.0
        %7097 = vmatprep.subr.mxu0 0.0
        %7098 = vmatpush1.xpose.msra.mxu0 0.0
        %7099 = vmatprep.subr.mxu0 0.0
        %7100 = vmatpush1.xpose.msra.mxu0 0.0
        %7101 = vmatprep.subr.mxu0 0.0
        %7102 = vmatpush1.xpose.msra.mxu0 0.0
        %7103 = vmatprep.mubr.f32.mxu0 0.0
        %7104 = vmatmul.mubr.f32.gmra.mrb[0].mxu0 %v6322
        %v7105 = vpop.f32.mrb[0].mxu0
        %v7106 = vadd.f32 0.0, %v7105
        %v7107 = vpop.f32.mrb[0].mxu0
        %7108 = vdwg.mxu0
        %v7110 = vsel %vm885, %v6999, 0
        %v7113 = vsel %vm885, %v7000, 0
        %v7116 = vsel %vm885, %v7001, 0
        %v7119 = vsel %vm885, %v7002, 0
        %7121 = vmatprep.subr.mxu0 0.0
        %7122 = vmatpush1.xpose.msra.mxu0 %v7110
        %7123 = vmatprep.subr.mxu0 0.0
        %7124 = vmatpush1.xpose.msra.mxu0 %v7113
        %7125 = vmatprep.subr.mxu0 0.0
        %7126 = vmatpush1.xpose.msra.mxu0 %v7116
        %7127 = vmatprep.subr.mxu0 0.0
        %7128 = vmatpush1.xpose.msra.mxu0 %v7119
        %7129 = vmatprep.subr.mxu0 0.0
        %7130 = vmatpush1.xpose.msra.mxu0 0.0
        %7131 = vmatprep.subr.mxu0 0.0
        %7132 = vmatpush1.xpose.msra.mxu0 0.0
        %7133 = vmatprep.subr.mxu0 0.0
        %7134 = vmatpush1.xpose.msra.mxu0 0.0
        %7135 = vmatprep.subr.mxu0 0.0
        %7136 = vmatpush1.xpose.msra.mxu0 0.0
        %7137 = vmatprep.subr.mxu0 0.0
        %7138 = vmatpush1.xpose.msra.mxu0 0.0
        %7139 = vmatprep.subr.mxu0 0.0
        %7140 = vmatpush1.xpose.msra.mxu0 0.0
        %7141 = vmatprep.subr.mxu0 0.0
        %7142 = vmatpush1.xpose.msra.mxu0 0.0
        %7143 = vmatprep.subr.mxu0 0.0
        %7144 = vmatpush1.xpose.msra.mxu0 0.0
        %7145 = vmatprep.subr.mxu0 0.0
        %7146 = vmatpush1.xpose.msra.mxu0 0.0
        %7147 = vmatprep.subr.mxu0 0.0
        %7148 = vmatpush1.xpose.msra.mxu0 0.0
        %7149 = vmatprep.subr.mxu0 0.0
        %7150 = vmatpush1.xpose.msra.mxu0 0.0
        %7151 = vmatprep.subr.mxu0 0.0
        %7152 = vmatpush1.xpose.msra.mxu0 0.0
        %7153 = vmatprep.subr.mxu0 0.0
        %7154 = vmatpush1.xpose.msra.mxu0 0.0
        %7155 = vmatprep.subr.mxu0 0.0
        %7156 = vmatpush1.xpose.msra.mxu0 0.0
        %7157 = vmatprep.subr.mxu0 0.0
        %7158 = vmatpush1.xpose.msra.mxu0 0.0
        %7159 = vmatprep.subr.mxu0 0.0
        %7160 = vmatpush1.xpose.msra.mxu0 0.0
        %7161 = vmatprep.subr.mxu0 0.0
        %7162 = vmatpush1.xpose.msra.mxu0 0.0
        %7163 = vmatprep.subr.mxu0 0.0
        %7164 = vmatpush1.xpose.msra.mxu0 0.0
        %7165 = vmatprep.subr.mxu0 0.0
        %7166 = vmatpush1.xpose.msra.mxu0 0.0
        %7167 = vmatprep.subr.mxu0 0.0
        %7168 = vmatpush1.xpose.msra.mxu0 0.0
        %7169 = vmatprep.subr.mxu0 0.0
        %7170 = vmatpush1.xpose.msra.mxu0 0.0
        %7171 = vmatprep.subr.mxu0 0.0
        %7172 = vmatpush1.xpose.msra.mxu0 0.0
        %7173 = vmatprep.subr.mxu0 0.0
        %7174 = vmatpush1.xpose.msra.mxu0 0.0
        %7175 = vmatprep.subr.mxu0 0.0
        %7176 = vmatpush1.xpose.msra.mxu0 0.0
        %7177 = vmatprep.subr.mxu0 0.0
        %7178 = vmatpush1.xpose.msra.mxu0 0.0
        %7179 = vmatprep.subr.mxu0 0.0
        %7180 = vmatpush1.xpose.msra.mxu0 0.0
        %7181 = vmatprep.subr.mxu0 0.0
        %7182 = vmatpush1.xpose.msra.mxu0 0.0
        %7183 = vmatprep.subr.mxu0 0.0
        %7184 = vmatpush1.xpose.msra.mxu0 0.0
        %7185 = vmatprep.mubr.f32.mxu0 0.0
        %7186 = vmatmul.mubr.f32.gmra.mrb[0].mxu0 %v6406
        %v7187 = vpop.f32.mrb[0].mxu0
        %v7188 = vadd.f32 0.0, %v7187
        %v7189 = vpop.f32.mrb[0].mxu0
        %7190 = vdwg.mxu0
        %v7192 = vsel %vm885, %v7003, 0
        %v7195 = vsel %vm885, %v7004, 0
        %v7198 = vsel %vm885, %v7005, 0
        %v7201 = vsel %vm885, %v7006, 0
        %7203 = vmatprep.subr.mxu0 0.0
        %7204 = vmatpush1.xpose.msra.mxu0 %v7192
        %7205 = vmatprep.subr.mxu0 0.0
        %7206 = vmatpush1.xpose.msra.mxu0 %v7195
        %7207 = vmatprep.subr.mxu0 0.0
        %7208 = vmatpush1.xpose.msra.mxu0 %v7198
        %7209 = vmatprep.subr.mxu0 0.0
        %7210 = vmatpush1.xpose.msra.mxu0 %v7201
        %7211 = vmatprep.subr.mxu0 0.0
        %7212 = vmatpush1.xpose.msra.mxu0 0.0
        %7213 = vmatprep.subr.mxu0 0.0
        %7214 = vmatpush1.xpose.msra.mxu0 0.0
        %7215 = vmatprep.subr.mxu0 0.0
        %7216 = vmatpush1.xpose.msra.mxu0 0.0
        %7217 = vmatprep.subr.mxu0 0.0
        %7218 = vmatpush1.xpose.msra.mxu0 0.0
        %7219 = vmatprep.subr.mxu0 0.0
        %7220 = vmatpush1.xpose.msra.mxu0 0.0
        %7221 = vmatprep.subr.mxu0 0.0
        %7222 = vmatpush1.xpose.msra.mxu0 0.0
        %7223 = vmatprep.subr.mxu0 0.0
        %7224 = vmatpush1.xpose.msra.mxu0 0.0
        %7225 = vmatprep.subr.mxu0 0.0
        %7226 = vmatpush1.xpose.msra.mxu0 0.0
        %7227 = vmatprep.subr.mxu0 0.0
        %7228 = vmatpush1.xpose.msra.mxu0 0.0
        %7229 = vmatprep.subr.mxu0 0.0
        %7230 = vmatpush1.xpose.msra.mxu0 0.0
        %7231 = vmatprep.subr.mxu0 0.0
        %7232 = vmatpush1.xpose.msra.mxu0 0.0
        %7233 = vmatprep.subr.mxu0 0.0
        %7234 = vmatpush1.xpose.msra.mxu0 0.0
        %7235 = vmatprep.subr.mxu0 0.0
        %7236 = vmatpush1.xpose.msra.mxu0 0.0
        %7237 = vmatprep.subr.mxu0 0.0
        %7238 = vmatpush1.xpose.msra.mxu0 0.0
        %7239 = vmatprep.subr.mxu0 0.0
        %7240 = vmatpush1.xpose.msra.mxu0 0.0
        %7241 = vmatprep.subr.mxu0 0.0
        %7242 = vmatpush1.xpose.msra.mxu0 0.0
        %7243 = vmatprep.subr.mxu0 0.0
        %7244 = vmatpush1.xpose.msra.mxu0 0.0
        %7245 = vmatprep.subr.mxu0 0.0
        %7246 = vmatpush1.xpose.msra.mxu0 0.0
        %7247 = vmatprep.subr.mxu0 0.0
        %7248 = vmatpush1.xpose.msra.mxu0 0.0
        %7249 = vmatprep.subr.mxu0 0.0
        %7250 = vmatpush1.xpose.msra.mxu0 0.0
        %7251 = vmatprep.subr.mxu0 0.0
        %7252 = vmatpush1.xpose.msra.mxu0 0.0
        %7253 = vmatprep.subr.mxu0 0.0
        %7254 = vmatpush1.xpose.msra.mxu0 0.0
        %7255 = vmatprep.subr.mxu0 0.0
        %7256 = vmatpush1.xpose.msra.mxu0 0.0
        %7257 = vmatprep.subr.mxu0 0.0
        %7258 = vmatpush1.xpose.msra.mxu0 0.0
        %7259 = vmatprep.subr.mxu0 0.0
        %7260 = vmatpush1.xpose.msra.mxu0 0.0
        %7261 = vmatprep.subr.mxu0 0.0
        %7262 = vmatpush1.xpose.msra.mxu0 0.0
        %7263 = vmatprep.subr.mxu0 0.0
        %7264 = vmatpush1.xpose.msra.mxu0 0.0
        %7265 = vmatprep.subr.mxu0 0.0
        %7266 = vmatpush1.xpose.msra.mxu0 0.0
        %7267 = vmatprep.mubr.f32.mxu0 0.0
        %7268 = vmatmul.mubr.f32.gmra.mrb[0].mxu0 %v6490
        %v7269 = vpop.f32.mrb[0].mxu0
        %v7270 = vadd.f32 0.0, %v7269
        %v7271 = vpop.f32.mrb[0].mxu0
        %7272 = vdwg.mxu0
        %v7274 = vsel %vm885, %v7007, 0
        %v7277 = vsel %vm885, %v7008, 0
        %v7280 = vsel %vm885, %v7009, 0
        %v7283 = vsel %vm885, %v7010, 0
        %7285 = vmatprep.subr.mxu0 0.0
        %7286 = vmatpush1.xpose.msra.mxu0 %v7274
        %7287 = vmatprep.subr.mxu0 0.0
        %7288 = vmatpush1.xpose.msra.mxu0 %v7277
        %7289 = vmatprep.subr.mxu0 0.0
        %7290 = vmatpush1.xpose.msra.mxu0 %v7280
        %7291 = vmatprep.subr.mxu0 0.0
        %7292 = vmatpush1.xpose.msra.mxu0 %v7283
        %7293 = vmatprep.subr.mxu0 0.0
        %7294 = vmatpush1.xpose.msra.mxu0 0.0
        %7295 = vmatprep.subr.mxu0 0.0
        %7296 = vmatpush1.xpose.msra.mxu0 0.0
        %7297 = vmatprep.subr.mxu0 0.0
        %7298 = vmatpush1.xpose.msra.mxu0 0.0
        %7299 = vmatprep.subr.mxu0 0.0
        %7300 = vmatpush1.xpose.msra.mxu0 0.0
        %7301 = vmatprep.subr.mxu0 0.0
        %7302 = vmatpush1.xpose.msra.mxu0 0.0
        %7303 = vmatprep.subr.mxu0 0.0
        %7304 = vmatpush1.xpose.msra.mxu0 0.0
        %7305 = vmatprep.subr.mxu0 0.0
        %7306 = vmatpush1.xpose.msra.mxu0 0.0
        %7307 = vmatprep.subr.mxu0 0.0
        %7308 = vmatpush1.xpose.msra.mxu0 0.0
        %7309 = vmatprep.subr.mxu0 0.0
        %7310 = vmatpush1.xpose.msra.mxu0 0.0
        %7311 = vmatprep.subr.mxu0 0.0
        %7312 = vmatpush1.xpose.msra.mxu0 0.0
        %7313 = vmatprep.subr.mxu0 0.0
        %7314 = vmatpush1.xpose.msra.mxu0 0.0
        %7315 = vmatprep.subr.mxu0 0.0
        %7316 = vmatpush1.xpose.msra.mxu0 0.0
        %7317 = vmatprep.subr.mxu0 0.0
        %7318 = vmatpush1.xpose.msra.mxu0 0.0
        %7319 = vmatprep.subr.mxu0 0.0
        %7320 = vmatpush1.xpose.msra.mxu0 0.0
        %7321 = vmatprep.subr.mxu0 0.0
        %7322 = vmatpush1.xpose.msra.mxu0 0.0
        %7323 = vmatprep.subr.mxu0 0.0
        %7324 = vmatpush1.xpose.msra.mxu0 0.0
        %7325 = vmatprep.subr.mxu0 0.0
        %7326 = vmatpush1.xpose.msra.mxu0 0.0
        %7327 = vmatprep.subr.mxu0 0.0
        %7328 = vmatpush1.xpose.msra.mxu0 0.0
        %7329 = vmatprep.subr.mxu0 0.0
        %7330 = vmatpush1.xpose.msra.mxu0 0.0
        %7331 = vmatprep.subr.mxu0 0.0
        %7332 = vmatpush1.xpose.msra.mxu0 0.0
        %7333 = vmatprep.subr.mxu0 0.0
        %7334 = vmatpush1.xpose.msra.mxu0 0.0
        %7335 = vmatprep.subr.mxu0 0.0
        %7336 = vmatpush1.xpose.msra.mxu0 0.0
        %7337 = vmatprep.subr.mxu0 0.0
        %7338 = vmatpush1.xpose.msra.mxu0 0.0
        %7339 = vmatprep.subr.mxu0 0.0
        %7340 = vmatpush1.xpose.msra.mxu0 0.0
        %7341 = vmatprep.subr.mxu0 0.0
        %7342 = vmatpush1.xpose.msra.mxu0 0.0
        %7343 = vmatprep.subr.mxu0 0.0
        %7344 = vmatpush1.xpose.msra.mxu0 0.0
        %7345 = vmatprep.subr.mxu0 0.0
        %7346 = vmatpush1.xpose.msra.mxu0 0.0
        %7347 = vmatprep.subr.mxu0 0.0
        %7348 = vmatpush1.xpose.msra.mxu0 0.0
        %7349 = vmatprep.mubr.f32.mxu0 0.0
        %7350 = vmatmul.mubr.f32.gmra.mrb[0].mxu0 %v6574
        %v7351 = vpop.f32.mrb[0].mxu0
        %v7352 = vadd.f32 0.0, %v7351
        %v7353 = vpop.f32.mrb[0].mxu0
        %7354 = vdwg.mxu0
        %v7356 = vsel %vm885, %v7011, 0
        %v7359 = vsel %vm885, %v7012, 0
        %v7362 = vsel %vm885, %v7013, 0
        %v7365 = vsel %vm885, %v7014, 0
        %7367 = vmatprep.subr.mxu0 0.0
        %7368 = vmatpush1.xpose.msra.mxu0 %v7356
        %7369 = vmatprep.subr.mxu0 0.0
        %7370 = vmatpush1.xpose.msra.mxu0 %v7359
        %7371 = vmatprep.subr.mxu0 0.0
        %7372 = vmatpush1.xpose.msra.mxu0 %v7362
        %7373 = vmatprep.subr.mxu0 0.0
        %7374 = vmatpush1.xpose.msra.mxu0 %v7365
        %7375 = vmatprep.subr.mxu0 0.0
        %7376 = vmatpush1.xpose.msra.mxu0 0.0
        %7377 = vmatprep.subr.mxu0 0.0
        %7378 = vmatpush1.xpose.msra.mxu0 0.0
        %7379 = vmatprep.subr.mxu0 0.0
        %7380 = vmatpush1.xpose.msra.mxu0 0.0
        %7381 = vmatprep.subr.mxu0 0.0
        %7382 = vmatpush1.xpose.msra.mxu0 0.0
        %7383 = vmatprep.subr.mxu0 0.0
        %7384 = vmatpush1.xpose.msra.mxu0 0.0
        %7385 = vmatprep.subr.mxu0 0.0
        %7386 = vmatpush1.xpose.msra.mxu0 0.0
        %7387 = vmatprep.subr.mxu0 0.0
        %7388 = vmatpush1.xpose.msra.mxu0 0.0
        %7389 = vmatprep.subr.mxu0 0.0
        %7390 = vmatpush1.xpose.msra.mxu0 0.0
        %7391 = vmatprep.subr.mxu0 0.0
        %7392 = vmatpush1.xpose.msra.mxu0 0.0
        %7393 = vmatprep.subr.mxu0 0.0
        %7394 = vmatpush1.xpose.msra.mxu0 0.0
        %7395 = vmatprep.subr.mxu0 0.0
        %7396 = vmatpush1.xpose.msra.mxu0 0.0
        %7397 = vmatprep.subr.mxu0 0.0
        %7398 = vmatpush1.xpose.msra.mxu0 0.0
        %7399 = vmatprep.subr.mxu0 0.0
        %7400 = vmatpush1.xpose.msra.mxu0 0.0
        %7401 = vmatprep.subr.mxu0 0.0
        %7402 = vmatpush1.xpose.msra.mxu0 0.0
        %7403 = vmatprep.subr.mxu0 0.0
        %7404 = vmatpush1.xpose.msra.mxu0 0.0
        %7405 = vmatprep.subr.mxu0 0.0
        %7406 = vmatpush1.xpose.msra.mxu0 0.0
        %7407 = vmatprep.subr.mxu0 0.0
        %7408 = vmatpush1.xpose.msra.mxu0 0.0
        %7409 = vmatprep.subr.mxu0 0.0
        %7410 = vmatpush1.xpose.msra.mxu0 0.0
        %7411 = vmatprep.subr.mxu0 0.0
        %7412 = vmatpush1.xpose.msra.mxu0 0.0
        %7413 = vmatprep.subr.mxu0 0.0
        %7414 = vmatpush1.xpose.msra.mxu0 0.0
        %7415 = vmatprep.subr.mxu0 0.0
        %7416 = vmatpush1.xpose.msra.mxu0 0.0
        %7417 = vmatprep.subr.mxu0 0.0
        %7418 = vmatpush1.xpose.msra.mxu0 0.0
        %7419 = vmatprep.subr.mxu0 0.0
        %7420 = vmatpush1.xpose.msra.mxu0 0.0
        %7421 = vmatprep.subr.mxu0 0.0
        %7422 = vmatpush1.xpose.msra.mxu0 0.0
        %7423 = vmatprep.subr.mxu0 0.0
        %7424 = vmatpush1.xpose.msra.mxu0 0.0
        %7425 = vmatprep.subr.mxu0 0.0
        %7426 = vmatpush1.xpose.msra.mxu0 0.0
        %7427 = vmatprep.subr.mxu0 0.0
        %7428 = vmatpush1.xpose.msra.mxu0 0.0
        %7429 = vmatprep.subr.mxu0 0.0
        %7430 = vmatpush1.xpose.msra.mxu0 0.0
        %7431 = vmatprep.mubr.f32.mxu0 0.0
        %7432 = vmatmul.mubr.f32.gmra.mrb[0].mxu0 %v6658
        %v7433 = vpop.f32.mrb[0].mxu0
        %v7434 = vadd.f32 0.0, %v7433
        %v7435 = vpop.f32.mrb[0].mxu0
        %7436 = vdwg.mxu0
        %v7438 = vsel %vm885, %v7015, 0
        %v7441 = vsel %vm885, %v7016, 0
        %v7444 = vsel %vm885, %v7017, 0
        %v7447 = vsel %vm885, %v7018, 0
        %7449 = vmatprep.subr.mxu0 0.0
        %7450 = vmatpush1.xpose.msra.mxu0 %v7438
        %7451 = vmatprep.subr.mxu0 0.0
        %7452 = vmatpush1.xpose.msra.mxu0 %v7441
        %7453 = vmatprep.subr.mxu0 0.0
        %7454 = vmatpush1.xpose.msra.mxu0 %v7444
        %7455 = vmatprep.subr.mxu0 0.0
        %7456 = vmatpush1.xpose.msra.mxu0 %v7447
        %7457 = vmatprep.subr.mxu0 0.0
        %7458 = vmatpush1.xpose.msra.mxu0 0.0
        %7459 = vmatprep.subr.mxu0 0.0
        %7460 = vmatpush1.xpose.msra.mxu0 0.0
        %7461 = vmatprep.subr.mxu0 0.0
        %7462 = vmatpush1.xpose.msra.mxu0 0.0
        %7463 = vmatprep.subr.mxu0 0.0
        %7464 = vmatpush1.xpose.msra.mxu0 0.0
        %7465 = vmatprep.subr.mxu0 0.0
        %7466 = vmatpush1.xpose.msra.mxu0 0.0
        %7467 = vmatprep.subr.mxu0 0.0
        %7468 = vmatpush1.xpose.msra.mxu0 0.0
        %7469 = vmatprep.subr.mxu0 0.0
        %7470 = vmatpush1.xpose.msra.mxu0 0.0
        %7471 = vmatprep.subr.mxu0 0.0
        %7472 = vmatpush1.xpose.msra.mxu0 0.0
        %7473 = vmatprep.subr.mxu0 0.0
        %7474 = vmatpush1.xpose.msra.mxu0 0.0
        %7475 = vmatprep.subr.mxu0 0.0
        %7476 = vmatpush1.xpose.msra.mxu0 0.0
        %7477 = vmatprep.subr.mxu0 0.0
        %7478 = vmatpush1.xpose.msra.mxu0 0.0
        %7479 = vmatprep.subr.mxu0 0.0
        %7480 = vmatpush1.xpose.msra.mxu0 0.0
        %7481 = vmatprep.subr.mxu0 0.0
        %7482 = vmatpush1.xpose.msra.mxu0 0.0
        %7483 = vmatprep.subr.mxu0 0.0
        %7484 = vmatpush1.xpose.msra.mxu0 0.0
        %7485 = vmatprep.subr.mxu0 0.0
        %7486 = vmatpush1.xpose.msra.mxu0 0.0
        %7487 = vmatprep.subr.mxu0 0.0
        %7488 = vmatpush1.xpose.msra.mxu0 0.0
        %7489 = vmatprep.subr.mxu0 0.0
        %7490 = vmatpush1.xpose.msra.mxu0 0.0
        %7491 = vmatprep.subr.mxu0 0.0
        %7492 = vmatpush1.xpose.msra.mxu0 0.0
        %7493 = vmatprep.subr.mxu0 0.0
        %7494 = vmatpush1.xpose.msra.mxu0 0.0
        %7495 = vmatprep.subr.mxu0 0.0
        %7496 = vmatpush1.xpose.msra.mxu0 0.0
        %7497 = vmatprep.subr.mxu0 0.0
        %7498 = vmatpush1.xpose.msra.mxu0 0.0
        %7499 = vmatprep.subr.mxu0 0.0
        %7500 = vmatpush1.xpose.msra.mxu0 0.0
        %7501 = vmatprep.subr.mxu0 0.0
        %7502 = vmatpush1.xpose.msra.mxu0 0.0
        %7503 = vmatprep.subr.mxu0 0.0
        %7504 = vmatpush1.xpose.msra.mxu0 0.0
        %7505 = vmatprep.subr.mxu0 0.0
        %7506 = vmatpush1.xpose.msra.mxu0 0.0
        %7507 = vmatprep.subr.mxu0 0.0
        %7508 = vmatpush1.xpose.msra.mxu0 0.0
        %7509 = vmatprep.subr.mxu0 0.0
        %7510 = vmatpush1.xpose.msra.mxu0 0.0
        %7511 = vmatprep.subr.mxu0 0.0
        %7512 = vmatpush1.xpose.msra.mxu0 0.0
        %7513 = vmatprep.mubr.f32.mxu0 0.0
        %7514 = vmatmul.mubr.f32.gmra.mrb[0].mxu0 %v6742
        %v7515 = vpop.f32.mrb[0].mxu0
        %v7516 = vadd.f32 0.0, %v7515
        %v7517 = vpop.f32.mrb[0].mxu0
        %7518 = vdwg.mxu0
        %v7520 = vsel %vm885, %v7019, 0
        %v7523 = vsel %vm885, %v7020, 0
        %v7526 = vsel %vm885, %v7021, 0
        %v7529 = vsel %vm885, %v7022, 0
        %7531 = vmatprep.subr.mxu0 0.0
        %7532 = vmatpush1.xpose.msra.mxu0 %v7520
        %7533 = vmatprep.subr.mxu0 0.0
        %7534 = vmatpush1.xpose.msra.mxu0 %v7523
        %7535 = vmatprep.subr.mxu0 0.0
        %7536 = vmatpush1.xpose.msra.mxu0 %v7526
        %7537 = vmatprep.subr.mxu0 0.0
        %7538 = vmatpush1.xpose.msra.mxu0 %v7529
        %7539 = vmatprep.subr.mxu0 0.0
        %7540 = vmatpush1.xpose.msra.mxu0 0.0
        %7541 = vmatprep.subr.mxu0 0.0
        %7542 = vmatpush1.xpose.msra.mxu0 0.0
        %7543 = vmatprep.subr.mxu0 0.0
        %7544 = vmatpush1.xpose.msra.mxu0 0.0
        %7545 = vmatprep.subr.mxu0 0.0
        %7546 = vmatpush1.xpose.msra.mxu0 0.0
        %7547 = vmatprep.subr.mxu0 0.0
        %7548 = vmatpush1.xpose.msra.mxu0 0.0
        %7549 = vmatprep.subr.mxu0 0.0
        %7550 = vmatpush1.xpose.msra.mxu0 0.0
        %7551 = vmatprep.subr.mxu0 0.0
        %7552 = vmatpush1.xpose.msra.mxu0 0.0
        %7553 = vmatprep.subr.mxu0 0.0
        %7554 = vmatpush1.xpose.msra.mxu0 0.0
        %7555 = vmatprep.subr.mxu0 0.0
        %7556 = vmatpush1.xpose.msra.mxu0 0.0
        %7557 = vmatprep.subr.mxu0 0.0
        %7558 = vmatpush1.xpose.msra.mxu0 0.0
        %7559 = vmatprep.subr.mxu0 0.0
        %7560 = vmatpush1.xpose.msra.mxu0 0.0
        %7561 = vmatprep.subr.mxu0 0.0
        %7562 = vmatpush1.xpose.msra.mxu0 0.0
        %7563 = vmatprep.subr.mxu0 0.0
        %7564 = vmatpush1.xpose.msra.mxu0 0.0
        %7565 = vmatprep.subr.mxu0 0.0
        %7566 = vmatpush1.xpose.msra.mxu0 0.0
        %7567 = vmatprep.subr.mxu0 0.0
        %7568 = vmatpush1.xpose.msra.mxu0 0.0
        %7569 = vmatprep.subr.mxu0 0.0
        %7570 = vmatpush1.xpose.msra.mxu0 0.0
        %7571 = vmatprep.subr.mxu0 0.0
        %7572 = vmatpush1.xpose.msra.mxu0 0.0
        %7573 = vmatprep.subr.mxu0 0.0
        %7574 = vmatpush1.xpose.msra.mxu0 0.0
        %7575 = vmatprep.subr.mxu0 0.0
        %7576 = vmatpush1.xpose.msra.mxu0 0.0
        %7577 = vmatprep.subr.mxu0 0.0
        %7578 = vmatpush1.xpose.msra.mxu0 0.0
        %7579 = vmatprep.subr.mxu0 0.0
        %7580 = vmatpush1.xpose.msra.mxu0 0.0
        %7581 = vmatprep.subr.mxu0 0.0
        %7582 = vmatpush1.xpose.msra.mxu0 0.0
        %7583 = vmatprep.subr.mxu0 0.0
        %7584 = vmatpush1.xpose.msra.mxu0 0.0
        %7585 = vmatprep.subr.mxu0 0.0
        %7586 = vmatpush1.xpose.msra.mxu0 0.0
        %7587 = vmatprep.subr.mxu0 0.0
        %7588 = vmatpush1.xpose.msra.mxu0 0.0
        %7589 = vmatprep.subr.mxu0 0.0
        %7590 = vmatpush1.xpose.msra.mxu0 0.0
        %7591 = vmatprep.subr.mxu0 0.0
        %7592 = vmatpush1.xpose.msra.mxu0 0.0
        %7593 = vmatprep.subr.mxu0 0.0
        %7594 = vmatpush1.xpose.msra.mxu0 0.0
        %7595 = vmatprep.mubr.f32.mxu0 0.0
        %7596 = vmatmul.mubr.f32.gmra.mrb[0].mxu0 %v6826
        %v7597 = vpop.f32.mrb[0].mxu0
        %v7598 = vadd.f32 0.0, %v7597
        %v7599 = vpop.f32.mrb[0].mxu0
        %7600 = vdwg.mxu0
        %v7602 = vsel %vm885, %v7023, 0
        %v7605 = vsel %vm885, %v7024, 0
        %v7608 = vsel %vm885, %v7025, 0
        %v7611 = vsel %vm885, %v7026, 0
        %7613 = vmatprep.subr.mxu0 0.0
        %7614 = vmatpush1.xpose.msra.mxu0 %v7602
        %7615 = vmatprep.subr.mxu0 0.0
        %7616 = vmatpush1.xpose.msra.mxu0 %v7605
        %7617 = vmatprep.subr.mxu0 0.0
        %7618 = vmatpush1.xpose.msra.mxu0 %v7608
        %7619 = vmatprep.subr.mxu0 0.0
        %7620 = vmatpush1.xpose.msra.mxu0 %v7611
        %7621 = vmatprep.subr.mxu0 0.0
        %7622 = vmatpush1.xpose.msra.mxu0 0.0
        %7623 = vmatprep.subr.mxu0 0.0
        %7624 = vmatpush1.xpose.msra.mxu0 0.0
        %7625 = vmatprep.subr.mxu0 0.0
        %7626 = vmatpush1.xpose.msra.mxu0 0.0
        %7627 = vmatprep.subr.mxu0 0.0
        %7628 = vmatpush1.xpose.msra.mxu0 0.0
        %7629 = vmatprep.subr.mxu0 0.0
        %7630 = vmatpush1.xpose.msra.mxu0 0.0
        %7631 = vmatprep.subr.mxu0 0.0
        %7632 = vmatpush1.xpose.msra.mxu0 0.0
        %7633 = vmatprep.subr.mxu0 0.0
        %7634 = vmatpush1.xpose.msra.mxu0 0.0
        %7635 = vmatprep.subr.mxu0 0.0
        %7636 = vmatpush1.xpose.msra.mxu0 0.0
        %7637 = vmatprep.subr.mxu0 0.0
        %7638 = vmatpush1.xpose.msra.mxu0 0.0
        %7639 = vmatprep.subr.mxu0 0.0
        %7640 = vmatpush1.xpose.msra.mxu0 0.0
        %7641 = vmatprep.subr.mxu0 0.0
        %7642 = vmatpush1.xpose.msra.mxu0 0.0
        %7643 = vmatprep.subr.mxu0 0.0
        %7644 = vmatpush1.xpose.msra.mxu0 0.0
        %7645 = vmatprep.subr.mxu0 0.0
        %7646 = vmatpush1.xpose.msra.mxu0 0.0
        %7647 = vmatprep.subr.mxu0 0.0
        %7648 = vmatpush1.xpose.msra.mxu0 0.0
        %7649 = vmatprep.subr.mxu0 0.0
        %7650 = vmatpush1.xpose.msra.mxu0 0.0
        %7651 = vmatprep.subr.mxu0 0.0
        %7652 = vmatpush1.xpose.msra.mxu0 0.0
        %7653 = vmatprep.subr.mxu0 0.0
        %7654 = vmatpush1.xpose.msra.mxu0 0.0
        %7655 = vmatprep.subr.mxu0 0.0
        %7656 = vmatpush1.xpose.msra.mxu0 0.0
        %7657 = vmatprep.subr.mxu0 0.0
        %7658 = vmatpush1.xpose.msra.mxu0 0.0
        %7659 = vmatprep.subr.mxu0 0.0
        %7660 = vmatpush1.xpose.msra.mxu0 0.0
        %7661 = vmatprep.subr.mxu0 0.0
        %7662 = vmatpush1.xpose.msra.mxu0 0.0
        %7663 = vmatprep.subr.mxu0 0.0
        %7664 = vmatpush1.xpose.msra.mxu0 0.0
        %7665 = vmatprep.subr.mxu0 0.0
        %7666 = vmatpush1.xpose.msra.mxu0 0.0
        %7667 = vmatprep.subr.mxu0 0.0
        %7668 = vmatpush1.xpose.msra.mxu0 0.0
        %7669 = vmatprep.subr.mxu0 0.0
        %7670 = vmatpush1.xpose.msra.mxu0 0.0
        %7671 = vmatprep.subr.mxu0 0.0
        %7672 = vmatpush1.xpose.msra.mxu0 0.0
        %7673 = vmatprep.subr.mxu0 0.0
        %7674 = vmatpush1.xpose.msra.mxu0 0.0
        %7675 = vmatprep.subr.mxu0 0.0
        %7676 = vmatpush1.xpose.msra.mxu0 0.0
        %7677 = vmatprep.mubr.f32.mxu0 0.0
        %7678 = vmatmul.mubr.f32.gmra.mrb[0].mxu0 %v6910
        %v7679 = vpop.f32.mrb[0].mxu0
        %v7680 = vadd.f32 0.0, %v7679
        %v7681 = vpop.f32.mrb[0].mxu0
        %7682 = vdwg.mxu0
        %v7691 = vrot.slane %v7106, 1
        %v7692 = vrot.slane %v7188, 1
        %v7693 = vrot.slane %v7270, 1
        %v7694 = vrot.slane %v7352, 1
        %v7695 = vrot.slane %v7434, 1
        %v7696 = vrot.slane %v7516, 1
        %v7697 = vrot.slane %v7598, 1
        %v7698 = vrot.slane %v7680, 1
        %v7707 = vsub.f32 %v6403, %v7691
        %v7708 = vsub.f32 %v6487, %v7692
        %v7709 = vsub.f32 %v6571, %v7693
        %v7710 = vsub.f32 %v6655, %v7694
        %v7711 = vsub.f32 %v6739, %v7695
        %v7712 = vsub.f32 %v6823, %v7696
        %v7713 = vsub.f32 %v6907, %v7697
        %v7714 = vsub.f32 %v6991, %v7698
        %v7723 = vrot.slane %v6403, 1
        %v7724 = vrot.slane %v6487, 1
        %v7725 = vrot.slane %v6571, 1
        %v7726 = vrot.slane %v6655, 1
        %v7727 = vrot.slane %v6739, 1
        %v7728 = vrot.slane %v6823, 1
        %v7729 = vrot.slane %v6907, 1
        %v7730 = vrot.slane %v6991, 1
        %v7739 = vadd.f32 %v7106, %v7723
        %v7740 = vadd.f32 %v7188, %v7724
        %v7741 = vadd.f32 %v7270, %v7725
        %v7742 = vadd.f32 %v7352, %v7726
        %v7743 = vadd.f32 %v7434, %v7727
        %v7744 = vadd.f32 %v7516, %v7728
        %v7745 = vadd.f32 %v7598, %v7729
        %v7746 = vadd.f32 %v7680, %v7730
        %v7755 = vrot.slane %v7708, 7
        %v7756 = vsel %vm2319, %v7755, %v7707
        %v7757 = vrot.slane %v7709, 6
        %v7758 = vsel %vm2322, %v7757, %v7756
        %v7759 = vrot.slane %v7710, 5
        %v7760 = vsel %vm2325, %v7759, %v7758
        %v7761 = vrot.slane %v7711, 4
        %v7762 = vsel %vm2328, %v7761, %v7760
        %v7763 = vrot.slane %v7712, 3
        %v7764 = vsel %vm2331, %v7763, %v7762
        %v7765 = vrot.slane %v7713, 2
        %v7766 = vsel %vm2334, %v7765, %v7764
        %v7767 = vrot.slane %v7714, 1
        %v7768 = vsel %vm2337, %v7767, %v7766
        %v7778 = vrot.slane %v7740, 7
        %v7779 = vsel %vm2319, %v7778, %v7739
        %v7780 = vrot.slane %v7741, 6
        %v7781 = vsel %vm2322, %v7780, %v7779
        %v7782 = vrot.slane %v7742, 5
        %v7783 = vsel %vm2325, %v7782, %v7781
        %v7784 = vrot.slane %v7743, 4
        %v7785 = vsel %vm2328, %v7784, %v7783
        %v7786 = vrot.slane %v7744, 3
        %v7787 = vsel %vm2331, %v7786, %v7785
        %v7788 = vrot.slane %v7745, 2
        %v7789 = vsel %vm2334, %v7788, %v7787
        %v7790 = vrot.slane %v7746, 1
        %v7791 = vsel %vm2337, %v7790, %v7789
        %s7793 = scalar_lea.vmem [#allocation14], 96
        %v7794 = vld [vmem:[%s7793] sm:$0xff]
        %v7795 = vld [vmem:[%s7793 + $0x8] sm:$0xff]
        %v7796 = vld [vmem:[%s7793 + $0x10] sm:$0xff]
        %v7797 = vld [vmem:[%s7793 + $0x18] sm:$0xff]
        %v7799 = vsel %vm885, %v6176, 0
        %v7802 = vsel %vm885, %v6177, 0
        %v7805 = vsel %vm885, %v7794, 0
        %v7808 = vsel %vm885, %v7795, 0
        %v7811 = vsel %vm885, %v7796, 0
        %v7814 = vsel %vm885, %v7797, 0
        %7816 = vmatprep.subr.mxu0 0.0
        %7817 = vmatpush1.xpose.msra.mxu0 %v7805
        %7818 = vmatprep.subr.mxu0 0.0
        %7819 = vmatpush1.xpose.msra.mxu0 %v7808
        %7820 = vmatprep.subr.mxu0 0.0
        %7821 = vmatpush1.xpose.msra.mxu0 %v7811
        %7822 = vmatprep.subr.mxu0 0.0
        %7823 = vmatpush1.xpose.msra.mxu0 %v7814
        %7824 = vmatprep.subr.mxu0 0.0
        %7825 = vmatpush1.xpose.msra.mxu0 0.0
        %7826 = vmatprep.subr.mxu0 0.0
        %7827 = vmatpush1.xpose.msra.mxu0 0.0
        %7828 = vmatprep.subr.mxu0 0.0
        %7829 = vmatpush1.xpose.msra.mxu0 0.0
        %7830 = vmatprep.subr.mxu0 0.0
        %7831 = vmatpush1.xpose.msra.mxu0 0.0
        %7832 = vmatprep.subr.mxu0 0.0
        %7833 = vmatpush1.xpose.msra.mxu0 0.0
        %7834 = vmatprep.subr.mxu0 0.0
        %7835 = vmatpush1.xpose.msra.mxu0 0.0
        %7836 = vmatprep.subr.mxu0 0.0
        %7837 = vmatpush1.xpose.msra.mxu0 0.0
        %7838 = vmatprep.subr.mxu0 0.0
        %7839 = vmatpush1.xpose.msra.mxu0 0.0
        %7840 = vmatprep.subr.mxu0 0.0
        %7841 = vmatpush1.xpose.msra.mxu0 0.0
        %7842 = vmatprep.subr.mxu0 0.0
        %7843 = vmatpush1.xpose.msra.mxu0 0.0
        %7844 = vmatprep.subr.mxu0 0.0
        %7845 = vmatpush1.xpose.msra.mxu0 0.0
        %7846 = vmatprep.subr.mxu0 0.0
        %7847 = vmatpush1.xpose.msra.mxu0 0.0
        %7848 = vmatprep.subr.mxu0 0.0
        %7849 = vmatpush1.xpose.msra.mxu0 0.0
        %7850 = vmatprep.subr.mxu0 0.0
        %7851 = vmatpush1.xpose.msra.mxu0 0.0
        %7852 = vmatprep.subr.mxu0 0.0
        %7853 = vmatpush1.xpose.msra.mxu0 0.0
        %7854 = vmatprep.subr.mxu0 0.0
        %7855 = vmatpush1.xpose.msra.mxu0 0.0
        %7856 = vmatprep.subr.mxu0 0.0
        %7857 = vmatpush1.xpose.msra.mxu0 0.0
        %7858 = vmatprep.subr.mxu0 0.0
        %7859 = vmatpush1.xpose.msra.mxu0 0.0
        %7860 = vmatprep.subr.mxu0 0.0
        %7861 = vmatpush1.xpose.msra.mxu0 0.0
        %7862 = vmatprep.subr.mxu0 0.0
        %7863 = vmatpush1.xpose.msra.mxu0 0.0
        %7864 = vmatprep.subr.mxu0 0.0
        %7865 = vmatpush1.xpose.msra.mxu0 0.0
        %7866 = vmatprep.subr.mxu0 0.0
        %7867 = vmatpush1.xpose.msra.mxu0 0.0
        %7868 = vmatprep.subr.mxu0 0.0
        %7869 = vmatpush1.xpose.msra.mxu0 0.0
        %7870 = vmatprep.subr.mxu0 0.0
        %7871 = vmatpush1.xpose.msra.mxu0 0.0
        %7872 = vmatprep.subr.mxu0 0.0
        %7873 = vmatpush1.xpose.msra.mxu0 0.0
        %7874 = vmatprep.subr.mxu0 0.0
        %7875 = vmatpush1.xpose.msra.mxu0 0.0
        %7876 = vmatprep.subr.mxu0 0.0
        %7877 = vmatpush1.xpose.msra.mxu0 0.0
        %7878 = vmatprep.subr.mxu0 0.0
        %7879 = vmatpush1.xpose.msra.mxu0 0.0
        %7880 = vmatprep.mubr.f32.mxu0 0.0
        %7881 = vmatmul.mubr.f32.gmra.mrb[0].mxu0 %v7799
        %v7882 = vpop.f32.mrb[0].mxu0
        %v7883 = vadd.f32 0.0, %v7882
        %v7884 = vpop.f32.mrb[0].mxu0
        %7885 = vmatprep.mubr.f32.mxu0 0.0
        %7886 = vmatmul.mubr.f32.gmra.mrb[0].mxu0 %v7802
        %v7887 = vpop.f32.mrb[0].mxu0
        %v7888 = vadd.f32 0.0, %v7887
        %v7889 = vpop.f32.mrb[0].mxu0
        %7890 = vdwg.mxu0
        %7891 = vmatprep.subr.mxu0 0.0
        %7892 = vmatpush1.msra.mxu0 %v7768
        %7893 = vmatprep.subr.mxu0 0.0
        %7894 = vmatpush1.msra.mxu0 %v7791
        %7895 = vmatprep.subr.mxu0 0.0
        %7896 = vmatpush1.msra.mxu0 0.0
        %7897 = vmatprep.subr.mxu0 0.0
        %7898 = vmatpush1.msra.mxu0 0.0
        %7899 = vmatprep.subr.mxu0 0.0
        %7900 = vmatpush1.msra.mxu0 0.0
        %7901 = vmatprep.subr.mxu0 0.0
        %7902 = vmatpush1.msra.mxu0 0.0
        %7903 = vmatprep.subr.mxu0 0.0
        %7904 = vmatpush1.msra.mxu0 0.0
        %7905 = vmatprep.subr.mxu0 0.0
        %7906 = vmatpush1.msra.mxu0 0.0
        %7907 = vmatprep.subr.mxu0 0.0
        %7908 = vmatpush1.msra.mxu0 0.0
        %7909 = vmatprep.subr.mxu0 0.0
        %7910 = vmatpush1.msra.mxu0 0.0
        %7911 = vmatprep.subr.mxu0 0.0
        %7912 = vmatpush1.msra.mxu0 0.0
        %7913 = vmatprep.subr.mxu0 0.0
        %7914 = vmatpush1.msra.mxu0 0.0
        %7915 = vmatprep.subr.mxu0 0.0
        %7916 = vmatpush1.msra.mxu0 0.0
        %7917 = vmatprep.subr.mxu0 0.0
        %7918 = vmatpush1.msra.mxu0 0.0
        %7919 = vmatprep.subr.mxu0 0.0
        %7920 = vmatpush1.msra.mxu0 0.0
        %7921 = vmatprep.subr.mxu0 0.0
        %7922 = vmatpush1.msra.mxu0 0.0
        %7923 = vmatprep.subr.mxu0 0.0
        %7924 = vmatpush1.msra.mxu0 0.0
        %7925 = vmatprep.subr.mxu0 0.0
        %7926 = vmatpush1.msra.mxu0 0.0
        %7927 = vmatprep.subr.mxu0 0.0
        %7928 = vmatpush1.msra.mxu0 0.0
        %7929 = vmatprep.subr.mxu0 0.0
        %7930 = vmatpush1.msra.mxu0 0.0
        %7931 = vmatprep.subr.mxu0 0.0
        %7932 = vmatpush1.msra.mxu0 0.0
        %7933 = vmatprep.subr.mxu0 0.0
        %7934 = vmatpush1.msra.mxu0 0.0
        %7935 = vmatprep.subr.mxu0 0.0
        %7936 = vmatpush1.msra.mxu0 0.0
        %7937 = vmatprep.subr.mxu0 0.0
        %7938 = vmatpush1.msra.mxu0 0.0
        %7939 = vmatprep.subr.mxu0 0.0
        %7940 = vmatpush1.msra.mxu0 0.0
        %7941 = vmatprep.subr.mxu0 0.0
        %7942 = vmatpush1.msra.mxu0 0.0
        %7943 = vmatprep.subr.mxu0 0.0
        %7944 = vmatpush1.msra.mxu0 0.0
        %7945 = vmatprep.subr.mxu0 0.0
        %7946 = vmatpush1.msra.mxu0 0.0
        %7947 = vmatprep.subr.mxu0 0.0
        %7948 = vmatpush1.msra.mxu0 0.0
        %7949 = vmatprep.subr.mxu0 0.0
        %7950 = vmatpush1.msra.mxu0 0.0
        %7951 = vmatprep.subr.mxu0 0.0
        %7952 = vmatpush1.msra.mxu0 0.0
        %7953 = vmatprep.subr.mxu0 0.0
        %7954 = vmatpush1.msra.mxu0 0.0
        %7955 = vmatprep.mubr.f32.mxu0 0.0
        %7956 = vmatmul.mubr.f32.gmra.mrb[0].mxu0 %v2463
        %v7957 = vpop.f32.mrb[0].mxu0
        %v7958 = vadd.f32 %v7883, %v7957
        %v7959 = vpop.f32.mrb[0].mxu0
        %7960 = vmatprep.mubr.f32.mxu0 0.0
        %7961 = vmatmul.mubr.f32.gmra.mrb[0].mxu0 %v2466
        %v7962 = vpop.f32.mrb[0].mxu0
        %v7963 = vadd.f32 %v7888, %v7962
        %v7964 = vpop.f32.mrb[0].mxu0
        %7965 = vdwg.mxu0
        %s7966 = scalar_lea.vmem [#allocation15], 3
        %v7967 = vld [vmem:[%s7966] sm:$0x1]
        %v7969 = vlaneseq
        %v7970 = vshrl.u32 %v7969, 7
        %v7971 = vsub.s32 0, %v7970
        %v7972 = vrot.slane %v7967, %v7971
        %v7974 = vadd.f32 %v7958, %v7972
        %v7975 = vadd.f32 %v7963, %v7972
        %v7976 = vld [vmem:[#allocation18] sm:$0xff]
        %v7977 = vld [vmem:[#allocation18 + $0x8] sm:$0xff]
        %v7978 = vld [vmem:[#allocation18 + $0x10] sm:$0xff]
        %v7979 = vld [vmem:[#allocation18 + $0x18] sm:$0xff]
        %v7980 = vld [vmem:[#allocation20] sm:$0x1]
        %v7982 = vlaneseq
        %v7983 = vshrl.u32 %v7982, 7
        %v7984 = vsub.s32 0, %v7983
        %v7985 = vrot.slane %v7980, %v7984
        %v7988 = vsel %vm885, %v7974, 0
        %v7991 = vsel %vm885, %v7975, 0
        %7993 = vmatprep.subr.mxu0 0.0
        %7994 = vmatpush1.msra.mxu0 %v7976
        %7995 = vmatprep.subr.mxu0 0.0
        %7996 = vmatpush1.msra.mxu0 %v7977
        %7997 = vmatprep.subr.mxu0 0.0
        %7998 = vmatpush1.msra.mxu0 %v7978
        %7999 = vmatprep.subr.mxu0 0.0
        %8000 = vmatpush1.msra.mxu0 %v7979
        %8001 = vmatprep.subr.mxu0 0.0
        %8002 = vmatpush1.msra.mxu0 0.0
        %8003 = vmatprep.subr.mxu0 0.0
        %8004 = vmatpush1.msra.mxu0 0.0
        %8005 = vmatprep.subr.mxu0 0.0
        %8006 = vmatpush1.msra.mxu0 0.0
        %8007 = vmatprep.subr.mxu0 0.0
        %8008 = vmatpush1.msra.mxu0 0.0
        %8009 = vmatprep.subr.mxu0 0.0
        %8010 = vmatpush1.msra.mxu0 0.0
        %8011 = vmatprep.subr.mxu0 0.0
        %8012 = vmatpush1.msra.mxu0 0.0
        %8013 = vmatprep.subr.mxu0 0.0
        %8014 = vmatpush1.msra.mxu0 0.0
        %8015 = vmatprep.subr.mxu0 0.0
        %8016 = vmatpush1.msra.mxu0 0.0
        %8017 = vmatprep.subr.mxu0 0.0
        %8018 = vmatpush1.msra.mxu0 0.0
        %8019 = vmatprep.subr.mxu0 0.0
        %8020 = vmatpush1.msra.mxu0 0.0
        %8021 = vmatprep.subr.mxu0 0.0
        %8022 = vmatpush1.msra.mxu0 0.0
        %8023 = vmatprep.subr.mxu0 0.0
        %8024 = vmatpush1.msra.mxu0 0.0
        %8025 = vmatprep.subr.mxu0 0.0
        %8026 = vmatpush1.msra.mxu0 0.0
        %8027 = vmatprep.subr.mxu0 0.0
        %8028 = vmatpush1.msra.mxu0 0.0
        %8029 = vmatprep.subr.mxu0 0.0
        %8030 = vmatpush1.msra.mxu0 0.0
        %8031 = vmatprep.subr.mxu0 0.0
        %8032 = vmatpush1.msra.mxu0 0.0
        %8033 = vmatprep.subr.mxu0 0.0
        %8034 = vmatpush1.msra.mxu0 0.0
        %8035 = vmatprep.subr.mxu0 0.0
        %8036 = vmatpush1.msra.mxu0 0.0
        %8037 = vmatprep.subr.mxu0 0.0
        %8038 = vmatpush1.msra.mxu0 0.0
        %8039 = vmatprep.subr.mxu0 0.0
        %8040 = vmatpush1.msra.mxu0 0.0
        %8041 = vmatprep.subr.mxu0 0.0
        %8042 = vmatpush1.msra.mxu0 0.0
        %8043 = vmatprep.subr.mxu0 0.0
        %8044 = vmatpush1.msra.mxu0 0.0
        %8045 = vmatprep.subr.mxu0 0.0
        %8046 = vmatpush1.msra.mxu0 0.0
        %8047 = vmatprep.subr.mxu0 0.0
        %8048 = vmatpush1.msra.mxu0 0.0
        %8049 = vmatprep.subr.mxu0 0.0
        %8050 = vmatpush1.msra.mxu0 0.0
        %8051 = vmatprep.subr.mxu0 0.0
        %8052 = vmatpush1.msra.mxu0 0.0
        %8053 = vmatprep.subr.mxu0 0.0
        %8054 = vmatpush1.msra.mxu0 0.0
        %8055 = vmatprep.subr.mxu0 0.0
        %8056 = vmatpush1.msra.mxu0 0.0
        %8057 = vmatprep.mubr.f32.mxu0 0.0
        %8058 = vmatmul.mubr.f32.gmra.mrb[0].mxu0 %v7988
        %v8059 = vpop.f32.mrb[0].mxu0
        %v8060 = vadd.f32 %v7985, %v8059
        %v8061 = vpop.f32.mrb[0].mxu0
        %8062 = vmatprep.mubr.f32.mxu0 0.0
        %8063 = vmatmul.mubr.f32.gmra.mrb[0].mxu0 %v7991
        %v8064 = vpop.f32.mrb[0].mxu0
        %v8065 = vadd.f32 %v7985, %v8064
        %v8066 = vpop.f32.mrb[0].mxu0
        %8067 = vdwg.mxu0
        %v8068 = vmul.f32 %v8060, 0.5
        %v8069 = vmul.f32 %v8065, 0.5
        %v8070 = vmul.f32 %v8060, 0.70710677
        %v8071 = vmul.f32 %v8065, 0.70710677
        %v8072 = verf.f32.pop %v8070
        %v8073 = verf.f32.pop %v8071
        %v8074 = vadd.f32 %v8072, 1.0
        %v8075 = vadd.f32 %v8073, 1.0
        %v8076 = vmul.f32 %v8068, %v8074
        %v8077 = vmul.f32 %v8069, %v8075
        %v8078 = vld [vmem:[#allocation21] sm:$0x1]
        %v8079 = vld [vmem:[#allocation2] sm:$0x1]
        %8081 = vset.pattern.permute.xlu0 0
        %8082 = vperm.xlu0 %8081, %v8079
        %v8083 = vpop.permute.xlu0 %8082
        %v8085 = vlaneseq
        %v8086 = vshrl.u32 %v8085, 7
        %v8087 = vsub.s32 0, %v8086
        %v8088 = vrot.slane %v8083, %v8087
        %8089 = vmatprep.subr.mxu0 0.0
        %8090 = vmatpush1.xpose.msra.mxu0 %v8076
        %8091 = vmatprep.subr.mxu0 0.0
        %8092 = vmatpush1.xpose.msra.mxu0 %v8077
        %8093 = vmatprep.subr.mxu0 0.0
        %8094 = vmatpush1.xpose.msra.mxu0 0.0
        %8095 = vmatprep.subr.mxu0 0.0
        %8096 = vmatpush1.xpose.msra.mxu0 0.0
        %8097 = vmatprep.subr.mxu0 0.0
        %8098 = vmatpush1.xpose.msra.mxu0 0.0
        %8099 = vmatprep.subr.mxu0 0.0
        %8100 = vmatpush1.xpose.msra.mxu0 0.0
        %8101 = vmatprep.subr.mxu0 0.0
        %8102 = vmatpush1.xpose.msra.mxu0 0.0
        %8103 = vmatprep.subr.mxu0 0.0
        %8104 = vmatpush1.xpose.msra.mxu0 0.0
        %8105 = vmatprep.subr.mxu0 0.0
        %8106 = vmatpush1.xpose.msra.mxu0 0.0
        %8107 = vmatprep.subr.mxu0 0.0
        %8108 = vmatpush1.xpose.msra.mxu0 0.0
        %8109 = vmatprep.subr.mxu0 0.0
        %8110 = vmatpush1.xpose.msra.mxu0 0.0
        %8111 = vmatprep.subr.mxu0 0.0
        %8112 = vmatpush1.xpose.msra.mxu0 0.0
        %8113 = vmatprep.subr.mxu0 0.0
        %8114 = vmatpush1.xpose.msra.mxu0 0.0
        %8115 = vmatprep.subr.mxu0 0.0
        %8116 = vmatpush1.xpose.msra.mxu0 0.0
        %8117 = vmatprep.subr.mxu0 0.0
        %8118 = vmatpush1.xpose.msra.mxu0 0.0
        %8119 = vmatprep.subr.mxu0 0.0
        %8120 = vmatpush1.xpose.msra.mxu0 0.0
        %8121 = vmatprep.subr.mxu0 0.0
        %8122 = vmatpush1.xpose.msra.mxu0 0.0
        %8123 = vmatprep.subr.mxu0 0.0
        %8124 = vmatpush1.xpose.msra.mxu0 0.0
        %8125 = vmatprep.subr.mxu0 0.0
        %8126 = vmatpush1.xpose.msra.mxu0 0.0
        %8127 = vmatprep.subr.mxu0 0.0
        %8128 = vmatpush1.xpose.msra.mxu0 0.0
        %8129 = vmatprep.subr.mxu0 0.0
        %8130 = vmatpush1.xpose.msra.mxu0 0.0
        %8131 = vmatprep.subr.mxu0 0.0
        %8132 = vmatpush1.xpose.msra.mxu0 0.0
        %8133 = vmatprep.subr.mxu0 0.0
        %8134 = vmatpush1.xpose.msra.mxu0 0.0
        %8135 = vmatprep.subr.mxu0 0.0
        %8136 = vmatpush1.xpose.msra.mxu0 0.0
        %8137 = vmatprep.subr.mxu0 0.0
        %8138 = vmatpush1.xpose.msra.mxu0 0.0
        %8139 = vmatprep.subr.mxu0 0.0
        %8140 = vmatpush1.xpose.msra.mxu0 0.0
        %8141 = vmatprep.subr.mxu0 0.0
        %8142 = vmatpush1.xpose.msra.mxu0 0.0
        %8143 = vmatprep.subr.mxu0 0.0
        %8144 = vmatpush1.xpose.msra.mxu0 0.0
        %8145 = vmatprep.subr.mxu0 0.0
        %8146 = vmatpush1.xpose.msra.mxu0 0.0
        %8147 = vmatprep.subr.mxu0 0.0
        %8148 = vmatpush1.xpose.msra.mxu0 0.0
        %8149 = vmatprep.subr.mxu0 0.0
        %8150 = vmatpush1.xpose.msra.mxu0 0.0
        %8151 = vmatprep.subr.mxu0 0.0
        %8152 = vmatpush1.xpose.msra.mxu0 0.0
        %8153 = vmatprep.mubr.f32.mxu0 0.0
        %8154 = vmatmul.mubr.f32.gmra.mrb[0].mxu0 %v8078
        %v8155 = vpop.f32.mrb[0].mxu0
        %v8156 = vadd.f32 %v8088, %v8155
        %v8157 = vpop.f32.mrb[0].mxu0
        %8158 = vdwg.mxu0
        %vm8159 = vcmask 122880
        %8160 = vst.msk [vmem:[%s610] sm:$0x1] %vm8159, %v8156
        %s8161 = sand.u32 %s324, 1
        %s8162 = scalar_lea.sflag [#allocation5], %s8161
        %s8163 = sand.u32 %s324, 1
        %s8164 = scalar_lea.vmem [#allocation23], %s8163
        // Predicated region
        $region121: #{tpu_custom_call.1} parent=71 // pred_check
          %p8165 = pneg %p334
        $region122: #{tpu_custom_call.1} parent=71 // pred_check_branch
          %8167 = sbr.rel (%p8165) target = $region124
        $region123: #{tpu_custom_call.1} parent=71 // pred_region
          %s8169 = ssub.s32 16, 16
          %8170 = vsyncadd %s8162, %s8169
          %s8171 = smul.addr %s38, 16
          %s8172 = scalar_lea.hbm %s13, %s8171
          %s8174 = sshll.u32 %s8164, 4
          %s8175 = int_to_ptr.vmem [resolvable:$true] %s8174
          %8177 = dma.vmem_to_hbm [thread:$0]  %s8175, 16, %s8172, %s8162
        $region124: #{tpu_custom_call.1} parent=71 // pred_fallthru
          _
      $region72: #{tpu_custom_call.1} parent=5 // pred_fallthru
        _
      %p8178 = scmp.le.s32.totalorder 2, %s33
      // Predicated region
      $region125: #{tpu_custom_call.1} parent=5 // pred_check
        %p8179 = pneg %p8178
      $region126: #{tpu_custom_call.1} parent=5 // pred_check_branch
        %8181 = sbr.rel (%p8179) target = $region128
      $region127: #{tpu_custom_call.1} parent=5 // pred_region
        %s8182 = ssub.s32 %s33, 2
        // Predicated region
        $region129: #{tpu_custom_call.1} parent=127 // pred_check
          %p8183 = pneg %p340
        $region130: #{tpu_custom_call.1} parent=127 // pred_check_branch
          %8185 = sbr.rel (%p8183) target = $region132
        $region131: #{tpu_custom_call.1} parent=127 // pred_region
          %s8186 = sand.u32 %s325, 1
          %s8187 = scalar_lea.sflag [#allocation5], %s8186
          %s8188 = sand.u32 %s325, 1
          %s8189 = scalar_lea.vmem [#allocation23], %s8188
          %8190 = dma.done %s8187, 16
        $region132: #{tpu_custom_call.1} parent=127 // pred_fallthru
          _
      $region128: #{tpu_custom_call.1} parent=5 // pred_fallthru
        _
    $region6: #{tpu_custom_call.1} parent=1 // loop_footer
      %s37 = sadd.s32 1, %s33
    $region7: #{tpu_custom_call.1} parent=1 // loop_footer_branch
      %32 = sbr.rel target = $region3
    $region8: #{tpu_custom_call.1} parent=1 // loop_exit
      _
    %8191 = vsyncpa [#allocation4], 1
    %s8192 = scalar_lea.sflag [#allocation4], 1
    %8193 = vsyncpa %s8192, 1
    %8194 = vsyncpa [#allocation7], 1
    %8195 = vsyncpa [#allocation10], 1
    %8196 = vsyncpa [#allocation13], 1
    %8197 = vsyncpa [#allocation16], 1
    %8198 = vsyncpa [#allocation19], 1
    %8199 = vsyncpa [#allocation22], 1
    %8200 = vsyncpa [#allocation5], 1
    %s8201 = scalar_lea.sflag [#allocation5], 1
    %8202 = vsyncpa %s8201, 1

</llo_original>
